<compile_context>
chip_gen: v7x
topology: tpu7x:2x2x1
jax: 0.10.0
libtpu: 0.0.40
codegen_flags: <defaults>
</compile_context>

<pallas_src>
import numpy as np

import jax
import jax.numpy as jnp
from jax.experimental import pallas as pl
from jax.experimental.pallas import tpu as pltpu

# ----------------------------------------------------------------------------
# Scaled-down AlexNet_Complex configuration (same structure / kernel sizes /
# strides / paddings as the PyTorch module; channel counts shrunk for the toy).
# Conv spec: (c_in, c_out, kernel, stride, padding, fused_modrelu)
# ----------------------------------------------------------------------------
IN_CHANNEL = 1
SEQ_LEN = 61
HIDDEN = 32
CLASSES = 2
THRESHOLD = 0.5           # CplxModReLU threshold
N_OUT_PAD = 128           # lane padding of the final logits (per real/imag half)

CONV_SPECS = [
    (IN_CHANNEL, 8, 11, 4, 1, True),   # CplxConv1d + CplxModReLU
    (8, 8, 3, 2, 0, False),            # CplxConv1d
    (8, 16, 5, 1, 2, True),            # CplxConv1d + CplxModReLU
    (16, 16, 3, 2, 0, False),          # CplxConv1d
    (16, 24, 3, 1, 1, True),           # CplxConv1d + CplxModReLU
    (24, 24, 3, 1, 1, True),           # CplxConv1d + CplxModReLU
    (24, 16, 3, 1, 1, True),           # CplxConv1d + CplxModReLU
]


def _conv_out_len(L, k, s, p):
    return (L + 2 * p - k) // s + 1


def _conv_lengths(L0):
    Ls = [L0]
    for (_, _, k, s, p, _) in CONV_SPECS:
        Ls.append(_conv_out_len(Ls[-1], k, s, p))
    return Ls


CONV_LENS = _conv_lengths(SEQ_LEN)
LAST_C = CONV_SPECS[-1][1]
LAST_L = CONV_LENS[-1]
FLATTEN_DIM = LAST_C * LAST_L

LINEAR_SPECS = [
    (FLATTEN_DIM, HIDDEN, True),       # CplxLinear + CplxModReLU
    (HIDDEN, HIDDEN, True),            # CplxLinear + CplxModReLU
    (HIDDEN, CLASSES, False),          # CplxLinear
]

# Kernel-side conv specs: the first conv is consumed as pre-im2col'd patches
# (its stride-4 / padding is folded into a wrapper-side gather), i.e. it
# becomes a k=1 / s=1 / p=0 conv with ci = in_channel * kernel_size.
_C0_IN, _C0_OUT, _C0_K, _C0_S, _C0_P, _C0_RELU = CONV_SPECS[0]
KCONV_SPECS = [(_C0_IN * _C0_K, _C0_OUT, 1, 1, 0, _C0_RELU)] + CONV_SPECS[1:]
KCONV_LENS = [(CONV_LENS[1], CONV_LENS[1])] + [
    (CONV_LENS[i], CONV_LENS[i + 1]) for i in range(1, len(CONV_SPECS))]


# ----------------------------------------------------------------------------
# Parameters (PyTorch-like layout) + one-time packing into kernel-ready layout.
# ----------------------------------------------------------------------------
def init_params(key):
    """Raw params: Conv1d (C_out, C_in, k), Linear (F_out, F_in), biases (C_out,)."""
    params = {"conv": [], "linear": []}
    for i, (ci, co, k, _, _, _) in enumerate(CONV_SPECS):
        kk = jax.random.fold_in(key, i)
        k1, k2, k3, k4 = jax.random.split(kk, 4)
        scale = 1.0 / jnp.sqrt(ci * k)
        params["conv"].append(dict(
            wr=jax.random.normal(k1, (co, ci, k), jnp.float32) * scale,
            wi=jax.random.normal(k2, (co, ci, k), jnp.float32) * scale,
            br=jax.random.normal(k3, (co,), jnp.float32) * 0.01,
            bi=jax.random.normal(k4, (co,), jnp.float32) * 0.01,
        ))
    for i, (fi, fo, _) in enumerate(LINEAR_SPECS):
        kk = jax.random.fold_in(key, 100 + i)
        k1, k2, k3, k4 = jax.random.split(kk, 4)
        scale = 1.0 / jnp.sqrt(fi)
        params["linear"].append(dict(
            wr=jax.random.normal(k1, (fo, fi), jnp.float32) * scale,
            wi=jax.random.normal(k2, (fo, fi), jnp.float32) * scale,
            br=jax.random.normal(k3, (fo,), jnp.float32) * 0.01,
            bi=jax.random.normal(k4, (fo,), jnp.float32) * 0.01,
        ))
    return params


def pack_params(params):
    """Pre-transpose / pre-split / bf16-cast every weight once (outside the jit)."""
    packed = {"conv": [], "linear": []}

    for i, (spec, p) in enumerate(zip(CONV_SPECS, params["conv"])):
        ci, co, k, _, _, _ = spec
        wr = jnp.transpose(p["wr"], (2, 1, 0))        # (k, ci, co): tap-major
        wi = jnp.transpose(p["wi"], (2, 1, 0))
        if i == 0:
            # First conv eats pre-im2col'd patches: fold (tap, channel) into one
            # contraction axis with lane ordering t*ci + c (matches wrapper).
            wr = wr.reshape(1, k * ci, co)
            wi = wi.reshape(1, k * ci, co)
        layer = dict(
            wr=wr.astype(jnp.bfloat16),
            wi=wi.astype(jnp.bfloat16),
            br=p["br"].reshape(1, co).astype(jnp.float32),
            bi=p["bi"].reshape(1, co).astype(jnp.float32),
        )
        kci, kco, kk, ks, kp_, _ = KCONV_SPECS[i]
        if ks > 1:
            # Tiny constant per-tap row selection (independent of batch size),
            # applied BEFORE the conv matmul: no wasted stride-1 positions and
            # no O((B*L)^2) buffer.
            L_in, L_out = KCONV_LENS[i]
            sel = np.zeros((kk, L_out, L_in), np.float32)
            for t in range(kk):
                for j in range(L_out):
                    sel[t, j, j * ks + t] = 1.0
            layer["sel"] = jnp.asarray(sel, jnp.bfloat16)
        packed["conv"].append(layer)

    for i, (spec, p) in enumerate(zip(LINEAR_SPECS, params["linear"])):
        _, fo, _ = spec
        wr = p["wr"].T
        wi = p["wi"].T
        br = p["br"]
        bi = p["bi"]
        if i == 0:
            # PyTorch Flatten(start_dim=-2) is (C, L)-ordered; the kernel
            # contracts per position l with an activation row of shape (C,),
            # so pre-split the weight into (L, C, H) with matching rows.
            wr = wr.reshape(LAST_C, LAST_L, fo).transpose(1, 0, 2)
            wi = wi.reshape(LAST_C, LAST_L, fo).transpose(1, 0, 2)
        if i == len(LINEAR_SPECS) - 1:
            # lane-pad the logits (zero columns + zero bias) -> lane-dense store
            wr = jnp.pad(wr, ((0, 0), (0, N_OUT_PAD - fo)))
            wi = jnp.pad(wi, ((0, 0), (0, N_OUT_PAD - fo)))
            br = jnp.pad(br, (0, N_OUT_PAD - fo))
            bi = jnp.pad(bi, (0, N_OUT_PAD - fo))
        packed["linear"].append(dict(
            wr=wr.astype(jnp.bfloat16),
            wi=wi.astype(jnp.bfloat16),
            br=br.reshape(1, -1).astype(jnp.float32),
            bi=bi.reshape(1, -1).astype(jnp.float32)))
    return packed


# ----------------------------------------------------------------------------
# The fused whole-network Pallas kernel (one grid step = one batch element).
# ----------------------------------------------------------------------------
def _modrelu(yr, yi):
    # z * relu(1 - threshold / max(|z|, 1e-5)) using one rsqrt (clamp on |z|^2).
    inv_mod = jax.lax.rsqrt(jnp.maximum(yr * yr + yi * yi, 1e-10))
    scale = jnp.maximum(1.0 - THRESHOLD * inv_mod, 0.0)
    return yr * scale, yi * scale


def _cdot(ar, ai, wr, wi):
    """Complex product via 4 real bf16 MXU matmuls with f32 accumulation."""
    f32 = jnp.float32
    rr = jnp.dot(ar, wr, preferred_element_type=f32)
    ii = jnp.dot(ai, wi, preferred_element_type=f32)
    ri = jnp.dot(ar, wi, preferred_element_type=f32)
    ir = jnp.dot(ai, wr, preferred_element_type=f32)
    return rr - ii, ri + ir


def _make_fused_kernel(kconv_specs, kconv_lens):
    def kernel(*refs):
        it = iter(refs)
        pr_ref = next(it)
        pi_ref = next(it)
        conv_refs = []
        for (_, _, _, s, _, _) in kconv_specs:
            wr = next(it); wi = next(it); br = next(it); bi = next(it)
            sel = next(it) if s > 1 else None
            conv_refs.append((wr, wi, br, bi, sel))
        lin_refs = [(next(it), next(it), next(it), next(it)) for _ in LINEAR_SPECS]
        o_r_ref = next(it)
        o_i_ref = next(it)

        # This grid step's batch element, (L, C) bf16.
        xr = pr_ref[0]
        xi = pi_ref[0]

        # -------- conv stack: per-tap MXU accumulation, separate real/imag ----
        for spec, (L_in, L_out), (wr_ref, wi_ref, br_ref, bi_ref, sel_ref) in zip(
                kconv_specs, kconv_lens, conv_refs):
            ci, co, k, s, p, relu = spec
            if p > 0:
                z = jnp.zeros((p, ci), xr.dtype)
                xr = jnp.concatenate([z, xr, z], axis=0)
                xi = jnp.concatenate([z, xi, z], axis=0)

            accr = jnp.zeros((L_out, co), jnp.float32)
            acci = jnp.zeros((L_out, co), jnp.float32)
            for t in range(k):
                if s == 1:
                    ar = xr[t:t + L_out, :]
                    ai = xi[t:t + L_out, :]
                else:
                    # constant 0/1 row selection picks the L_out strided rows
                    # for this tap (MXU has slack; avoids strided relayouts).
                    st = sel_ref[t]
                    ar = jnp.dot(st, xr,
                                 preferred_element_type=jnp.float32
                                 ).astype(jnp.bfloat16)
                    ai = jnp.dot(st, xi,
                                 preferred_element_type=jnp.float32
                                 ).astype(jnp.bfloat16)
                dr, di = _cdot(ar, ai, wr_ref[t], wi_ref[t])
                accr += dr
                acci += di

            yr = accr + br_ref[...]
            yi = acci + bi_ref[...]
            if relu:
                yr, yi = _modrelu(yr, yi)
            xr = yr.astype(jnp.bfloat16)
            xi = yi.astype(jnp.bfloat16)

        # -------- Flatten folded into linear 0: per-position contraction ------
        w0r_ref, w0i_ref, b0r_ref, b0i_ref = lin_refs[0]
        hr = jnp.zeros((1, HIDDEN), jnp.float32)
        hi = jnp.zeros((1, HIDDEN), jnp.float32)
        for l in range(LAST_L):
            dr, di = _cdot(xr[l:l + 1, :], xi[l:l + 1, :], w0r_ref[l], w0i_ref[l])
            hr += dr
            hi += di
        hr += b0r_ref[...]
        hi += b0i_ref[...]
        hr, hi = _modrelu(hr, hi)
        fr = hr.astype(jnp.bfloat16)
        fi = hi.astype(jnp.bfloat16)

        # TODO(synk): CplxDropout(p=0.5) treated as identity (inference/eval mode).
        yr = yi = None
        for li in range(1, len(LINEAR_SPECS)):
            wr_ref, wi_ref, br_ref, bi_ref = lin_refs[li]
            dr, di = _cdot(fr, fi, wr_ref[...], wi_ref[...])
            yr = dr + br_ref[...]
            yi = di + bi_ref[...]
            if LINEAR_SPECS[li][2]:
                yr, yi = _modrelu(yr, yi)
            fr = yr.astype(jnp.bfloat16)
            fi = yi.astype(jnp.bfloat16)

        o_r_ref[0] = yr                      # (1, N_OUT_PAD) lane-dense f32 store
        o_i_ref[0] = yi

    return kernel


# ----------------------------------------------------------------------------
# Wrapper: single pallas_call for the whole network, grid over batch.
# ----------------------------------------------------------------------------
def _im2col_first_conv(x):
    """(B, C_in, L) -> (B, L_out, k*C_in) bf16 patches for the stride-4 first conv."""
    ci, _, k, s, p, _ = CONV_SPECS[0]
    L_out = CONV_LENS[1]
    x_nlc = jnp.transpose(x, (0, 2, 1))                     # (B, L, ci)
    x_pad = jnp.pad(x_nlc, ((0, 0), (p, p), (0, 0)))
    idx = s * np.arange(L_out)[:, None] + np.arange(k)[None, :]   # (L_out, k)
    patches = x_pad[:, idx, :]                              # (B, L_out, k, ci)
    return patches.reshape(x.shape[0], L_out, k * ci).astype(jnp.bfloat16)


def _flops_estimate(B):
    flops = 0
    trans = 0
    for (ci, co, k, s, _, relu), (L_in, L_out) in zip(KCONV_SPECS, KCONV_LENS):
        flops += B * k * 4 * 2 * L_out * ci * co          # 4 real matmuls per tap
        if s > 1:
            flops += B * k * 2 * 2 * L_out * L_in * ci    # row-selection matmuls
        if relu:
            trans += B * L_out * co
    flops += B * LAST_L * 4 * 2 * LAST_C * HIDDEN
    trans += B * HIDDEN
    flops += B * 4 * 2 * HIDDEN * HIDDEN
    trans += B * HIDDEN
    flops += B * 4 * 2 * HIDDEN * N_OUT_PAD
    return flops, trans


def alexnet_complex_forward(packed, x_real, x_imag):
    """x_*: (B, C_in, L) in PyTorch NCL layout. Returns (real, imag) (B, CLASSES)."""
    B = x_real.shape[0]

    # First conv's stride-4 im2col + padding done once in the wrapper (plain XLA).
    pr = _im2col_first_conv(x_real)
    pi = _im2col_first_conv(x_imag)

    args = [pr, pi]
    in_specs = [
        pl.BlockSpec((1,) + tuple(pr.shape[1:]), lambda b: (b, 0, 0)),
        pl.BlockSpec((1,) + tuple(pi.shape[1:]), lambda b: (b, 0, 0)),
    ]

    def resident(arr):
        # Whole-array VMEM-resident operand: constant block index across the
        # batch grid, so Pallas keeps it resident instead of re-DMAing.
        args.append(arr)
        in_specs.append(
            pl.BlockSpec(tuple(arr.shape), lambda b, _n=arr.ndim: (0,) * _n))

    for spec, layer in zip(KCONV_SPECS, packed["conv"]):
        resident(layer["wr"])
        resident(layer["wi"])
        resident(layer["br"])
        resident(layer["bi"])
        if spec[3] > 1:
            resident(layer["sel"])
    for layer in packed["linear"]:
        resident(layer["wr"])
        resident(layer["wi"])
        resident(layer["br"])
        resident(layer["bi"])

    out_shape = (jax.ShapeDtypeStruct((B, 1, N_OUT_PAD), jnp.float32),
                 jax.ShapeDtypeStruct((B, 1, N_OUT_PAD), jnp.float32))
    out_specs = (pl.BlockSpec((1, 1, N_OUT_PAD), lambda b: (b, 0, 0)),
                 pl.BlockSpec((1, 1, N_OUT_PAD), lambda b: (b, 0, 0)))

    flops, trans = _flops_estimate(B)
    bytes_acc = sum(int(np.prod(a.shape)) * a.dtype.itemsize for a in args)
    bytes_acc += 2 * B * N_OUT_PAD * 4

    out_r, out_i = pl.pallas_call(
        _make_fused_kernel(KCONV_SPECS, KCONV_LENS),
        grid=(B,),
        out_shape=out_shape,
        in_specs=in_specs,
        out_specs=out_specs,
        compiler_params=pltpu.CompilerParams(
            dimension_semantics=("parallel",)),
        cost_estimate=pl.CostEstimate(
            flops=int(flops),
            transcendentals=int(trans),
            bytes_accessed=int(bytes_acc)),
    )(*args)

    return out_r[:, 0, :CLASSES], out_i[:, 0, :CLASSES]


# ----------------------------------------------------------------------------
# Pure-JAX reference (original 4-real-ops f32 formulation) for a tolerance check.
# ----------------------------------------------------------------------------
def _modrelu_ref(yr, yi):
    mod = jnp.maximum(jnp.sqrt(yr * yr + yi * yi), 1e-5)
    scale = jnp.maximum(1.0 - THRESHOLD / mod, 0.0)
    return yr * scale, yi * scale


def reference_forward(params, xr, xi):
    for spec, p in zip(CONV_SPECS, params["conv"]):
        _, _, _, s, pad, relu = spec

        def conv(x, w, s=s, pad=pad):
            return jax.lax.conv_general_dilated(
                x, w, window_strides=(s,), padding=[(pad, pad)],
                dimension_numbers=("NCH", "OIH", "NCH"))

        yr = conv(xr, p["wr"]) - conv(xi, p["wi"]) + p["br"][None, :, None]
        yi = conv(xr, p["wi"]) + conv(xi, p["wr"]) + p["bi"][None, :, None]
        if relu:
            yr, yi = _modrelu_ref(yr, yi)
        xr, xi = yr, yi
    B = xr.shape[0]
    fr, fi = xr.reshape(B, -1), xi.reshape(B, -1)
    for spec, p in zip(LINEAR_SPECS, params["linear"]):
        _, _, relu = spec
        yr = fr @ p["wr"].T - fi @ p["wi"].T + p["br"]
        yi = fr @ p["wi"].T + fi @ p["wr"].T + p["bi"]
        if relu:
            yr, yi = _modrelu_ref(yr, yi)
        fr, fi = yr, yi
    return fr, fi


if __name__ == "__main__":
    key = jax.random.PRNGKey(0)
    kx1, kx2, kp = jax.random.split(key, 3)
    B = 2
    x_real = jax.random.normal(kx1, (B, IN_CHANNEL, SEQ_LEN), jnp.float32)
    x_imag = jax.random.normal(kx2, (B, IN_CHANNEL, SEQ_LEN), jnp.float32)

    params = init_params(kp)
    packed = pack_params(params)   # one-time weight pre-split / transpose / bf16 cast

    fwd = jax.jit(alexnet_complex_forward)
    out_r, out_i = fwd(packed, x_real, x_imag)
    jax.block_until_ready((out_r, out_i))

    assert out_r.shape == (B, CLASSES) and out_i.shape == (B, CLASSES)
    assert bool(jnp.all(jnp.isfinite(out_r))) and bool(jnp.all(jnp.isfinite(out_i)))

    # Verify against the plain f32 4-real-ops reference.  Tolerance is
    # deliberately loose (5e-2) because the kernel uses bf16 MXU matmul inputs
    # (f32 accumulation); with f32 matmul inputs this matches to ~1e-5.
    ref_r, ref_i = jax.jit(reference_forward)(params, x_real, x_imag)
    np.testing.assert_allclose(np.asarray(out_r), np.asarray(ref_r), rtol=5e-2, atol=5e-2)
    np.testing.assert_allclose(np.asarray(out_i), np.asarray(ref_i), rtol=5e-2, atol=5e-2)

    print("KERNEL_OK")
</pallas_src>

<mosaic_0001>
module attributes {stable_mosaic.version = 11 : i64} {
  func.func @kernel(%arg0: i32, %arg1: memref<1x14x11xbf16, #tpu.memory_space<vmem>>, %arg2: memref<1x14x11xbf16, #tpu.memory_space<vmem>>, %arg3: memref<1x11x8xbf16, #tpu.memory_space<vmem>>, %arg4: memref<1x11x8xbf16, #tpu.memory_space<vmem>>, %arg5: memref<1x8xf32, #tpu.memory_space<vmem>>, %arg6: memref<1x8xf32, #tpu.memory_space<vmem>>, %arg7: memref<3x8x8xbf16, #tpu.memory_space<vmem>>, %arg8: memref<3x8x8xbf16, #tpu.memory_space<vmem>>, %arg9: memref<1x8xf32, #tpu.memory_space<vmem>>, %arg10: memref<1x8xf32, #tpu.memory_space<vmem>>, %arg11: memref<3x6x14xbf16, #tpu.memory_space<vmem>>, %arg12: memref<5x8x16xbf16, #tpu.memory_space<vmem>>, %arg13: memref<5x8x16xbf16, #tpu.memory_space<vmem>>, %arg14: memref<1x16xf32, #tpu.memory_space<vmem>>, %arg15: memref<1x16xf32, #tpu.memory_space<vmem>>, %arg16: memref<3x16x16xbf16, #tpu.memory_space<vmem>>, %arg17: memref<3x16x16xbf16, #tpu.memory_space<vmem>>, %arg18: memref<1x16xf32, #tpu.memory_space<vmem>>, %arg19: memref<1x16xf32, #tpu.memory_space<vmem>>, %arg20: memref<3x2x6xbf16, #tpu.memory_space<vmem>>, %arg21: memref<3x16x24xbf16, #tpu.memory_space<vmem>>, %arg22: memref<3x16x24xbf16, #tpu.memory_space<vmem>>, %arg23: memref<1x24xf32, #tpu.memory_space<vmem>>, %arg24: memref<1x24xf32, #tpu.memory_space<vmem>>, %arg25: memref<3x24x24xbf16, #tpu.memory_space<vmem>>, %arg26: memref<3x24x24xbf16, #tpu.memory_space<vmem>>, %arg27: memref<1x24xf32, #tpu.memory_space<vmem>>, %arg28: memref<1x24xf32, #tpu.memory_space<vmem>>, %arg29: memref<3x24x16xbf16, #tpu.memory_space<vmem>>, %arg30: memref<3x24x16xbf16, #tpu.memory_space<vmem>>, %arg31: memref<1x16xf32, #tpu.memory_space<vmem>>, %arg32: memref<1x16xf32, #tpu.memory_space<vmem>>, %arg33: memref<2x16x32xbf16, #tpu.memory_space<vmem>>, %arg34: memref<2x16x32xbf16, #tpu.memory_space<vmem>>, %arg35: memref<1x32xf32, #tpu.memory_space<vmem>>, %arg36: memref<1x32xf32, #tpu.memory_space<vmem>>, %arg37: memref<32x32xbf16, #tpu.memory_space<vmem>>, %arg38: memref<32x32xbf16, #tpu.memory_space<vmem>>, %arg39: memref<1x32xf32, #tpu.memory_space<vmem>>, %arg40: memref<1x32xf32, #tpu.memory_space<vmem>>, %arg41: memref<32x128xbf16, #tpu.memory_space<vmem>>, %arg42: memref<32x128xbf16, #tpu.memory_space<vmem>>, %arg43: memref<1x128xf32, #tpu.memory_space<vmem>>, %arg44: memref<1x128xf32, #tpu.memory_space<vmem>>, %arg45: memref<1x1x128xf32, #tpu.memory_space<vmem>>, %arg46: memref<1x1x128xf32, #tpu.memory_space<vmem>>) attributes {dimension_semantics = [#tpu.dimension_semantics<parallel>], iteration_bounds = array<i64: 2>, scalar_prefetch = 0 : i64, scratch_operands = 0 : i64, tpu.core_type = #tpu.core_type<tc>, window_params = [{transform_indices = @transform_0, window_bounds = array<i64: 1, 14, 11>}, {transform_indices = @transform_1, window_bounds = array<i64: 1, 14, 11>}, {pipeline_mode = #tpu.pipeline_mode<synchronous>, transform_indices = @transform_2, window_bounds = array<i64: 1, 11, 8>}, {pipeline_mode = #tpu.pipeline_mode<synchronous>, transform_indices = @transform_3, window_bounds = array<i64: 1, 11, 8>}, {pipeline_mode = #tpu.pipeline_mode<synchronous>, transform_indices = @transform_4, window_bounds = array<i64: 1, 8>}, {pipeline_mode = #tpu.pipeline_mode<synchronous>, transform_indices = @transform_5, window_bounds = array<i64: 1, 8>}, {pipeline_mode = #tpu.pipeline_mode<synchronous>, transform_indices = @transform_6, window_bounds = array<i64: 3, 8, 8>}, {pipeline_mode = #tpu.pipeline_mode<synchronous>, transform_indices = @transform_7, window_bounds = array<i64: 3, 8, 8>}, {pipeline_mode = #tpu.pipeline_mode<synchronous>, transform_indices = @transform_8, window_bounds = array<i64: 1, 8>}, {pipeline_mode = #tpu.pipeline_mode<synchronous>, transform_indices = @transform_9, window_bounds = array<i64: 1, 8>}, {pipeline_mode = #tpu.pipeline_mode<synchronous>, transform_indices = @transform_10, window_bounds = array<i64: 3, 6, 14>}, {pipeline_mode = #tpu.pipeline_mode<synchronous>, transform_indices = @transform_11, window_bounds = array<i64: 5, 8, 16>}, {pipeline_mode = #tpu.pipeline_mode<synchronous>, transform_indices = @transform_12, window_bounds = array<i64: 5, 8, 16>}, {pipeline_mode = #tpu.pipeline_mode<synchronous>, transform_indices = @transform_13, window_bounds = array<i64: 1, 16>}, {pipeline_mode = #tpu.pipeline_mode<synchronous>, transform_indices = @transform_14, window_bounds = array<i64: 1, 16>}, {pipeline_mode = #tpu.pipeline_mode<synchronous>, transform_indices = @transform_15, window_bounds = array<i64: 3, 16, 16>}, {pipeline_mode = #tpu.pipeline_mode<synchronous>, transform_indices = @transform_16, window_bounds = array<i64: 3, 16, 16>}, {pipeline_mode = #tpu.pipeline_mode<synchronous>, transform_indices = @transform_17, window_bounds = array<i64: 1, 16>}, {pipeline_mode = #tpu.pipeline_mode<synchronous>, transform_indices = @transform_18, window_bounds = array<i64: 1, 16>}, {pipeline_mode = #tpu.pipeline_mode<synchronous>, transform_indices = @transform_19, window_bounds = array<i64: 3, 2, 6>}, {pipeline_mode = #tpu.pipeline_mode<synchronous>, transform_indices = @transform_20, window_bounds = array<i64: 3, 16, 24>}, {pipeline_mode = #tpu.pipeline_mode<synchronous>, transform_indices = @transform_21, window_bounds = array<i64: 3, 16, 24>}, {pipeline_mode = #tpu.pipeline_mode<synchronous>, transform_indices = @transform_22, window_bounds = array<i64: 1, 24>}, {pipeline_mode = #tpu.pipeline_mode<synchronous>, transform_indices = @transform_23, window_bounds = array<i64: 1, 24>}, {pipeline_mode = #tpu.pipeline_mode<synchronous>, transform_indices = @transform_24, window_bounds = array<i64: 3, 24, 24>}, {pipeline_mode = #tpu.pipeline_mode<synchronous>, transform_indices = @transform_25, window_bounds = array<i64: 3, 24, 24>}, {pipeline_mode = #tpu.pipeline_mode<synchronous>, transform_indices = @transform_26, window_bounds = array<i64: 1, 24>}, {pipeline_mode = #tpu.pipeline_mode<synchronous>, transform_indices = @transform_27, window_bounds = array<i64: 1, 24>}, {pipeline_mode = #tpu.pipeline_mode<synchronous>, transform_indices = @transform_28, window_bounds = array<i64: 3, 24, 16>}, {pipeline_mode = #tpu.pipeline_mode<synchronous>, transform_indices = @transform_29, window_bounds = array<i64: 3, 24, 16>}, {pipeline_mode = #tpu.pipeline_mode<synchronous>, transform_indices = @transform_30, window_bounds = array<i64: 1, 16>}, {pipeline_mode = #tpu.pipeline_mode<synchronous>, transform_indices = @transform_31, window_bounds = array<i64: 1, 16>}, {pipeline_mode = #tpu.pipeline_mode<synchronous>, transform_indices = @transform_32, window_bounds = array<i64: 2, 16, 32>}, {pipeline_mode = #tpu.pipeline_mode<synchronous>, transform_indices = @transform_33, window_bounds = array<i64: 2, 16, 32>}, {pipeline_mode = #tpu.pipeline_mode<synchronous>, transform_indices = @transform_34, window_bounds = array<i64: 1, 32>}, {pipeline_mode = #tpu.pipeline_mode<synchronous>, transform_indices = @transform_35, window_bounds = array<i64: 1, 32>}, {pipeline_mode = #tpu.pipeline_mode<synchronous>, transform_indices = @transform_36, window_bounds = array<i64: 32, 32>}, {pipeline_mode = #tpu.pipeline_mode<synchronous>, transform_indices = @transform_37, window_bounds = array<i64: 32, 32>}, {pipeline_mode = #tpu.pipeline_mode<synchronous>, transform_indices = @transform_38, window_bounds = array<i64: 1, 32>}, {pipeline_mode = #tpu.pipeline_mode<synchronous>, transform_indices = @transform_39, window_bounds = array<i64: 1, 32>}, {pipeline_mode = #tpu.pipeline_mode<synchronous>, transform_indices = @transform_40, window_bounds = array<i64: 32, 128>}, {pipeline_mode = #tpu.pipeline_mode<synchronous>, transform_indices = @transform_41, window_bounds = array<i64: 32, 128>}, {pipeline_mode = #tpu.pipeline_mode<synchronous>, transform_indices = @transform_42, window_bounds = array<i64: 1, 128>}, {pipeline_mode = #tpu.pipeline_mode<synchronous>, transform_indices = @transform_43, window_bounds = array<i64: 1, 128>}, {transform_indices = @transform_44, window_bounds = array<i64: 1, 1, 128>}, {transform_indices = @transform_45, window_bounds = array<i64: 1, 1, 128>}]} {
    %c0 = arith.constant 0 : index
    %c0_0 = arith.constant 0 : index
    %c0_1 = arith.constant 0 : index
    %0 = vector.load %arg1[%c0, %c0_0, %c0_1] : memref<1x14x11xbf16, #tpu.memory_space<vmem>>, vector<1x14x11xbf16>
    %1 = vector.shape_cast %0 : vector<1x14x11xbf16> to vector<14x11xbf16>
    %c0_2 = arith.constant 0 : index
    %c0_3 = arith.constant 0 : index
    %c0_4 = arith.constant 0 : index
    %2 = vector.load %arg2[%c0_2, %c0_3, %c0_4] : memref<1x14x11xbf16, #tpu.memory_space<vmem>>, vector<1x14x11xbf16>
    %3 = vector.shape_cast %2 : vector<1x14x11xbf16> to vector<14x11xbf16>
    %cst = arith.constant 0.000000e+00 : f32
    %4 = vector.broadcast %cst : f32 to vector<14x8xf32>
    %cst_5 = arith.constant 0.000000e+00 : f32
    %5 = vector.broadcast %cst_5 : f32 to vector<14x8xf32>
    %c0_6 = arith.constant 0 : index
    %c0_7 = arith.constant 0 : index
    %c0_8 = arith.constant 0 : index
    %6 = vector.load %arg3[%c0_6, %c0_7, %c0_8] : memref<1x11x8xbf16, #tpu.memory_space<vmem>>, vector<1x11x8xbf16>
    %7 = vector.shape_cast %6 : vector<1x11x8xbf16> to vector<11x8xbf16>
    %c0_9 = arith.constant 0 : index
    %c0_10 = arith.constant 0 : index
    %c0_11 = arith.constant 0 : index
    %8 = vector.load %arg4[%c0_9, %c0_10, %c0_11] : memref<1x11x8xbf16, #tpu.memory_space<vmem>>, vector<1x11x8xbf16>
    %9 = vector.shape_cast %8 : vector<1x11x8xbf16> to vector<11x8xbf16>
    %cst_12 = arith.constant dense<0.000000e+00> : vector<14x8xf32>
    %10 = tpu.matmul %1, %7, %cst_12 {dimension_numbers = #tpu.dot_dimension_numbers<[1], [0], [0], [1], [0, 0, 1, 1], [], []>} : vector<14x11xbf16>, vector<11x8xbf16>, vector<14x8xf32> -> vector<14x8xf32>
    %cst_13 = arith.constant dense<0.000000e+00> : vector<14x8xf32>
    %11 = tpu.matmul %3, %9, %cst_13 {dimension_numbers = #tpu.dot_dimension_numbers<[1], [0], [0], [1], [0, 0, 1, 1], [], []>} : vector<14x11xbf16>, vector<11x8xbf16>, vector<14x8xf32> -> vector<14x8xf32>
    %cst_14 = arith.constant dense<0.000000e+00> : vector<14x8xf32>
    %12 = tpu.matmul %1, %9, %cst_14 {dimension_numbers = #tpu.dot_dimension_numbers<[1], [0], [0], [1], [0, 0, 1, 1], [], []>} : vector<14x11xbf16>, vector<11x8xbf16>, vector<14x8xf32> -> vector<14x8xf32>
    %cst_15 = arith.constant dense<0.000000e+00> : vector<14x8xf32>
    %13 = tpu.matmul %3, %7, %cst_15 {dimension_numbers = #tpu.dot_dimension_numbers<[1], [0], [0], [1], [0, 0, 1, 1], [], []>} : vector<14x11xbf16>, vector<11x8xbf16>, vector<14x8xf32> -> vector<14x8xf32>
    %14 = arith.subf %10, %11 : vector<14x8xf32>
    %15 = arith.addf %12, %13 : vector<14x8xf32>
    %16 = arith.addf %4, %14 : vector<14x8xf32>
    %17 = arith.addf %5, %15 : vector<14x8xf32>
    %c0_16 = arith.constant 0 : index
    %c0_17 = arith.constant 0 : index
    %18 = vector.load %arg5[%c0_16, %c0_17] : memref<1x8xf32, #tpu.memory_space<vmem>>, vector<1x8xf32>
    %19 = vector.broadcast %18 : vector<1x8xf32> to vector<14x8xf32>
    %20 = arith.addf %16, %19 : vector<14x8xf32>
    %c0_18 = arith.constant 0 : index
    %c0_19 = arith.constant 0 : index
    %21 = vector.load %arg6[%c0_18, %c0_19] : memref<1x8xf32, #tpu.memory_space<vmem>>, vector<1x8xf32>
    %22 = vector.broadcast %21 : vector<1x8xf32> to vector<14x8xf32>
    %23 = arith.addf %17, %22 : vector<14x8xf32>
    %24 = arith.mulf %20, %20 : vector<14x8xf32>
    %25 = arith.mulf %23, %23 : vector<14x8xf32>
    %26 = arith.addf %24, %25 : vector<14x8xf32>
    %cst_20 = arith.constant 1.000000e-10 : f32
    %27 = vector.broadcast %cst_20 : f32 to vector<14x8xf32>
    %28 = arith.maximumf %26, %27 : vector<14x8xf32>
    %29 = math.rsqrt %28 : vector<14x8xf32>
    %cst_21 = arith.constant 5.000000e-01 : f32
    %30 = vector.broadcast %cst_21 : f32 to vector<14x8xf32>
    %31 = arith.mulf %30, %29 : vector<14x8xf32>
    %cst_22 = arith.constant 1.000000e+00 : f32
    %32 = vector.broadcast %cst_22 : f32 to vector<14x8xf32>
    %33 = arith.subf %32, %31 : vector<14x8xf32>
    %cst_23 = arith.constant 0.000000e+00 : f32
    %34 = vector.broadcast %cst_23 : f32 to vector<14x8xf32>
    %35 = arith.maximumf %33, %34 : vector<14x8xf32>
    %36 = arith.mulf %20, %35 : vector<14x8xf32>
    %37 = arith.mulf %23, %35 : vector<14x8xf32>
    %38 = arith.truncf %36 : vector<14x8xf32> to vector<14x8xbf16>
    %39 = arith.truncf %37 : vector<14x8xf32> to vector<14x8xbf16>
    %cst_24 = arith.constant 0.000000e+00 : f32
    %40 = vector.broadcast %cst_24 : f32 to vector<6x8xf32>
    %cst_25 = arith.constant 0.000000e+00 : f32
    %41 = vector.broadcast %cst_25 : f32 to vector<6x8xf32>
    %c0_26 = arith.constant 0 : index
    %c0_27 = arith.constant 0 : index
    %c0_28 = arith.constant 0 : index
    %42 = vector.load %arg11[%c0_26, %c0_27, %c0_28] : memref<3x6x14xbf16, #tpu.memory_space<vmem>>, vector<1x6x14xbf16>
    %43 = vector.shape_cast %42 : vector<1x6x14xbf16> to vector<6x14xbf16>
    %cst_29 = arith.constant dense<0.000000e+00> : vector<6x8xf32>
    %44 = tpu.matmul %43, %38, %cst_29 {dimension_numbers = #tpu.dot_dimension_numbers<[1], [0], [0], [1], [0, 0, 1, 1], [], []>} : vector<6x14xbf16>, vector<14x8xbf16>, vector<6x8xf32> -> vector<6x8xf32>
    %45 = arith.truncf %44 : vector<6x8xf32> to vector<6x8xbf16>
    %cst_30 = arith.constant dense<0.000000e+00> : vector<6x8xf32>
    %46 = tpu.matmul %43, %39, %cst_30 {dimension_numbers = #tpu.dot_dimension_numbers<[1], [0], [0], [1], [0, 0, 1, 1], [], []>} : vector<6x14xbf16>, vector<14x8xbf16>, vector<6x8xf32> -> vector<6x8xf32>
    %47 = arith.truncf %46 : vector<6x8xf32> to vector<6x8xbf16>
    %c0_31 = arith.constant 0 : index
    %c0_32 = arith.constant 0 : index
    %c0_33 = arith.constant 0 : index
    %48 = vector.load %arg7[%c0_31, %c0_32, %c0_33] : memref<3x8x8xbf16, #tpu.memory_space<vmem>>, vector<1x8x8xbf16>
    %49 = vector.shape_cast %48 : vector<1x8x8xbf16> to vector<8x8xbf16>
    %c0_34 = arith.constant 0 : index
    %c0_35 = arith.constant 0 : index
    %c0_36 = arith.constant 0 : index
    %50 = vector.load %arg8[%c0_34, %c0_35, %c0_36] : memref<3x8x8xbf16, #tpu.memory_space<vmem>>, vector<1x8x8xbf16>
    %51 = vector.shape_cast %50 : vector<1x8x8xbf16> to vector<8x8xbf16>
    %cst_37 = arith.constant dense<0.000000e+00> : vector<6x8xf32>
    %52 = tpu.matmul %45, %49, %cst_37 {dimension_numbers = #tpu.dot_dimension_numbers<[1], [0], [0], [1], [0, 0, 1, 1], [], []>} : vector<6x8xbf16>, vector<8x8xbf16>, vector<6x8xf32> -> vector<6x8xf32>
    %cst_38 = arith.constant dense<0.000000e+00> : vector<6x8xf32>
    %53 = tpu.matmul %47, %51, %cst_38 {dimension_numbers = #tpu.dot_dimension_numbers<[1], [0], [0], [1], [0, 0, 1, 1], [], []>} : vector<6x8xbf16>, vector<8x8xbf16>, vector<6x8xf32> -> vector<6x8xf32>
    %cst_39 = arith.constant dense<0.000000e+00> : vector<6x8xf32>
    %54 = tpu.matmul %45, %51, %cst_39 {dimension_numbers = #tpu.dot_dimension_numbers<[1], [0], [0], [1], [0, 0, 1, 1], [], []>} : vector<6x8xbf16>, vector<8x8xbf16>, vector<6x8xf32> -> vector<6x8xf32>
    %cst_40 = arith.constant dense<0.000000e+00> : vector<6x8xf32>
    %55 = tpu.matmul %47, %49, %cst_40 {dimension_numbers = #tpu.dot_dimension_numbers<[1], [0], [0], [1], [0, 0, 1, 1], [], []>} : vector<6x8xbf16>, vector<8x8xbf16>, vector<6x8xf32> -> vector<6x8xf32>
    %56 = arith.subf %52, %53 : vector<6x8xf32>
    %57 = arith.addf %54, %55 : vector<6x8xf32>
    %58 = arith.addf %40, %56 : vector<6x8xf32>
    %59 = arith.addf %41, %57 : vector<6x8xf32>
    %c1 = arith.constant 1 : index
    %c0_41 = arith.constant 0 : index
    %c0_42 = arith.constant 0 : index
    %60 = vector.load %arg11[%c1, %c0_41, %c0_42] : memref<3x6x14xbf16, #tpu.memory_space<vmem>>, vector<1x6x14xbf16>
    %61 = vector.shape_cast %60 : vector<1x6x14xbf16> to vector<6x14xbf16>
    %cst_43 = arith.constant dense<0.000000e+00> : vector<6x8xf32>
    %62 = tpu.matmul %61, %38, %cst_43 {dimension_numbers = #tpu.dot_dimension_numbers<[1], [0], [0], [1], [0, 0, 1, 1], [], []>} : vector<6x14xbf16>, vector<14x8xbf16>, vector<6x8xf32> -> vector<6x8xf32>
    %63 = arith.truncf %62 : vector<6x8xf32> to vector<6x8xbf16>
    %cst_44 = arith.constant dense<0.000000e+00> : vector<6x8xf32>
    %64 = tpu.matmul %61, %39, %cst_44 {dimension_numbers = #tpu.dot_dimension_numbers<[1], [0], [0], [1], [0, 0, 1, 1], [], []>} : vector<6x14xbf16>, vector<14x8xbf16>, vector<6x8xf32> -> vector<6x8xf32>
    %65 = arith.truncf %64 : vector<6x8xf32> to vector<6x8xbf16>
    %c1_45 = arith.constant 1 : index
    %c0_46 = arith.constant 0 : index
    %c0_47 = arith.constant 0 : index
    %66 = vector.load %arg7[%c1_45, %c0_46, %c0_47] : memref<3x8x8xbf16, #tpu.memory_space<vmem>>, vector<1x8x8xbf16>
    %67 = vector.shape_cast %66 : vector<1x8x8xbf16> to vector<8x8xbf16>
    %c1_48 = arith.constant 1 : index
    %c0_49 = arith.constant 0 : index
    %c0_50 = arith.constant 0 : index
    %68 = vector.load %arg8[%c1_48, %c0_49, %c0_50] : memref<3x8x8xbf16, #tpu.memory_space<vmem>>, vector<1x8x8xbf16>
    %69 = vector.shape_cast %68 : vector<1x8x8xbf16> to vector<8x8xbf16>
    %cst_51 = arith.constant dense<0.000000e+00> : vector<6x8xf32>
    %70 = tpu.matmul %63, %67, %cst_51 {dimension_numbers = #tpu.dot_dimension_numbers<[1], [0], [0], [1], [0, 0, 1, 1], [], []>} : vector<6x8xbf16>, vector<8x8xbf16>, vector<6x8xf32> -> vector<6x8xf32>
    %cst_52 = arith.constant dense<0.000000e+00> : vector<6x8xf32>
    %71 = tpu.matmul %65, %69, %cst_52 {dimension_numbers = #tpu.dot_dimension_numbers<[1], [0], [0], [1], [0, 0, 1, 1], [], []>} : vector<6x8xbf16>, vector<8x8xbf16>, vector<6x8xf32> -> vector<6x8xf32>
    %cst_53 = arith.constant dense<0.000000e+00> : vector<6x8xf32>
    %72 = tpu.matmul %63, %69, %cst_53 {dimension_numbers = #tpu.dot_dimension_numbers<[1], [0], [0], [1], [0, 0, 1, 1], [], []>} : vector<6x8xbf16>, vector<8x8xbf16>, vector<6x8xf32> -> vector<6x8xf32>
    %cst_54 = arith.constant dense<0.000000e+00> : vector<6x8xf32>
    %73 = tpu.matmul %65, %67, %cst_54 {dimension_numbers = #tpu.dot_dimension_numbers<[1], [0], [0], [1], [0, 0, 1, 1], [], []>} : vector<6x8xbf16>, vector<8x8xbf16>, vector<6x8xf32> -> vector<6x8xf32>
    %74 = arith.subf %70, %71 : vector<6x8xf32>
    %75 = arith.addf %72, %73 : vector<6x8xf32>
    %76 = arith.addf %58, %74 : vector<6x8xf32>
    %77 = arith.addf %59, %75 : vector<6x8xf32>
    %c2 = arith.constant 2 : index
    %c0_55 = arith.constant 0 : index
    %c0_56 = arith.constant 0 : index
    %78 = vector.load %arg11[%c2, %c0_55, %c0_56] : memref<3x6x14xbf16, #tpu.memory_space<vmem>>, vector<1x6x14xbf16>
    %79 = vector.shape_cast %78 : vector<1x6x14xbf16> to vector<6x14xbf16>
    %cst_57 = arith.constant dense<0.000000e+00> : vector<6x8xf32>
    %80 = tpu.matmul %79, %38, %cst_57 {dimension_numbers = #tpu.dot_dimension_numbers<[1], [0], [0], [1], [0, 0, 1, 1], [], []>} : vector<6x14xbf16>, vector<14x8xbf16>, vector<6x8xf32> -> vector<6x8xf32>
    %81 = arith.truncf %80 : vector<6x8xf32> to vector<6x8xbf16>
    %cst_58 = arith.constant dense<0.000000e+00> : vector<6x8xf32>
    %82 = tpu.matmul %79, %39, %cst_58 {dimension_numbers = #tpu.dot_dimension_numbers<[1], [0], [0], [1], [0, 0, 1, 1], [], []>} : vector<6x14xbf16>, vector<14x8xbf16>, vector<6x8xf32> -> vector<6x8xf32>
    %83 = arith.truncf %82 : vector<6x8xf32> to vector<6x8xbf16>
    %c2_59 = arith.constant 2 : index
    %c0_60 = arith.constant 0 : index
    %c0_61 = arith.constant 0 : index
    %84 = vector.load %arg7[%c2_59, %c0_60, %c0_61] : memref<3x8x8xbf16, #tpu.memory_space<vmem>>, vector<1x8x8xbf16>
    %85 = vector.shape_cast %84 : vector<1x8x8xbf16> to vector<8x8xbf16>
    %c2_62 = arith.constant 2 : index
    %c0_63 = arith.constant 0 : index
    %c0_64 = arith.constant 0 : index
    %86 = vector.load %arg8[%c2_62, %c0_63, %c0_64] : memref<3x8x8xbf16, #tpu.memory_space<vmem>>, vector<1x8x8xbf16>
    %87 = vector.shape_cast %86 : vector<1x8x8xbf16> to vector<8x8xbf16>
    %cst_65 = arith.constant dense<0.000000e+00> : vector<6x8xf32>
    %88 = tpu.matmul %81, %85, %cst_65 {dimension_numbers = #tpu.dot_dimension_numbers<[1], [0], [0], [1], [0, 0, 1, 1], [], []>} : vector<6x8xbf16>, vector<8x8xbf16>, vector<6x8xf32> -> vector<6x8xf32>
    %cst_66 = arith.constant dense<0.000000e+00> : vector<6x8xf32>
    %89 = tpu.matmul %83, %87, %cst_66 {dimension_numbers = #tpu.dot_dimension_numbers<[1], [0], [0], [1], [0, 0, 1, 1], [], []>} : vector<6x8xbf16>, vector<8x8xbf16>, vector<6x8xf32> -> vector<6x8xf32>
    %cst_67 = arith.constant dense<0.000000e+00> : vector<6x8xf32>
    %90 = tpu.matmul %81, %87, %cst_67 {dimension_numbers = #tpu.dot_dimension_numbers<[1], [0], [0], [1], [0, 0, 1, 1], [], []>} : vector<6x8xbf16>, vector<8x8xbf16>, vector<6x8xf32> -> vector<6x8xf32>
    %cst_68 = arith.constant dense<0.000000e+00> : vector<6x8xf32>
    %91 = tpu.matmul %83, %85, %cst_68 {dimension_numbers = #tpu.dot_dimension_numbers<[1], [0], [0], [1], [0, 0, 1, 1], [], []>} : vector<6x8xbf16>, vector<8x8xbf16>, vector<6x8xf32> -> vector<6x8xf32>
    %92 = arith.subf %88, %89 : vector<6x8xf32>
    %93 = arith.addf %90, %91 : vector<6x8xf32>
    %94 = arith.addf %76, %92 : vector<6x8xf32>
    %95 = arith.addf %77, %93 : vector<6x8xf32>
    %c0_69 = arith.constant 0 : index
    %c0_70 = arith.constant 0 : index
    %96 = vector.load %arg9[%c0_69, %c0_70] : memref<1x8xf32, #tpu.memory_space<vmem>>, vector<1x8xf32>
    %97 = vector.broadcast %96 : vector<1x8xf32> to vector<6x8xf32>
    %98 = arith.addf %94, %97 : vector<6x8xf32>
    %c0_71 = arith.constant 0 : index
    %c0_72 = arith.constant 0 : index
    %99 = vector.load %arg10[%c0_71, %c0_72] : memref<1x8xf32, #tpu.memory_space<vmem>>, vector<1x8xf32>
    %100 = vector.broadcast %99 : vector<1x8xf32> to vector<6x8xf32>
    %101 = arith.addf %95, %100 : vector<6x8xf32>
    %102 = arith.truncf %98 : vector<6x8xf32> to vector<6x8xbf16>
    %103 = arith.truncf %101 : vector<6x8xf32> to vector<6x8xbf16>
    %cst_73 = arith.constant 0.000000e+00 : bf16
    %104 = vector.broadcast %cst_73 : bf16 to vector<2x8xbf16>
    %105 = tpu.concatenate %104, %102, %104 in 0 : vector<2x8xbf16>, vector<6x8xbf16>, vector<2x8xbf16> -> vector<10x8xbf16>
    %106 = tpu.concatenate %104, %103, %104 in 0 : vector<2x8xbf16>, vector<6x8xbf16>, vector<2x8xbf16> -> vector<10x8xbf16>
    %cst_74 = arith.constant 0.000000e+00 : f32
    %107 = vector.broadcast %cst_74 : f32 to vector<6x16xf32>
    %cst_75 = arith.constant 0.000000e+00 : f32
    %108 = vector.broadcast %cst_75 : f32 to vector<6x16xf32>
    %109 = vector.extract_strided_slice %105 {offsets = [0, 0], sizes = [6, 8], strides = [1, 1]} : vector<10x8xbf16> to vector<6x8xbf16>
    %110 = vector.extract_strided_slice %106 {offsets = [0, 0], sizes = [6, 8], strides = [1, 1]} : vector<10x8xbf16> to vector<6x8xbf16>
    %c0_76 = arith.constant 0 : index
    %c0_77 = arith.constant 0 : index
    %c0_78 = arith.constant 0 : index
    %111 = vector.load %arg12[%c0_76, %c0_77, %c0_78] : memref<5x8x16xbf16, #tpu.memory_space<vmem>>, vector<1x8x16xbf16>
    %112 = vector.shape_cast %111 : vector<1x8x16xbf16> to vector<8x16xbf16>
    %c0_79 = arith.constant 0 : index
    %c0_80 = arith.constant 0 : index
    %c0_81 = arith.constant 0 : index
    %113 = vector.load %arg13[%c0_79, %c0_80, %c0_81] : memref<5x8x16xbf16, #tpu.memory_space<vmem>>, vector<1x8x16xbf16>
    %114 = vector.shape_cast %113 : vector<1x8x16xbf16> to vector<8x16xbf16>
    %cst_82 = arith.constant dense<0.000000e+00> : vector<6x16xf32>
    %115 = tpu.matmul %109, %112, %cst_82 {dimension_numbers = #tpu.dot_dimension_numbers<[1], [0], [0], [1], [0, 0, 1, 1], [], []>} : vector<6x8xbf16>, vector<8x16xbf16>, vector<6x16xf32> -> vector<6x16xf32>
    %cst_83 = arith.constant dense<0.000000e+00> : vector<6x16xf32>
    %116 = tpu.matmul %110, %114, %cst_83 {dimension_numbers = #tpu.dot_dimension_numbers<[1], [0], [0], [1], [0, 0, 1, 1], [], []>} : vector<6x8xbf16>, vector<8x16xbf16>, vector<6x16xf32> -> vector<6x16xf32>
    %cst_84 = arith.constant dense<0.000000e+00> : vector<6x16xf32>
    %117 = tpu.matmul %109, %114, %cst_84 {dimension_numbers = #tpu.dot_dimension_numbers<[1], [0], [0], [1], [0, 0, 1, 1], [], []>} : vector<6x8xbf16>, vector<8x16xbf16>, vector<6x16xf32> -> vector<6x16xf32>
    %cst_85 = arith.constant dense<0.000000e+00> : vector<6x16xf32>
    %118 = tpu.matmul %110, %112, %cst_85 {dimension_numbers = #tpu.dot_dimension_numbers<[1], [0], [0], [1], [0, 0, 1, 1], [], []>} : vector<6x8xbf16>, vector<8x16xbf16>, vector<6x16xf32> -> vector<6x16xf32>
    %119 = arith.subf %115, %116 : vector<6x16xf32>
    %120 = arith.addf %117, %118 : vector<6x16xf32>
    %121 = arith.addf %107, %119 : vector<6x16xf32>
    %122 = arith.addf %108, %120 : vector<6x16xf32>
    %123 = vector.extract_strided_slice %105 {offsets = [1, 0], sizes = [6, 8], strides = [1, 1]} : vector<10x8xbf16> to vector<6x8xbf16>
    %124 = vector.extract_strided_slice %106 {offsets = [1, 0], sizes = [6, 8], strides = [1, 1]} : vector<10x8xbf16> to vector<6x8xbf16>
    %c1_86 = arith.constant 1 : index
    %c0_87 = arith.constant 0 : index
    %c0_88 = arith.constant 0 : index
    %125 = vector.load %arg12[%c1_86, %c0_87, %c0_88] : memref<5x8x16xbf16, #tpu.memory_space<vmem>>, vector<1x8x16xbf16>
    %126 = vector.shape_cast %125 : vector<1x8x16xbf16> to vector<8x16xbf16>
    %c1_89 = arith.constant 1 : index
    %c0_90 = arith.constant 0 : index
    %c0_91 = arith.constant 0 : index
    %127 = vector.load %arg13[%c1_89, %c0_90, %c0_91] : memref<5x8x16xbf16, #tpu.memory_space<vmem>>, vector<1x8x16xbf16>
    %128 = vector.shape_cast %127 : vector<1x8x16xbf16> to vector<8x16xbf16>
    %cst_92 = arith.constant dense<0.000000e+00> : vector<6x16xf32>
    %129 = tpu.matmul %123, %126, %cst_92 {dimension_numbers = #tpu.dot_dimension_numbers<[1], [0], [0], [1], [0, 0, 1, 1], [], []>} : vector<6x8xbf16>, vector<8x16xbf16>, vector<6x16xf32> -> vector<6x16xf32>
    %cst_93 = arith.constant dense<0.000000e+00> : vector<6x16xf32>
    %130 = tpu.matmul %124, %128, %cst_93 {dimension_numbers = #tpu.dot_dimension_numbers<[1], [0], [0], [1], [0, 0, 1, 1], [], []>} : vector<6x8xbf16>, vector<8x16xbf16>, vector<6x16xf32> -> vector<6x16xf32>
    %cst_94 = arith.constant dense<0.000000e+00> : vector<6x16xf32>
    %131 = tpu.matmul %123, %128, %cst_94 {dimension_numbers = #tpu.dot_dimension_numbers<[1], [0], [0], [1], [0, 0, 1, 1], [], []>} : vector<6x8xbf16>, vector<8x16xbf16>, vector<6x16xf32> -> vector<6x16xf32>
    %cst_95 = arith.constant dense<0.000000e+00> : vector<6x16xf32>
    %132 = tpu.matmul %124, %126, %cst_95 {dimension_numbers = #tpu.dot_dimension_numbers<[1], [0], [0], [1], [0, 0, 1, 1], [], []>} : vector<6x8xbf16>, vector<8x16xbf16>, vector<6x16xf32> -> vector<6x16xf32>
    %133 = arith.subf %129, %130 : vector<6x16xf32>
    %134 = arith.addf %131, %132 : vector<6x16xf32>
    %135 = arith.addf %121, %133 : vector<6x16xf32>
    %136 = arith.addf %122, %134 : vector<6x16xf32>
    %137 = vector.extract_strided_slice %105 {offsets = [2, 0], sizes = [6, 8], strides = [1, 1]} : vector<10x8xbf16> to vector<6x8xbf16>
    %138 = vector.extract_strided_slice %106 {offsets = [2, 0], sizes = [6, 8], strides = [1, 1]} : vector<10x8xbf16> to vector<6x8xbf16>
    %c2_96 = arith.constant 2 : index
    %c0_97 = arith.constant 0 : index
    %c0_98 = arith.constant 0 : index
    %139 = vector.load %arg12[%c2_96, %c0_97, %c0_98] : memref<5x8x16xbf16, #tpu.memory_space<vmem>>, vector<1x8x16xbf16>
    %140 = vector.shape_cast %139 : vector<1x8x16xbf16> to vector<8x16xbf16>
    %c2_99 = arith.constant 2 : index
    %c0_100 = arith.constant 0 : index
    %c0_101 = arith.constant 0 : index
    %141 = vector.load %arg13[%c2_99, %c0_100, %c0_101] : memref<5x8x16xbf16, #tpu.memory_space<vmem>>, vector<1x8x16xbf16>
    %142 = vector.shape_cast %141 : vector<1x8x16xbf16> to vector<8x16xbf16>
    %cst_102 = arith.constant dense<0.000000e+00> : vector<6x16xf32>
    %143 = tpu.matmul %137, %140, %cst_102 {dimension_numbers = #tpu.dot_dimension_numbers<[1], [0], [0], [1], [0, 0, 1, 1], [], []>} : vector<6x8xbf16>, vector<8x16xbf16>, vector<6x16xf32> -> vector<6x16xf32>
    %cst_103 = arith.constant dense<0.000000e+00> : vector<6x16xf32>
    %144 = tpu.matmul %138, %142, %cst_103 {dimension_numbers = #tpu.dot_dimension_numbers<[1], [0], [0], [1], [0, 0, 1, 1], [], []>} : vector<6x8xbf16>, vector<8x16xbf16>, vector<6x16xf32> -> vector<6x16xf32>
    %cst_104 = arith.constant dense<0.000000e+00> : vector<6x16xf32>
    %145 = tpu.matmul %137, %142, %cst_104 {dimension_numbers = #tpu.dot_dimension_numbers<[1], [0], [0], [1], [0, 0, 1, 1], [], []>} : vector<6x8xbf16>, vector<8x16xbf16>, vector<6x16xf32> -> vector<6x16xf32>
    %cst_105 = arith.constant dense<0.000000e+00> : vector<6x16xf32>
    %146 = tpu.matmul %138, %140, %cst_105 {dimension_numbers = #tpu.dot_dimension_numbers<[1], [0], [0], [1], [0, 0, 1, 1], [], []>} : vector<6x8xbf16>, vector<8x16xbf16>, vector<6x16xf32> -> vector<6x16xf32>
    %147 = arith.subf %143, %144 : vector<6x16xf32>
    %148 = arith.addf %145, %146 : vector<6x16xf32>
    %149 = arith.addf %135, %147 : vector<6x16xf32>
    %150 = arith.addf %136, %148 : vector<6x16xf32>
    %151 = vector.extract_strided_slice %105 {offsets = [3, 0], sizes = [6, 8], strides = [1, 1]} : vector<10x8xbf16> to vector<6x8xbf16>
    %152 = vector.extract_strided_slice %106 {offsets = [3, 0], sizes = [6, 8], strides = [1, 1]} : vector<10x8xbf16> to vector<6x8xbf16>
    %c3 = arith.constant 3 : index
    %c0_106 = arith.constant 0 : index
    %c0_107 = arith.constant 0 : index
    %153 = vector.load %arg12[%c3, %c0_106, %c0_107] : memref<5x8x16xbf16, #tpu.memory_space<vmem>>, vector<1x8x16xbf16>
    %154 = vector.shape_cast %153 : vector<1x8x16xbf16> to vector<8x16xbf16>
    %c3_108 = arith.constant 3 : index
    %c0_109 = arith.constant 0 : index
    %c0_110 = arith.constant 0 : index
    %155 = vector.load %arg13[%c3_108, %c0_109, %c0_110] : memref<5x8x16xbf16, #tpu.memory_space<vmem>>, vector<1x8x16xbf16>
    %156 = vector.shape_cast %155 : vector<1x8x16xbf16> to vector<8x16xbf16>
    %cst_111 = arith.constant dense<0.000000e+00> : vector<6x16xf32>
    %157 = tpu.matmul %151, %154, %cst_111 {dimension_numbers = #tpu.dot_dimension_numbers<[1], [0], [0], [1], [0, 0, 1, 1], [], []>} : vector<6x8xbf16>, vector<8x16xbf16>, vector<6x16xf32> -> vector<6x16xf32>
    %cst_112 = arith.constant dense<0.000000e+00> : vector<6x16xf32>
    %158 = tpu.matmul %152, %156, %cst_112 {dimension_numbers = #tpu.dot_dimension_numbers<[1], [0], [0], [1], [0, 0, 1, 1], [], []>} : vector<6x8xbf16>, vector<8x16xbf16>, vector<6x16xf32> -> vector<6x16xf32>
    %cst_113 = arith.constant dense<0.000000e+00> : vector<6x16xf32>
    %159 = tpu.matmul %151, %156, %cst_113 {dimension_numbers = #tpu.dot_dimension_numbers<[1], [0], [0], [1], [0, 0, 1, 1], [], []>} : vector<6x8xbf16>, vector<8x16xbf16>, vector<6x16xf32> -> vector<6x16xf32>
    %cst_114 = arith.constant dense<0.000000e+00> : vector<6x16xf32>
    %160 = tpu.matmul %152, %154, %cst_114 {dimension_numbers = #tpu.dot_dimension_numbers<[1], [0], [0], [1], [0, 0, 1, 1], [], []>} : vector<6x8xbf16>, vector<8x16xbf16>, vector<6x16xf32> -> vector<6x16xf32>
    %161 = arith.subf %157, %158 : vector<6x16xf32>
    %162 = arith.addf %159, %160 : vector<6x16xf32>
    %163 = arith.addf %149, %161 : vector<6x16xf32>
    %164 = arith.addf %150, %162 : vector<6x16xf32>
    %165 = vector.extract_strided_slice %105 {offsets = [4, 0], sizes = [6, 8], strides = [1, 1]} : vector<10x8xbf16> to vector<6x8xbf16>
    %166 = vector.extract_strided_slice %106 {offsets = [4, 0], sizes = [6, 8], strides = [1, 1]} : vector<10x8xbf16> to vector<6x8xbf16>
    %c4 = arith.constant 4 : index
    %c0_115 = arith.constant 0 : index
    %c0_116 = arith.constant 0 : index
    %167 = vector.load %arg12[%c4, %c0_115, %c0_116] : memref<5x8x16xbf16, #tpu.memory_space<vmem>>, vector<1x8x16xbf16>
    %168 = vector.shape_cast %167 : vector<1x8x16xbf16> to vector<8x16xbf16>
    %c4_117 = arith.constant 4 : index
    %c0_118 = arith.constant 0 : index
    %c0_119 = arith.constant 0 : index
    %169 = vector.load %arg13[%c4_117, %c0_118, %c0_119] : memref<5x8x16xbf16, #tpu.memory_space<vmem>>, vector<1x8x16xbf16>
    %170 = vector.shape_cast %169 : vector<1x8x16xbf16> to vector<8x16xbf16>
    %cst_120 = arith.constant dense<0.000000e+00> : vector<6x16xf32>
    %171 = tpu.matmul %165, %168, %cst_120 {dimension_numbers = #tpu.dot_dimension_numbers<[1], [0], [0], [1], [0, 0, 1, 1], [], []>} : vector<6x8xbf16>, vector<8x16xbf16>, vector<6x16xf32> -> vector<6x16xf32>
    %cst_121 = arith.constant dense<0.000000e+00> : vector<6x16xf32>
    %172 = tpu.matmul %166, %170, %cst_121 {dimension_numbers = #tpu.dot_dimension_numbers<[1], [0], [0], [1], [0, 0, 1, 1], [], []>} : vector<6x8xbf16>, vector<8x16xbf16>, vector<6x16xf32> -> vector<6x16xf32>
    %cst_122 = arith.constant dense<0.000000e+00> : vector<6x16xf32>
    %173 = tpu.matmul %165, %170, %cst_122 {dimension_numbers = #tpu.dot_dimension_numbers<[1], [0], [0], [1], [0, 0, 1, 1], [], []>} : vector<6x8xbf16>, vector<8x16xbf16>, vector<6x16xf32> -> vector<6x16xf32>
    %cst_123 = arith.constant dense<0.000000e+00> : vector<6x16xf32>
    %174 = tpu.matmul %166, %168, %cst_123 {dimension_numbers = #tpu.dot_dimension_numbers<[1], [0], [0], [1], [0, 0, 1, 1], [], []>} : vector<6x8xbf16>, vector<8x16xbf16>, vector<6x16xf32> -> vector<6x16xf32>
    %175 = arith.subf %171, %172 : vector<6x16xf32>
    %176 = arith.addf %173, %174 : vector<6x16xf32>
    %177 = arith.addf %163, %175 : vector<6x16xf32>
    %178 = arith.addf %164, %176 : vector<6x16xf32>
    %c0_124 = arith.constant 0 : index
    %c0_125 = arith.constant 0 : index
    %179 = vector.load %arg14[%c0_124, %c0_125] : memref<1x16xf32, #tpu.memory_space<vmem>>, vector<1x16xf32>
    %180 = vector.broadcast %179 : vector<1x16xf32> to vector<6x16xf32>
    %181 = arith.addf %177, %180 : vector<6x16xf32>
    %c0_126 = arith.constant 0 : index
    %c0_127 = arith.constant 0 : index
    %182 = vector.load %arg15[%c0_126, %c0_127] : memref<1x16xf32, #tpu.memory_space<vmem>>, vector<1x16xf32>
    %183 = vector.broadcast %182 : vector<1x16xf32> to vector<6x16xf32>
    %184 = arith.addf %178, %183 : vector<6x16xf32>
    %185 = arith.mulf %181, %181 : vector<6x16xf32>
    %186 = arith.mulf %184, %184 : vector<6x16xf32>
    %187 = arith.addf %185, %186 : vector<6x16xf32>
    %cst_128 = arith.constant 1.000000e-10 : f32
    %188 = vector.broadcast %cst_128 : f32 to vector<6x16xf32>
    %189 = arith.maximumf %187, %188 : vector<6x16xf32>
    %190 = math.rsqrt %189 : vector<6x16xf32>
    %cst_129 = arith.constant 5.000000e-01 : f32
    %191 = vector.broadcast %cst_129 : f32 to vector<6x16xf32>
    %192 = arith.mulf %191, %190 : vector<6x16xf32>
    %cst_130 = arith.constant 1.000000e+00 : f32
    %193 = vector.broadcast %cst_130 : f32 to vector<6x16xf32>
    %194 = arith.subf %193, %192 : vector<6x16xf32>
    %cst_131 = arith.constant 0.000000e+00 : f32
    %195 = vector.broadcast %cst_131 : f32 to vector<6x16xf32>
    %196 = arith.maximumf %194, %195 : vector<6x16xf32>
    %197 = arith.mulf %181, %196 : vector<6x16xf32>
    %198 = arith.mulf %184, %196 : vector<6x16xf32>
    %199 = arith.truncf %197 : vector<6x16xf32> to vector<6x16xbf16>
    %200 = arith.truncf %198 : vector<6x16xf32> to vector<6x16xbf16>
    %cst_132 = arith.constant 0.000000e+00 : f32
    %201 = vector.broadcast %cst_132 : f32 to vector<2x16xf32>
    %cst_133 = arith.constant 0.000000e+00 : f32
    %202 = vector.broadcast %cst_133 : f32 to vector<2x16xf32>
    %c0_134 = arith.constant 0 : index
    %c0_135 = arith.constant 0 : index
    %c0_136 = arith.constant 0 : index
    %203 = vector.load %arg20[%c0_134, %c0_135, %c0_136] : memref<3x2x6xbf16, #tpu.memory_space<vmem>>, vector<1x2x6xbf16>
    %204 = vector.shape_cast %203 : vector<1x2x6xbf16> to vector<2x6xbf16>
    %cst_137 = arith.constant dense<0.000000e+00> : vector<2x16xf32>
    %205 = tpu.matmul %204, %199, %cst_137 {dimension_numbers = #tpu.dot_dimension_numbers<[1], [0], [0], [1], [0, 0, 1, 1], [], []>} : vector<2x6xbf16>, vector<6x16xbf16>, vector<2x16xf32> -> vector<2x16xf32>
    %206 = arith.truncf %205 : vector<2x16xf32> to vector<2x16xbf16>
    %cst_138 = arith.constant dense<0.000000e+00> : vector<2x16xf32>
    %207 = tpu.matmul %204, %200, %cst_138 {dimension_numbers = #tpu.dot_dimension_numbers<[1], [0], [0], [1], [0, 0, 1, 1], [], []>} : vector<2x6xbf16>, vector<6x16xbf16>, vector<2x16xf32> -> vector<2x16xf32>
    %208 = arith.truncf %207 : vector<2x16xf32> to vector<2x16xbf16>
    %c0_139 = arith.constant 0 : index
    %c0_140 = arith.constant 0 : index
    %c0_141 = arith.constant 0 : index
    %209 = vector.load %arg16[%c0_139, %c0_140, %c0_141] : memref<3x16x16xbf16, #tpu.memory_space<vmem>>, vector<1x16x16xbf16>
    %210 = vector.shape_cast %209 : vector<1x16x16xbf16> to vector<16x16xbf16>
    %c0_142 = arith.constant 0 : index
    %c0_143 = arith.constant 0 : index
    %c0_144 = arith.constant 0 : index
    %211 = vector.load %arg17[%c0_142, %c0_143, %c0_144] : memref<3x16x16xbf16, #tpu.memory_space<vmem>>, vector<1x16x16xbf16>
    %212 = vector.shape_cast %211 : vector<1x16x16xbf16> to vector<16x16xbf16>
    %cst_145 = arith.constant dense<0.000000e+00> : vector<2x16xf32>
    %213 = tpu.matmul %206, %210, %cst_145 {dimension_numbers = #tpu.dot_dimension_numbers<[1], [0], [0], [1], [0, 0, 1, 1], [], []>} : vector<2x16xbf16>, vector<16x16xbf16>, vector<2x16xf32> -> vector<2x16xf32>
    %cst_146 = arith.constant dense<0.000000e+00> : vector<2x16xf32>
    %214 = tpu.matmul %208, %212, %cst_146 {dimension_numbers = #tpu.dot_dimension_numbers<[1], [0], [0], [1], [0, 0, 1, 1], [], []>} : vector<2x16xbf16>, vector<16x16xbf16>, vector<2x16xf32> -> vector<2x16xf32>
    %cst_147 = arith.constant dense<0.000000e+00> : vector<2x16xf32>
    %215 = tpu.matmul %206, %212, %cst_147 {dimension_numbers = #tpu.dot_dimension_numbers<[1], [0], [0], [1], [0, 0, 1, 1], [], []>} : vector<2x16xbf16>, vector<16x16xbf16>, vector<2x16xf32> -> vector<2x16xf32>
    %cst_148 = arith.constant dense<0.000000e+00> : vector<2x16xf32>
    %216 = tpu.matmul %208, %210, %cst_148 {dimension_numbers = #tpu.dot_dimension_numbers<[1], [0], [0], [1], [0, 0, 1, 1], [], []>} : vector<2x16xbf16>, vector<16x16xbf16>, vector<2x16xf32> -> vector<2x16xf32>
    %217 = arith.subf %213, %214 : vector<2x16xf32>
    %218 = arith.addf %215, %216 : vector<2x16xf32>
    %219 = arith.addf %201, %217 : vector<2x16xf32>
    %220 = arith.addf %202, %218 : vector<2x16xf32>
    %c1_149 = arith.constant 1 : index
    %c0_150 = arith.constant 0 : index
    %c0_151 = arith.constant 0 : index
    %221 = vector.load %arg20[%c1_149, %c0_150, %c0_151] : memref<3x2x6xbf16, #tpu.memory_space<vmem>>, vector<1x2x6xbf16>
    %222 = vector.shape_cast %221 : vector<1x2x6xbf16> to vector<2x6xbf16>
    %cst_152 = arith.constant dense<0.000000e+00> : vector<2x16xf32>
    %223 = tpu.matmul %222, %199, %cst_152 {dimension_numbers = #tpu.dot_dimension_numbers<[1], [0], [0], [1], [0, 0, 1, 1], [], []>} : vector<2x6xbf16>, vector<6x16xbf16>, vector<2x16xf32> -> vector<2x16xf32>
    %224 = arith.truncf %223 : vector<2x16xf32> to vector<2x16xbf16>
    %cst_153 = arith.constant dense<0.000000e+00> : vector<2x16xf32>
    %225 = tpu.matmul %222, %200, %cst_153 {dimension_numbers = #tpu.dot_dimension_numbers<[1], [0], [0], [1], [0, 0, 1, 1], [], []>} : vector<2x6xbf16>, vector<6x16xbf16>, vector<2x16xf32> -> vector<2x16xf32>
    %226 = arith.truncf %225 : vector<2x16xf32> to vector<2x16xbf16>
    %c1_154 = arith.constant 1 : index
    %c0_155 = arith.constant 0 : index
    %c0_156 = arith.constant 0 : index
    %227 = vector.load %arg16[%c1_154, %c0_155, %c0_156] : memref<3x16x16xbf16, #tpu.memory_space<vmem>>, vector<1x16x16xbf16>
    %228 = vector.shape_cast %227 : vector<1x16x16xbf16> to vector<16x16xbf16>
    %c1_157 = arith.constant 1 : index
    %c0_158 = arith.constant 0 : index
    %c0_159 = arith.constant 0 : index
    %229 = vector.load %arg17[%c1_157, %c0_158, %c0_159] : memref<3x16x16xbf16, #tpu.memory_space<vmem>>, vector<1x16x16xbf16>
    %230 = vector.shape_cast %229 : vector<1x16x16xbf16> to vector<16x16xbf16>
    %cst_160 = arith.constant dense<0.000000e+00> : vector<2x16xf32>
    %231 = tpu.matmul %224, %228, %cst_160 {dimension_numbers = #tpu.dot_dimension_numbers<[1], [0], [0], [1], [0, 0, 1, 1], [], []>} : vector<2x16xbf16>, vector<16x16xbf16>, vector<2x16xf32> -> vector<2x16xf32>
    %cst_161 = arith.constant dense<0.000000e+00> : vector<2x16xf32>
    %232 = tpu.matmul %226, %230, %cst_161 {dimension_numbers = #tpu.dot_dimension_numbers<[1], [0], [0], [1], [0, 0, 1, 1], [], []>} : vector<2x16xbf16>, vector<16x16xbf16>, vector<2x16xf32> -> vector<2x16xf32>
    %cst_162 = arith.constant dense<0.000000e+00> : vector<2x16xf32>
    %233 = tpu.matmul %224, %230, %cst_162 {dimension_numbers = #tpu.dot_dimension_numbers<[1], [0], [0], [1], [0, 0, 1, 1], [], []>} : vector<2x16xbf16>, vector<16x16xbf16>, vector<2x16xf32> -> vector<2x16xf32>
    %cst_163 = arith.constant dense<0.000000e+00> : vector<2x16xf32>
    %234 = tpu.matmul %226, %228, %cst_163 {dimension_numbers = #tpu.dot_dimension_numbers<[1], [0], [0], [1], [0, 0, 1, 1], [], []>} : vector<2x16xbf16>, vector<16x16xbf16>, vector<2x16xf32> -> vector<2x16xf32>
    %235 = arith.subf %231, %232 : vector<2x16xf32>
    %236 = arith.addf %233, %234 : vector<2x16xf32>
    %237 = arith.addf %219, %235 : vector<2x16xf32>
    %238 = arith.addf %220, %236 : vector<2x16xf32>
    %c2_164 = arith.constant 2 : index
    %c0_165 = arith.constant 0 : index
    %c0_166 = arith.constant 0 : index
    %239 = vector.load %arg20[%c2_164, %c0_165, %c0_166] : memref<3x2x6xbf16, #tpu.memory_space<vmem>>, vector<1x2x6xbf16>
    %240 = vector.shape_cast %239 : vector<1x2x6xbf16> to vector<2x6xbf16>
    %cst_167 = arith.constant dense<0.000000e+00> : vector<2x16xf32>
    %241 = tpu.matmul %240, %199, %cst_167 {dimension_numbers = #tpu.dot_dimension_numbers<[1], [0], [0], [1], [0, 0, 1, 1], [], []>} : vector<2x6xbf16>, vector<6x16xbf16>, vector<2x16xf32> -> vector<2x16xf32>
    %242 = arith.truncf %241 : vector<2x16xf32> to vector<2x16xbf16>
    %cst_168 = arith.constant dense<0.000000e+00> : vector<2x16xf32>
    %243 = tpu.matmul %240, %200, %cst_168 {dimension_numbers = #tpu.dot_dimension_numbers<[1], [0], [0], [1], [0, 0, 1, 1], [], []>} : vector<2x6xbf16>, vector<6x16xbf16>, vector<2x16xf32> -> vector<2x16xf32>
    %244 = arith.truncf %243 : vector<2x16xf32> to vector<2x16xbf16>
    %c2_169 = arith.constant 2 : index
    %c0_170 = arith.constant 0 : index
    %c0_171 = arith.constant 0 : index
    %245 = vector.load %arg16[%c2_169, %c0_170, %c0_171] : memref<3x16x16xbf16, #tpu.memory_space<vmem>>, vector<1x16x16xbf16>
    %246 = vector.shape_cast %245 : vector<1x16x16xbf16> to vector<16x16xbf16>
    %c2_172 = arith.constant 2 : index
    %c0_173 = arith.constant 0 : index
    %c0_174 = arith.constant 0 : index
    %247 = vector.load %arg17[%c2_172, %c0_173, %c0_174] : memref<3x16x16xbf16, #tpu.memory_space<vmem>>, vector<1x16x16xbf16>
    %248 = vector.shape_cast %247 : vector<1x16x16xbf16> to vector<16x16xbf16>
    %cst_175 = arith.constant dense<0.000000e+00> : vector<2x16xf32>
    %249 = tpu.matmul %242, %246, %cst_175 {dimension_numbers = #tpu.dot_dimension_numbers<[1], [0], [0], [1], [0, 0, 1, 1], [], []>} : vector<2x16xbf16>, vector<16x16xbf16>, vector<2x16xf32> -> vector<2x16xf32>
    %cst_176 = arith.constant dense<0.000000e+00> : vector<2x16xf32>
    %250 = tpu.matmul %244, %248, %cst_176 {dimension_numbers = #tpu.dot_dimension_numbers<[1], [0], [0], [1], [0, 0, 1, 1], [], []>} : vector<2x16xbf16>, vector<16x16xbf16>, vector<2x16xf32> -> vector<2x16xf32>
    %cst_177 = arith.constant dense<0.000000e+00> : vector<2x16xf32>
    %251 = tpu.matmul %242, %248, %cst_177 {dimension_numbers = #tpu.dot_dimension_numbers<[1], [0], [0], [1], [0, 0, 1, 1], [], []>} : vector<2x16xbf16>, vector<16x16xbf16>, vector<2x16xf32> -> vector<2x16xf32>
    %cst_178 = arith.constant dense<0.000000e+00> : vector<2x16xf32>
    %252 = tpu.matmul %244, %246, %cst_178 {dimension_numbers = #tpu.dot_dimension_numbers<[1], [0], [0], [1], [0, 0, 1, 1], [], []>} : vector<2x16xbf16>, vector<16x16xbf16>, vector<2x16xf32> -> vector<2x16xf32>
    %253 = arith.subf %249, %250 : vector<2x16xf32>
    %254 = arith.addf %251, %252 : vector<2x16xf32>
    %255 = arith.addf %237, %253 : vector<2x16xf32>
    %256 = arith.addf %238, %254 : vector<2x16xf32>
    %c0_179 = arith.constant 0 : index
    %c0_180 = arith.constant 0 : index
    %257 = vector.load %arg18[%c0_179, %c0_180] : memref<1x16xf32, #tpu.memory_space<vmem>>, vector<1x16xf32>
    %258 = vector.broadcast %257 : vector<1x16xf32> to vector<2x16xf32>
    %259 = arith.addf %255, %258 : vector<2x16xf32>
    %c0_181 = arith.constant 0 : index
    %c0_182 = arith.constant 0 : index
    %260 = vector.load %arg19[%c0_181, %c0_182] : memref<1x16xf32, #tpu.memory_space<vmem>>, vector<1x16xf32>
    %261 = vector.broadcast %260 : vector<1x16xf32> to vector<2x16xf32>
    %262 = arith.addf %256, %261 : vector<2x16xf32>
    %263 = arith.truncf %259 : vector<2x16xf32> to vector<2x16xbf16>
    %264 = arith.truncf %262 : vector<2x16xf32> to vector<2x16xbf16>
    %cst_183 = arith.constant 0.000000e+00 : bf16
    %265 = vector.broadcast %cst_183 : bf16 to vector<1x16xbf16>
    %266 = tpu.concatenate %265, %263, %265 in 0 : vector<1x16xbf16>, vector<2x16xbf16>, vector<1x16xbf16> -> vector<4x16xbf16>
    %267 = tpu.concatenate %265, %264, %265 in 0 : vector<1x16xbf16>, vector<2x16xbf16>, vector<1x16xbf16> -> vector<4x16xbf16>
    %cst_184 = arith.constant 0.000000e+00 : f32
    %268 = vector.broadcast %cst_184 : f32 to vector<2x24xf32>
    %cst_185 = arith.constant 0.000000e+00 : f32
    %269 = vector.broadcast %cst_185 : f32 to vector<2x24xf32>
    %270 = vector.extract_strided_slice %266 {offsets = [0, 0], sizes = [2, 16], strides = [1, 1]} : vector<4x16xbf16> to vector<2x16xbf16>
    %271 = vector.extract_strided_slice %267 {offsets = [0, 0], sizes = [2, 16], strides = [1, 1]} : vector<4x16xbf16> to vector<2x16xbf16>
    %c0_186 = arith.constant 0 : index
    %c0_187 = arith.constant 0 : index
    %c0_188 = arith.constant 0 : index
    %272 = vector.load %arg21[%c0_186, %c0_187, %c0_188] : memref<3x16x24xbf16, #tpu.memory_space<vmem>>, vector<1x16x24xbf16>
    %273 = vector.shape_cast %272 : vector<1x16x24xbf16> to vector<16x24xbf16>
    %c0_189 = arith.constant 0 : index
    %c0_190 = arith.constant 0 : index
    %c0_191 = arith.constant 0 : index
    %274 = vector.load %arg22[%c0_189, %c0_190, %c0_191] : memref<3x16x24xbf16, #tpu.memory_space<vmem>>, vector<1x16x24xbf16>
    %275 = vector.shape_cast %274 : vector<1x16x24xbf16> to vector<16x24xbf16>
    %cst_192 = arith.constant dense<0.000000e+00> : vector<2x24xf32>
    %276 = tpu.matmul %270, %273, %cst_192 {dimension_numbers = #tpu.dot_dimension_numbers<[1], [0], [0], [1], [0, 0, 1, 1], [], []>} : vector<2x16xbf16>, vector<16x24xbf16>, vector<2x24xf32> -> vector<2x24xf32>
    %cst_193 = arith.constant dense<0.000000e+00> : vector<2x24xf32>
    %277 = tpu.matmul %271, %275, %cst_193 {dimension_numbers = #tpu.dot_dimension_numbers<[1], [0], [0], [1], [0, 0, 1, 1], [], []>} : vector<2x16xbf16>, vector<16x24xbf16>, vector<2x24xf32> -> vector<2x24xf32>
    %cst_194 = arith.constant dense<0.000000e+00> : vector<2x24xf32>
    %278 = tpu.matmul %270, %275, %cst_194 {dimension_numbers = #tpu.dot_dimension_numbers<[1], [0], [0], [1], [0, 0, 1, 1], [], []>} : vector<2x16xbf16>, vector<16x24xbf16>, vector<2x24xf32> -> vector<2x24xf32>
    %cst_195 = arith.constant dense<0.000000e+00> : vector<2x24xf32>
    %279 = tpu.matmul %271, %273, %cst_195 {dimension_numbers = #tpu.dot_dimension_numbers<[1], [0], [0], [1], [0, 0, 1, 1], [], []>} : vector<2x16xbf16>, vector<16x24xbf16>, vector<2x24xf32> -> vector<2x24xf32>
    %280 = arith.subf %276, %277 : vector<2x24xf32>
    %281 = arith.addf %278, %279 : vector<2x24xf32>
    %282 = arith.addf %268, %280 : vector<2x24xf32>
    %283 = arith.addf %269, %281 : vector<2x24xf32>
    %284 = vector.extract_strided_slice %266 {offsets = [1, 0], sizes = [2, 16], strides = [1, 1]} : vector<4x16xbf16> to vector<2x16xbf16>
    %285 = vector.extract_strided_slice %267 {offsets = [1, 0], sizes = [2, 16], strides = [1, 1]} : vector<4x16xbf16> to vector<2x16xbf16>
    %c1_196 = arith.constant 1 : index
    %c0_197 = arith.constant 0 : index
    %c0_198 = arith.constant 0 : index
    %286 = vector.load %arg21[%c1_196, %c0_197, %c0_198] : memref<3x16x24xbf16, #tpu.memory_space<vmem>>, vector<1x16x24xbf16>
    %287 = vector.shape_cast %286 : vector<1x16x24xbf16> to vector<16x24xbf16>
    %c1_199 = arith.constant 1 : index
    %c0_200 = arith.constant 0 : index
    %c0_201 = arith.constant 0 : index
    %288 = vector.load %arg22[%c1_199, %c0_200, %c0_201] : memref<3x16x24xbf16, #tpu.memory_space<vmem>>, vector<1x16x24xbf16>
    %289 = vector.shape_cast %288 : vector<1x16x24xbf16> to vector<16x24xbf16>
    %cst_202 = arith.constant dense<0.000000e+00> : vector<2x24xf32>
    %290 = tpu.matmul %284, %287, %cst_202 {dimension_numbers = #tpu.dot_dimension_numbers<[1], [0], [0], [1], [0, 0, 1, 1], [], []>} : vector<2x16xbf16>, vector<16x24xbf16>, vector<2x24xf32> -> vector<2x24xf32>
    %cst_203 = arith.constant dense<0.000000e+00> : vector<2x24xf32>
    %291 = tpu.matmul %285, %289, %cst_203 {dimension_numbers = #tpu.dot_dimension_numbers<[1], [0], [0], [1], [0, 0, 1, 1], [], []>} : vector<2x16xbf16>, vector<16x24xbf16>, vector<2x24xf32> -> vector<2x24xf32>
    %cst_204 = arith.constant dense<0.000000e+00> : vector<2x24xf32>
    %292 = tpu.matmul %284, %289, %cst_204 {dimension_numbers = #tpu.dot_dimension_numbers<[1], [0], [0], [1], [0, 0, 1, 1], [], []>} : vector<2x16xbf16>, vector<16x24xbf16>, vector<2x24xf32> -> vector<2x24xf32>
    %cst_205 = arith.constant dense<0.000000e+00> : vector<2x24xf32>
    %293 = tpu.matmul %285, %287, %cst_205 {dimension_numbers = #tpu.dot_dimension_numbers<[1], [0], [0], [1], [0, 0, 1, 1], [], []>} : vector<2x16xbf16>, vector<16x24xbf16>, vector<2x24xf32> -> vector<2x24xf32>
    %294 = arith.subf %290, %291 : vector<2x24xf32>
    %295 = arith.addf %292, %293 : vector<2x24xf32>
    %296 = arith.addf %282, %294 : vector<2x24xf32>
    %297 = arith.addf %283, %295 : vector<2x24xf32>
    %298 = vector.extract_strided_slice %266 {offsets = [2, 0], sizes = [2, 16], strides = [1, 1]} : vector<4x16xbf16> to vector<2x16xbf16>
    %299 = vector.extract_strided_slice %267 {offsets = [2, 0], sizes = [2, 16], strides = [1, 1]} : vector<4x16xbf16> to vector<2x16xbf16>
    %c2_206 = arith.constant 2 : index
    %c0_207 = arith.constant 0 : index
    %c0_208 = arith.constant 0 : index
    %300 = vector.load %arg21[%c2_206, %c0_207, %c0_208] : memref<3x16x24xbf16, #tpu.memory_space<vmem>>, vector<1x16x24xbf16>
    %301 = vector.shape_cast %300 : vector<1x16x24xbf16> to vector<16x24xbf16>
    %c2_209 = arith.constant 2 : index
    %c0_210 = arith.constant 0 : index
    %c0_211 = arith.constant 0 : index
    %302 = vector.load %arg22[%c2_209, %c0_210, %c0_211] : memref<3x16x24xbf16, #tpu.memory_space<vmem>>, vector<1x16x24xbf16>
    %303 = vector.shape_cast %302 : vector<1x16x24xbf16> to vector<16x24xbf16>
    %cst_212 = arith.constant dense<0.000000e+00> : vector<2x24xf32>
    %304 = tpu.matmul %298, %301, %cst_212 {dimension_numbers = #tpu.dot_dimension_numbers<[1], [0], [0], [1], [0, 0, 1, 1], [], []>} : vector<2x16xbf16>, vector<16x24xbf16>, vector<2x24xf32> -> vector<2x24xf32>
    %cst_213 = arith.constant dense<0.000000e+00> : vector<2x24xf32>
    %305 = tpu.matmul %299, %303, %cst_213 {dimension_numbers = #tpu.dot_dimension_numbers<[1], [0], [0], [1], [0, 0, 1, 1], [], []>} : vector<2x16xbf16>, vector<16x24xbf16>, vector<2x24xf32> -> vector<2x24xf32>
    %cst_214 = arith.constant dense<0.000000e+00> : vector<2x24xf32>
    %306 = tpu.matmul %298, %303, %cst_214 {dimension_numbers = #tpu.dot_dimension_numbers<[1], [0], [0], [1], [0, 0, 1, 1], [], []>} : vector<2x16xbf16>, vector<16x24xbf16>, vector<2x24xf32> -> vector<2x24xf32>
    %cst_215 = arith.constant dense<0.000000e+00> : vector<2x24xf32>
    %307 = tpu.matmul %299, %301, %cst_215 {dimension_numbers = #tpu.dot_dimension_numbers<[1], [0], [0], [1], [0, 0, 1, 1], [], []>} : vector<2x16xbf16>, vector<16x24xbf16>, vector<2x24xf32> -> vector<2x24xf32>
    %308 = arith.subf %304, %305 : vector<2x24xf32>
    %309 = arith.addf %306, %307 : vector<2x24xf32>
    %310 = arith.addf %296, %308 : vector<2x24xf32>
    %311 = arith.addf %297, %309 : vector<2x24xf32>
    %c0_216 = arith.constant 0 : index
    %c0_217 = arith.constant 0 : index
    %312 = vector.load %arg23[%c0_216, %c0_217] : memref<1x24xf32, #tpu.memory_space<vmem>>, vector<1x24xf32>
    %313 = vector.broadcast %312 : vector<1x24xf32> to vector<2x24xf32>
    %314 = arith.addf %310, %313 : vector<2x24xf32>
    %c0_218 = arith.constant 0 : index
    %c0_219 = arith.constant 0 : index
    %315 = vector.load %arg24[%c0_218, %c0_219] : memref<1x24xf32, #tpu.memory_space<vmem>>, vector<1x24xf32>
    %316 = vector.broadcast %315 : vector<1x24xf32> to vector<2x24xf32>
    %317 = arith.addf %311, %316 : vector<2x24xf32>
    %318 = arith.mulf %314, %314 : vector<2x24xf32>
    %319 = arith.mulf %317, %317 : vector<2x24xf32>
    %320 = arith.addf %318, %319 : vector<2x24xf32>
    %cst_220 = arith.constant 1.000000e-10 : f32
    %321 = vector.broadcast %cst_220 : f32 to vector<2x24xf32>
    %322 = arith.maximumf %320, %321 : vector<2x24xf32>
    %323 = math.rsqrt %322 : vector<2x24xf32>
    %cst_221 = arith.constant 5.000000e-01 : f32
    %324 = vector.broadcast %cst_221 : f32 to vector<2x24xf32>
    %325 = arith.mulf %324, %323 : vector<2x24xf32>
    %cst_222 = arith.constant 1.000000e+00 : f32
    %326 = vector.broadcast %cst_222 : f32 to vector<2x24xf32>
    %327 = arith.subf %326, %325 : vector<2x24xf32>
    %cst_223 = arith.constant 0.000000e+00 : f32
    %328 = vector.broadcast %cst_223 : f32 to vector<2x24xf32>
    %329 = arith.maximumf %327, %328 : vector<2x24xf32>
    %330 = arith.mulf %314, %329 : vector<2x24xf32>
    %331 = arith.mulf %317, %329 : vector<2x24xf32>
    %332 = arith.truncf %330 : vector<2x24xf32> to vector<2x24xbf16>
    %333 = arith.truncf %331 : vector<2x24xf32> to vector<2x24xbf16>
    %cst_224 = arith.constant 0.000000e+00 : bf16
    %334 = vector.broadcast %cst_224 : bf16 to vector<1x24xbf16>
    %335 = tpu.concatenate %334, %332, %334 in 0 : vector<1x24xbf16>, vector<2x24xbf16>, vector<1x24xbf16> -> vector<4x24xbf16>
    %336 = tpu.concatenate %334, %333, %334 in 0 : vector<1x24xbf16>, vector<2x24xbf16>, vector<1x24xbf16> -> vector<4x24xbf16>
    %cst_225 = arith.constant 0.000000e+00 : f32
    %337 = vector.broadcast %cst_225 : f32 to vector<2x24xf32>
    %cst_226 = arith.constant 0.000000e+00 : f32
    %338 = vector.broadcast %cst_226 : f32 to vector<2x24xf32>
    %339 = vector.extract_strided_slice %335 {offsets = [0, 0], sizes = [2, 24], strides = [1, 1]} : vector<4x24xbf16> to vector<2x24xbf16>
    %340 = vector.extract_strided_slice %336 {offsets = [0, 0], sizes = [2, 24], strides = [1, 1]} : vector<4x24xbf16> to vector<2x24xbf16>
    %c0_227 = arith.constant 0 : index
    %c0_228 = arith.constant 0 : index
    %c0_229 = arith.constant 0 : index
    %341 = vector.load %arg25[%c0_227, %c0_228, %c0_229] : memref<3x24x24xbf16, #tpu.memory_space<vmem>>, vector<1x24x24xbf16>
    %342 = vector.shape_cast %341 : vector<1x24x24xbf16> to vector<24x24xbf16>
    %c0_230 = arith.constant 0 : index
    %c0_231 = arith.constant 0 : index
    %c0_232 = arith.constant 0 : index
    %343 = vector.load %arg26[%c0_230, %c0_231, %c0_232] : memref<3x24x24xbf16, #tpu.memory_space<vmem>>, vector<1x24x24xbf16>
    %344 = vector.shape_cast %343 : vector<1x24x24xbf16> to vector<24x24xbf16>
    %cst_233 = arith.constant dense<0.000000e+00> : vector<2x24xf32>
    %345 = tpu.matmul %339, %342, %cst_233 {dimension_numbers = #tpu.dot_dimension_numbers<[1], [0], [0], [1], [0, 0, 1, 1], [], []>} : vector<2x24xbf16>, vector<24x24xbf16>, vector<2x24xf32> -> vector<2x24xf32>
    %cst_234 = arith.constant dense<0.000000e+00> : vector<2x24xf32>
    %346 = tpu.matmul %340, %344, %cst_234 {dimension_numbers = #tpu.dot_dimension_numbers<[1], [0], [0], [1], [0, 0, 1, 1], [], []>} : vector<2x24xbf16>, vector<24x24xbf16>, vector<2x24xf32> -> vector<2x24xf32>
    %cst_235 = arith.constant dense<0.000000e+00> : vector<2x24xf32>
    %347 = tpu.matmul %339, %344, %cst_235 {dimension_numbers = #tpu.dot_dimension_numbers<[1], [0], [0], [1], [0, 0, 1, 1], [], []>} : vector<2x24xbf16>, vector<24x24xbf16>, vector<2x24xf32> -> vector<2x24xf32>
    %cst_236 = arith.constant dense<0.000000e+00> : vector<2x24xf32>
    %348 = tpu.matmul %340, %342, %cst_236 {dimension_numbers = #tpu.dot_dimension_numbers<[1], [0], [0], [1], [0, 0, 1, 1], [], []>} : vector<2x24xbf16>, vector<24x24xbf16>, vector<2x24xf32> -> vector<2x24xf32>
    %349 = arith.subf %345, %346 : vector<2x24xf32>
    %350 = arith.addf %347, %348 : vector<2x24xf32>
    %351 = arith.addf %337, %349 : vector<2x24xf32>
    %352 = arith.addf %338, %350 : vector<2x24xf32>
    %353 = vector.extract_strided_slice %335 {offsets = [1, 0], sizes = [2, 24], strides = [1, 1]} : vector<4x24xbf16> to vector<2x24xbf16>
    %354 = vector.extract_strided_slice %336 {offsets = [1, 0], sizes = [2, 24], strides = [1, 1]} : vector<4x24xbf16> to vector<2x24xbf16>
    %c1_237 = arith.constant 1 : index
    %c0_238 = arith.constant 0 : index
    %c0_239 = arith.constant 0 : index
    %355 = vector.load %arg25[%c1_237, %c0_238, %c0_239] : memref<3x24x24xbf16, #tpu.memory_space<vmem>>, vector<1x24x24xbf16>
    %356 = vector.shape_cast %355 : vector<1x24x24xbf16> to vector<24x24xbf16>
    %c1_240 = arith.constant 1 : index
    %c0_241 = arith.constant 0 : index
    %c0_242 = arith.constant 0 : index
    %357 = vector.load %arg26[%c1_240, %c0_241, %c0_242] : memref<3x24x24xbf16, #tpu.memory_space<vmem>>, vector<1x24x24xbf16>
    %358 = vector.shape_cast %357 : vector<1x24x24xbf16> to vector<24x24xbf16>
    %cst_243 = arith.constant dense<0.000000e+00> : vector<2x24xf32>
    %359 = tpu.matmul %353, %356, %cst_243 {dimension_numbers = #tpu.dot_dimension_numbers<[1], [0], [0], [1], [0, 0, 1, 1], [], []>} : vector<2x24xbf16>, vector<24x24xbf16>, vector<2x24xf32> -> vector<2x24xf32>
    %cst_244 = arith.constant dense<0.000000e+00> : vector<2x24xf32>
    %360 = tpu.matmul %354, %358, %cst_244 {dimension_numbers = #tpu.dot_dimension_numbers<[1], [0], [0], [1], [0, 0, 1, 1], [], []>} : vector<2x24xbf16>, vector<24x24xbf16>, vector<2x24xf32> -> vector<2x24xf32>
    %cst_245 = arith.constant dense<0.000000e+00> : vector<2x24xf32>
    %361 = tpu.matmul %353, %358, %cst_245 {dimension_numbers = #tpu.dot_dimension_numbers<[1], [0], [0], [1], [0, 0, 1, 1], [], []>} : vector<2x24xbf16>, vector<24x24xbf16>, vector<2x24xf32> -> vector<2x24xf32>
    %cst_246 = arith.constant dense<0.000000e+00> : vector<2x24xf32>
    %362 = tpu.matmul %354, %356, %cst_246 {dimension_numbers = #tpu.dot_dimension_numbers<[1], [0], [0], [1], [0, 0, 1, 1], [], []>} : vector<2x24xbf16>, vector<24x24xbf16>, vector<2x24xf32> -> vector<2x24xf32>
    %363 = arith.subf %359, %360 : vector<2x24xf32>
    %364 = arith.addf %361, %362 : vector<2x24xf32>
    %365 = arith.addf %351, %363 : vector<2x24xf32>
    %366 = arith.addf %352, %364 : vector<2x24xf32>
    %367 = vector.extract_strided_slice %335 {offsets = [2, 0], sizes = [2, 24], strides = [1, 1]} : vector<4x24xbf16> to vector<2x24xbf16>
    %368 = vector.extract_strided_slice %336 {offsets = [2, 0], sizes = [2, 24], strides = [1, 1]} : vector<4x24xbf16> to vector<2x24xbf16>
    %c2_247 = arith.constant 2 : index
    %c0_248 = arith.constant 0 : index
    %c0_249 = arith.constant 0 : index
    %369 = vector.load %arg25[%c2_247, %c0_248, %c0_249] : memref<3x24x24xbf16, #tpu.memory_space<vmem>>, vector<1x24x24xbf16>
    %370 = vector.shape_cast %369 : vector<1x24x24xbf16> to vector<24x24xbf16>
    %c2_250 = arith.constant 2 : index
    %c0_251 = arith.constant 0 : index
    %c0_252 = arith.constant 0 : index
    %371 = vector.load %arg26[%c2_250, %c0_251, %c0_252] : memref<3x24x24xbf16, #tpu.memory_space<vmem>>, vector<1x24x24xbf16>
    %372 = vector.shape_cast %371 : vector<1x24x24xbf16> to vector<24x24xbf16>
    %cst_253 = arith.constant dense<0.000000e+00> : vector<2x24xf32>
    %373 = tpu.matmul %367, %370, %cst_253 {dimension_numbers = #tpu.dot_dimension_numbers<[1], [0], [0], [1], [0, 0, 1, 1], [], []>} : vector<2x24xbf16>, vector<24x24xbf16>, vector<2x24xf32> -> vector<2x24xf32>
    %cst_254 = arith.constant dense<0.000000e+00> : vector<2x24xf32>
    %374 = tpu.matmul %368, %372, %cst_254 {dimension_numbers = #tpu.dot_dimension_numbers<[1], [0], [0], [1], [0, 0, 1, 1], [], []>} : vector<2x24xbf16>, vector<24x24xbf16>, vector<2x24xf32> -> vector<2x24xf32>
    %cst_255 = arith.constant dense<0.000000e+00> : vector<2x24xf32>
    %375 = tpu.matmul %367, %372, %cst_255 {dimension_numbers = #tpu.dot_dimension_numbers<[1], [0], [0], [1], [0, 0, 1, 1], [], []>} : vector<2x24xbf16>, vector<24x24xbf16>, vector<2x24xf32> -> vector<2x24xf32>
    %cst_256 = arith.constant dense<0.000000e+00> : vector<2x24xf32>
    %376 = tpu.matmul %368, %370, %cst_256 {dimension_numbers = #tpu.dot_dimension_numbers<[1], [0], [0], [1], [0, 0, 1, 1], [], []>} : vector<2x24xbf16>, vector<24x24xbf16>, vector<2x24xf32> -> vector<2x24xf32>
    %377 = arith.subf %373, %374 : vector<2x24xf32>
    %378 = arith.addf %375, %376 : vector<2x24xf32>
    %379 = arith.addf %365, %377 : vector<2x24xf32>
    %380 = arith.addf %366, %378 : vector<2x24xf32>
    %c0_257 = arith.constant 0 : index
    %c0_258 = arith.constant 0 : index
    %381 = vector.load %arg27[%c0_257, %c0_258] : memref<1x24xf32, #tpu.memory_space<vmem>>, vector<1x24xf32>
    %382 = vector.broadcast %381 : vector<1x24xf32> to vector<2x24xf32>
    %383 = arith.addf %379, %382 : vector<2x24xf32>
    %c0_259 = arith.constant 0 : index
    %c0_260 = arith.constant 0 : index
    %384 = vector.load %arg28[%c0_259, %c0_260] : memref<1x24xf32, #tpu.memory_space<vmem>>, vector<1x24xf32>
    %385 = vector.broadcast %384 : vector<1x24xf32> to vector<2x24xf32>
    %386 = arith.addf %380, %385 : vector<2x24xf32>
    %387 = arith.mulf %383, %383 : vector<2x24xf32>
    %388 = arith.mulf %386, %386 : vector<2x24xf32>
    %389 = arith.addf %387, %388 : vector<2x24xf32>
    %cst_261 = arith.constant 1.000000e-10 : f32
    %390 = vector.broadcast %cst_261 : f32 to vector<2x24xf32>
    %391 = arith.maximumf %389, %390 : vector<2x24xf32>
    %392 = math.rsqrt %391 : vector<2x24xf32>
    %cst_262 = arith.constant 5.000000e-01 : f32
    %393 = vector.broadcast %cst_262 : f32 to vector<2x24xf32>
    %394 = arith.mulf %393, %392 : vector<2x24xf32>
    %cst_263 = arith.constant 1.000000e+00 : f32
    %395 = vector.broadcast %cst_263 : f32 to vector<2x24xf32>
    %396 = arith.subf %395, %394 : vector<2x24xf32>
    %cst_264 = arith.constant 0.000000e+00 : f32
    %397 = vector.broadcast %cst_264 : f32 to vector<2x24xf32>
    %398 = arith.maximumf %396, %397 : vector<2x24xf32>
    %399 = arith.mulf %383, %398 : vector<2x24xf32>
    %400 = arith.mulf %386, %398 : vector<2x24xf32>
    %401 = arith.truncf %399 : vector<2x24xf32> to vector<2x24xbf16>
    %402 = arith.truncf %400 : vector<2x24xf32> to vector<2x24xbf16>
    %cst_265 = arith.constant 0.000000e+00 : bf16
    %403 = vector.broadcast %cst_265 : bf16 to vector<1x24xbf16>
    %404 = tpu.concatenate %403, %401, %403 in 0 : vector<1x24xbf16>, vector<2x24xbf16>, vector<1x24xbf16> -> vector<4x24xbf16>
    %405 = tpu.concatenate %403, %402, %403 in 0 : vector<1x24xbf16>, vector<2x24xbf16>, vector<1x24xbf16> -> vector<4x24xbf16>
    %cst_266 = arith.constant 0.000000e+00 : f32
    %406 = vector.broadcast %cst_266 : f32 to vector<2x16xf32>
    %cst_267 = arith.constant 0.000000e+00 : f32
    %407 = vector.broadcast %cst_267 : f32 to vector<2x16xf32>
    %408 = vector.extract_strided_slice %404 {offsets = [0, 0], sizes = [2, 24], strides = [1, 1]} : vector<4x24xbf16> to vector<2x24xbf16>
    %409 = vector.extract_strided_slice %405 {offsets = [0, 0], sizes = [2, 24], strides = [1, 1]} : vector<4x24xbf16> to vector<2x24xbf16>
    %c0_268 = arith.constant 0 : index
    %c0_269 = arith.constant 0 : index
    %c0_270 = arith.constant 0 : index
    %410 = vector.load %arg29[%c0_268, %c0_269, %c0_270] : memref<3x24x16xbf16, #tpu.memory_space<vmem>>, vector<1x24x16xbf16>
    %411 = vector.shape_cast %410 : vector<1x24x16xbf16> to vector<24x16xbf16>
    %c0_271 = arith.constant 0 : index
    %c0_272 = arith.constant 0 : index
    %c0_273 = arith.constant 0 : index
    %412 = vector.load %arg30[%c0_271, %c0_272, %c0_273] : memref<3x24x16xbf16, #tpu.memory_space<vmem>>, vector<1x24x16xbf16>
    %413 = vector.shape_cast %412 : vector<1x24x16xbf16> to vector<24x16xbf16>
    %cst_274 = arith.constant dense<0.000000e+00> : vector<2x16xf32>
    %414 = tpu.matmul %408, %411, %cst_274 {dimension_numbers = #tpu.dot_dimension_numbers<[1], [0], [0], [1], [0, 0, 1, 1], [], []>} : vector<2x24xbf16>, vector<24x16xbf16>, vector<2x16xf32> -> vector<2x16xf32>
    %cst_275 = arith.constant dense<0.000000e+00> : vector<2x16xf32>
    %415 = tpu.matmul %409, %413, %cst_275 {dimension_numbers = #tpu.dot_dimension_numbers<[1], [0], [0], [1], [0, 0, 1, 1], [], []>} : vector<2x24xbf16>, vector<24x16xbf16>, vector<2x16xf32> -> vector<2x16xf32>
    %cst_276 = arith.constant dense<0.000000e+00> : vector<2x16xf32>
    %416 = tpu.matmul %408, %413, %cst_276 {dimension_numbers = #tpu.dot_dimension_numbers<[1], [0], [0], [1], [0, 0, 1, 1], [], []>} : vector<2x24xbf16>, vector<24x16xbf16>, vector<2x16xf32> -> vector<2x16xf32>
    %cst_277 = arith.constant dense<0.000000e+00> : vector<2x16xf32>
    %417 = tpu.matmul %409, %411, %cst_277 {dimension_numbers = #tpu.dot_dimension_numbers<[1], [0], [0], [1], [0, 0, 1, 1], [], []>} : vector<2x24xbf16>, vector<24x16xbf16>, vector<2x16xf32> -> vector<2x16xf32>
    %418 = arith.subf %414, %415 : vector<2x16xf32>
    %419 = arith.addf %416, %417 : vector<2x16xf32>
    %420 = arith.addf %406, %418 : vector<2x16xf32>
    %421 = arith.addf %407, %419 : vector<2x16xf32>
    %422 = vector.extract_strided_slice %404 {offsets = [1, 0], sizes = [2, 24], strides = [1, 1]} : vector<4x24xbf16> to vector<2x24xbf16>
    %423 = vector.extract_strided_slice %405 {offsets = [1, 0], sizes = [2, 24], strides = [1, 1]} : vector<4x24xbf16> to vector<2x24xbf16>
    %c1_278 = arith.constant 1 : index
    %c0_279 = arith.constant 0 : index
    %c0_280 = arith.constant 0 : index
    %424 = vector.load %arg29[%c1_278, %c0_279, %c0_280] : memref<3x24x16xbf16, #tpu.memory_space<vmem>>, vector<1x24x16xbf16>
    %425 = vector.shape_cast %424 : vector<1x24x16xbf16> to vector<24x16xbf16>
    %c1_281 = arith.constant 1 : index
    %c0_282 = arith.constant 0 : index
    %c0_283 = arith.constant 0 : index
    %426 = vector.load %arg30[%c1_281, %c0_282, %c0_283] : memref<3x24x16xbf16, #tpu.memory_space<vmem>>, vector<1x24x16xbf16>
    %427 = vector.shape_cast %426 : vector<1x24x16xbf16> to vector<24x16xbf16>
    %cst_284 = arith.constant dense<0.000000e+00> : vector<2x16xf32>
    %428 = tpu.matmul %422, %425, %cst_284 {dimension_numbers = #tpu.dot_dimension_numbers<[1], [0], [0], [1], [0, 0, 1, 1], [], []>} : vector<2x24xbf16>, vector<24x16xbf16>, vector<2x16xf32> -> vector<2x16xf32>
    %cst_285 = arith.constant dense<0.000000e+00> : vector<2x16xf32>
    %429 = tpu.matmul %423, %427, %cst_285 {dimension_numbers = #tpu.dot_dimension_numbers<[1], [0], [0], [1], [0, 0, 1, 1], [], []>} : vector<2x24xbf16>, vector<24x16xbf16>, vector<2x16xf32> -> vector<2x16xf32>
    %cst_286 = arith.constant dense<0.000000e+00> : vector<2x16xf32>
    %430 = tpu.matmul %422, %427, %cst_286 {dimension_numbers = #tpu.dot_dimension_numbers<[1], [0], [0], [1], [0, 0, 1, 1], [], []>} : vector<2x24xbf16>, vector<24x16xbf16>, vector<2x16xf32> -> vector<2x16xf32>
    %cst_287 = arith.constant dense<0.000000e+00> : vector<2x16xf32>
    %431 = tpu.matmul %423, %425, %cst_287 {dimension_numbers = #tpu.dot_dimension_numbers<[1], [0], [0], [1], [0, 0, 1, 1], [], []>} : vector<2x24xbf16>, vector<24x16xbf16>, vector<2x16xf32> -> vector<2x16xf32>
    %432 = arith.subf %428, %429 : vector<2x16xf32>
    %433 = arith.addf %430, %431 : vector<2x16xf32>
    %434 = arith.addf %420, %432 : vector<2x16xf32>
    %435 = arith.addf %421, %433 : vector<2x16xf32>
    %436 = vector.extract_strided_slice %404 {offsets = [2, 0], sizes = [2, 24], strides = [1, 1]} : vector<4x24xbf16> to vector<2x24xbf16>
    %437 = vector.extract_strided_slice %405 {offsets = [2, 0], sizes = [2, 24], strides = [1, 1]} : vector<4x24xbf16> to vector<2x24xbf16>
    %c2_288 = arith.constant 2 : index
    %c0_289 = arith.constant 0 : index
    %c0_290 = arith.constant 0 : index
    %438 = vector.load %arg29[%c2_288, %c0_289, %c0_290] : memref<3x24x16xbf16, #tpu.memory_space<vmem>>, vector<1x24x16xbf16>
    %439 = vector.shape_cast %438 : vector<1x24x16xbf16> to vector<24x16xbf16>
    %c2_291 = arith.constant 2 : index
    %c0_292 = arith.constant 0 : index
    %c0_293 = arith.constant 0 : index
    %440 = vector.load %arg30[%c2_291, %c0_292, %c0_293] : memref<3x24x16xbf16, #tpu.memory_space<vmem>>, vector<1x24x16xbf16>
    %441 = vector.shape_cast %440 : vector<1x24x16xbf16> to vector<24x16xbf16>
    %cst_294 = arith.constant dense<0.000000e+00> : vector<2x16xf32>
    %442 = tpu.matmul %436, %439, %cst_294 {dimension_numbers = #tpu.dot_dimension_numbers<[1], [0], [0], [1], [0, 0, 1, 1], [], []>} : vector<2x24xbf16>, vector<24x16xbf16>, vector<2x16xf32> -> vector<2x16xf32>
    %cst_295 = arith.constant dense<0.000000e+00> : vector<2x16xf32>
    %443 = tpu.matmul %437, %441, %cst_295 {dimension_numbers = #tpu.dot_dimension_numbers<[1], [0], [0], [1], [0, 0, 1, 1], [], []>} : vector<2x24xbf16>, vector<24x16xbf16>, vector<2x16xf32> -> vector<2x16xf32>
    %cst_296 = arith.constant dense<0.000000e+00> : vector<2x16xf32>
    %444 = tpu.matmul %436, %441, %cst_296 {dimension_numbers = #tpu.dot_dimension_numbers<[1], [0], [0], [1], [0, 0, 1, 1], [], []>} : vector<2x24xbf16>, vector<24x16xbf16>, vector<2x16xf32> -> vector<2x16xf32>
    %cst_297 = arith.constant dense<0.000000e+00> : vector<2x16xf32>
    %445 = tpu.matmul %437, %439, %cst_297 {dimension_numbers = #tpu.dot_dimension_numbers<[1], [0], [0], [1], [0, 0, 1, 1], [], []>} : vector<2x24xbf16>, vector<24x16xbf16>, vector<2x16xf32> -> vector<2x16xf32>
    %446 = arith.subf %442, %443 : vector<2x16xf32>
    %447 = arith.addf %444, %445 : vector<2x16xf32>
    %448 = arith.addf %434, %446 : vector<2x16xf32>
    %449 = arith.addf %435, %447 : vector<2x16xf32>
    %c0_298 = arith.constant 0 : index
    %c0_299 = arith.constant 0 : index
    %450 = vector.load %arg31[%c0_298, %c0_299] : memref<1x16xf32, #tpu.memory_space<vmem>>, vector<1x16xf32>
    %451 = vector.broadcast %450 : vector<1x16xf32> to vector<2x16xf32>
    %452 = arith.addf %448, %451 : vector<2x16xf32>
    %c0_300 = arith.constant 0 : index
    %c0_301 = arith.constant 0 : index
    %453 = vector.load %arg32[%c0_300, %c0_301] : memref<1x16xf32, #tpu.memory_space<vmem>>, vector<1x16xf32>
    %454 = vector.broadcast %453 : vector<1x16xf32> to vector<2x16xf32>
    %455 = arith.addf %449, %454 : vector<2x16xf32>
    %456 = arith.mulf %452, %452 : vector<2x16xf32>
    %457 = arith.mulf %455, %455 : vector<2x16xf32>
    %458 = arith.addf %456, %457 : vector<2x16xf32>
    %cst_302 = arith.constant 1.000000e-10 : f32
    %459 = vector.broadcast %cst_302 : f32 to vector<2x16xf32>
    %460 = arith.maximumf %458, %459 : vector<2x16xf32>
    %461 = math.rsqrt %460 : vector<2x16xf32>
    %cst_303 = arith.constant 5.000000e-01 : f32
    %462 = vector.broadcast %cst_303 : f32 to vector<2x16xf32>
    %463 = arith.mulf %462, %461 : vector<2x16xf32>
    %cst_304 = arith.constant 1.000000e+00 : f32
    %464 = vector.broadcast %cst_304 : f32 to vector<2x16xf32>
    %465 = arith.subf %464, %463 : vector<2x16xf32>
    %cst_305 = arith.constant 0.000000e+00 : f32
    %466 = vector.broadcast %cst_305 : f32 to vector<2x16xf32>
    %467 = arith.maximumf %465, %466 : vector<2x16xf32>
    %468 = arith.mulf %452, %467 : vector<2x16xf32>
    %469 = arith.mulf %455, %467 : vector<2x16xf32>
    %470 = arith.truncf %468 : vector<2x16xf32> to vector<2x16xbf16>
    %471 = arith.truncf %469 : vector<2x16xf32> to vector<2x16xbf16>
    %cst_306 = arith.constant 0.000000e+00 : f32
    %472 = vector.broadcast %cst_306 : f32 to vector<1x32xf32>
    %cst_307 = arith.constant 0.000000e+00 : f32
    %473 = vector.broadcast %cst_307 : f32 to vector<1x32xf32>
    %474 = vector.extract_strided_slice %470 {offsets = [0, 0], sizes = [1, 16], strides = [1, 1]} : vector<2x16xbf16> to vector<1x16xbf16>
    %475 = vector.extract_strided_slice %471 {offsets = [0, 0], sizes = [1, 16], strides = [1, 1]} : vector<2x16xbf16> to vector<1x16xbf16>
    %c0_308 = arith.constant 0 : index
    %c0_309 = arith.constant 0 : index
    %c0_310 = arith.constant 0 : index
    %476 = vector.load %arg33[%c0_308, %c0_309, %c0_310] : memref<2x16x32xbf16, #tpu.memory_space<vmem>>, vector<1x16x32xbf16>
    %477 = vector.shape_cast %476 : vector<1x16x32xbf16> to vector<16x32xbf16>
    %c0_311 = arith.constant 0 : index
    %c0_312 = arith.constant 0 : index
    %c0_313 = arith.constant 0 : index
    %478 = vector.load %arg34[%c0_311, %c0_312, %c0_313] : memref<2x16x32xbf16, #tpu.memory_space<vmem>>, vector<1x16x32xbf16>
    %479 = vector.shape_cast %478 : vector<1x16x32xbf16> to vector<16x32xbf16>
    %cst_314 = arith.constant dense<0.000000e+00> : vector<1x32xf32>
    %480 = tpu.matmul %474, %477, %cst_314 {dimension_numbers = #tpu.dot_dimension_numbers<[1], [0], [0], [1], [0, 0, 1, 1], [], []>} : vector<1x16xbf16>, vector<16x32xbf16>, vector<1x32xf32> -> vector<1x32xf32>
    %cst_315 = arith.constant dense<0.000000e+00> : vector<1x32xf32>
    %481 = tpu.matmul %475, %479, %cst_315 {dimension_numbers = #tpu.dot_dimension_numbers<[1], [0], [0], [1], [0, 0, 1, 1], [], []>} : vector<1x16xbf16>, vector<16x32xbf16>, vector<1x32xf32> -> vector<1x32xf32>
    %cst_316 = arith.constant dense<0.000000e+00> : vector<1x32xf32>
    %482 = tpu.matmul %474, %479, %cst_316 {dimension_numbers = #tpu.dot_dimension_numbers<[1], [0], [0], [1], [0, 0, 1, 1], [], []>} : vector<1x16xbf16>, vector<16x32xbf16>, vector<1x32xf32> -> vector<1x32xf32>
    %cst_317 = arith.constant dense<0.000000e+00> : vector<1x32xf32>
    %483 = tpu.matmul %475, %477, %cst_317 {dimension_numbers = #tpu.dot_dimension_numbers<[1], [0], [0], [1], [0, 0, 1, 1], [], []>} : vector<1x16xbf16>, vector<16x32xbf16>, vector<1x32xf32> -> vector<1x32xf32>
    %484 = arith.subf %480, %481 : vector<1x32xf32>
    %485 = arith.addf %482, %483 : vector<1x32xf32>
    %486 = arith.addf %472, %484 : vector<1x32xf32>
    %487 = arith.addf %473, %485 : vector<1x32xf32>
    %488 = vector.extract_strided_slice %470 {offsets = [1, 0], sizes = [1, 16], strides = [1, 1]} : vector<2x16xbf16> to vector<1x16xbf16>
    %489 = vector.extract_strided_slice %471 {offsets = [1, 0], sizes = [1, 16], strides = [1, 1]} : vector<2x16xbf16> to vector<1x16xbf16>
    %c1_318 = arith.constant 1 : index
    %c0_319 = arith.constant 0 : index
    %c0_320 = arith.constant 0 : index
    %490 = vector.load %arg33[%c1_318, %c0_319, %c0_320] : memref<2x16x32xbf16, #tpu.memory_space<vmem>>, vector<1x16x32xbf16>
    %491 = vector.shape_cast %490 : vector<1x16x32xbf16> to vector<16x32xbf16>
    %c1_321 = arith.constant 1 : index
    %c0_322 = arith.constant 0 : index
    %c0_323 = arith.constant 0 : index
    %492 = vector.load %arg34[%c1_321, %c0_322, %c0_323] : memref<2x16x32xbf16, #tpu.memory_space<vmem>>, vector<1x16x32xbf16>
    %493 = vector.shape_cast %492 : vector<1x16x32xbf16> to vector<16x32xbf16>
    %cst_324 = arith.constant dense<0.000000e+00> : vector<1x32xf32>
    %494 = tpu.matmul %488, %491, %cst_324 {dimension_numbers = #tpu.dot_dimension_numbers<[1], [0], [0], [1], [0, 0, 1, 1], [], []>} : vector<1x16xbf16>, vector<16x32xbf16>, vector<1x32xf32> -> vector<1x32xf32>
    %cst_325 = arith.constant dense<0.000000e+00> : vector<1x32xf32>
    %495 = tpu.matmul %489, %493, %cst_325 {dimension_numbers = #tpu.dot_dimension_numbers<[1], [0], [0], [1], [0, 0, 1, 1], [], []>} : vector<1x16xbf16>, vector<16x32xbf16>, vector<1x32xf32> -> vector<1x32xf32>
    %cst_326 = arith.constant dense<0.000000e+00> : vector<1x32xf32>
    %496 = tpu.matmul %488, %493, %cst_326 {dimension_numbers = #tpu.dot_dimension_numbers<[1], [0], [0], [1], [0, 0, 1, 1], [], []>} : vector<1x16xbf16>, vector<16x32xbf16>, vector<1x32xf32> -> vector<1x32xf32>
    %cst_327 = arith.constant dense<0.000000e+00> : vector<1x32xf32>
    %497 = tpu.matmul %489, %491, %cst_327 {dimension_numbers = #tpu.dot_dimension_numbers<[1], [0], [0], [1], [0, 0, 1, 1], [], []>} : vector<1x16xbf16>, vector<16x32xbf16>, vector<1x32xf32> -> vector<1x32xf32>
    %498 = arith.subf %494, %495 : vector<1x32xf32>
    %499 = arith.addf %496, %497 : vector<1x32xf32>
    %500 = arith.addf %486, %498 : vector<1x32xf32>
    %501 = arith.addf %487, %499 : vector<1x32xf32>
    %c0_328 = arith.constant 0 : index
    %c0_329 = arith.constant 0 : index
    %502 = vector.load %arg35[%c0_328, %c0_329] : memref<1x32xf32, #tpu.memory_space<vmem>>, vector<1x32xf32>
    %503 = arith.addf %500, %502 : vector<1x32xf32>
    %c0_330 = arith.constant 0 : index
    %c0_331 = arith.constant 0 : index
    %504 = vector.load %arg36[%c0_330, %c0_331] : memref<1x32xf32, #tpu.memory_space<vmem>>, vector<1x32xf32>
    %505 = arith.addf %501, %504 : vector<1x32xf32>
    %506 = arith.mulf %503, %503 : vector<1x32xf32>
    %507 = arith.mulf %505, %505 : vector<1x32xf32>
    %508 = arith.addf %506, %507 : vector<1x32xf32>
    %cst_332 = arith.constant 1.000000e-10 : f32
    %509 = vector.broadcast %cst_332 : f32 to vector<1x32xf32>
    %510 = arith.maximumf %508, %509 : vector<1x32xf32>
    %511 = math.rsqrt %510 : vector<1x32xf32>
    %cst_333 = arith.constant 5.000000e-01 : f32
    %512 = vector.broadcast %cst_333 : f32 to vector<1x32xf32>
    %513 = arith.mulf %512, %511 : vector<1x32xf32>
    %cst_334 = arith.constant 1.000000e+00 : f32
    %514 = vector.broadcast %cst_334 : f32 to vector<1x32xf32>
    %515 = arith.subf %514, %513 : vector<1x32xf32>
    %cst_335 = arith.constant 0.000000e+00 : f32
    %516 = vector.broadcast %cst_335 : f32 to vector<1x32xf32>
    %517 = arith.maximumf %515, %516 : vector<1x32xf32>
    %518 = arith.mulf %503, %517 : vector<1x32xf32>
    %519 = arith.mulf %505, %517 : vector<1x32xf32>
    %520 = arith.truncf %518 : vector<1x32xf32> to vector<1x32xbf16>
    %521 = arith.truncf %519 : vector<1x32xf32> to vector<1x32xbf16>
    %c0_336 = arith.constant 0 : index
    %c0_337 = arith.constant 0 : index
    %522 = vector.load %arg37[%c0_336, %c0_337] : memref<32x32xbf16, #tpu.memory_space<vmem>>, vector<32x32xbf16>
    %c0_338 = arith.constant 0 : index
    %c0_339 = arith.constant 0 : index
    %523 = vector.load %arg38[%c0_338, %c0_339] : memref<32x32xbf16, #tpu.memory_space<vmem>>, vector<32x32xbf16>
    %cst_340 = arith.constant dense<0.000000e+00> : vector<1x32xf32>
    %524 = tpu.matmul %520, %522, %cst_340 {dimension_numbers = #tpu.dot_dimension_numbers<[1], [0], [0], [1], [0, 0, 1, 1], [], []>} : vector<1x32xbf16>, vector<32x32xbf16>, vector<1x32xf32> -> vector<1x32xf32>
    %cst_341 = arith.constant dense<0.000000e+00> : vector<1x32xf32>
    %525 = tpu.matmul %521, %523, %cst_341 {dimension_numbers = #tpu.dot_dimension_numbers<[1], [0], [0], [1], [0, 0, 1, 1], [], []>} : vector<1x32xbf16>, vector<32x32xbf16>, vector<1x32xf32> -> vector<1x32xf32>
    %cst_342 = arith.constant dense<0.000000e+00> : vector<1x32xf32>
    %526 = tpu.matmul %520, %523, %cst_342 {dimension_numbers = #tpu.dot_dimension_numbers<[1], [0], [0], [1], [0, 0, 1, 1], [], []>} : vector<1x32xbf16>, vector<32x32xbf16>, vector<1x32xf32> -> vector<1x32xf32>
    %cst_343 = arith.constant dense<0.000000e+00> : vector<1x32xf32>
    %527 = tpu.matmul %521, %522, %cst_343 {dimension_numbers = #tpu.dot_dimension_numbers<[1], [0], [0], [1], [0, 0, 1, 1], [], []>} : vector<1x32xbf16>, vector<32x32xbf16>, vector<1x32xf32> -> vector<1x32xf32>
    %528 = arith.subf %524, %525 : vector<1x32xf32>
    %529 = arith.addf %526, %527 : vector<1x32xf32>
    %c0_344 = arith.constant 0 : index
    %c0_345 = arith.constant 0 : index
    %530 = vector.load %arg39[%c0_344, %c0_345] : memref<1x32xf32, #tpu.memory_space<vmem>>, vector<1x32xf32>
    %531 = arith.addf %528, %530 : vector<1x32xf32>
    %c0_346 = arith.constant 0 : index
    %c0_347 = arith.constant 0 : index
    %532 = vector.load %arg40[%c0_346, %c0_347] : memref<1x32xf32, #tpu.memory_space<vmem>>, vector<1x32xf32>
    %533 = arith.addf %529, %532 : vector<1x32xf32>
    %534 = arith.mulf %531, %531 : vector<1x32xf32>
    %535 = arith.mulf %533, %533 : vector<1x32xf32>
    %536 = arith.addf %534, %535 : vector<1x32xf32>
    %cst_348 = arith.constant 1.000000e-10 : f32
    %537 = vector.broadcast %cst_348 : f32 to vector<1x32xf32>
    %538 = arith.maximumf %536, %537 : vector<1x32xf32>
    %539 = math.rsqrt %538 : vector<1x32xf32>
    %cst_349 = arith.constant 5.000000e-01 : f32
    %540 = vector.broadcast %cst_349 : f32 to vector<1x32xf32>
    %541 = arith.mulf %540, %539 : vector<1x32xf32>
    %cst_350 = arith.constant 1.000000e+00 : f32
    %542 = vector.broadcast %cst_350 : f32 to vector<1x32xf32>
    %543 = arith.subf %542, %541 : vector<1x32xf32>
    %cst_351 = arith.constant 0.000000e+00 : f32
    %544 = vector.broadcast %cst_351 : f32 to vector<1x32xf32>
    %545 = arith.maximumf %543, %544 : vector<1x32xf32>
    %546 = arith.mulf %531, %545 : vector<1x32xf32>
    %547 = arith.mulf %533, %545 : vector<1x32xf32>
    %548 = arith.truncf %546 : vector<1x32xf32> to vector<1x32xbf16>
    %549 = arith.truncf %547 : vector<1x32xf32> to vector<1x32xbf16>
    %c0_352 = arith.constant 0 : index
    %c0_353 = arith.constant 0 : index
    %550 = vector.load %arg41[%c0_352, %c0_353] : memref<32x128xbf16, #tpu.memory_space<vmem>>, vector<32x128xbf16>
    %c0_354 = arith.constant 0 : index
    %c0_355 = arith.constant 0 : index
    %551 = vector.load %arg42[%c0_354, %c0_355] : memref<32x128xbf16, #tpu.memory_space<vmem>>, vector<32x128xbf16>
    %cst_356 = arith.constant dense<0.000000e+00> : vector<1x128xf32>
    %552 = tpu.matmul %548, %550, %cst_356 {dimension_numbers = #tpu.dot_dimension_numbers<[1], [0], [0], [1], [0, 0, 1, 1], [], []>} : vector<1x32xbf16>, vector<32x128xbf16>, vector<1x128xf32> -> vector<1x128xf32>
    %cst_357 = arith.constant dense<0.000000e+00> : vector<1x128xf32>
    %553 = tpu.matmul %549, %551, %cst_357 {dimension_numbers = #tpu.dot_dimension_numbers<[1], [0], [0], [1], [0, 0, 1, 1], [], []>} : vector<1x32xbf16>, vector<32x128xbf16>, vector<1x128xf32> -> vector<1x128xf32>
    %cst_358 = arith.constant dense<0.000000e+00> : vector<1x128xf32>
    %554 = tpu.matmul %548, %551, %cst_358 {dimension_numbers = #tpu.dot_dimension_numbers<[1], [0], [0], [1], [0, 0, 1, 1], [], []>} : vector<1x32xbf16>, vector<32x128xbf16>, vector<1x128xf32> -> vector<1x128xf32>
    %cst_359 = arith.constant dense<0.000000e+00> : vector<1x128xf32>
    %555 = tpu.matmul %549, %550, %cst_359 {dimension_numbers = #tpu.dot_dimension_numbers<[1], [0], [0], [1], [0, 0, 1, 1], [], []>} : vector<1x32xbf16>, vector<32x128xbf16>, vector<1x128xf32> -> vector<1x128xf32>
    %556 = arith.subf %552, %553 : vector<1x128xf32>
    %557 = arith.addf %554, %555 : vector<1x128xf32>
    %c0_360 = arith.constant 0 : index
    %c0_361 = arith.constant 0 : index
    %558 = vector.load %arg43[%c0_360, %c0_361] : memref<1x128xf32, #tpu.memory_space<vmem>>, vector<1x128xf32>
    %559 = arith.addf %556, %558 : vector<1x128xf32>
    %c0_362 = arith.constant 0 : index
    %c0_363 = arith.constant 0 : index
    %560 = vector.load %arg44[%c0_362, %c0_363] : memref<1x128xf32, #tpu.memory_space<vmem>>, vector<1x128xf32>
    %561 = arith.addf %557, %560 : vector<1x128xf32>
    %c0_364 = arith.constant 0 : index
    %c0_365 = arith.constant 0 : index
    %c0_366 = arith.constant 0 : index
    %562 = vector.load %arg45[%c0_364, %c0_365, %c0_366] : memref<1x1x128xf32, #tpu.memory_space<vmem>>, vector<1x1x128xf32>
    %563 = vector.shape_cast %562 : vector<1x1x128xf32> to vector<1x128xf32>
    %564 = vector.shape_cast %559 : vector<1x128xf32> to vector<1x1x128xf32>
    tpu.vector_store %arg45[%c0_364, %c0_365, %c0_366], %564 {strides = array<i32>} : memref<1x1x128xf32, #tpu.memory_space<vmem>>, vector<1x1x128xf32>,
    %c0_367 = arith.constant 0 : index
    %c0_368 = arith.constant 0 : index
    %c0_369 = arith.constant 0 : index
    %565 = vector.load %arg46[%c0_367, %c0_368, %c0_369] : memref<1x1x128xf32, #tpu.memory_space<vmem>>, vector<1x1x128xf32>
    %566 = vector.shape_cast %565 : vector<1x1x128xf32> to vector<1x128xf32>
    %567 = vector.shape_cast %561 : vector<1x128xf32> to vector<1x1x128xf32>
    tpu.vector_store %arg46[%c0_367, %c0_368, %c0_369], %567 {strides = array<i32>} : memref<1x1x128xf32, #tpu.memory_space<vmem>>, vector<1x1x128xf32>,
    return
  }
  func.func @transform_0(%arg0: i32) -> (i32, i32, i32) {
    %c0_i32 = arith.constant 0 : i32
    %c0_i32_0 = arith.constant 0 : i32
    %c0_i32_1 = arith.constant 0 : i32
    return %arg0, %c0_i32, %c0_i32_0 : i32, i32, i32
  }
  func.func @transform_1(%arg0: i32) -> (i32, i32, i32) {
    %c0_i32 = arith.constant 0 : i32
    %c0_i32_0 = arith.constant 0 : i32
    %c0_i32_1 = arith.constant 0 : i32
    return %arg0, %c0_i32, %c0_i32_0 : i32, i32, i32
  }
  func.func @transform_2(%arg0: i32) -> (i32, i32, i32) {
    %c0_i32 = arith.constant 0 : i32
    %c0_i32_0 = arith.constant 0 : i32
    %c0_i32_1 = arith.constant 0 : i32
    %c0_i32_2 = arith.constant 0 : i32
    return %c0_i32, %c0_i32_0, %c0_i32_1 : i32, i32, i32
  }
  func.func @transform_3(%arg0: i32) -> (i32, i32, i32) {
    %c0_i32 = arith.constant 0 : i32
    %c0_i32_0 = arith.constant 0 : i32
    %c0_i32_1 = arith.constant 0 : i32
    %c0_i32_2 = arith.constant 0 : i32
    return %c0_i32, %c0_i32_0, %c0_i32_1 : i32, i32, i32
  }
  func.func @transform_4(%arg0: i32) -> (i32, i32) {
    %c0_i32 = arith.constant 0 : i32
    %c0_i32_0 = arith.constant 0 : i32
    %c0_i32_1 = arith.constant 0 : i32
    return %c0_i32, %c0_i32_0 : i32, i32
  }
  func.func @transform_5(%arg0: i32) -> (i32, i32) {
    %c0_i32 = arith.constant 0 : i32
    %c0_i32_0 = arith.constant 0 : i32
    %c0_i32_1 = arith.constant 0 : i32
    return %c0_i32, %c0_i32_0 : i32, i32
  }
  func.func @transform_6(%arg0: i32) -> (i32, i32, i32) {
    %c0_i32 = arith.constant 0 : i32
    %c0_i32_0 = arith.constant 0 : i32
    %c0_i32_1 = arith.constant 0 : i32
    %c0_i32_2 = arith.constant 0 : i32
    return %c0_i32, %c0_i32_0, %c0_i32_1 : i32, i32, i32
  }
  func.func @transform_7(%arg0: i32) -> (i32, i32, i32) {
    %c0_i32 = arith.constant 0 : i32
    %c0_i32_0 = arith.constant 0 : i32
    %c0_i32_1 = arith.constant 0 : i32
    %c0_i32_2 = arith.constant 0 : i32
    return %c0_i32, %c0_i32_0, %c0_i32_1 : i32, i32, i32
  }
  func.func @transform_8(%arg0: i32) -> (i32, i32) {
    %c0_i32 = arith.constant 0 : i32
    %c0_i32_0 = arith.constant 0 : i32
    %c0_i32_1 = arith.constant 0 : i32
    return %c0_i32, %c0_i32_0 : i32, i32
  }
  func.func @transform_9(%arg0: i32) -> (i32, i32) {
    %c0_i32 = arith.constant 0 : i32
    %c0_i32_0 = arith.constant 0 : i32
    %c0_i32_1 = arith.constant 0 : i32
    return %c0_i32, %c0_i32_0 : i32, i32
  }
  func.func @transform_10(%arg0: i32) -> (i32, i32, i32) {
    %c0_i32 = arith.constant 0 : i32
    %c0_i32_0 = arith.constant 0 : i32
    %c0_i32_1 = arith.constant 0 : i32
    %c0_i32_2 = arith.constant 0 : i32
    return %c0_i32, %c0_i32_0, %c0_i32_1 : i32, i32, i32
  }
  func.func @transform_11(%arg0: i32) -> (i32, i32, i32) {
    %c0_i32 = arith.constant 0 : i32
    %c0_i32_0 = arith.constant 0 : i32
    %c0_i32_1 = arith.constant 0 : i32
    %c0_i32_2 = arith.constant 0 : i32
    return %c0_i32, %c0_i32_0, %c0_i32_1 : i32, i32, i32
  }
  func.func @transform_12(%arg0: i32) -> (i32, i32, i32) {
    %c0_i32 = arith.constant 0 : i32
    %c0_i32_0 = arith.constant 0 : i32
    %c0_i32_1 = arith.constant 0 : i32
    %c0_i32_2 = arith.constant 0 : i32
    return %c0_i32, %c0_i32_0, %c0_i32_1 : i32, i32, i32
  }
  func.func @transform_13(%arg0: i32) -> (i32, i32) {
    %c0_i32 = arith.constant 0 : i32
    %c0_i32_0 = arith.constant 0 : i32
    %c0_i32_1 = arith.constant 0 : i32
    return %c0_i32, %c0_i32_0 : i32, i32
  }
  func.func @transform_14(%arg0: i32) -> (i32, i32) {
    %c0_i32 = arith.constant 0 : i32
    %c0_i32_0 = arith.constant 0 : i32
    %c0_i32_1 = arith.constant 0 : i32
    return %c0_i32, %c0_i32_0 : i32, i32
  }
  func.func @transform_15(%arg0: i32) -> (i32, i32, i32) {
    %c0_i32 = arith.constant 0 : i32
    %c0_i32_0 = arith.constant 0 : i32
    %c0_i32_1 = arith.constant 0 : i32
    %c0_i32_2 = arith.constant 0 : i32
    return %c0_i32, %c0_i32_0, %c0_i32_1 : i32, i32, i32
  }
  func.func @transform_16(%arg0: i32) -> (i32, i32, i32) {
    %c0_i32 = arith.constant 0 : i32
    %c0_i32_0 = arith.constant 0 : i32
    %c0_i32_1 = arith.constant 0 : i32
    %c0_i32_2 = arith.constant 0 : i32
    return %c0_i32, %c0_i32_0, %c0_i32_1 : i32, i32, i32
  }
  func.func @transform_17(%arg0: i32) -> (i32, i32) {
    %c0_i32 = arith.constant 0 : i32
    %c0_i32_0 = arith.constant 0 : i32
    %c0_i32_1 = arith.constant 0 : i32
    return %c0_i32, %c0_i32_0 : i32, i32
  }
  func.func @transform_18(%arg0: i32) -> (i32, i32) {
    %c0_i32 = arith.constant 0 : i32
    %c0_i32_0 = arith.constant 0 : i32
    %c0_i32_1 = arith.constant 0 : i32
    return %c0_i32, %c0_i32_0 : i32, i32
  }
  func.func @transform_19(%arg0: i32) -> (i32, i32, i32) {
    %c0_i32 = arith.constant 0 : i32
    %c0_i32_0 = arith.constant 0 : i32
    %c0_i32_1 = arith.constant 0 : i32
    %c0_i32_2 = arith.constant 0 : i32
    return %c0_i32, %c0_i32_0, %c0_i32_1 : i32, i32, i32
  }
  func.func @transform_20(%arg0: i32) -> (i32, i32, i32) {
    %c0_i32 = arith.constant 0 : i32
    %c0_i32_0 = arith.constant 0 : i32
    %c0_i32_1 = arith.constant 0 : i32
    %c0_i32_2 = arith.constant 0 : i32
    return %c0_i32, %c0_i32_0, %c0_i32_1 : i32, i32, i32
  }
  func.func @transform_21(%arg0: i32) -> (i32, i32, i32) {
    %c0_i32 = arith.constant 0 : i32
    %c0_i32_0 = arith.constant 0 : i32
    %c0_i32_1 = arith.constant 0 : i32
    %c0_i32_2 = arith.constant 0 : i32
    return %c0_i32, %c0_i32_0, %c0_i32_1 : i32, i32, i32
  }
  func.func @transform_22(%arg0: i32) -> (i32, i32) {
    %c0_i32 = arith.constant 0 : i32
    %c0_i32_0 = arith.constant 0 : i32
    %c0_i32_1 = arith.constant 0 : i32
    return %c0_i32, %c0_i32_0 : i32, i32
  }
  func.func @transform_23(%arg0: i32) -> (i32, i32) {
    %c0_i32 = arith.constant 0 : i32
    %c0_i32_0 = arith.constant 0 : i32
    %c0_i32_1 = arith.constant 0 : i32
    return %c0_i32, %c0_i32_0 : i32, i32
  }
  func.func @transform_24(%arg0: i32) -> (i32, i32, i32) {
    %c0_i32 = arith.constant 0 : i32
    %c0_i32_0 = arith.constant 0 : i32
    %c0_i32_1 = arith.constant 0 : i32
    %c0_i32_2 = arith.constant 0 : i32
    return %c0_i32, %c0_i32_0, %c0_i32_1 : i32, i32, i32
  }
  func.func @transform_25(%arg0: i32) -> (i32, i32, i32) {
    %c0_i32 = arith.constant 0 : i32
    %c0_i32_0 = arith.constant 0 : i32
    %c0_i32_1 = arith.constant 0 : i32
    %c0_i32_2 = arith.constant 0 : i32
    return %c0_i32, %c0_i32_0, %c0_i32_1 : i32, i32, i32
  }
  func.func @transform_26(%arg0: i32) -> (i32, i32) {
    %c0_i32 = arith.constant 0 : i32
    %c0_i32_0 = arith.constant 0 : i32
    %c0_i32_1 = arith.constant 0 : i32
    return %c0_i32, %c0_i32_0 : i32, i32
  }
  func.func @transform_27(%arg0: i32) -> (i32, i32) {
    %c0_i32 = arith.constant 0 : i32
    %c0_i32_0 = arith.constant 0 : i32
    %c0_i32_1 = arith.constant 0 : i32
    return %c0_i32, %c0_i32_0 : i32, i32
  }
  func.func @transform_28(%arg0: i32) -> (i32, i32, i32) {
    %c0_i32 = arith.constant 0 : i32
    %c0_i32_0 = arith.constant 0 : i32
    %c0_i32_1 = arith.constant 0 : i32
    %c0_i32_2 = arith.constant 0 : i32
    return %c0_i32, %c0_i32_0, %c0_i32_1 : i32, i32, i32
  }
  func.func @transform_29(%arg0: i32) -> (i32, i32, i32) {
    %c0_i32 = arith.constant 0 : i32
    %c0_i32_0 = arith.constant 0 : i32
    %c0_i32_1 = arith.constant 0 : i32
    %c0_i32_2 = arith.constant 0 : i32
    return %c0_i32, %c0_i32_0, %c0_i32_1 : i32, i32, i32
  }
  func.func @transform_30(%arg0: i32) -> (i32, i32) {
    %c0_i32 = arith.constant 0 : i32
    %c0_i32_0 = arith.constant 0 : i32
    %c0_i32_1 = arith.constant 0 : i32
    return %c0_i32, %c0_i32_0 : i32, i32
  }
  func.func @transform_31(%arg0: i32) -> (i32, i32) {
    %c0_i32 = arith.constant 0 : i32
    %c0_i32_0 = arith.constant 0 : i32
    %c0_i32_1 = arith.constant 0 : i32
    return %c0_i32, %c0_i32_0 : i32, i32
  }
  func.func @transform_32(%arg0: i32) -> (i32, i32, i32) {
    %c0_i32 = arith.constant 0 : i32
    %c0_i32_0 = arith.constant 0 : i32
    %c0_i32_1 = arith.constant 0 : i32
    %c0_i32_2 = arith.constant 0 : i32
    return %c0_i32, %c0_i32_0, %c0_i32_1 : i32, i32, i32
  }
  func.func @transform_33(%arg0: i32) -> (i32, i32, i32) {
    %c0_i32 = arith.constant 0 : i32
    %c0_i32_0 = arith.constant 0 : i32
    %c0_i32_1 = arith.constant 0 : i32
    %c0_i32_2 = arith.constant 0 : i32
    return %c0_i32, %c0_i32_0, %c0_i32_1 : i32, i32, i32
  }
  func.func @transform_34(%arg0: i32) -> (i32, i32) {
    %c0_i32 = arith.constant 0 : i32
    %c0_i32_0 = arith.constant 0 : i32
    %c0_i32_1 = arith.constant 0 : i32
    return %c0_i32, %c0_i32_0 : i32, i32
  }
  func.func @transform_35(%arg0: i32) -> (i32, i32) {
    %c0_i32 = arith.constant 0 : i32
    %c0_i32_0 = arith.constant 0 : i32
    %c0_i32_1 = arith.constant 0 : i32
    return %c0_i32, %c0_i32_0 : i32, i32
  }
  func.func @transform_36(%arg0: i32) -> (i32, i32) {
    %c0_i32 = arith.constant 0 : i32
    %c0_i32_0 = arith.constant 0 : i32
    %c0_i32_1 = arith.constant 0 : i32
    return %c0_i32, %c0_i32_0 : i32, i32
  }
  func.func @transform_37(%arg0: i32) -> (i32, i32) {
    %c0_i32 = arith.constant 0 : i32
    %c0_i32_0 = arith.constant 0 : i32
    %c0_i32_1 = arith.constant 0 : i32
    return %c0_i32, %c0_i32_0 : i32, i32
  }
  func.func @transform_38(%arg0: i32) -> (i32, i32) {
    %c0_i32 = arith.constant 0 : i32
    %c0_i32_0 = arith.constant 0 : i32
    %c0_i32_1 = arith.constant 0 : i32
    return %c0_i32, %c0_i32_0 : i32, i32
  }
  func.func @transform_39(%arg0: i32) -> (i32, i32) {
    %c0_i32 = arith.constant 0 : i32
    %c0_i32_0 = arith.constant 0 : i32
    %c0_i32_1 = arith.constant 0 : i32
    return %c0_i32, %c0_i32_0 : i32, i32
  }
  func.func @transform_40(%arg0: i32) -> (i32, i32) {
    %c0_i32 = arith.constant 0 : i32
    %c0_i32_0 = arith.constant 0 : i32
    %c0_i32_1 = arith.constant 0 : i32
    return %c0_i32, %c0_i32_0 : i32, i32
  }
  func.func @transform_41(%arg0: i32) -> (i32, i32) {
    %c0_i32 = arith.constant 0 : i32
    %c0_i32_0 = arith.constant 0 : i32
    %c0_i32_1 = arith.constant 0 : i32
    return %c0_i32, %c0_i32_0 : i32, i32
  }
  func.func @transform_42(%arg0: i32) -> (i32, i32) {
    %c0_i32 = arith.constant 0 : i32
    %c0_i32_0 = arith.constant 0 : i32
    %c0_i32_1 = arith.constant 0 : i32
    return %c0_i32, %c0_i32_0 : i32, i32
  }
  func.func @transform_43(%arg0: i32) -> (i32, i32) {
    %c0_i32 = arith.constant 0 : i32
    %c0_i32_0 = arith.constant 0 : i32
    %c0_i32_1 = arith.constant 0 : i32
    return %c0_i32, %c0_i32_0 : i32, i32
  }
  func.func @transform_44(%arg0: i32) -> (i32, i32, i32) {
    %c0_i32 = arith.constant 0 : i32
    %c0_i32_0 = arith.constant 0 : i32
    %c0_i32_1 = arith.constant 0 : i32
    return %arg0, %c0_i32, %c0_i32_0 : i32, i32, i32
  }
  func.func @transform_45(%arg0: i32) -> (i32, i32, i32) {
    %c0_i32 = arith.constant 0 : i32
    %c0_i32_0 = arith.constant 0 : i32
    %c0_i32_1 = arith.constant 0 : i32
    return %arg0, %c0_i32, %c0_i32_0 : i32, i32, i32
  }
}

</mosaic_0001>

<llo_original>
// kernel: alexnet_complex_forward.1
$region0: #{alexnet_complex_forward.1}
  #allocation0 [shape = 'u32[]', space=smem, size = 0x4, offset = 0x4, fixed_abs, tag = 'smem constant byte address 0x4 - core index']
  #allocation1 [shape = 'u32[144,128]{1,0:T(1,128)}', space=vmem, size = 0x12000, scoped, tag = 'internal scratch']
  %s0 = inlined_call_operand.smem [shape: u32[46], index: -1, kind: input, shape index: {}]
  %s1 = sld [smem:[%s0]]
  %s2 = scalar_lea.smem %s0, 1
  %s3 = sld [smem:[%s2]]
  %s4 = scalar_lea.smem %s0, 2
  %s5 = sld [smem:[%s4]]
  %s6 = scalar_lea.smem %s0, 3
  %s7 = sld [smem:[%s6]]
  %s8 = scalar_lea.smem %s0, 4
  %s9 = sld [smem:[%s8]]
  %s10 = scalar_lea.smem %s0, 5
  %s11 = sld [smem:[%s10]]
  %s12 = scalar_lea.smem %s0, 6
  %s13 = sld [smem:[%s12]]
  %s14 = scalar_lea.smem %s0, 7
  %s15 = sld [smem:[%s14]]
  %s16 = scalar_lea.smem %s0, 8
  %s17 = sld [smem:[%s16]]
  %s18 = scalar_lea.smem %s0, 9
  %s19 = sld [smem:[%s18]]
  %s20 = scalar_lea.smem %s0, 10
  %s21 = sld [smem:[%s20]]
  %s22 = scalar_lea.smem %s0, 11
  %s23 = sld [smem:[%s22]]
  %s24 = scalar_lea.smem %s0, 12
  %s25 = sld [smem:[%s24]]
  %s26 = scalar_lea.smem %s0, 13
  %s27 = sld [smem:[%s26]]
  %s28 = scalar_lea.smem %s0, 14
  %s29 = sld [smem:[%s28]]
  %s30 = scalar_lea.smem %s0, 15
  %s31 = sld [smem:[%s30]]
  %s32 = scalar_lea.smem %s0, 16
  %s33 = sld [smem:[%s32]]
  %s34 = scalar_lea.smem %s0, 17
  %s35 = sld [smem:[%s34]]
  %s36 = scalar_lea.smem %s0, 18
  %s37 = sld [smem:[%s36]]
  %s38 = scalar_lea.smem %s0, 19
  %s39 = sld [smem:[%s38]]
  %s40 = scalar_lea.smem %s0, 20
  %s41 = sld [smem:[%s40]]
  %s42 = scalar_lea.smem %s0, 21
  %s43 = sld [smem:[%s42]]
  %s44 = scalar_lea.smem %s0, 22
  %s45 = sld [smem:[%s44]]
  %s46 = scalar_lea.smem %s0, 23
  %s47 = sld [smem:[%s46]]
  %s48 = scalar_lea.smem %s0, 24
  %s49 = sld [smem:[%s48]]
  %s50 = scalar_lea.smem %s0, 25
  %s51 = sld [smem:[%s50]]
  %s52 = scalar_lea.smem %s0, 26
  %s53 = sld [smem:[%s52]]
  %s54 = scalar_lea.smem %s0, 27
  %s55 = sld [smem:[%s54]]
  %s56 = scalar_lea.smem %s0, 28
  %s57 = sld [smem:[%s56]]
  %s58 = scalar_lea.smem %s0, 29
  %s59 = sld [smem:[%s58]]
  %s60 = scalar_lea.smem %s0, 30
  %s61 = sld [smem:[%s60]]
  %s62 = scalar_lea.smem %s0, 31
  %s63 = sld [smem:[%s62]]
  %s64 = scalar_lea.smem %s0, 32
  %s65 = sld [smem:[%s64]]
  %s66 = scalar_lea.smem %s0, 33
  %s67 = sld [smem:[%s66]]
  %s68 = scalar_lea.smem %s0, 34
  %s69 = sld [smem:[%s68]]
  %s70 = scalar_lea.smem %s0, 35
  %s71 = sld [smem:[%s70]]
  %s72 = scalar_lea.smem %s0, 36
  %s73 = sld [smem:[%s72]]
  %s74 = scalar_lea.smem %s0, 37
  %s75 = sld [smem:[%s74]]
  %s76 = scalar_lea.smem %s0, 38
  %s77 = sld [smem:[%s76]]
  %s78 = scalar_lea.smem %s0, 39
  %s79 = sld [smem:[%s78]]
  %s80 = scalar_lea.smem %s0, 40
  %s81 = sld [smem:[%s80]]
  %s82 = scalar_lea.smem %s0, 41
  %s83 = sld [smem:[%s82]]
  %s84 = scalar_lea.smem %s0, 42
  %s85 = sld [smem:[%s84]]
  %s86 = scalar_lea.smem %s0, 43
  %s87 = sld [smem:[%s86]]
  %s88 = scalar_lea.smem %s0, 44
  %s89 = sld [smem:[%s88]]
  %s90 = scalar_lea.smem %s0, 45
  %s91 = sld [smem:[%s90]]
  %92 = xla_tuple %s89, %s91
  %s93 = sld [smem:[#allocation0]]
  $region225: #{alexnet_complex_forward.1} parent=0
    _
  %s95 = ssub.s32 1, %s93
  %s96 = scalar_select 0, %s95, %s93
  $region1: #{alexnet_complex_forward.1} parent=0
    #allocation2 [shape = 'u8[512]{0}', space=vmem, size = 0x400, scoped, tag = 'input window, operand 42, single buffered']
    #allocation3 [shape = 's32[2]{0}', space=sflag, size = 0x8, scoped, tag = 'scoped memory for alexnet_complex_forward.1']
    #allocation4 [shape = 's32[2]{0}', space=sflag, size = 0x8, scoped, tag = 'scoped memory for alexnet_complex_forward.1']
    #allocation5 [shape = 'u8[512]{0}', space=vmem, size = 0x400, scoped, tag = 'input window, operand 43, single buffered']
    #allocation6 [shape = 's32[1]{0}', space=sflag, size = 0x4, scoped, tag = 'scoped memory for alexnet_complex_forward.1']
    #allocation7 [shape = 'u8[1024]{0}', space=vmem, size = 0x400, scoped, tag = 'output window, operand 0']
    #allocation8 [shape = 'u8[1024]{0}', space=vmem, size = 0x400, scoped, tag = 'output window, operand 1']
    #allocation9 [shape = 's32[2]{0}', space=sflag, size = 0x8, scoped, tag = 'scoped memory for alexnet_complex_forward.1']
    %97 = vsyncpa [#allocation3], 0
    %98 = vsyncpa [#allocation6], 0
    %99 = vsyncpa [#allocation4], 0
    %s100 = scalar_lea.sflag [#allocation4], 1
    %101 = vsyncpa %s100, 0
    %102 = vsyncpa [#allocation9], 0
    %s103 = scalar_lea.sflag [#allocation9], 1
    %104 = vsyncpa %s103, 0
    loop: start=0, step=1, limit=4
    $region2: #{alexnet_complex_forward.1} parent=1 // loop_pre_header
      _
    $region3: #{alexnet_complex_forward.1} parent=1 // loop_header
      %s106 = sphi 0, %s110
      %p107 = scmp.ge.s32.totalorder %s106, 4
      %s116 = sphi 0, %s118
      %s119 = sphi 0, %s116
      %s120 = sphi 0, %s119
      %s136 = sphi 0, %s120
      %s142 = sphi 0, %s144
      %s145 = sphi 0, %s142
      %s146 = sphi 0, %s145
      %s162 = sphi 0, %s146
      %s166 = sphi 0, %s166
      %s168 = sphi 0, %s166
      %s169 = sphi 0, %s168
      %s183 = sphi 0, %s169
      %s187 = sphi 0, %s187
      %s189 = sphi 0, %s187
      %s190 = sphi 0, %s189
      %s204 = sphi 0, %s190
      %s208 = sphi 0, %s208
      %s210 = sphi 0, %s208
      %s211 = sphi 0, %s210
      %s225 = sphi 0, %s211
      %s229 = sphi 0, %s229
      %s231 = sphi 0, %s229
      %s232 = sphi 0, %s231
      %s246 = sphi 0, %s232
      %s250 = sphi 0, %s250
      %s252 = sphi 0, %s250
      %s253 = sphi 0, %s252
      %s267 = sphi 0, %s253
      %s271 = sphi 0, %s271
      %s273 = sphi 0, %s271
      %s274 = sphi 0, %s273
      %s288 = sphi 0, %s274
      %s292 = sphi 0, %s292
      %s294 = sphi 0, %s292
      %s295 = sphi 0, %s294
      %s309 = sphi 0, %s295
      %s313 = sphi 0, %s313
      %s315 = sphi 0, %s313
      %s316 = sphi 0, %s315
      %s330 = sphi 0, %s316
      %s334 = sphi 0, %s334
      %s336 = sphi 0, %s334
      %s337 = sphi 0, %s336
      %s351 = sphi 0, %s337
      %s355 = sphi 0, %s355
      %s357 = sphi 0, %s355
      %s358 = sphi 0, %s357
      %s372 = sphi 0, %s358
      %s376 = sphi 0, %s376
      %s378 = sphi 0, %s376
      %s379 = sphi 0, %s378
      %s393 = sphi 0, %s379
      %s397 = sphi 0, %s397
      %s399 = sphi 0, %s397
      %s400 = sphi 0, %s399
      %s414 = sphi 0, %s400
      %s418 = sphi 0, %s418
      %s420 = sphi 0, %s418
      %s421 = sphi 0, %s420
      %s435 = sphi 0, %s421
      %s439 = sphi 0, %s439
      %s441 = sphi 0, %s439
      %s442 = sphi 0, %s441
      %s456 = sphi 0, %s442
      %s460 = sphi 0, %s460
      %s462 = sphi 0, %s460
      %s463 = sphi 0, %s462
      %s477 = sphi 0, %s463
      %s481 = sphi 0, %s481
      %s483 = sphi 0, %s481
      %s484 = sphi 0, %s483
      %s498 = sphi 0, %s484
      %s502 = sphi 0, %s502
      %s504 = sphi 0, %s502
      %s505 = sphi 0, %s504
      %s519 = sphi 0, %s505
      %s523 = sphi 0, %s523
      %s525 = sphi 0, %s523
      %s526 = sphi 0, %s525
      %s540 = sphi 0, %s526
      %s544 = sphi 0, %s544
      %s546 = sphi 0, %s544
      %s547 = sphi 0, %s546
      %s561 = sphi 0, %s547
      %s565 = sphi 0, %s565
      %s567 = sphi 0, %s565
      %s568 = sphi 0, %s567
      %s582 = sphi 0, %s568
      %s586 = sphi 0, %s586
      %s588 = sphi 0, %s586
      %s589 = sphi 0, %s588
      %s603 = sphi 0, %s589
      %s607 = sphi 0, %s607
      %s609 = sphi 0, %s607
      %s610 = sphi 0, %s609
      %s624 = sphi 0, %s610
      %s628 = sphi 0, %s628
      %s630 = sphi 0, %s628
      %s631 = sphi 0, %s630
      %s645 = sphi 0, %s631
      %s649 = sphi 0, %s649
      %s651 = sphi 0, %s649
      %s652 = sphi 0, %s651
      %s666 = sphi 0, %s652
      %s670 = sphi 0, %s670
      %s672 = sphi 0, %s670
      %s673 = sphi 0, %s672
      %s687 = sphi 0, %s673
      %s691 = sphi 0, %s691
      %s693 = sphi 0, %s691
      %s694 = sphi 0, %s693
      %s708 = sphi 0, %s694
      %s712 = sphi 0, %s712
      %s714 = sphi 0, %s712
      %s715 = sphi 0, %s714
      %s729 = sphi 0, %s715
      %s733 = sphi 0, %s733
      %s735 = sphi 0, %s733
      %s736 = sphi 0, %s735
      %s750 = sphi 0, %s736
      %s754 = sphi 0, %s754
      %s756 = sphi 0, %s754
      %s757 = sphi 0, %s756
      %s771 = sphi 0, %s757
      %s775 = sphi 0, %s775
      %s777 = sphi 0, %s775
      %s778 = sphi 0, %s777
      %s792 = sphi 0, %s778
      %s796 = sphi 0, %s796
      %s798 = sphi 0, %s796
      %s799 = sphi 0, %s798
      %s813 = sphi 0, %s799
      %s817 = sphi 0, %s817
      %s819 = sphi 0, %s817
      %s820 = sphi 0, %s819
      %s834 = sphi 0, %s820
      %s838 = sphi 0, %s838
      %s840 = sphi 0, %s838
      %s841 = sphi 0, %s840
      %s855 = sphi 0, %s841
      %s859 = sphi 0, %s859
      %s861 = sphi 0, %s859
      %s862 = sphi 0, %s861
      %s876 = sphi 0, %s862
      %s880 = sphi 0, %s880
      %s882 = sphi 0, %s880
      %s883 = sphi 0, %s882
      %s897 = sphi 0, %s883
      %s901 = sphi 0, %s901
      %s903 = sphi 0, %s901
      %s904 = sphi 0, %s903
      %s918 = sphi 0, %s904
      %s922 = sphi 0, %s922
      %s924 = sphi 0, %s922
      %s925 = sphi 0, %s924
      %s939 = sphi 0, %s925
      %s943 = sphi 0, %s943
      %s945 = sphi 0, %s943
      %s946 = sphi 0, %s945
      %s960 = sphi 0, %s946
      %s964 = sphi 0, %s964
      %s966 = sphi 0, %s964
      %s967 = sphi 0, %s966
      %s981 = sphi 0, %s967
      %s985 = sphi 0, %s985
      %s987 = sphi 0, %s985
      %s988 = sphi 0, %s987
      %s1002 = sphi 0, %s988
      %s1006 = sphi 0, %s1006
      %s1008 = sphi 0, %s1006
      %s1009 = sphi 0, %s1008
      %s1023 = sphi 0, %s1009
      %s1027 = sphi 0, %s1027
      %s1029 = sphi 0, %s1027
      %s1030 = sphi 0, %s1029
      %s1044 = sphi 0, %s1030
      %s1050 = sphi 0, %s1052
      %s1053 = sphi 0, %s1050
      %s1054 = sphi 0, %s1053
      %s1070 = sphi 0, %s1054
      %s1076 = sphi 0, %s1078
      %s1079 = sphi 0, %s1076
      %s1080 = sphi 0, %s1079
      %s1096 = sphi 0, %s1080
    $region4: #{alexnet_complex_forward.1} parent=1 // loop_header_branch
      %109 = sbr.rel (%p107) target = $region8
    $region5: #{alexnet_complex_forward.1} parent=1 // loop_body
      %s111 = ssub.s32 %s106, 1
      %s112 = ssub.s32 %s106, 2
      %s113 = sadd.s32 %s106, 1
      %s114 = ssub.s32 %s106, %s113
      %p115 = scmp.eq.s32.totalorder %s114, 0
      %s117 = sadd.s32 %s116, 1
      %s118 = scalar_select %p115, %s116, %s117
      %p121 = pneg %p115
      %p122 = scmp.eq.s32.totalorder %s106, 1
      %p123 = por %p121, %p122
      %p124 = scmp.ne.s32.totalorder %s116, %s119
      %p125 = scmp.eq.s32.totalorder %s106, 0
      %p126 = por %p124, %p125
      %p127 = scmp.ne.s32.totalorder %s116, %s119
      %p128 = scmp.eq.s32.totalorder %s111, 1
      %p129 = por %p127, %p128
      %p130 = scmp.ne.s32.totalorder %s119, %s120
      %p131 = scmp.eq.s32.totalorder %s111, 0
      %p132 = por %p130, %p131
      %p133 = scmp.ne.s32.totalorder %s119, %s120
      %p134 = scmp.eq.s32.totalorder %s112, 1
      %p135 = por %p133, %p134
      %p137 = scmp.ne.s32.totalorder %s120, %s136
      %p138 = scmp.eq.s32.totalorder %s112, 0
      %p139 = por %p137, %p138
      %s140 = ssub.s32 %s106, %s113
      %p141 = scmp.eq.s32.totalorder %s140, 0
      %s143 = sadd.s32 %s142, 1
      %s144 = scalar_select %p141, %s142, %s143
      %p147 = pneg %p141
      %p148 = scmp.eq.s32.totalorder %s106, 1
      %p149 = por %p147, %p148
      %p150 = scmp.ne.s32.totalorder %s142, %s145
      %p151 = scmp.eq.s32.totalorder %s106, 0
      %p152 = por %p150, %p151
      %p153 = scmp.ne.s32.totalorder %s142, %s145
      %p154 = scmp.eq.s32.totalorder %s111, 1
      %p155 = por %p153, %p154
      %p156 = scmp.ne.s32.totalorder %s145, %s146
      %p157 = scmp.eq.s32.totalorder %s111, 0
      %p158 = por %p156, %p157
      %p159 = scmp.ne.s32.totalorder %s145, %s146
      %p160 = scmp.eq.s32.totalorder %s112, 1
      %p161 = por %p159, %p160
      %p163 = scmp.ne.s32.totalorder %s146, %s162
      %p164 = scmp.eq.s32.totalorder %s112, 0
      %p165 = por %p163, %p164
      %s167 = sadd.s32 %s166, 1
      %p170 = scmp.eq.s32.totalorder %s106, 1
      %p171 = scmp.ne.s32.totalorder %s166, %s168
      %p172 = scmp.eq.s32.totalorder %s106, 0
      %p173 = por %p171, %p172
      %p174 = scmp.ne.s32.totalorder %s166, %s168
      %p175 = scmp.eq.s32.totalorder %s111, 1
      %p176 = por %p174, %p175
      %p177 = scmp.ne.s32.totalorder %s168, %s169
      %p178 = scmp.eq.s32.totalorder %s111, 0
      %p179 = por %p177, %p178
      %p180 = scmp.ne.s32.totalorder %s168, %s169
      %p181 = scmp.eq.s32.totalorder %s112, 1
      %p182 = por %p180, %p181
      %p184 = scmp.ne.s32.totalorder %s169, %s183
      %p185 = scmp.eq.s32.totalorder %s112, 0
      %p186 = por %p184, %p185
      %s188 = sadd.s32 %s187, 1
      %p191 = scmp.eq.s32.totalorder %s106, 1
      %p192 = scmp.ne.s32.totalorder %s187, %s189
      %p193 = scmp.eq.s32.totalorder %s106, 0
      %p194 = por %p192, %p193
      %p195 = scmp.ne.s32.totalorder %s187, %s189
      %p196 = scmp.eq.s32.totalorder %s111, 1
      %p197 = por %p195, %p196
      %p198 = scmp.ne.s32.totalorder %s189, %s190
      %p199 = scmp.eq.s32.totalorder %s111, 0
      %p200 = por %p198, %p199
      %p201 = scmp.ne.s32.totalorder %s189, %s190
      %p202 = scmp.eq.s32.totalorder %s112, 1
      %p203 = por %p201, %p202
      %p205 = scmp.ne.s32.totalorder %s190, %s204
      %p206 = scmp.eq.s32.totalorder %s112, 0
      %p207 = por %p205, %p206
      %s209 = sadd.s32 %s208, 1
      %p212 = scmp.eq.s32.totalorder %s106, 1
      %p213 = scmp.ne.s32.totalorder %s208, %s210
      %p214 = scmp.eq.s32.totalorder %s106, 0
      %p215 = por %p213, %p214
      %p216 = scmp.ne.s32.totalorder %s208, %s210
      %p217 = scmp.eq.s32.totalorder %s111, 1
      %p218 = por %p216, %p217
      %p219 = scmp.ne.s32.totalorder %s210, %s211
      %p220 = scmp.eq.s32.totalorder %s111, 0
      %p221 = por %p219, %p220
      %p222 = scmp.ne.s32.totalorder %s210, %s211
      %p223 = scmp.eq.s32.totalorder %s112, 1
      %p224 = por %p222, %p223
      %p226 = scmp.ne.s32.totalorder %s211, %s225
      %p227 = scmp.eq.s32.totalorder %s112, 0
      %p228 = por %p226, %p227
      %s230 = sadd.s32 %s229, 1
      %p233 = scmp.eq.s32.totalorder %s106, 1
      %p234 = scmp.ne.s32.totalorder %s229, %s231
      %p235 = scmp.eq.s32.totalorder %s106, 0
      %p236 = por %p234, %p235
      %p237 = scmp.ne.s32.totalorder %s229, %s231
      %p238 = scmp.eq.s32.totalorder %s111, 1
      %p239 = por %p237, %p238
      %p240 = scmp.ne.s32.totalorder %s231, %s232
      %p241 = scmp.eq.s32.totalorder %s111, 0
      %p242 = por %p240, %p241
      %p243 = scmp.ne.s32.totalorder %s231, %s232
      %p244 = scmp.eq.s32.totalorder %s112, 1
      %p245 = por %p243, %p244
      %p247 = scmp.ne.s32.totalorder %s232, %s246
      %p248 = scmp.eq.s32.totalorder %s112, 0
      %p249 = por %p247, %p248
      %s251 = sadd.s32 %s250, 1
      %p254 = scmp.eq.s32.totalorder %s106, 1
      %p255 = scmp.ne.s32.totalorder %s250, %s252
      %p256 = scmp.eq.s32.totalorder %s106, 0
      %p257 = por %p255, %p256
      %p258 = scmp.ne.s32.totalorder %s250, %s252
      %p259 = scmp.eq.s32.totalorder %s111, 1
      %p260 = por %p258, %p259
      %p261 = scmp.ne.s32.totalorder %s252, %s253
      %p262 = scmp.eq.s32.totalorder %s111, 0
      %p263 = por %p261, %p262
      %p264 = scmp.ne.s32.totalorder %s252, %s253
      %p265 = scmp.eq.s32.totalorder %s112, 1
      %p266 = por %p264, %p265
      %p268 = scmp.ne.s32.totalorder %s253, %s267
      %p269 = scmp.eq.s32.totalorder %s112, 0
      %p270 = por %p268, %p269
      %s272 = sadd.s32 %s271, 1
      %p275 = scmp.eq.s32.totalorder %s106, 1
      %p276 = scmp.ne.s32.totalorder %s271, %s273
      %p277 = scmp.eq.s32.totalorder %s106, 0
      %p278 = por %p276, %p277
      %p279 = scmp.ne.s32.totalorder %s271, %s273
      %p280 = scmp.eq.s32.totalorder %s111, 1
      %p281 = por %p279, %p280
      %p282 = scmp.ne.s32.totalorder %s273, %s274
      %p283 = scmp.eq.s32.totalorder %s111, 0
      %p284 = por %p282, %p283
      %p285 = scmp.ne.s32.totalorder %s273, %s274
      %p286 = scmp.eq.s32.totalorder %s112, 1
      %p287 = por %p285, %p286
      %p289 = scmp.ne.s32.totalorder %s274, %s288
      %p290 = scmp.eq.s32.totalorder %s112, 0
      %p291 = por %p289, %p290
      %s293 = sadd.s32 %s292, 1
      %p296 = scmp.eq.s32.totalorder %s106, 1
      %p297 = scmp.ne.s32.totalorder %s292, %s294
      %p298 = scmp.eq.s32.totalorder %s106, 0
      %p299 = por %p297, %p298
      %p300 = scmp.ne.s32.totalorder %s292, %s294
      %p301 = scmp.eq.s32.totalorder %s111, 1
      %p302 = por %p300, %p301
      %p303 = scmp.ne.s32.totalorder %s294, %s295
      %p304 = scmp.eq.s32.totalorder %s111, 0
      %p305 = por %p303, %p304
      %p306 = scmp.ne.s32.totalorder %s294, %s295
      %p307 = scmp.eq.s32.totalorder %s112, 1
      %p308 = por %p306, %p307
      %p310 = scmp.ne.s32.totalorder %s295, %s309
      %p311 = scmp.eq.s32.totalorder %s112, 0
      %p312 = por %p310, %p311
      %s314 = sadd.s32 %s313, 1
      %p317 = scmp.eq.s32.totalorder %s106, 1
      %p318 = scmp.ne.s32.totalorder %s313, %s315
      %p319 = scmp.eq.s32.totalorder %s106, 0
      %p320 = por %p318, %p319
      %p321 = scmp.ne.s32.totalorder %s313, %s315
      %p322 = scmp.eq.s32.totalorder %s111, 1
      %p323 = por %p321, %p322
      %p324 = scmp.ne.s32.totalorder %s315, %s316
      %p325 = scmp.eq.s32.totalorder %s111, 0
      %p326 = por %p324, %p325
      %p327 = scmp.ne.s32.totalorder %s315, %s316
      %p328 = scmp.eq.s32.totalorder %s112, 1
      %p329 = por %p327, %p328
      %p331 = scmp.ne.s32.totalorder %s316, %s330
      %p332 = scmp.eq.s32.totalorder %s112, 0
      %p333 = por %p331, %p332
      %s335 = sadd.s32 %s334, 1
      %p338 = scmp.eq.s32.totalorder %s106, 1
      %p339 = scmp.ne.s32.totalorder %s334, %s336
      %p340 = scmp.eq.s32.totalorder %s106, 0
      %p341 = por %p339, %p340
      %p342 = scmp.ne.s32.totalorder %s334, %s336
      %p343 = scmp.eq.s32.totalorder %s111, 1
      %p344 = por %p342, %p343
      %p345 = scmp.ne.s32.totalorder %s336, %s337
      %p346 = scmp.eq.s32.totalorder %s111, 0
      %p347 = por %p345, %p346
      %p348 = scmp.ne.s32.totalorder %s336, %s337
      %p349 = scmp.eq.s32.totalorder %s112, 1
      %p350 = por %p348, %p349
      %p352 = scmp.ne.s32.totalorder %s337, %s351
      %p353 = scmp.eq.s32.totalorder %s112, 0
      %p354 = por %p352, %p353
      %s356 = sadd.s32 %s355, 1
      %p359 = scmp.eq.s32.totalorder %s106, 1
      %p360 = scmp.ne.s32.totalorder %s355, %s357
      %p361 = scmp.eq.s32.totalorder %s106, 0
      %p362 = por %p360, %p361
      %p363 = scmp.ne.s32.totalorder %s355, %s357
      %p364 = scmp.eq.s32.totalorder %s111, 1
      %p365 = por %p363, %p364
      %p366 = scmp.ne.s32.totalorder %s357, %s358
      %p367 = scmp.eq.s32.totalorder %s111, 0
      %p368 = por %p366, %p367
      %p369 = scmp.ne.s32.totalorder %s357, %s358
      %p370 = scmp.eq.s32.totalorder %s112, 1
      %p371 = por %p369, %p370
      %p373 = scmp.ne.s32.totalorder %s358, %s372
      %p374 = scmp.eq.s32.totalorder %s112, 0
      %p375 = por %p373, %p374
      %s377 = sadd.s32 %s376, 1
      %p380 = scmp.eq.s32.totalorder %s106, 1
      %p381 = scmp.ne.s32.totalorder %s376, %s378
      %p382 = scmp.eq.s32.totalorder %s106, 0
      %p383 = por %p381, %p382
      %p384 = scmp.ne.s32.totalorder %s376, %s378
      %p385 = scmp.eq.s32.totalorder %s111, 1
      %p386 = por %p384, %p385
      %p387 = scmp.ne.s32.totalorder %s378, %s379
      %p388 = scmp.eq.s32.totalorder %s111, 0
      %p389 = por %p387, %p388
      %p390 = scmp.ne.s32.totalorder %s378, %s379
      %p391 = scmp.eq.s32.totalorder %s112, 1
      %p392 = por %p390, %p391
      %p394 = scmp.ne.s32.totalorder %s379, %s393
      %p395 = scmp.eq.s32.totalorder %s112, 0
      %p396 = por %p394, %p395
      %s398 = sadd.s32 %s397, 1
      %p401 = scmp.eq.s32.totalorder %s106, 1
      %p402 = scmp.ne.s32.totalorder %s397, %s399
      %p403 = scmp.eq.s32.totalorder %s106, 0
      %p404 = por %p402, %p403
      %p405 = scmp.ne.s32.totalorder %s397, %s399
      %p406 = scmp.eq.s32.totalorder %s111, 1
      %p407 = por %p405, %p406
      %p408 = scmp.ne.s32.totalorder %s399, %s400
      %p409 = scmp.eq.s32.totalorder %s111, 0
      %p410 = por %p408, %p409
      %p411 = scmp.ne.s32.totalorder %s399, %s400
      %p412 = scmp.eq.s32.totalorder %s112, 1
      %p413 = por %p411, %p412
      %p415 = scmp.ne.s32.totalorder %s400, %s414
      %p416 = scmp.eq.s32.totalorder %s112, 0
      %p417 = por %p415, %p416
      %s419 = sadd.s32 %s418, 1
      %p422 = scmp.eq.s32.totalorder %s106, 1
      %p423 = scmp.ne.s32.totalorder %s418, %s420
      %p424 = scmp.eq.s32.totalorder %s106, 0
      %p425 = por %p423, %p424
      %p426 = scmp.ne.s32.totalorder %s418, %s420
      %p427 = scmp.eq.s32.totalorder %s111, 1
      %p428 = por %p426, %p427
      %p429 = scmp.ne.s32.totalorder %s420, %s421
      %p430 = scmp.eq.s32.totalorder %s111, 0
      %p431 = por %p429, %p430
      %p432 = scmp.ne.s32.totalorder %s420, %s421
      %p433 = scmp.eq.s32.totalorder %s112, 1
      %p434 = por %p432, %p433
      %p436 = scmp.ne.s32.totalorder %s421, %s435
      %p437 = scmp.eq.s32.totalorder %s112, 0
      %p438 = por %p436, %p437
      %s440 = sadd.s32 %s439, 1
      %p443 = scmp.eq.s32.totalorder %s106, 1
      %p444 = scmp.ne.s32.totalorder %s439, %s441
      %p445 = scmp.eq.s32.totalorder %s106, 0
      %p446 = por %p444, %p445
      %p447 = scmp.ne.s32.totalorder %s439, %s441
      %p448 = scmp.eq.s32.totalorder %s111, 1
      %p449 = por %p447, %p448
      %p450 = scmp.ne.s32.totalorder %s441, %s442
      %p451 = scmp.eq.s32.totalorder %s111, 0
      %p452 = por %p450, %p451
      %p453 = scmp.ne.s32.totalorder %s441, %s442
      %p454 = scmp.eq.s32.totalorder %s112, 1
      %p455 = por %p453, %p454
      %p457 = scmp.ne.s32.totalorder %s442, %s456
      %p458 = scmp.eq.s32.totalorder %s112, 0
      %p459 = por %p457, %p458
      %s461 = sadd.s32 %s460, 1
      %p464 = scmp.eq.s32.totalorder %s106, 1
      %p465 = scmp.ne.s32.totalorder %s460, %s462
      %p466 = scmp.eq.s32.totalorder %s106, 0
      %p467 = por %p465, %p466
      %p468 = scmp.ne.s32.totalorder %s460, %s462
      %p469 = scmp.eq.s32.totalorder %s111, 1
      %p470 = por %p468, %p469
      %p471 = scmp.ne.s32.totalorder %s462, %s463
      %p472 = scmp.eq.s32.totalorder %s111, 0
      %p473 = por %p471, %p472
      %p474 = scmp.ne.s32.totalorder %s462, %s463
      %p475 = scmp.eq.s32.totalorder %s112, 1
      %p476 = por %p474, %p475
      %p478 = scmp.ne.s32.totalorder %s463, %s477
      %p479 = scmp.eq.s32.totalorder %s112, 0
      %p480 = por %p478, %p479
      %s482 = sadd.s32 %s481, 1
      %p485 = scmp.eq.s32.totalorder %s106, 1
      %p486 = scmp.ne.s32.totalorder %s481, %s483
      %p487 = scmp.eq.s32.totalorder %s106, 0
      %p488 = por %p486, %p487
      %p489 = scmp.ne.s32.totalorder %s481, %s483
      %p490 = scmp.eq.s32.totalorder %s111, 1
      %p491 = por %p489, %p490
      %p492 = scmp.ne.s32.totalorder %s483, %s484
      %p493 = scmp.eq.s32.totalorder %s111, 0
      %p494 = por %p492, %p493
      %p495 = scmp.ne.s32.totalorder %s483, %s484
      %p496 = scmp.eq.s32.totalorder %s112, 1
      %p497 = por %p495, %p496
      %p499 = scmp.ne.s32.totalorder %s484, %s498
      %p500 = scmp.eq.s32.totalorder %s112, 0
      %p501 = por %p499, %p500
      %s503 = sadd.s32 %s502, 1
      %p506 = scmp.eq.s32.totalorder %s106, 1
      %p507 = scmp.ne.s32.totalorder %s502, %s504
      %p508 = scmp.eq.s32.totalorder %s106, 0
      %p509 = por %p507, %p508
      %p510 = scmp.ne.s32.totalorder %s502, %s504
      %p511 = scmp.eq.s32.totalorder %s111, 1
      %p512 = por %p510, %p511
      %p513 = scmp.ne.s32.totalorder %s504, %s505
      %p514 = scmp.eq.s32.totalorder %s111, 0
      %p515 = por %p513, %p514
      %p516 = scmp.ne.s32.totalorder %s504, %s505
      %p517 = scmp.eq.s32.totalorder %s112, 1
      %p518 = por %p516, %p517
      %p520 = scmp.ne.s32.totalorder %s505, %s519
      %p521 = scmp.eq.s32.totalorder %s112, 0
      %p522 = por %p520, %p521
      %s524 = sadd.s32 %s523, 1
      %p527 = scmp.eq.s32.totalorder %s106, 1
      %p528 = scmp.ne.s32.totalorder %s523, %s525
      %p529 = scmp.eq.s32.totalorder %s106, 0
      %p530 = por %p528, %p529
      %p531 = scmp.ne.s32.totalorder %s523, %s525
      %p532 = scmp.eq.s32.totalorder %s111, 1
      %p533 = por %p531, %p532
      %p534 = scmp.ne.s32.totalorder %s525, %s526
      %p535 = scmp.eq.s32.totalorder %s111, 0
      %p536 = por %p534, %p535
      %p537 = scmp.ne.s32.totalorder %s525, %s526
      %p538 = scmp.eq.s32.totalorder %s112, 1
      %p539 = por %p537, %p538
      %p541 = scmp.ne.s32.totalorder %s526, %s540
      %p542 = scmp.eq.s32.totalorder %s112, 0
      %p543 = por %p541, %p542
      %s545 = sadd.s32 %s544, 1
      %p548 = scmp.eq.s32.totalorder %s106, 1
      %p549 = scmp.ne.s32.totalorder %s544, %s546
      %p550 = scmp.eq.s32.totalorder %s106, 0
      %p551 = por %p549, %p550
      %p552 = scmp.ne.s32.totalorder %s544, %s546
      %p553 = scmp.eq.s32.totalorder %s111, 1
      %p554 = por %p552, %p553
      %p555 = scmp.ne.s32.totalorder %s546, %s547
      %p556 = scmp.eq.s32.totalorder %s111, 0
      %p557 = por %p555, %p556
      %p558 = scmp.ne.s32.totalorder %s546, %s547
      %p559 = scmp.eq.s32.totalorder %s112, 1
      %p560 = por %p558, %p559
      %p562 = scmp.ne.s32.totalorder %s547, %s561
      %p563 = scmp.eq.s32.totalorder %s112, 0
      %p564 = por %p562, %p563
      %s566 = sadd.s32 %s565, 1
      %p569 = scmp.eq.s32.totalorder %s106, 1
      %p570 = scmp.ne.s32.totalorder %s565, %s567
      %p571 = scmp.eq.s32.totalorder %s106, 0
      %p572 = por %p570, %p571
      %p573 = scmp.ne.s32.totalorder %s565, %s567
      %p574 = scmp.eq.s32.totalorder %s111, 1
      %p575 = por %p573, %p574
      %p576 = scmp.ne.s32.totalorder %s567, %s568
      %p577 = scmp.eq.s32.totalorder %s111, 0
      %p578 = por %p576, %p577
      %p579 = scmp.ne.s32.totalorder %s567, %s568
      %p580 = scmp.eq.s32.totalorder %s112, 1
      %p581 = por %p579, %p580
      %p583 = scmp.ne.s32.totalorder %s568, %s582
      %p584 = scmp.eq.s32.totalorder %s112, 0
      %p585 = por %p583, %p584
      %s587 = sadd.s32 %s586, 1
      %p590 = scmp.eq.s32.totalorder %s106, 1
      %p591 = scmp.ne.s32.totalorder %s586, %s588
      %p592 = scmp.eq.s32.totalorder %s106, 0
      %p593 = por %p591, %p592
      %p594 = scmp.ne.s32.totalorder %s586, %s588
      %p595 = scmp.eq.s32.totalorder %s111, 1
      %p596 = por %p594, %p595
      %p597 = scmp.ne.s32.totalorder %s588, %s589
      %p598 = scmp.eq.s32.totalorder %s111, 0
      %p599 = por %p597, %p598
      %p600 = scmp.ne.s32.totalorder %s588, %s589
      %p601 = scmp.eq.s32.totalorder %s112, 1
      %p602 = por %p600, %p601
      %p604 = scmp.ne.s32.totalorder %s589, %s603
      %p605 = scmp.eq.s32.totalorder %s112, 0
      %p606 = por %p604, %p605
      %s608 = sadd.s32 %s607, 1
      %p611 = scmp.eq.s32.totalorder %s106, 1
      %p612 = scmp.ne.s32.totalorder %s607, %s609
      %p613 = scmp.eq.s32.totalorder %s106, 0
      %p614 = por %p612, %p613
      %p615 = scmp.ne.s32.totalorder %s607, %s609
      %p616 = scmp.eq.s32.totalorder %s111, 1
      %p617 = por %p615, %p616
      %p618 = scmp.ne.s32.totalorder %s609, %s610
      %p619 = scmp.eq.s32.totalorder %s111, 0
      %p620 = por %p618, %p619
      %p621 = scmp.ne.s32.totalorder %s609, %s610
      %p622 = scmp.eq.s32.totalorder %s112, 1
      %p623 = por %p621, %p622
      %p625 = scmp.ne.s32.totalorder %s610, %s624
      %p626 = scmp.eq.s32.totalorder %s112, 0
      %p627 = por %p625, %p626
      %s629 = sadd.s32 %s628, 1
      %p632 = scmp.eq.s32.totalorder %s106, 1
      %p633 = scmp.ne.s32.totalorder %s628, %s630
      %p634 = scmp.eq.s32.totalorder %s106, 0
      %p635 = por %p633, %p634
      %p636 = scmp.ne.s32.totalorder %s628, %s630
      %p637 = scmp.eq.s32.totalorder %s111, 1
      %p638 = por %p636, %p637
      %p639 = scmp.ne.s32.totalorder %s630, %s631
      %p640 = scmp.eq.s32.totalorder %s111, 0
      %p641 = por %p639, %p640
      %p642 = scmp.ne.s32.totalorder %s630, %s631
      %p643 = scmp.eq.s32.totalorder %s112, 1
      %p644 = por %p642, %p643
      %p646 = scmp.ne.s32.totalorder %s631, %s645
      %p647 = scmp.eq.s32.totalorder %s112, 0
      %p648 = por %p646, %p647
      %s650 = sadd.s32 %s649, 1
      %p653 = scmp.eq.s32.totalorder %s106, 1
      %p654 = scmp.ne.s32.totalorder %s649, %s651
      %p655 = scmp.eq.s32.totalorder %s106, 0
      %p656 = por %p654, %p655
      %p657 = scmp.ne.s32.totalorder %s649, %s651
      %p658 = scmp.eq.s32.totalorder %s111, 1
      %p659 = por %p657, %p658
      %p660 = scmp.ne.s32.totalorder %s651, %s652
      %p661 = scmp.eq.s32.totalorder %s111, 0
      %p662 = por %p660, %p661
      %p663 = scmp.ne.s32.totalorder %s651, %s652
      %p664 = scmp.eq.s32.totalorder %s112, 1
      %p665 = por %p663, %p664
      %p667 = scmp.ne.s32.totalorder %s652, %s666
      %p668 = scmp.eq.s32.totalorder %s112, 0
      %p669 = por %p667, %p668
      %s671 = sadd.s32 %s670, 1
      %p674 = scmp.eq.s32.totalorder %s106, 1
      %p675 = scmp.ne.s32.totalorder %s670, %s672
      %p676 = scmp.eq.s32.totalorder %s106, 0
      %p677 = por %p675, %p676
      %p678 = scmp.ne.s32.totalorder %s670, %s672
      %p679 = scmp.eq.s32.totalorder %s111, 1
      %p680 = por %p678, %p679
      %p681 = scmp.ne.s32.totalorder %s672, %s673
      %p682 = scmp.eq.s32.totalorder %s111, 0
      %p683 = por %p681, %p682
      %p684 = scmp.ne.s32.totalorder %s672, %s673
      %p685 = scmp.eq.s32.totalorder %s112, 1
      %p686 = por %p684, %p685
      %p688 = scmp.ne.s32.totalorder %s673, %s687
      %p689 = scmp.eq.s32.totalorder %s112, 0
      %p690 = por %p688, %p689
      %s692 = sadd.s32 %s691, 1
      %p695 = scmp.eq.s32.totalorder %s106, 1
      %p696 = scmp.ne.s32.totalorder %s691, %s693
      %p697 = scmp.eq.s32.totalorder %s106, 0
      %p698 = por %p696, %p697
      %p699 = scmp.ne.s32.totalorder %s691, %s693
      %p700 = scmp.eq.s32.totalorder %s111, 1
      %p701 = por %p699, %p700
      %p702 = scmp.ne.s32.totalorder %s693, %s694
      %p703 = scmp.eq.s32.totalorder %s111, 0
      %p704 = por %p702, %p703
      %p705 = scmp.ne.s32.totalorder %s693, %s694
      %p706 = scmp.eq.s32.totalorder %s112, 1
      %p707 = por %p705, %p706
      %p709 = scmp.ne.s32.totalorder %s694, %s708
      %p710 = scmp.eq.s32.totalorder %s112, 0
      %p711 = por %p709, %p710
      %s713 = sadd.s32 %s712, 1
      %p716 = scmp.eq.s32.totalorder %s106, 1
      %p717 = scmp.ne.s32.totalorder %s712, %s714
      %p718 = scmp.eq.s32.totalorder %s106, 0
      %p719 = por %p717, %p718
      %p720 = scmp.ne.s32.totalorder %s712, %s714
      %p721 = scmp.eq.s32.totalorder %s111, 1
      %p722 = por %p720, %p721
      %p723 = scmp.ne.s32.totalorder %s714, %s715
      %p724 = scmp.eq.s32.totalorder %s111, 0
      %p725 = por %p723, %p724
      %p726 = scmp.ne.s32.totalorder %s714, %s715
      %p727 = scmp.eq.s32.totalorder %s112, 1
      %p728 = por %p726, %p727
      %p730 = scmp.ne.s32.totalorder %s715, %s729
      %p731 = scmp.eq.s32.totalorder %s112, 0
      %p732 = por %p730, %p731
      %s734 = sadd.s32 %s733, 1
      %p737 = scmp.eq.s32.totalorder %s106, 1
      %p738 = scmp.ne.s32.totalorder %s733, %s735
      %p739 = scmp.eq.s32.totalorder %s106, 0
      %p740 = por %p738, %p739
      %p741 = scmp.ne.s32.totalorder %s733, %s735
      %p742 = scmp.eq.s32.totalorder %s111, 1
      %p743 = por %p741, %p742
      %p744 = scmp.ne.s32.totalorder %s735, %s736
      %p745 = scmp.eq.s32.totalorder %s111, 0
      %p746 = por %p744, %p745
      %p747 = scmp.ne.s32.totalorder %s735, %s736
      %p748 = scmp.eq.s32.totalorder %s112, 1
      %p749 = por %p747, %p748
      %p751 = scmp.ne.s32.totalorder %s736, %s750
      %p752 = scmp.eq.s32.totalorder %s112, 0
      %p753 = por %p751, %p752
      %s755 = sadd.s32 %s754, 1
      %p758 = scmp.eq.s32.totalorder %s106, 1
      %p759 = scmp.ne.s32.totalorder %s754, %s756
      %p760 = scmp.eq.s32.totalorder %s106, 0
      %p761 = por %p759, %p760
      %p762 = scmp.ne.s32.totalorder %s754, %s756
      %p763 = scmp.eq.s32.totalorder %s111, 1
      %p764 = por %p762, %p763
      %p765 = scmp.ne.s32.totalorder %s756, %s757
      %p766 = scmp.eq.s32.totalorder %s111, 0
      %p767 = por %p765, %p766
      %p768 = scmp.ne.s32.totalorder %s756, %s757
      %p769 = scmp.eq.s32.totalorder %s112, 1
      %p770 = por %p768, %p769
      %p772 = scmp.ne.s32.totalorder %s757, %s771
      %p773 = scmp.eq.s32.totalorder %s112, 0
      %p774 = por %p772, %p773
      %s776 = sadd.s32 %s775, 1
      %p779 = scmp.eq.s32.totalorder %s106, 1
      %p780 = scmp.ne.s32.totalorder %s775, %s777
      %p781 = scmp.eq.s32.totalorder %s106, 0
      %p782 = por %p780, %p781
      %p783 = scmp.ne.s32.totalorder %s775, %s777
      %p784 = scmp.eq.s32.totalorder %s111, 1
      %p785 = por %p783, %p784
      %p786 = scmp.ne.s32.totalorder %s777, %s778
      %p787 = scmp.eq.s32.totalorder %s111, 0
      %p788 = por %p786, %p787
      %p789 = scmp.ne.s32.totalorder %s777, %s778
      %p790 = scmp.eq.s32.totalorder %s112, 1
      %p791 = por %p789, %p790
      %p793 = scmp.ne.s32.totalorder %s778, %s792
      %p794 = scmp.eq.s32.totalorder %s112, 0
      %p795 = por %p793, %p794
      %s797 = sadd.s32 %s796, 1
      %p800 = scmp.eq.s32.totalorder %s106, 1
      %p801 = scmp.ne.s32.totalorder %s796, %s798
      %p802 = scmp.eq.s32.totalorder %s106, 0
      %p803 = por %p801, %p802
      %p804 = scmp.ne.s32.totalorder %s796, %s798
      %p805 = scmp.eq.s32.totalorder %s111, 1
      %p806 = por %p804, %p805
      %p807 = scmp.ne.s32.totalorder %s798, %s799
      %p808 = scmp.eq.s32.totalorder %s111, 0
      %p809 = por %p807, %p808
      %p810 = scmp.ne.s32.totalorder %s798, %s799
      %p811 = scmp.eq.s32.totalorder %s112, 1
      %p812 = por %p810, %p811
      %p814 = scmp.ne.s32.totalorder %s799, %s813
      %p815 = scmp.eq.s32.totalorder %s112, 0
      %p816 = por %p814, %p815
      %s818 = sadd.s32 %s817, 1
      %p821 = scmp.eq.s32.totalorder %s106, 1
      %p822 = scmp.ne.s32.totalorder %s817, %s819
      %p823 = scmp.eq.s32.totalorder %s106, 0
      %p824 = por %p822, %p823
      %p825 = scmp.ne.s32.totalorder %s817, %s819
      %p826 = scmp.eq.s32.totalorder %s111, 1
      %p827 = por %p825, %p826
      %p828 = scmp.ne.s32.totalorder %s819, %s820
      %p829 = scmp.eq.s32.totalorder %s111, 0
      %p830 = por %p828, %p829
      %p831 = scmp.ne.s32.totalorder %s819, %s820
      %p832 = scmp.eq.s32.totalorder %s112, 1
      %p833 = por %p831, %p832
      %p835 = scmp.ne.s32.totalorder %s820, %s834
      %p836 = scmp.eq.s32.totalorder %s112, 0
      %p837 = por %p835, %p836
      %s839 = sadd.s32 %s838, 1
      %p842 = scmp.eq.s32.totalorder %s106, 1
      %p843 = scmp.ne.s32.totalorder %s838, %s840
      %p844 = scmp.eq.s32.totalorder %s106, 0
      %p845 = por %p843, %p844
      %p846 = scmp.ne.s32.totalorder %s838, %s840
      %p847 = scmp.eq.s32.totalorder %s111, 1
      %p848 = por %p846, %p847
      %p849 = scmp.ne.s32.totalorder %s840, %s841
      %p850 = scmp.eq.s32.totalorder %s111, 0
      %p851 = por %p849, %p850
      %p852 = scmp.ne.s32.totalorder %s840, %s841
      %p853 = scmp.eq.s32.totalorder %s112, 1
      %p854 = por %p852, %p853
      %p856 = scmp.ne.s32.totalorder %s841, %s855
      %p857 = scmp.eq.s32.totalorder %s112, 0
      %p858 = por %p856, %p857
      %s860 = sadd.s32 %s859, 1
      %p863 = scmp.eq.s32.totalorder %s106, 1
      %p864 = scmp.ne.s32.totalorder %s859, %s861
      %p865 = scmp.eq.s32.totalorder %s106, 0
      %p866 = por %p864, %p865
      %p867 = scmp.ne.s32.totalorder %s859, %s861
      %p868 = scmp.eq.s32.totalorder %s111, 1
      %p869 = por %p867, %p868
      %p870 = scmp.ne.s32.totalorder %s861, %s862
      %p871 = scmp.eq.s32.totalorder %s111, 0
      %p872 = por %p870, %p871
      %p873 = scmp.ne.s32.totalorder %s861, %s862
      %p874 = scmp.eq.s32.totalorder %s112, 1
      %p875 = por %p873, %p874
      %p877 = scmp.ne.s32.totalorder %s862, %s876
      %p878 = scmp.eq.s32.totalorder %s112, 0
      %p879 = por %p877, %p878
      %s881 = sadd.s32 %s880, 1
      %p884 = scmp.eq.s32.totalorder %s106, 1
      %p885 = scmp.ne.s32.totalorder %s880, %s882
      %p886 = scmp.eq.s32.totalorder %s106, 0
      %p887 = por %p885, %p886
      %p888 = scmp.ne.s32.totalorder %s880, %s882
      %p889 = scmp.eq.s32.totalorder %s111, 1
      %p890 = por %p888, %p889
      %p891 = scmp.ne.s32.totalorder %s882, %s883
      %p892 = scmp.eq.s32.totalorder %s111, 0
      %p893 = por %p891, %p892
      %p894 = scmp.ne.s32.totalorder %s882, %s883
      %p895 = scmp.eq.s32.totalorder %s112, 1
      %p896 = por %p894, %p895
      %p898 = scmp.ne.s32.totalorder %s883, %s897
      %p899 = scmp.eq.s32.totalorder %s112, 0
      %p900 = por %p898, %p899
      %s902 = sadd.s32 %s901, 1
      %p905 = scmp.eq.s32.totalorder %s106, 1
      %p906 = scmp.ne.s32.totalorder %s901, %s903
      %p907 = scmp.eq.s32.totalorder %s106, 0
      %p908 = por %p906, %p907
      %p909 = scmp.ne.s32.totalorder %s901, %s903
      %p910 = scmp.eq.s32.totalorder %s111, 1
      %p911 = por %p909, %p910
      %p912 = scmp.ne.s32.totalorder %s903, %s904
      %p913 = scmp.eq.s32.totalorder %s111, 0
      %p914 = por %p912, %p913
      %p915 = scmp.ne.s32.totalorder %s903, %s904
      %p916 = scmp.eq.s32.totalorder %s112, 1
      %p917 = por %p915, %p916
      %p919 = scmp.ne.s32.totalorder %s904, %s918
      %p920 = scmp.eq.s32.totalorder %s112, 0
      %p921 = por %p919, %p920
      %s923 = sadd.s32 %s922, 1
      %p926 = scmp.eq.s32.totalorder %s106, 1
      %p927 = scmp.ne.s32.totalorder %s922, %s924
      %p928 = scmp.eq.s32.totalorder %s106, 0
      %p929 = por %p927, %p928
      %p930 = scmp.ne.s32.totalorder %s922, %s924
      %p931 = scmp.eq.s32.totalorder %s111, 1
      %p932 = por %p930, %p931
      %p933 = scmp.ne.s32.totalorder %s924, %s925
      %p934 = scmp.eq.s32.totalorder %s111, 0
      %p935 = por %p933, %p934
      %p936 = scmp.ne.s32.totalorder %s924, %s925
      %p937 = scmp.eq.s32.totalorder %s112, 1
      %p938 = por %p936, %p937
      %p940 = scmp.ne.s32.totalorder %s925, %s939
      %p941 = scmp.eq.s32.totalorder %s112, 0
      %p942 = por %p940, %p941
      %s944 = sadd.s32 %s943, 1
      %p947 = scmp.eq.s32.totalorder %s106, 1
      %p948 = scmp.ne.s32.totalorder %s943, %s945
      %p949 = scmp.eq.s32.totalorder %s106, 0
      %p950 = por %p948, %p949
      %p951 = scmp.ne.s32.totalorder %s943, %s945
      %p952 = scmp.eq.s32.totalorder %s111, 1
      %p953 = por %p951, %p952
      %p954 = scmp.ne.s32.totalorder %s945, %s946
      %p955 = scmp.eq.s32.totalorder %s111, 0
      %p956 = por %p954, %p955
      %p957 = scmp.ne.s32.totalorder %s945, %s946
      %p958 = scmp.eq.s32.totalorder %s112, 1
      %p959 = por %p957, %p958
      %p961 = scmp.ne.s32.totalorder %s946, %s960
      %p962 = scmp.eq.s32.totalorder %s112, 0
      %p963 = por %p961, %p962
      %s965 = sadd.s32 %s964, 1
      %p968 = scmp.eq.s32.totalorder %s106, 1
      %p969 = scmp.ne.s32.totalorder %s964, %s966
      %p970 = scmp.eq.s32.totalorder %s106, 0
      %p971 = por %p969, %p970
      %p972 = scmp.ne.s32.totalorder %s964, %s966
      %p973 = scmp.eq.s32.totalorder %s111, 1
      %p974 = por %p972, %p973
      %p975 = scmp.ne.s32.totalorder %s966, %s967
      %p976 = scmp.eq.s32.totalorder %s111, 0
      %p977 = por %p975, %p976
      %p978 = scmp.ne.s32.totalorder %s966, %s967
      %p979 = scmp.eq.s32.totalorder %s112, 1
      %p980 = por %p978, %p979
      %p982 = scmp.ne.s32.totalorder %s967, %s981
      %p983 = scmp.eq.s32.totalorder %s112, 0
      %p984 = por %p982, %p983
      %s986 = sadd.s32 %s985, 1
      %p989 = scmp.eq.s32.totalorder %s106, 1
      %p990 = scmp.ne.s32.totalorder %s985, %s987
      %p991 = scmp.eq.s32.totalorder %s106, 0
      %p992 = por %p990, %p991
      %p993 = scmp.ne.s32.totalorder %s985, %s987
      %p994 = scmp.eq.s32.totalorder %s111, 1
      %p995 = por %p993, %p994
      %p996 = scmp.ne.s32.totalorder %s987, %s988
      %p997 = scmp.eq.s32.totalorder %s111, 0
      %p998 = por %p996, %p997
      %p999 = scmp.ne.s32.totalorder %s987, %s988
      %p1000 = scmp.eq.s32.totalorder %s112, 1
      %p1001 = por %p999, %p1000
      %p1003 = scmp.ne.s32.totalorder %s988, %s1002
      %p1004 = scmp.eq.s32.totalorder %s112, 0
      %p1005 = por %p1003, %p1004
      %s1007 = sadd.s32 %s1006, 1
      %p1010 = scmp.eq.s32.totalorder %s106, 1
      %p1011 = scmp.ne.s32.totalorder %s1006, %s1008
      %p1012 = scmp.eq.s32.totalorder %s106, 0
      %p1013 = por %p1011, %p1012
      %p1014 = scmp.ne.s32.totalorder %s1006, %s1008
      %p1015 = scmp.eq.s32.totalorder %s111, 1
      %p1016 = por %p1014, %p1015
      %p1017 = scmp.ne.s32.totalorder %s1008, %s1009
      %p1018 = scmp.eq.s32.totalorder %s111, 0
      %p1019 = por %p1017, %p1018
      %p1020 = scmp.ne.s32.totalorder %s1008, %s1009
      %p1021 = scmp.eq.s32.totalorder %s112, 1
      %p1022 = por %p1020, %p1021
      %p1024 = scmp.ne.s32.totalorder %s1009, %s1023
      %p1025 = scmp.eq.s32.totalorder %s112, 0
      %p1026 = por %p1024, %p1025
      %s1028 = sadd.s32 %s1027, 1
      %p1031 = scmp.eq.s32.totalorder %s106, 1
      %p1032 = scmp.ne.s32.totalorder %s1027, %s1029
      %p1033 = scmp.eq.s32.totalorder %s106, 0
      %p1034 = por %p1032, %p1033
      %p1035 = scmp.ne.s32.totalorder %s1027, %s1029
      %p1036 = scmp.eq.s32.totalorder %s111, 1
      %p1037 = por %p1035, %p1036
      %p1038 = scmp.ne.s32.totalorder %s1029, %s1030
      %p1039 = scmp.eq.s32.totalorder %s111, 0
      %p1040 = por %p1038, %p1039
      %p1041 = scmp.ne.s32.totalorder %s1029, %s1030
      %p1042 = scmp.eq.s32.totalorder %s112, 1
      %p1043 = por %p1041, %p1042
      %p1045 = scmp.ne.s32.totalorder %s1030, %s1044
      %p1046 = scmp.eq.s32.totalorder %s112, 0
      %p1047 = por %p1045, %p1046
      %s1048 = ssub.s32 %s106, %s113
      %p1049 = scmp.eq.s32.totalorder %s1048, 0
      %s1051 = sadd.s32 %s1050, 1
      %s1052 = scalar_select %p1049, %s1050, %s1051
      %p1055 = pneg %p1049
      %p1056 = scmp.eq.s32.totalorder %s106, 1
      %p1057 = por %p1055, %p1056
      %p1058 = scmp.ne.s32.totalorder %s1050, %s1053
      %p1059 = scmp.eq.s32.totalorder %s106, 0
      %p1060 = por %p1058, %p1059
      %p1061 = scmp.ne.s32.totalorder %s1050, %s1053
      %p1062 = scmp.eq.s32.totalorder %s111, 1
      %p1063 = por %p1061, %p1062
      %p1064 = scmp.ne.s32.totalorder %s1053, %s1054
      %p1065 = scmp.eq.s32.totalorder %s111, 0
      %p1066 = por %p1064, %p1065
      %p1067 = scmp.ne.s32.totalorder %s1053, %s1054
      %p1068 = scmp.eq.s32.totalorder %s112, 1
      %p1069 = por %p1067, %p1068
      %p1071 = scmp.ne.s32.totalorder %s1054, %s1070
      %p1072 = scmp.eq.s32.totalorder %s112, 0
      %p1073 = por %p1071, %p1072
      %s1074 = ssub.s32 %s106, %s113
      %p1075 = scmp.eq.s32.totalorder %s1074, 0
      %s1077 = sadd.s32 %s1076, 1
      %s1078 = scalar_select %p1075, %s1076, %s1077
      %p1081 = pneg %p1075
      %p1082 = scmp.eq.s32.totalorder %s106, 1
      %p1083 = por %p1081, %p1082
      %p1084 = scmp.ne.s32.totalorder %s1076, %s1079
      %p1085 = scmp.eq.s32.totalorder %s106, 0
      %p1086 = por %p1084, %p1085
      %p1087 = scmp.ne.s32.totalorder %s1076, %s1079
      %p1088 = scmp.eq.s32.totalorder %s111, 1
      %p1089 = por %p1087, %p1088
      %p1090 = scmp.ne.s32.totalorder %s1079, %s1080
      %p1091 = scmp.eq.s32.totalorder %s111, 0
      %p1092 = por %p1090, %p1091
      %p1093 = scmp.ne.s32.totalorder %s1079, %s1080
      %p1094 = scmp.eq.s32.totalorder %s112, 1
      %p1095 = por %p1093, %p1094
      %p1097 = scmp.ne.s32.totalorder %s1080, %s1096
      %p1098 = scmp.eq.s32.totalorder %s112, 0
      %p1099 = por %p1097, %p1098
      %p1100 = scmp.le.s32.totalorder 1, %s106
      %p1101 = scmp.lt.s32.totalorder %s106, 3
      %p1102 = pnand %p1100, %p1101
      %p1103 = pneg %p1102
      // Predicated region
      $region9: #{alexnet_complex_forward.1} parent=5 // pred_check
        _
      $region10: #{alexnet_complex_forward.1} parent=5 // pred_check_branch
        %1105 = sbr.rel (%p1102) target = $region12
      $region11: #{alexnet_complex_forward.1} parent=5 // pred_region
        %s1106 = ssub.s32 %s106, 1
        // Predicated region
        $region13: #{alexnet_complex_forward.1} parent=11 // pred_check
          %p1107 = pneg %p179
        $region14: #{alexnet_complex_forward.1} parent=11 // pred_check_branch
          %1109 = sbr.rel (%p1107) target = $region16
        $region15: #{alexnet_complex_forward.1} parent=11 // pred_region
          _
        $region16: #{alexnet_complex_forward.1} parent=11 // pred_fallthru
          _
        // Predicated region
        $region17: #{alexnet_complex_forward.1} parent=11 // pred_check
          %p1110 = pneg %p200
        $region18: #{alexnet_complex_forward.1} parent=11 // pred_check_branch
          %1112 = sbr.rel (%p1110) target = $region20
        $region19: #{alexnet_complex_forward.1} parent=11 // pred_region
          _
        $region20: #{alexnet_complex_forward.1} parent=11 // pred_fallthru
          _
        // Predicated region
        $region21: #{alexnet_complex_forward.1} parent=11 // pred_check
          %p1113 = pneg %p221
        $region22: #{alexnet_complex_forward.1} parent=11 // pred_check_branch
          %1115 = sbr.rel (%p1113) target = $region24
        $region23: #{alexnet_complex_forward.1} parent=11 // pred_region
          _
        $region24: #{alexnet_complex_forward.1} parent=11 // pred_fallthru
          _
        // Predicated region
        $region25: #{alexnet_complex_forward.1} parent=11 // pred_check
          %p1116 = pneg %p242
        $region26: #{alexnet_complex_forward.1} parent=11 // pred_check_branch
          %1118 = sbr.rel (%p1116) target = $region28
        $region27: #{alexnet_complex_forward.1} parent=11 // pred_region
          _
        $region28: #{alexnet_complex_forward.1} parent=11 // pred_fallthru
          _
        // Predicated region
        $region29: #{alexnet_complex_forward.1} parent=11 // pred_check
          %p1119 = pneg %p263
        $region30: #{alexnet_complex_forward.1} parent=11 // pred_check_branch
          %1121 = sbr.rel (%p1119) target = $region32
        $region31: #{alexnet_complex_forward.1} parent=11 // pred_region
          _
        $region32: #{alexnet_complex_forward.1} parent=11 // pred_fallthru
          _
        // Predicated region
        $region33: #{alexnet_complex_forward.1} parent=11 // pred_check
          %p1122 = pneg %p284
        $region34: #{alexnet_complex_forward.1} parent=11 // pred_check_branch
          %1124 = sbr.rel (%p1122) target = $region36
        $region35: #{alexnet_complex_forward.1} parent=11 // pred_region
          _
        $region36: #{alexnet_complex_forward.1} parent=11 // pred_fallthru
          _
        // Predicated region
        $region37: #{alexnet_complex_forward.1} parent=11 // pred_check
          %p1125 = pneg %p305
        $region38: #{alexnet_complex_forward.1} parent=11 // pred_check_branch
          %1127 = sbr.rel (%p1125) target = $region40
        $region39: #{alexnet_complex_forward.1} parent=11 // pred_region
          _
        $region40: #{alexnet_complex_forward.1} parent=11 // pred_fallthru
          _
        // Predicated region
        $region41: #{alexnet_complex_forward.1} parent=11 // pred_check
          %p1128 = pneg %p326
        $region42: #{alexnet_complex_forward.1} parent=11 // pred_check_branch
          %1130 = sbr.rel (%p1128) target = $region44
        $region43: #{alexnet_complex_forward.1} parent=11 // pred_region
          _
        $region44: #{alexnet_complex_forward.1} parent=11 // pred_fallthru
          _
        // Predicated region
        $region45: #{alexnet_complex_forward.1} parent=11 // pred_check
          %p1131 = pneg %p347
        $region46: #{alexnet_complex_forward.1} parent=11 // pred_check_branch
          %1133 = sbr.rel (%p1131) target = $region48
        $region47: #{alexnet_complex_forward.1} parent=11 // pred_region
          _
        $region48: #{alexnet_complex_forward.1} parent=11 // pred_fallthru
          _
        // Predicated region
        $region49: #{alexnet_complex_forward.1} parent=11 // pred_check
          %p1134 = pneg %p368
        $region50: #{alexnet_complex_forward.1} parent=11 // pred_check_branch
          %1136 = sbr.rel (%p1134) target = $region52
        $region51: #{alexnet_complex_forward.1} parent=11 // pred_region
          _
        $region52: #{alexnet_complex_forward.1} parent=11 // pred_fallthru
          _
        // Predicated region
        $region53: #{alexnet_complex_forward.1} parent=11 // pred_check
          %p1137 = pneg %p389
        $region54: #{alexnet_complex_forward.1} parent=11 // pred_check_branch
          %1139 = sbr.rel (%p1137) target = $region56
        $region55: #{alexnet_complex_forward.1} parent=11 // pred_region
          _
        $region56: #{alexnet_complex_forward.1} parent=11 // pred_fallthru
          _
        // Predicated region
        $region57: #{alexnet_complex_forward.1} parent=11 // pred_check
          %p1140 = pneg %p410
        $region58: #{alexnet_complex_forward.1} parent=11 // pred_check_branch
          %1142 = sbr.rel (%p1140) target = $region60
        $region59: #{alexnet_complex_forward.1} parent=11 // pred_region
          _
        $region60: #{alexnet_complex_forward.1} parent=11 // pred_fallthru
          _
        // Predicated region
        $region61: #{alexnet_complex_forward.1} parent=11 // pred_check
          %p1143 = pneg %p431
        $region62: #{alexnet_complex_forward.1} parent=11 // pred_check_branch
          %1145 = sbr.rel (%p1143) target = $region64
        $region63: #{alexnet_complex_forward.1} parent=11 // pred_region
          _
        $region64: #{alexnet_complex_forward.1} parent=11 // pred_fallthru
          _
        // Predicated region
        $region65: #{alexnet_complex_forward.1} parent=11 // pred_check
          %p1146 = pneg %p452
        $region66: #{alexnet_complex_forward.1} parent=11 // pred_check_branch
          %1148 = sbr.rel (%p1146) target = $region68
        $region67: #{alexnet_complex_forward.1} parent=11 // pred_region
          _
        $region68: #{alexnet_complex_forward.1} parent=11 // pred_fallthru
          _
        // Predicated region
        $region69: #{alexnet_complex_forward.1} parent=11 // pred_check
          %p1149 = pneg %p473
        $region70: #{alexnet_complex_forward.1} parent=11 // pred_check_branch
          %1151 = sbr.rel (%p1149) target = $region72
        $region71: #{alexnet_complex_forward.1} parent=11 // pred_region
          _
        $region72: #{alexnet_complex_forward.1} parent=11 // pred_fallthru
          _
        // Predicated region
        $region73: #{alexnet_complex_forward.1} parent=11 // pred_check
          %p1152 = pneg %p494
        $region74: #{alexnet_complex_forward.1} parent=11 // pred_check_branch
          %1154 = sbr.rel (%p1152) target = $region76
        $region75: #{alexnet_complex_forward.1} parent=11 // pred_region
          _
        $region76: #{alexnet_complex_forward.1} parent=11 // pred_fallthru
          _
        // Predicated region
        $region77: #{alexnet_complex_forward.1} parent=11 // pred_check
          %p1155 = pneg %p515
        $region78: #{alexnet_complex_forward.1} parent=11 // pred_check_branch
          %1157 = sbr.rel (%p1155) target = $region80
        $region79: #{alexnet_complex_forward.1} parent=11 // pred_region
          _
        $region80: #{alexnet_complex_forward.1} parent=11 // pred_fallthru
          _
        // Predicated region
        $region81: #{alexnet_complex_forward.1} parent=11 // pred_check
          %p1158 = pneg %p536
        $region82: #{alexnet_complex_forward.1} parent=11 // pred_check_branch
          %1160 = sbr.rel (%p1158) target = $region84
        $region83: #{alexnet_complex_forward.1} parent=11 // pred_region
          _
        $region84: #{alexnet_complex_forward.1} parent=11 // pred_fallthru
          _
        // Predicated region
        $region85: #{alexnet_complex_forward.1} parent=11 // pred_check
          %p1161 = pneg %p557
        $region86: #{alexnet_complex_forward.1} parent=11 // pred_check_branch
          %1163 = sbr.rel (%p1161) target = $region88
        $region87: #{alexnet_complex_forward.1} parent=11 // pred_region
          _
        $region88: #{alexnet_complex_forward.1} parent=11 // pred_fallthru
          _
        // Predicated region
        $region89: #{alexnet_complex_forward.1} parent=11 // pred_check
          %p1164 = pneg %p578
        $region90: #{alexnet_complex_forward.1} parent=11 // pred_check_branch
          %1166 = sbr.rel (%p1164) target = $region92
        $region91: #{alexnet_complex_forward.1} parent=11 // pred_region
          _
        $region92: #{alexnet_complex_forward.1} parent=11 // pred_fallthru
          _
        // Predicated region
        $region93: #{alexnet_complex_forward.1} parent=11 // pred_check
          %p1167 = pneg %p599
        $region94: #{alexnet_complex_forward.1} parent=11 // pred_check_branch
          %1169 = sbr.rel (%p1167) target = $region96
        $region95: #{alexnet_complex_forward.1} parent=11 // pred_region
          _
        $region96: #{alexnet_complex_forward.1} parent=11 // pred_fallthru
          _
        // Predicated region
        $region97: #{alexnet_complex_forward.1} parent=11 // pred_check
          %p1170 = pneg %p620
        $region98: #{alexnet_complex_forward.1} parent=11 // pred_check_branch
          %1172 = sbr.rel (%p1170) target = $region100
        $region99: #{alexnet_complex_forward.1} parent=11 // pred_region
          _
        $region100: #{alexnet_complex_forward.1} parent=11 // pred_fallthru
          _
        // Predicated region
        $region101: #{alexnet_complex_forward.1} parent=11 // pred_check
          %p1173 = pneg %p641
        $region102: #{alexnet_complex_forward.1} parent=11 // pred_check_branch
          %1175 = sbr.rel (%p1173) target = $region104
        $region103: #{alexnet_complex_forward.1} parent=11 // pred_region
          _
        $region104: #{alexnet_complex_forward.1} parent=11 // pred_fallthru
          _
        // Predicated region
        $region105: #{alexnet_complex_forward.1} parent=11 // pred_check
          %p1176 = pneg %p662
        $region106: #{alexnet_complex_forward.1} parent=11 // pred_check_branch
          %1178 = sbr.rel (%p1176) target = $region108
        $region107: #{alexnet_complex_forward.1} parent=11 // pred_region
          _
        $region108: #{alexnet_complex_forward.1} parent=11 // pred_fallthru
          _
        // Predicated region
        $region109: #{alexnet_complex_forward.1} parent=11 // pred_check
          %p1179 = pneg %p683
        $region110: #{alexnet_complex_forward.1} parent=11 // pred_check_branch
          %1181 = sbr.rel (%p1179) target = $region112
        $region111: #{alexnet_complex_forward.1} parent=11 // pred_region
          _
        $region112: #{alexnet_complex_forward.1} parent=11 // pred_fallthru
          _
        // Predicated region
        $region113: #{alexnet_complex_forward.1} parent=11 // pred_check
          %p1182 = pneg %p704
        $region114: #{alexnet_complex_forward.1} parent=11 // pred_check_branch
          %1184 = sbr.rel (%p1182) target = $region116
        $region115: #{alexnet_complex_forward.1} parent=11 // pred_region
          _
        $region116: #{alexnet_complex_forward.1} parent=11 // pred_fallthru
          _
        // Predicated region
        $region117: #{alexnet_complex_forward.1} parent=11 // pred_check
          %p1185 = pneg %p725
        $region118: #{alexnet_complex_forward.1} parent=11 // pred_check_branch
          %1187 = sbr.rel (%p1185) target = $region120
        $region119: #{alexnet_complex_forward.1} parent=11 // pred_region
          _
        $region120: #{alexnet_complex_forward.1} parent=11 // pred_fallthru
          _
        // Predicated region
        $region121: #{alexnet_complex_forward.1} parent=11 // pred_check
          %p1188 = pneg %p746
        $region122: #{alexnet_complex_forward.1} parent=11 // pred_check_branch
          %1190 = sbr.rel (%p1188) target = $region124
        $region123: #{alexnet_complex_forward.1} parent=11 // pred_region
          _
        $region124: #{alexnet_complex_forward.1} parent=11 // pred_fallthru
          _
        // Predicated region
        $region125: #{alexnet_complex_forward.1} parent=11 // pred_check
          %p1191 = pneg %p767
        $region126: #{alexnet_complex_forward.1} parent=11 // pred_check_branch
          %1193 = sbr.rel (%p1191) target = $region128
        $region127: #{alexnet_complex_forward.1} parent=11 // pred_region
          _
        $region128: #{alexnet_complex_forward.1} parent=11 // pred_fallthru
          _
        // Predicated region
        $region129: #{alexnet_complex_forward.1} parent=11 // pred_check
          %p1194 = pneg %p788
        $region130: #{alexnet_complex_forward.1} parent=11 // pred_check_branch
          %1196 = sbr.rel (%p1194) target = $region132
        $region131: #{alexnet_complex_forward.1} parent=11 // pred_region
          _
        $region132: #{alexnet_complex_forward.1} parent=11 // pred_fallthru
          _
        // Predicated region
        $region133: #{alexnet_complex_forward.1} parent=11 // pred_check
          %p1197 = pneg %p809
        $region134: #{alexnet_complex_forward.1} parent=11 // pred_check_branch
          %1199 = sbr.rel (%p1197) target = $region136
        $region135: #{alexnet_complex_forward.1} parent=11 // pred_region
          _
        $region136: #{alexnet_complex_forward.1} parent=11 // pred_fallthru
          _
        // Predicated region
        $region137: #{alexnet_complex_forward.1} parent=11 // pred_check
          %p1200 = pneg %p830
        $region138: #{alexnet_complex_forward.1} parent=11 // pred_check_branch
          %1202 = sbr.rel (%p1200) target = $region140
        $region139: #{alexnet_complex_forward.1} parent=11 // pred_region
          _
        $region140: #{alexnet_complex_forward.1} parent=11 // pred_fallthru
          _
        // Predicated region
        $region141: #{alexnet_complex_forward.1} parent=11 // pred_check
          %p1203 = pneg %p851
        $region142: #{alexnet_complex_forward.1} parent=11 // pred_check_branch
          %1205 = sbr.rel (%p1203) target = $region144
        $region143: #{alexnet_complex_forward.1} parent=11 // pred_region
          _
        $region144: #{alexnet_complex_forward.1} parent=11 // pred_fallthru
          _
        // Predicated region
        $region145: #{alexnet_complex_forward.1} parent=11 // pred_check
          %p1206 = pneg %p872
        $region146: #{alexnet_complex_forward.1} parent=11 // pred_check_branch
          %1208 = sbr.rel (%p1206) target = $region148
        $region147: #{alexnet_complex_forward.1} parent=11 // pred_region
          _
        $region148: #{alexnet_complex_forward.1} parent=11 // pred_fallthru
          _
        // Predicated region
        $region149: #{alexnet_complex_forward.1} parent=11 // pred_check
          %p1209 = pneg %p893
        $region150: #{alexnet_complex_forward.1} parent=11 // pred_check_branch
          %1211 = sbr.rel (%p1209) target = $region152
        $region151: #{alexnet_complex_forward.1} parent=11 // pred_region
          _
        $region152: #{alexnet_complex_forward.1} parent=11 // pred_fallthru
          _
        // Predicated region
        $region153: #{alexnet_complex_forward.1} parent=11 // pred_check
          %p1212 = pneg %p914
        $region154: #{alexnet_complex_forward.1} parent=11 // pred_check_branch
          %1214 = sbr.rel (%p1212) target = $region156
        $region155: #{alexnet_complex_forward.1} parent=11 // pred_region
          _
        $region156: #{alexnet_complex_forward.1} parent=11 // pred_fallthru
          _
        // Predicated region
        $region157: #{alexnet_complex_forward.1} parent=11 // pred_check
          %p1215 = pneg %p935
        $region158: #{alexnet_complex_forward.1} parent=11 // pred_check_branch
          %1217 = sbr.rel (%p1215) target = $region160
        $region159: #{alexnet_complex_forward.1} parent=11 // pred_region
          _
        $region160: #{alexnet_complex_forward.1} parent=11 // pred_fallthru
          _
        // Predicated region
        $region161: #{alexnet_complex_forward.1} parent=11 // pred_check
          %p1218 = pneg %p956
        $region162: #{alexnet_complex_forward.1} parent=11 // pred_check_branch
          %1220 = sbr.rel (%p1218) target = $region164
        $region163: #{alexnet_complex_forward.1} parent=11 // pred_region
          _
        $region164: #{alexnet_complex_forward.1} parent=11 // pred_fallthru
          _
        // Predicated region
        $region165: #{alexnet_complex_forward.1} parent=11 // pred_check
          %p1221 = pneg %p977
        $region166: #{alexnet_complex_forward.1} parent=11 // pred_check_branch
          %1223 = sbr.rel (%p1221) target = $region168
        $region167: #{alexnet_complex_forward.1} parent=11 // pred_region
          _
        $region168: #{alexnet_complex_forward.1} parent=11 // pred_fallthru
          _
        // Predicated region
        $region169: #{alexnet_complex_forward.1} parent=11 // pred_check
          %p1224 = pneg %p998
        $region170: #{alexnet_complex_forward.1} parent=11 // pred_check_branch
          %1226 = sbr.rel (%p1224) target = $region172
        $region171: #{alexnet_complex_forward.1} parent=11 // pred_region
          _
        $region172: #{alexnet_complex_forward.1} parent=11 // pred_fallthru
          _
        // Predicated region
        $region173: #{alexnet_complex_forward.1} parent=11 // pred_check
          %p1227 = pneg %p1019
        $region174: #{alexnet_complex_forward.1} parent=11 // pred_check_branch
          %1229 = sbr.rel (%p1227) target = $region176
        $region175: #{alexnet_complex_forward.1} parent=11 // pred_region
          %s1231 = ssub.s32 16, 16
          %1232 = vsyncadd [#allocation3], %s1231
          %s1234 = sshll.u32 [#allocation2], 4
          %s1235 = int_to_ptr.vmem [resolvable:$true] %s1234
          %1237 = dma.hbm_to_vmem [thread:$0]  %s85, 16, %s1235, [#allocation3]
        $region176: #{alexnet_complex_forward.1} parent=11 // pred_fallthru
          _
        // Predicated region
        $region177: #{alexnet_complex_forward.1} parent=11 // pred_check
          %p1238 = pneg %p1040
        $region178: #{alexnet_complex_forward.1} parent=11 // pred_check_branch
          %1240 = sbr.rel (%p1238) target = $region180
        $region179: #{alexnet_complex_forward.1} parent=11 // pred_region
          %s1242 = ssub.s32 16, 16
          %1243 = vsyncadd [#allocation6], %s1242
          %s1245 = sshll.u32 [#allocation5], 4
          %s1246 = int_to_ptr.vmem [resolvable:$true] %s1245
          %1248 = dma.hbm_to_vmem [thread:$0]  %s87, 16, %s1246, [#allocation6]
        $region180: #{alexnet_complex_forward.1} parent=11 // pred_fallthru
          _
      $region12: #{alexnet_complex_forward.1} parent=5 // pred_fallthru
        _
      %p1249 = scmp.lt.s32.totalorder %s106, 2
      // Predicated region
      $region181: #{alexnet_complex_forward.1} parent=5 // pred_check
        %p1250 = pneg %p1249
      $region182: #{alexnet_complex_forward.1} parent=5 // pred_check_branch
        %1252 = sbr.rel (%p1250) target = $region184
      $region183: #{alexnet_complex_forward.1} parent=5 // pred_region
        // Predicated region
        $region185: #{alexnet_complex_forward.1} parent=183 // pred_check
          %p1253 = pneg %p126
        $region186: #{alexnet_complex_forward.1} parent=183 // pred_check_branch
          %1255 = sbr.rel (%p1253) target = $region188
        $region187: #{alexnet_complex_forward.1} parent=183 // pred_region
          %p1256 = scmp.lt.s32.totalorder %s106, 1
          %s1257 = scalar_select %p1256, %s106, 1
          %s1258 = smul.addr %s1257, 2
          %s1259 = smul.addr %s1258, 4
          %s1260 = scalar_lea.vmem %s1, %s1259
        $region188: #{alexnet_complex_forward.1} parent=183 // pred_fallthru
          _
        // Predicated region
        $region189: #{alexnet_complex_forward.1} parent=183 // pred_check
          %p1261 = pneg %p152
        $region190: #{alexnet_complex_forward.1} parent=183 // pred_check_branch
          %1263 = sbr.rel (%p1261) target = $region192
        $region191: #{alexnet_complex_forward.1} parent=183 // pred_region
          %p1264 = scmp.lt.s32.totalorder %s106, 1
          %s1265 = scalar_select %p1264, %s106, 1
          %s1266 = smul.addr %s1265, 2
          %s1267 = smul.addr %s1266, 4
          %s1268 = scalar_lea.vmem %s3, %s1267
        $region192: #{alexnet_complex_forward.1} parent=183 // pred_fallthru
          _
      $region184: #{alexnet_complex_forward.1} parent=5 // pred_fallthru
        _
      %p1269 = scmp.le.s32.totalorder 1, %s106
      %p1270 = scmp.lt.s32.totalorder %s106, 3
      %p1271 = pnand %p1269, %p1270
      %p1272 = pneg %p1271
      // Predicated region
      $region193: #{alexnet_complex_forward.1} parent=5 // pred_check
        _
      $region194: #{alexnet_complex_forward.1} parent=5 // pred_check_branch
        %1274 = sbr.rel (%p1271) target = $region196
      $region195: #{alexnet_complex_forward.1} parent=5 // pred_region
        %s1275 = ssub.s32 %s106, 1
        // Predicated region
        $region197: #{alexnet_complex_forward.1} parent=195 // pred_check
          %p1276 = pneg %p1019
        $region198: #{alexnet_complex_forward.1} parent=195 // pred_check_branch
          %1278 = sbr.rel (%p1276) target = $region200
        $region199: #{alexnet_complex_forward.1} parent=195 // pred_region
          %1279 = dma.done [#allocation3], 16
        $region200: #{alexnet_complex_forward.1} parent=195 // pred_fallthru
          _
        // Predicated region
        $region201: #{alexnet_complex_forward.1} parent=195 // pred_check
          %p1280 = pneg %p1040
        $region202: #{alexnet_complex_forward.1} parent=195 // pred_check_branch
          %1282 = sbr.rel (%p1280) target = $region204
        $region203: #{alexnet_complex_forward.1} parent=195 // pred_region
          %1283 = dma.done [#allocation6], 16
        $region204: #{alexnet_complex_forward.1} parent=195 // pred_fallthru
          _
        %p1284 = scmp.lt.s32.totalorder %s111, 1
        %s1285 = scalar_select %p1284, %s111, 1
        %s1286 = smul.addr %s1285, 2
        %s1287 = smul.addr %s1286, 4
        %s1288 = scalar_lea.vmem %s1, %s1287
        %p1289 = pneg %p132
        %p1290 = pneg %p129
        %p1291 = scmp.lt.s32.totalorder %s111, 1
        %s1292 = scalar_select %p1291, %s111, 1
        %s1293 = smul.addr %s1292, 2
        %s1294 = smul.addr %s1293, 4
        %s1295 = scalar_lea.vmem %s3, %s1294
        %p1296 = pneg %p158
        %p1297 = pneg %p155
        %p1298 = pneg %p179
        %p1299 = pneg %p176
        %p1300 = pneg %p200
        %p1301 = pneg %p197
        %p1302 = pneg %p221
        %p1303 = pneg %p218
        %p1304 = pneg %p242
        %p1305 = pneg %p239
        %p1306 = pneg %p263
        %p1307 = pneg %p260
        %p1308 = pneg %p284
        %p1309 = pneg %p281
        %p1310 = pneg %p305
        %p1311 = pneg %p302
        %p1312 = pneg %p326
        %p1313 = pneg %p323
        %p1314 = pneg %p347
        %p1315 = pneg %p344
        %p1316 = pneg %p368
        %p1317 = pneg %p365
        %p1318 = pneg %p389
        %p1319 = pneg %p386
        %p1320 = pneg %p410
        %p1321 = pneg %p407
        %p1322 = pneg %p431
        %p1323 = pneg %p428
        %p1324 = pneg %p452
        %p1325 = pneg %p449
        %p1326 = pneg %p473
        %p1327 = pneg %p470
        %p1328 = pneg %p494
        %p1329 = pneg %p491
        %p1330 = pneg %p515
        %p1331 = pneg %p512
        %p1332 = pneg %p536
        %p1333 = pneg %p533
        %p1334 = pneg %p557
        %p1335 = pneg %p554
        %p1336 = pneg %p578
        %p1337 = pneg %p575
        %p1338 = pneg %p599
        %p1339 = pneg %p596
        %p1340 = pneg %p620
        %p1341 = pneg %p617
        %p1342 = pneg %p641
        %p1343 = pneg %p638
        %p1344 = pneg %p662
        %p1345 = pneg %p659
        %p1346 = pneg %p683
        %p1347 = pneg %p680
        %p1348 = pneg %p704
        %p1349 = pneg %p701
        %p1350 = pneg %p725
        %p1351 = pneg %p722
        %p1352 = pneg %p746
        %p1353 = pneg %p743
        %p1354 = pneg %p767
        %p1355 = pneg %p764
        %p1356 = pneg %p788
        %p1357 = pneg %p785
        %p1358 = pneg %p809
        %p1359 = pneg %p806
        %p1360 = pneg %p830
        %p1361 = pneg %p827
        %p1362 = pneg %p851
        %p1363 = pneg %p848
        %p1364 = pneg %p872
        %p1365 = pneg %p869
        %p1366 = pneg %p893
        %p1367 = pneg %p890
        %p1368 = pneg %p914
        %p1369 = pneg %p911
        %p1370 = pneg %p935
        %p1371 = pneg %p932
        %p1372 = pneg %p956
        %p1373 = pneg %p953
        %p1374 = pneg %p977
        %p1375 = pneg %p974
        %p1376 = pneg %p998
        %p1377 = pneg %p995
        %p1378 = pneg %p1019
        %p1379 = pneg %p1016
        %p1380 = pneg %p1040
        %p1381 = pneg %p1037
        %p1382 = pneg %p1066
        %p1383 = pneg %p1063
        %s1384 = sand.u32 %s1053, 1
        %s1385 = scalar_lea.sflag [#allocation4], %s1384
        %s1386 = sand.u32 %s1053, 1
        %s1387 = scalar_lea.vmem [#allocation7], %s1386
        %p1388 = pneg %p1092
        %p1389 = pneg %p1089
        %s1390 = sand.u32 %s1079, 1
        %s1391 = scalar_lea.sflag [#allocation9], %s1390
        %s1392 = sand.u32 %s1079, 1
        %s1393 = scalar_lea.vmem [#allocation8], %s1392
        %p1394 = scmp.lt.s32.totalorder %s111, 1
        %s1395 = scalar_select %p1394, %s111, 1
        %s1396 = smul.addr %s1395, 2
        %s1397 = smul.addr %s1396, 4
        %s1398 = scalar_lea.vmem %s1, %s1397
        %p1399 = scmp.lt.s32.totalorder %s111, 1
        %s1400 = scalar_select %p1399, %s111, 1
        %s1401 = smul.addr %s1400, 2
        %s1402 = smul.addr %s1401, 4
        %s1403 = scalar_lea.vmem %s3, %s1402
        %v1405 = vld [vmem:[%s1398] sm:$0xf]
        %v1406 = vld [vmem:[%s1398 + $0x4] sm:$0x7]
        %v1407 = vld [vmem:[%s1403] sm:$0xf]
        %v1408 = vld [vmem:[%s1403 + $0x4] sm:$0x7]
        %v1409 = vld [vmem:[%s5] sm:$0xf]
        %v1410 = vld [vmem:[%s5 + $0x4] sm:$0x3]
        %v1411 = vld [vmem:[%s7] sm:$0xf]
        %v1412 = vld [vmem:[%s7 + $0x4] sm:$0x3]
        %v1415 = vunpack.c.l.b16 %v1405
        %v1416 = vunpack.c.l.b16 %v1406
        %v1417 = vpack.c.b16 %v1416, %v1415
        %v1420 = vunpack.c.l.b16 %v1409
        %v1421 = vunpack.c.l.b16 %v1410
        %v1422 = vpack.c.b16 %v1421, %v1420
        %vm1423 = vcmask 89088
        %v1425 = vsel %vm1423, %v1417, 0
        %vm1427 = vcmask 1044480
        %vm1428 = vcmask 1045504
        %v1429 = vsel %vm1427, 4294967295, 65535
        %v1430 = vsel %vm1428, %v1429, 0
        %v1432 = vand.u32 %v1422, %v1430
        %1434 = vmatprep.subr.bf16.mxu0 0
        %1435 = vmatpush1.bf16.msra.mxu0 %v1432
        %1436 = vmatprep.subr.bf16.mxu0 0
        %1437 = vmatpush1.bf16.msra.mxu0 0
        %1438 = vmatprep.subr.bf16.mxu0 0
        %1439 = vmatpush1.bf16.msra.mxu0 0
        %1440 = vmatprep.subr.bf16.mxu0 0
        %1441 = vmatpush1.bf16.msra.mxu0 0
        %1442 = vmatprep.subr.bf16.mxu0 0
        %1443 = vmatpush1.bf16.msra.mxu0 0
        %1444 = vmatprep.subr.bf16.mxu0 0
        %1445 = vmatpush1.bf16.msra.mxu0 0
        %1446 = vmatprep.subr.bf16.mxu0 0
        %1447 = vmatpush1.bf16.msra.mxu0 0
        %1448 = vmatprep.subr.bf16.mxu0 0
        %1449 = vmatpush1.bf16.msra.mxu0 0
        %1450 = vmatprep.subr.bf16.mxu0 0
        %1451 = vmatpush1.bf16.msra.mxu0 0
        %1452 = vmatprep.subr.bf16.mxu0 0
        %1453 = vmatpush1.bf16.msra.mxu0 0
        %1454 = vmatprep.subr.bf16.mxu0 0
        %1455 = vmatpush1.bf16.msra.mxu0 0
        %1456 = vmatprep.subr.bf16.mxu0 0
        %1457 = vmatpush1.bf16.msra.mxu0 0
        %1458 = vmatprep.subr.bf16.mxu0 0
        %1459 = vmatpush1.bf16.msra.mxu0 0
        %1460 = vmatprep.subr.bf16.mxu0 0
        %1461 = vmatpush1.bf16.msra.mxu0 0
        %1462 = vmatprep.subr.bf16.mxu0 0
        %1463 = vmatpush1.bf16.msra.mxu0 0
        %1464 = vmatprep.subr.bf16.mxu0 0
        %1465 = vmatpush1.bf16.msra.mxu0 0
        %1466 = vmatprep.mubr.bf16.mxu0 0
        %1467 = vmatmul.mubr.bf16.gmra.mrb[0].mxu0 %v1425
        %v1468 = vpop.f32.mrb[0].mxu0
        %v1469 = vadd.f32 0.0, %v1468
        %v1470 = vpop.f32.mrb[0].mxu0
        %v1471 = vpop.f32.mrb[0].mxu0
        %v1472 = vadd.f32 0.0, %v1471
        %v1473 = vpop.f32.mrb[0].mxu0
        %1474 = vdwg.mxu0
        %v1477 = vunpack.c.l.b16 %v1407
        %v1478 = vunpack.c.l.b16 %v1408
        %v1479 = vpack.c.b16 %v1478, %v1477
        %v1482 = vunpack.c.l.b16 %v1411
        %v1483 = vunpack.c.l.b16 %v1412
        %v1484 = vpack.c.b16 %v1483, %v1482
        %v1486 = vsel %vm1423, %v1479, 0
        %v1489 = vand.u32 %v1484, %v1430
        %1491 = vmatprep.subr.bf16.mxu0 0
        %1492 = vmatpush1.bf16.msra.mxu0 %v1489
        %1493 = vmatprep.subr.bf16.mxu0 0
        %1494 = vmatpush1.bf16.msra.mxu0 0
        %1495 = vmatprep.subr.bf16.mxu0 0
        %1496 = vmatpush1.bf16.msra.mxu0 0
        %1497 = vmatprep.subr.bf16.mxu0 0
        %1498 = vmatpush1.bf16.msra.mxu0 0
        %1499 = vmatprep.subr.bf16.mxu0 0
        %1500 = vmatpush1.bf16.msra.mxu0 0
        %1501 = vmatprep.subr.bf16.mxu0 0
        %1502 = vmatpush1.bf16.msra.mxu0 0
        %1503 = vmatprep.subr.bf16.mxu0 0
        %1504 = vmatpush1.bf16.msra.mxu0 0
        %1505 = vmatprep.subr.bf16.mxu0 0
        %1506 = vmatpush1.bf16.msra.mxu0 0
        %1507 = vmatprep.subr.bf16.mxu0 0
        %1508 = vmatpush1.bf16.msra.mxu0 0
        %1509 = vmatprep.subr.bf16.mxu0 0
        %1510 = vmatpush1.bf16.msra.mxu0 0
        %1511 = vmatprep.subr.bf16.mxu0 0
        %1512 = vmatpush1.bf16.msra.mxu0 0
        %1513 = vmatprep.subr.bf16.mxu0 0
        %1514 = vmatpush1.bf16.msra.mxu0 0
        %1515 = vmatprep.subr.bf16.mxu0 0
        %1516 = vmatpush1.bf16.msra.mxu0 0
        %1517 = vmatprep.subr.bf16.mxu0 0
        %1518 = vmatpush1.bf16.msra.mxu0 0
        %1519 = vmatprep.subr.bf16.mxu0 0
        %1520 = vmatpush1.bf16.msra.mxu0 0
        %1521 = vmatprep.subr.bf16.mxu0 0
        %1522 = vmatpush1.bf16.msra.mxu0 0
        %1523 = vmatprep.mubr.bf16.mxu0 0
        %1524 = vmatmul.mubr.bf16.gmra.mrb[0].mxu0 %v1486
        %v1525 = vpop.f32.mrb[0].mxu0
        %v1526 = vadd.f32 0.0, %v1525
        %v1527 = vpop.f32.mrb[0].mxu0
        %v1528 = vpop.f32.mrb[0].mxu0
        %v1529 = vadd.f32 0.0, %v1528
        %v1530 = vpop.f32.mrb[0].mxu0
        %1531 = vdwg.mxu0
        %1532 = vmatprep.subr.bf16.mxu0 0
        %1533 = vmatpush1.bf16.msra.mxu0 %v1432
        %1534 = vmatprep.subr.bf16.mxu0 0
        %1535 = vmatpush1.bf16.msra.mxu0 0
        %1536 = vmatprep.subr.bf16.mxu0 0
        %1537 = vmatpush1.bf16.msra.mxu0 0
        %1538 = vmatprep.subr.bf16.mxu0 0
        %1539 = vmatpush1.bf16.msra.mxu0 0
        %1540 = vmatprep.subr.bf16.mxu0 0
        %1541 = vmatpush1.bf16.msra.mxu0 0
        %1542 = vmatprep.subr.bf16.mxu0 0
        %1543 = vmatpush1.bf16.msra.mxu0 0
        %1544 = vmatprep.subr.bf16.mxu0 0
        %1545 = vmatpush1.bf16.msra.mxu0 0
        %1546 = vmatprep.subr.bf16.mxu0 0
        %1547 = vmatpush1.bf16.msra.mxu0 0
        %1548 = vmatprep.subr.bf16.mxu0 0
        %1549 = vmatpush1.bf16.msra.mxu0 0
        %1550 = vmatprep.subr.bf16.mxu0 0
        %1551 = vmatpush1.bf16.msra.mxu0 0
        %1552 = vmatprep.subr.bf16.mxu0 0
        %1553 = vmatpush1.bf16.msra.mxu0 0
        %1554 = vmatprep.subr.bf16.mxu0 0
        %1555 = vmatpush1.bf16.msra.mxu0 0
        %1556 = vmatprep.subr.bf16.mxu0 0
        %1557 = vmatpush1.bf16.msra.mxu0 0
        %1558 = vmatprep.subr.bf16.mxu0 0
        %1559 = vmatpush1.bf16.msra.mxu0 0
        %1560 = vmatprep.subr.bf16.mxu0 0
        %1561 = vmatpush1.bf16.msra.mxu0 0
        %1562 = vmatprep.subr.bf16.mxu0 0
        %1563 = vmatpush1.bf16.msra.mxu0 0
        %1564 = vmatprep.mubr.bf16.mxu0 0
        %1565 = vmatmul.mubr.bf16.gmra.mrb[0].mxu0 %v1486
        %v1566 = vpop.f32.mrb[0].mxu0
        %v1567 = vadd.f32 0.0, %v1566
        %v1568 = vpop.f32.mrb[0].mxu0
        %v1569 = vpop.f32.mrb[0].mxu0
        %v1570 = vadd.f32 0.0, %v1569
        %v1571 = vpop.f32.mrb[0].mxu0
        %1572 = vdwg.mxu0
        %v1573 = vsub.f32 %v1469, %v1526
        %v1574 = vsub.f32 %v1472, %v1529
        %1575 = vmatprep.subr.bf16.mxu0 0
        %1576 = vmatpush1.bf16.msra.mxu0 %v1489
        %1577 = vmatprep.subr.bf16.mxu0 0
        %1578 = vmatpush1.bf16.msra.mxu0 0
        %1579 = vmatprep.subr.bf16.mxu0 0
        %1580 = vmatpush1.bf16.msra.mxu0 0
        %1581 = vmatprep.subr.bf16.mxu0 0
        %1582 = vmatpush1.bf16.msra.mxu0 0
        %1583 = vmatprep.subr.bf16.mxu0 0
        %1584 = vmatpush1.bf16.msra.mxu0 0
        %1585 = vmatprep.subr.bf16.mxu0 0
        %1586 = vmatpush1.bf16.msra.mxu0 0
        %1587 = vmatprep.subr.bf16.mxu0 0
        %1588 = vmatpush1.bf16.msra.mxu0 0
        %1589 = vmatprep.subr.bf16.mxu0 0
        %1590 = vmatpush1.bf16.msra.mxu0 0
        %1591 = vmatprep.subr.bf16.mxu0 0
        %1592 = vmatpush1.bf16.msra.mxu0 0
        %1593 = vmatprep.subr.bf16.mxu0 0
        %1594 = vmatpush1.bf16.msra.mxu0 0
        %1595 = vmatprep.subr.bf16.mxu0 0
        %1596 = vmatpush1.bf16.msra.mxu0 0
        %1597 = vmatprep.subr.bf16.mxu0 0
        %1598 = vmatpush1.bf16.msra.mxu0 0
        %1599 = vmatprep.subr.bf16.mxu0 0
        %1600 = vmatpush1.bf16.msra.mxu0 0
        %1601 = vmatprep.subr.bf16.mxu0 0
        %1602 = vmatpush1.bf16.msra.mxu0 0
        %1603 = vmatprep.subr.bf16.mxu0 0
        %1604 = vmatpush1.bf16.msra.mxu0 0
        %1605 = vmatprep.subr.bf16.mxu0 0
        %1606 = vmatpush1.bf16.msra.mxu0 0
        %1607 = vmatprep.mubr.bf16.mxu0 0
        %1608 = vmatmul.mubr.bf16.gmra.mrb[0].mxu0 %v1425
        %v1609 = vpop.f32.mrb[0].mxu0
        %v1610 = vadd.f32 %v1567, %v1609
        %v1611 = vpop.f32.mrb[0].mxu0
        %v1612 = vpop.f32.mrb[0].mxu0
        %v1613 = vadd.f32 %v1570, %v1612
        %v1614 = vpop.f32.mrb[0].mxu0
        %1615 = vdwg.mxu0
        %v1616 = vadd.f32 %v1573, 0.0
        %v1617 = vadd.f32 %v1574, 0.0
        %v1618 = vadd.f32 %v1610, 0.0
        %v1619 = vadd.f32 %v1613, 0.0
        %v1620 = vld [vmem:[%s9] sm:$0x1]
        %v1622 = vlaneseq
        %v1623 = vshrl.u32 %v1622, 7
        %v1624 = vsub.s32 0, %v1623
        %v1625 = vrot.slane %v1620, %v1624
        %v1627 = vadd.f32 %v1616, %v1625
        %v1628 = vadd.f32 %v1617, %v1625
        %v1629 = vld [vmem:[%s11] sm:$0x1]
        %v1631 = vlaneseq
        %v1632 = vshrl.u32 %v1631, 7
        %v1633 = vsub.s32 0, %v1632
        %v1634 = vrot.slane %v1629, %v1633
        %v1636 = vadd.f32 %v1618, %v1634
        %v1637 = vadd.f32 %v1619, %v1634
        %v1638 = vmul.f32 %v1627, %v1627
        %v1639 = vmul.f32 %v1628, %v1628
        %v1640 = vmul.f32 %v1636, %v1636
        %v1641 = vmul.f32 %v1637, %v1637
        %v1642 = vadd.f32 %v1638, %v1640
        %v1643 = vadd.f32 %v1639, %v1641
        %v1644 = vmax.f32 %v1642, 1e-10
        %v1645 = vmax.f32 %v1643, 1e-10
        %v1646 = vrsqrt.pop %v1644
        %v1647 = vrsqrt.pop %v1645
        %v1648 = vmul.f32 %v1646, 0.5
        %v1649 = vmul.f32 %v1647, 0.5
        %v1650 = vsub.f32 1.0, %v1648
        %v1651 = vsub.f32 1.0, %v1649
        %v1652 = vmax.f32 %v1650, 0.0
        %v1653 = vmax.f32 %v1651, 0.0
        %v1654 = vmul.f32 %v1627, %v1652
        %v1655 = vmul.f32 %v1628, %v1653
        %v1656 = vmul.f32 %v1636, %v1652
        %v1657 = vmul.f32 %v1637, %v1653
        %v1658 = vpack.c.bf16 %v1655, %v1654
        %v1659 = vpack.c.bf16 %v1657, %v1656
        %v1660 = vld [vmem:[%s21] sm:$0x7]
        %vm1661 = vcmask 113664
        %v1663 = vsel %vm1661, %v1660, 0
        %vm1665 = vcmask 1046528
        %v1667 = vsel %vm1665, %v1658, 0
        %1669 = vmatprep.subr.bf16.mxu0 0
        %1670 = vmatpush1.bf16.msra.mxu0 %v1667
        %1671 = vmatprep.subr.bf16.mxu0 0
        %1672 = vmatpush1.bf16.msra.mxu0 0
        %1673 = vmatprep.subr.bf16.mxu0 0
        %1674 = vmatpush1.bf16.msra.mxu0 0
        %1675 = vmatprep.subr.bf16.mxu0 0
        %1676 = vmatpush1.bf16.msra.mxu0 0
        %1677 = vmatprep.subr.bf16.mxu0 0
        %1678 = vmatpush1.bf16.msra.mxu0 0
        %1679 = vmatprep.subr.bf16.mxu0 0
        %1680 = vmatpush1.bf16.msra.mxu0 0
        %1681 = vmatprep.subr.bf16.mxu0 0
        %1682 = vmatpush1.bf16.msra.mxu0 0
        %1683 = vmatprep.subr.bf16.mxu0 0
        %1684 = vmatpush1.bf16.msra.mxu0 0
        %1685 = vmatprep.subr.bf16.mxu0 0
        %1686 = vmatpush1.bf16.msra.mxu0 0
        %1687 = vmatprep.subr.bf16.mxu0 0
        %1688 = vmatpush1.bf16.msra.mxu0 0
        %1689 = vmatprep.subr.bf16.mxu0 0
        %1690 = vmatpush1.bf16.msra.mxu0 0
        %1691 = vmatprep.subr.bf16.mxu0 0
        %1692 = vmatpush1.bf16.msra.mxu0 0
        %1693 = vmatprep.subr.bf16.mxu0 0
        %1694 = vmatpush1.bf16.msra.mxu0 0
        %1695 = vmatprep.subr.bf16.mxu0 0
        %1696 = vmatpush1.bf16.msra.mxu0 0
        %1697 = vmatprep.subr.bf16.mxu0 0
        %1698 = vmatpush1.bf16.msra.mxu0 0
        %1699 = vmatprep.subr.bf16.mxu0 0
        %1700 = vmatpush1.bf16.msra.mxu0 0
        %1701 = vmatprep.mubr.bf16.mxu0 0
        %1702 = vmatmul.mubr.bf16.gmra.mrb[0].mxu0 %v1663
        %v1703 = vpop.f32.mrb[0].mxu0
        %v1704 = vadd.f32 0.0, %v1703
        %v1705 = vpop.f32.mrb[0].mxu0
        %v1706 = vpop.f32.mrb[0].mxu0
        %v1707 = vpop.f32.mrb[0].mxu0
        %1708 = vdwg.mxu0
        %v1709 = vpack.c.bf16 %v1704, %v1704
        %v1711 = vsel %vm1665, %v1659, 0
        %1713 = vmatprep.subr.bf16.mxu0 0
        %1714 = vmatpush1.bf16.msra.mxu0 %v1711
        %1715 = vmatprep.subr.bf16.mxu0 0
        %1716 = vmatpush1.bf16.msra.mxu0 0
        %1717 = vmatprep.subr.bf16.mxu0 0
        %1718 = vmatpush1.bf16.msra.mxu0 0
        %1719 = vmatprep.subr.bf16.mxu0 0
        %1720 = vmatpush1.bf16.msra.mxu0 0
        %1721 = vmatprep.subr.bf16.mxu0 0
        %1722 = vmatpush1.bf16.msra.mxu0 0
        %1723 = vmatprep.subr.bf16.mxu0 0
        %1724 = vmatpush1.bf16.msra.mxu0 0
        %1725 = vmatprep.subr.bf16.mxu0 0
        %1726 = vmatpush1.bf16.msra.mxu0 0
        %1727 = vmatprep.subr.bf16.mxu0 0
        %1728 = vmatpush1.bf16.msra.mxu0 0
        %1729 = vmatprep.subr.bf16.mxu0 0
        %1730 = vmatpush1.bf16.msra.mxu0 0
        %1731 = vmatprep.subr.bf16.mxu0 0
        %1732 = vmatpush1.bf16.msra.mxu0 0
        %1733 = vmatprep.subr.bf16.mxu0 0
        %1734 = vmatpush1.bf16.msra.mxu0 0
        %1735 = vmatprep.subr.bf16.mxu0 0
        %1736 = vmatpush1.bf16.msra.mxu0 0
        %1737 = vmatprep.subr.bf16.mxu0 0
        %1738 = vmatpush1.bf16.msra.mxu0 0
        %1739 = vmatprep.subr.bf16.mxu0 0
        %1740 = vmatpush1.bf16.msra.mxu0 0
        %1741 = vmatprep.subr.bf16.mxu0 0
        %1742 = vmatpush1.bf16.msra.mxu0 0
        %1743 = vmatprep.subr.bf16.mxu0 0
        %1744 = vmatpush1.bf16.msra.mxu0 0
        %1745 = vmatprep.mubr.bf16.mxu0 0
        %1746 = vmatmul.mubr.bf16.gmra.mrb[0].mxu0 %v1663
        %v1747 = vpop.f32.mrb[0].mxu0
        %v1748 = vadd.f32 0.0, %v1747
        %v1749 = vpop.f32.mrb[0].mxu0
        %v1750 = vpop.f32.mrb[0].mxu0
        %v1751 = vpop.f32.mrb[0].mxu0
        %1752 = vdwg.mxu0
        %v1753 = vpack.c.bf16 %v1748, %v1748
        %v1754 = vld [vmem:[%s13] sm:$0xf]
        %v1755 = vld [vmem:[%s15] sm:$0xf]
        %vm1756 = vcmask 64512
        %v1758 = vsel %vm1756, %v1709, 0
        %vm1760 = vcmask 1043456
        %v1762 = vsel %vm1760, %v1754, 0
        %1764 = vmatprep.subr.bf16.mxu0 0
        %1765 = vmatpush1.bf16.msra.mxu0 %v1762
        %1766 = vmatprep.subr.bf16.mxu0 0
        %1767 = vmatpush1.bf16.msra.mxu0 0
        %1768 = vmatprep.subr.bf16.mxu0 0
        %1769 = vmatpush1.bf16.msra.mxu0 0
        %1770 = vmatprep.subr.bf16.mxu0 0
        %1771 = vmatpush1.bf16.msra.mxu0 0
        %1772 = vmatprep.subr.bf16.mxu0 0
        %1773 = vmatpush1.bf16.msra.mxu0 0
        %1774 = vmatprep.subr.bf16.mxu0 0
        %1775 = vmatpush1.bf16.msra.mxu0 0
        %1776 = vmatprep.subr.bf16.mxu0 0
        %1777 = vmatpush1.bf16.msra.mxu0 0
        %1778 = vmatprep.subr.bf16.mxu0 0
        %1779 = vmatpush1.bf16.msra.mxu0 0
        %1780 = vmatprep.subr.bf16.mxu0 0
        %1781 = vmatpush1.bf16.msra.mxu0 0
        %1782 = vmatprep.subr.bf16.mxu0 0
        %1783 = vmatpush1.bf16.msra.mxu0 0
        %1784 = vmatprep.subr.bf16.mxu0 0
        %1785 = vmatpush1.bf16.msra.mxu0 0
        %1786 = vmatprep.subr.bf16.mxu0 0
        %1787 = vmatpush1.bf16.msra.mxu0 0
        %1788 = vmatprep.subr.bf16.mxu0 0
        %1789 = vmatpush1.bf16.msra.mxu0 0
        %1790 = vmatprep.subr.bf16.mxu0 0
        %1791 = vmatpush1.bf16.msra.mxu0 0
        %1792 = vmatprep.subr.bf16.mxu0 0
        %1793 = vmatpush1.bf16.msra.mxu0 0
        %1794 = vmatprep.subr.bf16.mxu0 0
        %1795 = vmatpush1.bf16.msra.mxu0 0
        %1796 = vmatprep.mubr.bf16.mxu0 0
        %1797 = vmatmul.mubr.bf16.gmra.mrb[0].mxu0 %v1758
        %v1798 = vpop.f32.mrb[0].mxu0
        %v1799 = vadd.f32 0.0, %v1798
        %v1800 = vpop.f32.mrb[0].mxu0
        %v1801 = vpop.f32.mrb[0].mxu0
        %v1802 = vpop.f32.mrb[0].mxu0
        %1803 = vdwg.mxu0
        %v1805 = vsel %vm1756, %v1753, 0
        %v1808 = vsel %vm1760, %v1755, 0
        %1810 = vmatprep.subr.bf16.mxu0 0
        %1811 = vmatpush1.bf16.msra.mxu0 %v1808
        %1812 = vmatprep.subr.bf16.mxu0 0
        %1813 = vmatpush1.bf16.msra.mxu0 0
        %1814 = vmatprep.subr.bf16.mxu0 0
        %1815 = vmatpush1.bf16.msra.mxu0 0
        %1816 = vmatprep.subr.bf16.mxu0 0
        %1817 = vmatpush1.bf16.msra.mxu0 0
        %1818 = vmatprep.subr.bf16.mxu0 0
        %1819 = vmatpush1.bf16.msra.mxu0 0
        %1820 = vmatprep.subr.bf16.mxu0 0
        %1821 = vmatpush1.bf16.msra.mxu0 0
        %1822 = vmatprep.subr.bf16.mxu0 0
        %1823 = vmatpush1.bf16.msra.mxu0 0
        %1824 = vmatprep.subr.bf16.mxu0 0
        %1825 = vmatpush1.bf16.msra.mxu0 0
        %1826 = vmatprep.subr.bf16.mxu0 0
        %1827 = vmatpush1.bf16.msra.mxu0 0
        %1828 = vmatprep.subr.bf16.mxu0 0
        %1829 = vmatpush1.bf16.msra.mxu0 0
        %1830 = vmatprep.subr.bf16.mxu0 0
        %1831 = vmatpush1.bf16.msra.mxu0 0
        %1832 = vmatprep.subr.bf16.mxu0 0
        %1833 = vmatpush1.bf16.msra.mxu0 0
        %1834 = vmatprep.subr.bf16.mxu0 0
        %1835 = vmatpush1.bf16.msra.mxu0 0
        %1836 = vmatprep.subr.bf16.mxu0 0
        %1837 = vmatpush1.bf16.msra.mxu0 0
        %1838 = vmatprep.subr.bf16.mxu0 0
        %1839 = vmatpush1.bf16.msra.mxu0 0
        %1840 = vmatprep.subr.bf16.mxu0 0
        %1841 = vmatpush1.bf16.msra.mxu0 0
        %1842 = vmatprep.mubr.bf16.mxu0 0
        %1843 = vmatmul.mubr.bf16.gmra.mrb[0].mxu0 %v1805
        %v1844 = vpop.f32.mrb[0].mxu0
        %v1845 = vadd.f32 0.0, %v1844
        %v1846 = vpop.f32.mrb[0].mxu0
        %v1847 = vpop.f32.mrb[0].mxu0
        %v1848 = vpop.f32.mrb[0].mxu0
        %1849 = vdwg.mxu0
        %1850 = vmatprep.subr.bf16.mxu0 0
        %1851 = vmatpush1.bf16.msra.mxu0 %v1762
        %1852 = vmatprep.subr.bf16.mxu0 0
        %1853 = vmatpush1.bf16.msra.mxu0 0
        %1854 = vmatprep.subr.bf16.mxu0 0
        %1855 = vmatpush1.bf16.msra.mxu0 0
        %1856 = vmatprep.subr.bf16.mxu0 0
        %1857 = vmatpush1.bf16.msra.mxu0 0
        %1858 = vmatprep.subr.bf16.mxu0 0
        %1859 = vmatpush1.bf16.msra.mxu0 0
        %1860 = vmatprep.subr.bf16.mxu0 0
        %1861 = vmatpush1.bf16.msra.mxu0 0
        %1862 = vmatprep.subr.bf16.mxu0 0
        %1863 = vmatpush1.bf16.msra.mxu0 0
        %1864 = vmatprep.subr.bf16.mxu0 0
        %1865 = vmatpush1.bf16.msra.mxu0 0
        %1866 = vmatprep.subr.bf16.mxu0 0
        %1867 = vmatpush1.bf16.msra.mxu0 0
        %1868 = vmatprep.subr.bf16.mxu0 0
        %1869 = vmatpush1.bf16.msra.mxu0 0
        %1870 = vmatprep.subr.bf16.mxu0 0
        %1871 = vmatpush1.bf16.msra.mxu0 0
        %1872 = vmatprep.subr.bf16.mxu0 0
        %1873 = vmatpush1.bf16.msra.mxu0 0
        %1874 = vmatprep.subr.bf16.mxu0 0
        %1875 = vmatpush1.bf16.msra.mxu0 0
        %1876 = vmatprep.subr.bf16.mxu0 0
        %1877 = vmatpush1.bf16.msra.mxu0 0
        %1878 = vmatprep.subr.bf16.mxu0 0
        %1879 = vmatpush1.bf16.msra.mxu0 0
        %1880 = vmatprep.subr.bf16.mxu0 0
        %1881 = vmatpush1.bf16.msra.mxu0 0
        %1882 = vmatprep.mubr.bf16.mxu0 0
        %1883 = vmatmul.mubr.bf16.gmra.mrb[0].mxu0 %v1805
        %v1884 = vpop.f32.mrb[0].mxu0
        %v1885 = vadd.f32 0.0, %v1884
        %v1886 = vpop.f32.mrb[0].mxu0
        %v1887 = vpop.f32.mrb[0].mxu0
        %v1888 = vpop.f32.mrb[0].mxu0
        %1889 = vdwg.mxu0
        %v1890 = vsub.f32 %v1799, %v1845
        %1891 = vmatprep.subr.bf16.mxu0 0
        %1892 = vmatpush1.bf16.msra.mxu0 %v1808
        %1893 = vmatprep.subr.bf16.mxu0 0
        %1894 = vmatpush1.bf16.msra.mxu0 0
        %1895 = vmatprep.subr.bf16.mxu0 0
        %1896 = vmatpush1.bf16.msra.mxu0 0
        %1897 = vmatprep.subr.bf16.mxu0 0
        %1898 = vmatpush1.bf16.msra.mxu0 0
        %1899 = vmatprep.subr.bf16.mxu0 0
        %1900 = vmatpush1.bf16.msra.mxu0 0
        %1901 = vmatprep.subr.bf16.mxu0 0
        %1902 = vmatpush1.bf16.msra.mxu0 0
        %1903 = vmatprep.subr.bf16.mxu0 0
        %1904 = vmatpush1.bf16.msra.mxu0 0
        %1905 = vmatprep.subr.bf16.mxu0 0
        %1906 = vmatpush1.bf16.msra.mxu0 0
        %1907 = vmatprep.subr.bf16.mxu0 0
        %1908 = vmatpush1.bf16.msra.mxu0 0
        %1909 = vmatprep.subr.bf16.mxu0 0
        %1910 = vmatpush1.bf16.msra.mxu0 0
        %1911 = vmatprep.subr.bf16.mxu0 0
        %1912 = vmatpush1.bf16.msra.mxu0 0
        %1913 = vmatprep.subr.bf16.mxu0 0
        %1914 = vmatpush1.bf16.msra.mxu0 0
        %1915 = vmatprep.subr.bf16.mxu0 0
        %1916 = vmatpush1.bf16.msra.mxu0 0
        %1917 = vmatprep.subr.bf16.mxu0 0
        %1918 = vmatpush1.bf16.msra.mxu0 0
        %1919 = vmatprep.subr.bf16.mxu0 0
        %1920 = vmatpush1.bf16.msra.mxu0 0
        %1921 = vmatprep.subr.bf16.mxu0 0
        %1922 = vmatpush1.bf16.msra.mxu0 0
        %1923 = vmatprep.mubr.bf16.mxu0 0
        %1924 = vmatmul.mubr.bf16.gmra.mrb[0].mxu0 %v1758
        %v1925 = vpop.f32.mrb[0].mxu0
        %v1926 = vadd.f32 %v1885, %v1925
        %v1927 = vpop.f32.mrb[0].mxu0
        %v1928 = vpop.f32.mrb[0].mxu0
        %v1929 = vpop.f32.mrb[0].mxu0
        %1930 = vdwg.mxu0
        %v1931 = vadd.f32 %v1890, 0.0
        %v1932 = vadd.f32 %v1926, 0.0
        %s1933 = scalar_lea.vmem %s21, 4
        %v1934 = vld [vmem:[%s1933] sm:$0x7]
        %v1936 = vsel %vm1661, %v1934, 0
        %1938 = vmatprep.subr.bf16.mxu0 0
        %1939 = vmatpush1.bf16.msra.mxu0 %v1667
        %1940 = vmatprep.subr.bf16.mxu0 0
        %1941 = vmatpush1.bf16.msra.mxu0 0
        %1942 = vmatprep.subr.bf16.mxu0 0
        %1943 = vmatpush1.bf16.msra.mxu0 0
        %1944 = vmatprep.subr.bf16.mxu0 0
        %1945 = vmatpush1.bf16.msra.mxu0 0
        %1946 = vmatprep.subr.bf16.mxu0 0
        %1947 = vmatpush1.bf16.msra.mxu0 0
        %1948 = vmatprep.subr.bf16.mxu0 0
        %1949 = vmatpush1.bf16.msra.mxu0 0
        %1950 = vmatprep.subr.bf16.mxu0 0
        %1951 = vmatpush1.bf16.msra.mxu0 0
        %1952 = vmatprep.subr.bf16.mxu0 0
        %1953 = vmatpush1.bf16.msra.mxu0 0
        %1954 = vmatprep.subr.bf16.mxu0 0
        %1955 = vmatpush1.bf16.msra.mxu0 0
        %1956 = vmatprep.subr.bf16.mxu0 0
        %1957 = vmatpush1.bf16.msra.mxu0 0
        %1958 = vmatprep.subr.bf16.mxu0 0
        %1959 = vmatpush1.bf16.msra.mxu0 0
        %1960 = vmatprep.subr.bf16.mxu0 0
        %1961 = vmatpush1.bf16.msra.mxu0 0
        %1962 = vmatprep.subr.bf16.mxu0 0
        %1963 = vmatpush1.bf16.msra.mxu0 0
        %1964 = vmatprep.subr.bf16.mxu0 0
        %1965 = vmatpush1.bf16.msra.mxu0 0
        %1966 = vmatprep.subr.bf16.mxu0 0
        %1967 = vmatpush1.bf16.msra.mxu0 0
        %1968 = vmatprep.subr.bf16.mxu0 0
        %1969 = vmatpush1.bf16.msra.mxu0 0
        %1970 = vmatprep.mubr.bf16.mxu0 0
        %1971 = vmatmul.mubr.bf16.gmra.mrb[0].mxu0 %v1936
        %v1972 = vpop.f32.mrb[0].mxu0
        %v1973 = vadd.f32 0.0, %v1972
        %v1974 = vpop.f32.mrb[0].mxu0
        %v1975 = vpop.f32.mrb[0].mxu0
        %v1976 = vpop.f32.mrb[0].mxu0
        %1977 = vdwg.mxu0
        %v1978 = vpack.c.bf16 %v1973, %v1973
        %1979 = vmatprep.subr.bf16.mxu0 0
        %1980 = vmatpush1.bf16.msra.mxu0 %v1711
        %1981 = vmatprep.subr.bf16.mxu0 0
        %1982 = vmatpush1.bf16.msra.mxu0 0
        %1983 = vmatprep.subr.bf16.mxu0 0
        %1984 = vmatpush1.bf16.msra.mxu0 0
        %1985 = vmatprep.subr.bf16.mxu0 0
        %1986 = vmatpush1.bf16.msra.mxu0 0
        %1987 = vmatprep.subr.bf16.mxu0 0
        %1988 = vmatpush1.bf16.msra.mxu0 0
        %1989 = vmatprep.subr.bf16.mxu0 0
        %1990 = vmatpush1.bf16.msra.mxu0 0
        %1991 = vmatprep.subr.bf16.mxu0 0
        %1992 = vmatpush1.bf16.msra.mxu0 0
        %1993 = vmatprep.subr.bf16.mxu0 0
        %1994 = vmatpush1.bf16.msra.mxu0 0
        %1995 = vmatprep.subr.bf16.mxu0 0
        %1996 = vmatpush1.bf16.msra.mxu0 0
        %1997 = vmatprep.subr.bf16.mxu0 0
        %1998 = vmatpush1.bf16.msra.mxu0 0
        %1999 = vmatprep.subr.bf16.mxu0 0
        %2000 = vmatpush1.bf16.msra.mxu0 0
        %2001 = vmatprep.subr.bf16.mxu0 0
        %2002 = vmatpush1.bf16.msra.mxu0 0
        %2003 = vmatprep.subr.bf16.mxu0 0
        %2004 = vmatpush1.bf16.msra.mxu0 0
        %2005 = vmatprep.subr.bf16.mxu0 0
        %2006 = vmatpush1.bf16.msra.mxu0 0
        %2007 = vmatprep.subr.bf16.mxu0 0
        %2008 = vmatpush1.bf16.msra.mxu0 0
        %2009 = vmatprep.subr.bf16.mxu0 0
        %2010 = vmatpush1.bf16.msra.mxu0 0
        %2011 = vmatprep.mubr.bf16.mxu0 0
        %2012 = vmatmul.mubr.bf16.gmra.mrb[0].mxu0 %v1936
        %v2013 = vpop.f32.mrb[0].mxu0
        %v2014 = vadd.f32 0.0, %v2013
        %v2015 = vpop.f32.mrb[0].mxu0
        %v2016 = vpop.f32.mrb[0].mxu0
        %v2017 = vpop.f32.mrb[0].mxu0
        %2018 = vdwg.mxu0
        %v2019 = vpack.c.bf16 %v2014, %v2014
        %s2020 = scalar_lea.vmem %s13, 4
        %v2021 = vld [vmem:[%s2020] sm:$0xf]
        %s2022 = scalar_lea.vmem %s15, 4
        %v2023 = vld [vmem:[%s2022] sm:$0xf]
        %v2025 = vsel %vm1756, %v1978, 0
        %v2028 = vsel %vm1760, %v2021, 0
        %2030 = vmatprep.subr.bf16.mxu0 0
        %2031 = vmatpush1.bf16.msra.mxu0 %v2028
        %2032 = vmatprep.subr.bf16.mxu0 0
        %2033 = vmatpush1.bf16.msra.mxu0 0
        %2034 = vmatprep.subr.bf16.mxu0 0
        %2035 = vmatpush1.bf16.msra.mxu0 0
        %2036 = vmatprep.subr.bf16.mxu0 0
        %2037 = vmatpush1.bf16.msra.mxu0 0
        %2038 = vmatprep.subr.bf16.mxu0 0
        %2039 = vmatpush1.bf16.msra.mxu0 0
        %2040 = vmatprep.subr.bf16.mxu0 0
        %2041 = vmatpush1.bf16.msra.mxu0 0
        %2042 = vmatprep.subr.bf16.mxu0 0
        %2043 = vmatpush1.bf16.msra.mxu0 0
        %2044 = vmatprep.subr.bf16.mxu0 0
        %2045 = vmatpush1.bf16.msra.mxu0 0
        %2046 = vmatprep.subr.bf16.mxu0 0
        %2047 = vmatpush1.bf16.msra.mxu0 0
        %2048 = vmatprep.subr.bf16.mxu0 0
        %2049 = vmatpush1.bf16.msra.mxu0 0
        %2050 = vmatprep.subr.bf16.mxu0 0
        %2051 = vmatpush1.bf16.msra.mxu0 0
        %2052 = vmatprep.subr.bf16.mxu0 0
        %2053 = vmatpush1.bf16.msra.mxu0 0
        %2054 = vmatprep.subr.bf16.mxu0 0
        %2055 = vmatpush1.bf16.msra.mxu0 0
        %2056 = vmatprep.subr.bf16.mxu0 0
        %2057 = vmatpush1.bf16.msra.mxu0 0
        %2058 = vmatprep.subr.bf16.mxu0 0
        %2059 = vmatpush1.bf16.msra.mxu0 0
        %2060 = vmatprep.subr.bf16.mxu0 0
        %2061 = vmatpush1.bf16.msra.mxu0 0
        %2062 = vmatprep.mubr.bf16.mxu0 0
        %2063 = vmatmul.mubr.bf16.gmra.mrb[0].mxu0 %v2025
        %v2064 = vpop.f32.mrb[0].mxu0
        %v2065 = vadd.f32 0.0, %v2064
        %v2066 = vpop.f32.mrb[0].mxu0
        %v2067 = vpop.f32.mrb[0].mxu0
        %v2068 = vpop.f32.mrb[0].mxu0
        %2069 = vdwg.mxu0
        %v2071 = vsel %vm1756, %v2019, 0
        %v2074 = vsel %vm1760, %v2023, 0
        %2076 = vmatprep.subr.bf16.mxu0 0
        %2077 = vmatpush1.bf16.msra.mxu0 %v2074
        %2078 = vmatprep.subr.bf16.mxu0 0
        %2079 = vmatpush1.bf16.msra.mxu0 0
        %2080 = vmatprep.subr.bf16.mxu0 0
        %2081 = vmatpush1.bf16.msra.mxu0 0
        %2082 = vmatprep.subr.bf16.mxu0 0
        %2083 = vmatpush1.bf16.msra.mxu0 0
        %2084 = vmatprep.subr.bf16.mxu0 0
        %2085 = vmatpush1.bf16.msra.mxu0 0
        %2086 = vmatprep.subr.bf16.mxu0 0
        %2087 = vmatpush1.bf16.msra.mxu0 0
        %2088 = vmatprep.subr.bf16.mxu0 0
        %2089 = vmatpush1.bf16.msra.mxu0 0
        %2090 = vmatprep.subr.bf16.mxu0 0
        %2091 = vmatpush1.bf16.msra.mxu0 0
        %2092 = vmatprep.subr.bf16.mxu0 0
        %2093 = vmatpush1.bf16.msra.mxu0 0
        %2094 = vmatprep.subr.bf16.mxu0 0
        %2095 = vmatpush1.bf16.msra.mxu0 0
        %2096 = vmatprep.subr.bf16.mxu0 0
        %2097 = vmatpush1.bf16.msra.mxu0 0
        %2098 = vmatprep.subr.bf16.mxu0 0
        %2099 = vmatpush1.bf16.msra.mxu0 0
        %2100 = vmatprep.subr.bf16.mxu0 0
        %2101 = vmatpush1.bf16.msra.mxu0 0
        %2102 = vmatprep.subr.bf16.mxu0 0
        %2103 = vmatpush1.bf16.msra.mxu0 0
        %2104 = vmatprep.subr.bf16.mxu0 0
        %2105 = vmatpush1.bf16.msra.mxu0 0
        %2106 = vmatprep.subr.bf16.mxu0 0
        %2107 = vmatpush1.bf16.msra.mxu0 0
        %2108 = vmatprep.mubr.bf16.mxu0 0
        %2109 = vmatmul.mubr.bf16.gmra.mrb[0].mxu0 %v2071
        %v2110 = vpop.f32.mrb[0].mxu0
        %v2111 = vadd.f32 0.0, %v2110
        %v2112 = vpop.f32.mrb[0].mxu0
        %v2113 = vpop.f32.mrb[0].mxu0
        %v2114 = vpop.f32.mrb[0].mxu0
        %2115 = vdwg.mxu0
        %2116 = vmatprep.subr.bf16.mxu0 0
        %2117 = vmatpush1.bf16.msra.mxu0 %v2028
        %2118 = vmatprep.subr.bf16.mxu0 0
        %2119 = vmatpush1.bf16.msra.mxu0 0
        %2120 = vmatprep.subr.bf16.mxu0 0
        %2121 = vmatpush1.bf16.msra.mxu0 0
        %2122 = vmatprep.subr.bf16.mxu0 0
        %2123 = vmatpush1.bf16.msra.mxu0 0
        %2124 = vmatprep.subr.bf16.mxu0 0
        %2125 = vmatpush1.bf16.msra.mxu0 0
        %2126 = vmatprep.subr.bf16.mxu0 0
        %2127 = vmatpush1.bf16.msra.mxu0 0
        %2128 = vmatprep.subr.bf16.mxu0 0
        %2129 = vmatpush1.bf16.msra.mxu0 0
        %2130 = vmatprep.subr.bf16.mxu0 0
        %2131 = vmatpush1.bf16.msra.mxu0 0
        %2132 = vmatprep.subr.bf16.mxu0 0
        %2133 = vmatpush1.bf16.msra.mxu0 0
        %2134 = vmatprep.subr.bf16.mxu0 0
        %2135 = vmatpush1.bf16.msra.mxu0 0
        %2136 = vmatprep.subr.bf16.mxu0 0
        %2137 = vmatpush1.bf16.msra.mxu0 0
        %2138 = vmatprep.subr.bf16.mxu0 0
        %2139 = vmatpush1.bf16.msra.mxu0 0
        %2140 = vmatprep.subr.bf16.mxu0 0
        %2141 = vmatpush1.bf16.msra.mxu0 0
        %2142 = vmatprep.subr.bf16.mxu0 0
        %2143 = vmatpush1.bf16.msra.mxu0 0
        %2144 = vmatprep.subr.bf16.mxu0 0
        %2145 = vmatpush1.bf16.msra.mxu0 0
        %2146 = vmatprep.subr.bf16.mxu0 0
        %2147 = vmatpush1.bf16.msra.mxu0 0
        %2148 = vmatprep.mubr.bf16.mxu0 0
        %2149 = vmatmul.mubr.bf16.gmra.mrb[0].mxu0 %v2071
        %v2150 = vpop.f32.mrb[0].mxu0
        %v2151 = vadd.f32 0.0, %v2150
        %v2152 = vpop.f32.mrb[0].mxu0
        %v2153 = vpop.f32.mrb[0].mxu0
        %v2154 = vpop.f32.mrb[0].mxu0
        %2155 = vdwg.mxu0
        %v2156 = vsub.f32 %v2065, %v2111
        %2157 = vmatprep.subr.bf16.mxu0 0
        %2158 = vmatpush1.bf16.msra.mxu0 %v2074
        %2159 = vmatprep.subr.bf16.mxu0 0
        %2160 = vmatpush1.bf16.msra.mxu0 0
        %2161 = vmatprep.subr.bf16.mxu0 0
        %2162 = vmatpush1.bf16.msra.mxu0 0
        %2163 = vmatprep.subr.bf16.mxu0 0
        %2164 = vmatpush1.bf16.msra.mxu0 0
        %2165 = vmatprep.subr.bf16.mxu0 0
        %2166 = vmatpush1.bf16.msra.mxu0 0
        %2167 = vmatprep.subr.bf16.mxu0 0
        %2168 = vmatpush1.bf16.msra.mxu0 0
        %2169 = vmatprep.subr.bf16.mxu0 0
        %2170 = vmatpush1.bf16.msra.mxu0 0
        %2171 = vmatprep.subr.bf16.mxu0 0
        %2172 = vmatpush1.bf16.msra.mxu0 0
        %2173 = vmatprep.subr.bf16.mxu0 0
        %2174 = vmatpush1.bf16.msra.mxu0 0
        %2175 = vmatprep.subr.bf16.mxu0 0
        %2176 = vmatpush1.bf16.msra.mxu0 0
        %2177 = vmatprep.subr.bf16.mxu0 0
        %2178 = vmatpush1.bf16.msra.mxu0 0
        %2179 = vmatprep.subr.bf16.mxu0 0
        %2180 = vmatpush1.bf16.msra.mxu0 0
        %2181 = vmatprep.subr.bf16.mxu0 0
        %2182 = vmatpush1.bf16.msra.mxu0 0
        %2183 = vmatprep.subr.bf16.mxu0 0
        %2184 = vmatpush1.bf16.msra.mxu0 0
        %2185 = vmatprep.subr.bf16.mxu0 0
        %2186 = vmatpush1.bf16.msra.mxu0 0
        %2187 = vmatprep.subr.bf16.mxu0 0
        %2188 = vmatpush1.bf16.msra.mxu0 0
        %2189 = vmatprep.mubr.bf16.mxu0 0
        %2190 = vmatmul.mubr.bf16.gmra.mrb[0].mxu0 %v2025
        %v2191 = vpop.f32.mrb[0].mxu0
        %v2192 = vadd.f32 %v2151, %v2191
        %v2193 = vpop.f32.mrb[0].mxu0
        %v2194 = vpop.f32.mrb[0].mxu0
        %v2195 = vpop.f32.mrb[0].mxu0
        %2196 = vdwg.mxu0
        %v2197 = vadd.f32 %v1931, %v2156
        %v2198 = vadd.f32 %v1932, %v2192
        %s2199 = scalar_lea.vmem %s21, 8
        %v2200 = vld [vmem:[%s2199] sm:$0x7]
        %v2202 = vsel %vm1661, %v2200, 0
        %2204 = vmatprep.subr.bf16.mxu0 0
        %2205 = vmatpush1.bf16.msra.mxu0 %v1667
        %2206 = vmatprep.subr.bf16.mxu0 0
        %2207 = vmatpush1.bf16.msra.mxu0 0
        %2208 = vmatprep.subr.bf16.mxu0 0
        %2209 = vmatpush1.bf16.msra.mxu0 0
        %2210 = vmatprep.subr.bf16.mxu0 0
        %2211 = vmatpush1.bf16.msra.mxu0 0
        %2212 = vmatprep.subr.bf16.mxu0 0
        %2213 = vmatpush1.bf16.msra.mxu0 0
        %2214 = vmatprep.subr.bf16.mxu0 0
        %2215 = vmatpush1.bf16.msra.mxu0 0
        %2216 = vmatprep.subr.bf16.mxu0 0
        %2217 = vmatpush1.bf16.msra.mxu0 0
        %2218 = vmatprep.subr.bf16.mxu0 0
        %2219 = vmatpush1.bf16.msra.mxu0 0
        %2220 = vmatprep.subr.bf16.mxu0 0
        %2221 = vmatpush1.bf16.msra.mxu0 0
        %2222 = vmatprep.subr.bf16.mxu0 0
        %2223 = vmatpush1.bf16.msra.mxu0 0
        %2224 = vmatprep.subr.bf16.mxu0 0
        %2225 = vmatpush1.bf16.msra.mxu0 0
        %2226 = vmatprep.subr.bf16.mxu0 0
        %2227 = vmatpush1.bf16.msra.mxu0 0
        %2228 = vmatprep.subr.bf16.mxu0 0
        %2229 = vmatpush1.bf16.msra.mxu0 0
        %2230 = vmatprep.subr.bf16.mxu0 0
        %2231 = vmatpush1.bf16.msra.mxu0 0
        %2232 = vmatprep.subr.bf16.mxu0 0
        %2233 = vmatpush1.bf16.msra.mxu0 0
        %2234 = vmatprep.subr.bf16.mxu0 0
        %2235 = vmatpush1.bf16.msra.mxu0 0
        %2236 = vmatprep.mubr.bf16.mxu0 0
        %2237 = vmatmul.mubr.bf16.gmra.mrb[0].mxu0 %v2202
        %v2238 = vpop.f32.mrb[0].mxu0
        %v2239 = vadd.f32 0.0, %v2238
        %v2240 = vpop.f32.mrb[0].mxu0
        %v2241 = vpop.f32.mrb[0].mxu0
        %v2242 = vpop.f32.mrb[0].mxu0
        %2243 = vdwg.mxu0
        %v2244 = vpack.c.bf16 %v2239, %v2239
        %2245 = vmatprep.subr.bf16.mxu0 0
        %2246 = vmatpush1.bf16.msra.mxu0 %v1711
        %2247 = vmatprep.subr.bf16.mxu0 0
        %2248 = vmatpush1.bf16.msra.mxu0 0
        %2249 = vmatprep.subr.bf16.mxu0 0
        %2250 = vmatpush1.bf16.msra.mxu0 0
        %2251 = vmatprep.subr.bf16.mxu0 0
        %2252 = vmatpush1.bf16.msra.mxu0 0
        %2253 = vmatprep.subr.bf16.mxu0 0
        %2254 = vmatpush1.bf16.msra.mxu0 0
        %2255 = vmatprep.subr.bf16.mxu0 0
        %2256 = vmatpush1.bf16.msra.mxu0 0
        %2257 = vmatprep.subr.bf16.mxu0 0
        %2258 = vmatpush1.bf16.msra.mxu0 0
        %2259 = vmatprep.subr.bf16.mxu0 0
        %2260 = vmatpush1.bf16.msra.mxu0 0
        %2261 = vmatprep.subr.bf16.mxu0 0
        %2262 = vmatpush1.bf16.msra.mxu0 0
        %2263 = vmatprep.subr.bf16.mxu0 0
        %2264 = vmatpush1.bf16.msra.mxu0 0
        %2265 = vmatprep.subr.bf16.mxu0 0
        %2266 = vmatpush1.bf16.msra.mxu0 0
        %2267 = vmatprep.subr.bf16.mxu0 0
        %2268 = vmatpush1.bf16.msra.mxu0 0
        %2269 = vmatprep.subr.bf16.mxu0 0
        %2270 = vmatpush1.bf16.msra.mxu0 0
        %2271 = vmatprep.subr.bf16.mxu0 0
        %2272 = vmatpush1.bf16.msra.mxu0 0
        %2273 = vmatprep.subr.bf16.mxu0 0
        %2274 = vmatpush1.bf16.msra.mxu0 0
        %2275 = vmatprep.subr.bf16.mxu0 0
        %2276 = vmatpush1.bf16.msra.mxu0 0
        %2277 = vmatprep.mubr.bf16.mxu0 0
        %2278 = vmatmul.mubr.bf16.gmra.mrb[0].mxu0 %v2202
        %v2279 = vpop.f32.mrb[0].mxu0
        %v2280 = vadd.f32 0.0, %v2279
        %v2281 = vpop.f32.mrb[0].mxu0
        %v2282 = vpop.f32.mrb[0].mxu0
        %v2283 = vpop.f32.mrb[0].mxu0
        %2284 = vdwg.mxu0
        %v2285 = vpack.c.bf16 %v2280, %v2280
        %s2286 = scalar_lea.vmem %s13, 8
        %v2287 = vld [vmem:[%s2286] sm:$0xf]
        %s2288 = scalar_lea.vmem %s15, 8
        %v2289 = vld [vmem:[%s2288] sm:$0xf]
        %v2291 = vsel %vm1756, %v2244, 0
        %v2294 = vsel %vm1760, %v2287, 0
        %2296 = vmatprep.subr.bf16.mxu0 0
        %2297 = vmatpush1.bf16.msra.mxu0 %v2294
        %2298 = vmatprep.subr.bf16.mxu0 0
        %2299 = vmatpush1.bf16.msra.mxu0 0
        %2300 = vmatprep.subr.bf16.mxu0 0
        %2301 = vmatpush1.bf16.msra.mxu0 0
        %2302 = vmatprep.subr.bf16.mxu0 0
        %2303 = vmatpush1.bf16.msra.mxu0 0
        %2304 = vmatprep.subr.bf16.mxu0 0
        %2305 = vmatpush1.bf16.msra.mxu0 0
        %2306 = vmatprep.subr.bf16.mxu0 0
        %2307 = vmatpush1.bf16.msra.mxu0 0
        %2308 = vmatprep.subr.bf16.mxu0 0
        %2309 = vmatpush1.bf16.msra.mxu0 0
        %2310 = vmatprep.subr.bf16.mxu0 0
        %2311 = vmatpush1.bf16.msra.mxu0 0
        %2312 = vmatprep.subr.bf16.mxu0 0
        %2313 = vmatpush1.bf16.msra.mxu0 0
        %2314 = vmatprep.subr.bf16.mxu0 0
        %2315 = vmatpush1.bf16.msra.mxu0 0
        %2316 = vmatprep.subr.bf16.mxu0 0
        %2317 = vmatpush1.bf16.msra.mxu0 0
        %2318 = vmatprep.subr.bf16.mxu0 0
        %2319 = vmatpush1.bf16.msra.mxu0 0
        %2320 = vmatprep.subr.bf16.mxu0 0
        %2321 = vmatpush1.bf16.msra.mxu0 0
        %2322 = vmatprep.subr.bf16.mxu0 0
        %2323 = vmatpush1.bf16.msra.mxu0 0
        %2324 = vmatprep.subr.bf16.mxu0 0
        %2325 = vmatpush1.bf16.msra.mxu0 0
        %2326 = vmatprep.subr.bf16.mxu0 0
        %2327 = vmatpush1.bf16.msra.mxu0 0
        %2328 = vmatprep.mubr.bf16.mxu0 0
        %2329 = vmatmul.mubr.bf16.gmra.mrb[0].mxu0 %v2291
        %v2330 = vpop.f32.mrb[0].mxu0
        %v2331 = vadd.f32 0.0, %v2330
        %v2332 = vpop.f32.mrb[0].mxu0
        %v2333 = vpop.f32.mrb[0].mxu0
        %v2334 = vpop.f32.mrb[0].mxu0
        %2335 = vdwg.mxu0
        %v2337 = vsel %vm1756, %v2285, 0
        %v2340 = vsel %vm1760, %v2289, 0
        %2342 = vmatprep.subr.bf16.mxu0 0
        %2343 = vmatpush1.bf16.msra.mxu0 %v2340
        %2344 = vmatprep.subr.bf16.mxu0 0
        %2345 = vmatpush1.bf16.msra.mxu0 0
        %2346 = vmatprep.subr.bf16.mxu0 0
        %2347 = vmatpush1.bf16.msra.mxu0 0
        %2348 = vmatprep.subr.bf16.mxu0 0
        %2349 = vmatpush1.bf16.msra.mxu0 0
        %2350 = vmatprep.subr.bf16.mxu0 0
        %2351 = vmatpush1.bf16.msra.mxu0 0
        %2352 = vmatprep.subr.bf16.mxu0 0
        %2353 = vmatpush1.bf16.msra.mxu0 0
        %2354 = vmatprep.subr.bf16.mxu0 0
        %2355 = vmatpush1.bf16.msra.mxu0 0
        %2356 = vmatprep.subr.bf16.mxu0 0
        %2357 = vmatpush1.bf16.msra.mxu0 0
        %2358 = vmatprep.subr.bf16.mxu0 0
        %2359 = vmatpush1.bf16.msra.mxu0 0
        %2360 = vmatprep.subr.bf16.mxu0 0
        %2361 = vmatpush1.bf16.msra.mxu0 0
        %2362 = vmatprep.subr.bf16.mxu0 0
        %2363 = vmatpush1.bf16.msra.mxu0 0
        %2364 = vmatprep.subr.bf16.mxu0 0
        %2365 = vmatpush1.bf16.msra.mxu0 0
        %2366 = vmatprep.subr.bf16.mxu0 0
        %2367 = vmatpush1.bf16.msra.mxu0 0
        %2368 = vmatprep.subr.bf16.mxu0 0
        %2369 = vmatpush1.bf16.msra.mxu0 0
        %2370 = vmatprep.subr.bf16.mxu0 0
        %2371 = vmatpush1.bf16.msra.mxu0 0
        %2372 = vmatprep.subr.bf16.mxu0 0
        %2373 = vmatpush1.bf16.msra.mxu0 0
        %2374 = vmatprep.mubr.bf16.mxu0 0
        %2375 = vmatmul.mubr.bf16.gmra.mrb[0].mxu0 %v2337
        %v2376 = vpop.f32.mrb[0].mxu0
        %v2377 = vadd.f32 0.0, %v2376
        %v2378 = vpop.f32.mrb[0].mxu0
        %v2379 = vpop.f32.mrb[0].mxu0
        %v2380 = vpop.f32.mrb[0].mxu0
        %2381 = vdwg.mxu0
        %2382 = vmatprep.subr.bf16.mxu0 0
        %2383 = vmatpush1.bf16.msra.mxu0 %v2294
        %2384 = vmatprep.subr.bf16.mxu0 0
        %2385 = vmatpush1.bf16.msra.mxu0 0
        %2386 = vmatprep.subr.bf16.mxu0 0
        %2387 = vmatpush1.bf16.msra.mxu0 0
        %2388 = vmatprep.subr.bf16.mxu0 0
        %2389 = vmatpush1.bf16.msra.mxu0 0
        %2390 = vmatprep.subr.bf16.mxu0 0
        %2391 = vmatpush1.bf16.msra.mxu0 0
        %2392 = vmatprep.subr.bf16.mxu0 0
        %2393 = vmatpush1.bf16.msra.mxu0 0
        %2394 = vmatprep.subr.bf16.mxu0 0
        %2395 = vmatpush1.bf16.msra.mxu0 0
        %2396 = vmatprep.subr.bf16.mxu0 0
        %2397 = vmatpush1.bf16.msra.mxu0 0
        %2398 = vmatprep.subr.bf16.mxu0 0
        %2399 = vmatpush1.bf16.msra.mxu0 0
        %2400 = vmatprep.subr.bf16.mxu0 0
        %2401 = vmatpush1.bf16.msra.mxu0 0
        %2402 = vmatprep.subr.bf16.mxu0 0
        %2403 = vmatpush1.bf16.msra.mxu0 0
        %2404 = vmatprep.subr.bf16.mxu0 0
        %2405 = vmatpush1.bf16.msra.mxu0 0
        %2406 = vmatprep.subr.bf16.mxu0 0
        %2407 = vmatpush1.bf16.msra.mxu0 0
        %2408 = vmatprep.subr.bf16.mxu0 0
        %2409 = vmatpush1.bf16.msra.mxu0 0
        %2410 = vmatprep.subr.bf16.mxu0 0
        %2411 = vmatpush1.bf16.msra.mxu0 0
        %2412 = vmatprep.subr.bf16.mxu0 0
        %2413 = vmatpush1.bf16.msra.mxu0 0
        %2414 = vmatprep.mubr.bf16.mxu0 0
        %2415 = vmatmul.mubr.bf16.gmra.mrb[0].mxu0 %v2337
        %v2416 = vpop.f32.mrb[0].mxu0
        %v2417 = vadd.f32 0.0, %v2416
        %v2418 = vpop.f32.mrb[0].mxu0
        %v2419 = vpop.f32.mrb[0].mxu0
        %v2420 = vpop.f32.mrb[0].mxu0
        %2421 = vdwg.mxu0
        %v2422 = vsub.f32 %v2331, %v2377
        %2423 = vmatprep.subr.bf16.mxu0 0
        %2424 = vmatpush1.bf16.msra.mxu0 %v2340
        %2425 = vmatprep.subr.bf16.mxu0 0
        %2426 = vmatpush1.bf16.msra.mxu0 0
        %2427 = vmatprep.subr.bf16.mxu0 0
        %2428 = vmatpush1.bf16.msra.mxu0 0
        %2429 = vmatprep.subr.bf16.mxu0 0
        %2430 = vmatpush1.bf16.msra.mxu0 0
        %2431 = vmatprep.subr.bf16.mxu0 0
        %2432 = vmatpush1.bf16.msra.mxu0 0
        %2433 = vmatprep.subr.bf16.mxu0 0
        %2434 = vmatpush1.bf16.msra.mxu0 0
        %2435 = vmatprep.subr.bf16.mxu0 0
        %2436 = vmatpush1.bf16.msra.mxu0 0
        %2437 = vmatprep.subr.bf16.mxu0 0
        %2438 = vmatpush1.bf16.msra.mxu0 0
        %2439 = vmatprep.subr.bf16.mxu0 0
        %2440 = vmatpush1.bf16.msra.mxu0 0
        %2441 = vmatprep.subr.bf16.mxu0 0
        %2442 = vmatpush1.bf16.msra.mxu0 0
        %2443 = vmatprep.subr.bf16.mxu0 0
        %2444 = vmatpush1.bf16.msra.mxu0 0
        %2445 = vmatprep.subr.bf16.mxu0 0
        %2446 = vmatpush1.bf16.msra.mxu0 0
        %2447 = vmatprep.subr.bf16.mxu0 0
        %2448 = vmatpush1.bf16.msra.mxu0 0
        %2449 = vmatprep.subr.bf16.mxu0 0
        %2450 = vmatpush1.bf16.msra.mxu0 0
        %2451 = vmatprep.subr.bf16.mxu0 0
        %2452 = vmatpush1.bf16.msra.mxu0 0
        %2453 = vmatprep.subr.bf16.mxu0 0
        %2454 = vmatpush1.bf16.msra.mxu0 0
        %2455 = vmatprep.mubr.bf16.mxu0 0
        %2456 = vmatmul.mubr.bf16.gmra.mrb[0].mxu0 %v2291
        %v2457 = vpop.f32.mrb[0].mxu0
        %v2458 = vadd.f32 %v2417, %v2457
        %v2459 = vpop.f32.mrb[0].mxu0
        %v2460 = vpop.f32.mrb[0].mxu0
        %v2461 = vpop.f32.mrb[0].mxu0
        %2462 = vdwg.mxu0
        %v2463 = vadd.f32 %v2197, %v2422
        %v2464 = vadd.f32 %v2198, %v2458
        %v2465 = vld [vmem:[%s17] sm:$0x1]
        %v2467 = vlaneseq
        %v2468 = vshrl.u32 %v2467, 7
        %v2469 = vsub.s32 0, %v2468
        %v2470 = vrot.slane %v2465, %v2469
        %v2472 = vadd.f32 %v2463, %v2470
        %v2473 = vld [vmem:[%s19] sm:$0x1]
        %v2475 = vlaneseq
        %v2476 = vshrl.u32 %v2475, 7
        %v2477 = vsub.s32 0, %v2476
        %v2478 = vrot.slane %v2473, %v2477
        %v2480 = vadd.f32 %v2464, %v2478
        %v2481 = vpack.c.bf16 %v2472, %v2472
        %v2482 = vpack.c.bf16 %v2480, %v2480
        %v2484 = vrot.slane %v2481, 7
        %vm2485 = vcmask 1040384
        %v2488 = vsel %vm2485, 0, %v2484
        %v2489 = vsel %vm1760, %v2488, 0
        %v2491 = vrot.slane %v2482, 7
        %v2493 = vsel %vm2485, 0, %v2491
        %v2494 = vsel %vm1760, %v2493, 0
        %v2495 = vld [vmem:[%s23] sm:$0xf]
        %v2496 = vld [vmem:[%s25] sm:$0xf]
        %v2497 = vsel %vm1756, %v2489, 0
        %v2500 = vsel %vm1760, %v2495, 0
        %2502 = vmatprep.subr.bf16.mxu0 0
        %2503 = vmatpush1.bf16.msra.mxu0 %v2500
        %2504 = vmatprep.subr.bf16.mxu0 0
        %2505 = vmatpush1.bf16.msra.mxu0 0
        %2506 = vmatprep.subr.bf16.mxu0 0
        %2507 = vmatpush1.bf16.msra.mxu0 0
        %2508 = vmatprep.subr.bf16.mxu0 0
        %2509 = vmatpush1.bf16.msra.mxu0 0
        %2510 = vmatprep.subr.bf16.mxu0 0
        %2511 = vmatpush1.bf16.msra.mxu0 0
        %2512 = vmatprep.subr.bf16.mxu0 0
        %2513 = vmatpush1.bf16.msra.mxu0 0
        %2514 = vmatprep.subr.bf16.mxu0 0
        %2515 = vmatpush1.bf16.msra.mxu0 0
        %2516 = vmatprep.subr.bf16.mxu0 0
        %2517 = vmatpush1.bf16.msra.mxu0 0
        %2518 = vmatprep.subr.bf16.mxu0 0
        %2519 = vmatpush1.bf16.msra.mxu0 0
        %2520 = vmatprep.subr.bf16.mxu0 0
        %2521 = vmatpush1.bf16.msra.mxu0 0
        %2522 = vmatprep.subr.bf16.mxu0 0
        %2523 = vmatpush1.bf16.msra.mxu0 0
        %2524 = vmatprep.subr.bf16.mxu0 0
        %2525 = vmatpush1.bf16.msra.mxu0 0
        %2526 = vmatprep.subr.bf16.mxu0 0
        %2527 = vmatpush1.bf16.msra.mxu0 0
        %2528 = vmatprep.subr.bf16.mxu0 0
        %2529 = vmatpush1.bf16.msra.mxu0 0
        %2530 = vmatprep.subr.bf16.mxu0 0
        %2531 = vmatpush1.bf16.msra.mxu0 0
        %2532 = vmatprep.subr.bf16.mxu0 0
        %2533 = vmatpush1.bf16.msra.mxu0 0
        %2534 = vmatprep.mubr.bf16.mxu0 0
        %2535 = vmatmul.mubr.bf16.gmra.mrb[0].mxu0 %v2497
        %v2536 = vpop.f32.mrb[0].mxu0
        %v2537 = vadd.f32 0.0, %v2536
        %v2538 = vpop.f32.mrb[0].mxu0
        %v2539 = vpop.f32.mrb[0].mxu0
        %v2540 = vpop.f32.mrb[0].mxu0
        %2541 = vdwg.mxu0
        %v2542 = vsel %vm1756, %v2494, 0
        %v2545 = vsel %vm1760, %v2496, 0
        %2547 = vmatprep.subr.bf16.mxu0 0
        %2548 = vmatpush1.bf16.msra.mxu0 %v2545
        %2549 = vmatprep.subr.bf16.mxu0 0
        %2550 = vmatpush1.bf16.msra.mxu0 0
        %2551 = vmatprep.subr.bf16.mxu0 0
        %2552 = vmatpush1.bf16.msra.mxu0 0
        %2553 = vmatprep.subr.bf16.mxu0 0
        %2554 = vmatpush1.bf16.msra.mxu0 0
        %2555 = vmatprep.subr.bf16.mxu0 0
        %2556 = vmatpush1.bf16.msra.mxu0 0
        %2557 = vmatprep.subr.bf16.mxu0 0
        %2558 = vmatpush1.bf16.msra.mxu0 0
        %2559 = vmatprep.subr.bf16.mxu0 0
        %2560 = vmatpush1.bf16.msra.mxu0 0
        %2561 = vmatprep.subr.bf16.mxu0 0
        %2562 = vmatpush1.bf16.msra.mxu0 0
        %2563 = vmatprep.subr.bf16.mxu0 0
        %2564 = vmatpush1.bf16.msra.mxu0 0
        %2565 = vmatprep.subr.bf16.mxu0 0
        %2566 = vmatpush1.bf16.msra.mxu0 0
        %2567 = vmatprep.subr.bf16.mxu0 0
        %2568 = vmatpush1.bf16.msra.mxu0 0
        %2569 = vmatprep.subr.bf16.mxu0 0
        %2570 = vmatpush1.bf16.msra.mxu0 0
        %2571 = vmatprep.subr.bf16.mxu0 0
        %2572 = vmatpush1.bf16.msra.mxu0 0
        %2573 = vmatprep.subr.bf16.mxu0 0
        %2574 = vmatpush1.bf16.msra.mxu0 0
        %2575 = vmatprep.subr.bf16.mxu0 0
        %2576 = vmatpush1.bf16.msra.mxu0 0
        %2577 = vmatprep.subr.bf16.mxu0 0
        %2578 = vmatpush1.bf16.msra.mxu0 0
        %2579 = vmatprep.mubr.bf16.mxu0 0
        %2580 = vmatmul.mubr.bf16.gmra.mrb[0].mxu0 %v2542
        %v2581 = vpop.f32.mrb[0].mxu0
        %v2582 = vadd.f32 0.0, %v2581
        %v2583 = vpop.f32.mrb[0].mxu0
        %v2584 = vpop.f32.mrb[0].mxu0
        %v2585 = vpop.f32.mrb[0].mxu0
        %2586 = vdwg.mxu0
        %2587 = vmatprep.subr.bf16.mxu0 0
        %2588 = vmatpush1.bf16.msra.mxu0 %v2500
        %2589 = vmatprep.subr.bf16.mxu0 0
        %2590 = vmatpush1.bf16.msra.mxu0 0
        %2591 = vmatprep.subr.bf16.mxu0 0
        %2592 = vmatpush1.bf16.msra.mxu0 0
        %2593 = vmatprep.subr.bf16.mxu0 0
        %2594 = vmatpush1.bf16.msra.mxu0 0
        %2595 = vmatprep.subr.bf16.mxu0 0
        %2596 = vmatpush1.bf16.msra.mxu0 0
        %2597 = vmatprep.subr.bf16.mxu0 0
        %2598 = vmatpush1.bf16.msra.mxu0 0
        %2599 = vmatprep.subr.bf16.mxu0 0
        %2600 = vmatpush1.bf16.msra.mxu0 0
        %2601 = vmatprep.subr.bf16.mxu0 0
        %2602 = vmatpush1.bf16.msra.mxu0 0
        %2603 = vmatprep.subr.bf16.mxu0 0
        %2604 = vmatpush1.bf16.msra.mxu0 0
        %2605 = vmatprep.subr.bf16.mxu0 0
        %2606 = vmatpush1.bf16.msra.mxu0 0
        %2607 = vmatprep.subr.bf16.mxu0 0
        %2608 = vmatpush1.bf16.msra.mxu0 0
        %2609 = vmatprep.subr.bf16.mxu0 0
        %2610 = vmatpush1.bf16.msra.mxu0 0
        %2611 = vmatprep.subr.bf16.mxu0 0
        %2612 = vmatpush1.bf16.msra.mxu0 0
        %2613 = vmatprep.subr.bf16.mxu0 0
        %2614 = vmatpush1.bf16.msra.mxu0 0
        %2615 = vmatprep.subr.bf16.mxu0 0
        %2616 = vmatpush1.bf16.msra.mxu0 0
        %2617 = vmatprep.subr.bf16.mxu0 0
        %2618 = vmatpush1.bf16.msra.mxu0 0
        %2619 = vmatprep.mubr.bf16.mxu0 0
        %2620 = vmatmul.mubr.bf16.gmra.mrb[0].mxu0 %v2542
        %v2621 = vpop.f32.mrb[0].mxu0
        %v2622 = vadd.f32 0.0, %v2621
        %v2623 = vpop.f32.mrb[0].mxu0
        %v2624 = vpop.f32.mrb[0].mxu0
        %v2625 = vpop.f32.mrb[0].mxu0
        %2626 = vdwg.mxu0
        %v2627 = vsub.f32 %v2537, %v2582
        %2628 = vmatprep.subr.bf16.mxu0 0
        %2629 = vmatpush1.bf16.msra.mxu0 %v2545
        %2630 = vmatprep.subr.bf16.mxu0 0
        %2631 = vmatpush1.bf16.msra.mxu0 0
        %2632 = vmatprep.subr.bf16.mxu0 0
        %2633 = vmatpush1.bf16.msra.mxu0 0
        %2634 = vmatprep.subr.bf16.mxu0 0
        %2635 = vmatpush1.bf16.msra.mxu0 0
        %2636 = vmatprep.subr.bf16.mxu0 0
        %2637 = vmatpush1.bf16.msra.mxu0 0
        %2638 = vmatprep.subr.bf16.mxu0 0
        %2639 = vmatpush1.bf16.msra.mxu0 0
        %2640 = vmatprep.subr.bf16.mxu0 0
        %2641 = vmatpush1.bf16.msra.mxu0 0
        %2642 = vmatprep.subr.bf16.mxu0 0
        %2643 = vmatpush1.bf16.msra.mxu0 0
        %2644 = vmatprep.subr.bf16.mxu0 0
        %2645 = vmatpush1.bf16.msra.mxu0 0
        %2646 = vmatprep.subr.bf16.mxu0 0
        %2647 = vmatpush1.bf16.msra.mxu0 0
        %2648 = vmatprep.subr.bf16.mxu0 0
        %2649 = vmatpush1.bf16.msra.mxu0 0
        %2650 = vmatprep.subr.bf16.mxu0 0
        %2651 = vmatpush1.bf16.msra.mxu0 0
        %2652 = vmatprep.subr.bf16.mxu0 0
        %2653 = vmatpush1.bf16.msra.mxu0 0
        %2654 = vmatprep.subr.bf16.mxu0 0
        %2655 = vmatpush1.bf16.msra.mxu0 0
        %2656 = vmatprep.subr.bf16.mxu0 0
        %2657 = vmatpush1.bf16.msra.mxu0 0
        %2658 = vmatprep.subr.bf16.mxu0 0
        %2659 = vmatpush1.bf16.msra.mxu0 0
        %2660 = vmatprep.mubr.bf16.mxu0 0
        %2661 = vmatmul.mubr.bf16.gmra.mrb[0].mxu0 %v2497
        %v2662 = vpop.f32.mrb[0].mxu0
        %v2663 = vadd.f32 %v2622, %v2662
        %v2664 = vpop.f32.mrb[0].mxu0
        %v2665 = vpop.f32.mrb[0].mxu0
        %v2666 = vpop.f32.mrb[0].mxu0
        %2667 = vdwg.mxu0
        %v2668 = vadd.f32 %v2627, 0.0
        %v2669 = vadd.f32 %v2663, 0.0
        %s2670 = scalar_lea.vmem %s23, 4
        %v2671 = vld [vmem:[%s2670] sm:$0xf]
        %s2672 = scalar_lea.vmem %s25, 4
        %v2673 = vld [vmem:[%s2672] sm:$0xf]
        %v2674 = vshrl.u32 %v2489, 16
        %v2676 = vshll.u32 %v2489, 16
        %v2678 = vrot.slane %v2676, 1
        %v2679 = vor.u32 %v2674, %v2678
        %v2681 = vsel %vm1756, %v2679, 0
        %v2684 = vsel %vm1760, %v2671, 0
        %2686 = vmatprep.subr.bf16.mxu0 0
        %2687 = vmatpush1.bf16.msra.mxu0 %v2684
        %2688 = vmatprep.subr.bf16.mxu0 0
        %2689 = vmatpush1.bf16.msra.mxu0 0
        %2690 = vmatprep.subr.bf16.mxu0 0
        %2691 = vmatpush1.bf16.msra.mxu0 0
        %2692 = vmatprep.subr.bf16.mxu0 0
        %2693 = vmatpush1.bf16.msra.mxu0 0
        %2694 = vmatprep.subr.bf16.mxu0 0
        %2695 = vmatpush1.bf16.msra.mxu0 0
        %2696 = vmatprep.subr.bf16.mxu0 0
        %2697 = vmatpush1.bf16.msra.mxu0 0
        %2698 = vmatprep.subr.bf16.mxu0 0
        %2699 = vmatpush1.bf16.msra.mxu0 0
        %2700 = vmatprep.subr.bf16.mxu0 0
        %2701 = vmatpush1.bf16.msra.mxu0 0
        %2702 = vmatprep.subr.bf16.mxu0 0
        %2703 = vmatpush1.bf16.msra.mxu0 0
        %2704 = vmatprep.subr.bf16.mxu0 0
        %2705 = vmatpush1.bf16.msra.mxu0 0
        %2706 = vmatprep.subr.bf16.mxu0 0
        %2707 = vmatpush1.bf16.msra.mxu0 0
        %2708 = vmatprep.subr.bf16.mxu0 0
        %2709 = vmatpush1.bf16.msra.mxu0 0
        %2710 = vmatprep.subr.bf16.mxu0 0
        %2711 = vmatpush1.bf16.msra.mxu0 0
        %2712 = vmatprep.subr.bf16.mxu0 0
        %2713 = vmatpush1.bf16.msra.mxu0 0
        %2714 = vmatprep.subr.bf16.mxu0 0
        %2715 = vmatpush1.bf16.msra.mxu0 0
        %2716 = vmatprep.subr.bf16.mxu0 0
        %2717 = vmatpush1.bf16.msra.mxu0 0
        %2718 = vmatprep.mubr.bf16.mxu0 0
        %2719 = vmatmul.mubr.bf16.gmra.mrb[0].mxu0 %v2681
        %v2720 = vpop.f32.mrb[0].mxu0
        %v2721 = vadd.f32 0.0, %v2720
        %v2722 = vpop.f32.mrb[0].mxu0
        %v2723 = vpop.f32.mrb[0].mxu0
        %v2724 = vpop.f32.mrb[0].mxu0
        %2725 = vdwg.mxu0
        %v2726 = vshrl.u32 %v2494, 16
        %v2728 = vshll.u32 %v2494, 16
        %v2730 = vrot.slane %v2728, 1
        %v2731 = vor.u32 %v2726, %v2730
        %v2733 = vsel %vm1756, %v2731, 0
        %v2736 = vsel %vm1760, %v2673, 0
        %2738 = vmatprep.subr.bf16.mxu0 0
        %2739 = vmatpush1.bf16.msra.mxu0 %v2736
        %2740 = vmatprep.subr.bf16.mxu0 0
        %2741 = vmatpush1.bf16.msra.mxu0 0
        %2742 = vmatprep.subr.bf16.mxu0 0
        %2743 = vmatpush1.bf16.msra.mxu0 0
        %2744 = vmatprep.subr.bf16.mxu0 0
        %2745 = vmatpush1.bf16.msra.mxu0 0
        %2746 = vmatprep.subr.bf16.mxu0 0
        %2747 = vmatpush1.bf16.msra.mxu0 0
        %2748 = vmatprep.subr.bf16.mxu0 0
        %2749 = vmatpush1.bf16.msra.mxu0 0
        %2750 = vmatprep.subr.bf16.mxu0 0
        %2751 = vmatpush1.bf16.msra.mxu0 0
        %2752 = vmatprep.subr.bf16.mxu0 0
        %2753 = vmatpush1.bf16.msra.mxu0 0
        %2754 = vmatprep.subr.bf16.mxu0 0
        %2755 = vmatpush1.bf16.msra.mxu0 0
        %2756 = vmatprep.subr.bf16.mxu0 0
        %2757 = vmatpush1.bf16.msra.mxu0 0
        %2758 = vmatprep.subr.bf16.mxu0 0
        %2759 = vmatpush1.bf16.msra.mxu0 0
        %2760 = vmatprep.subr.bf16.mxu0 0
        %2761 = vmatpush1.bf16.msra.mxu0 0
        %2762 = vmatprep.subr.bf16.mxu0 0
        %2763 = vmatpush1.bf16.msra.mxu0 0
        %2764 = vmatprep.subr.bf16.mxu0 0
        %2765 = vmatpush1.bf16.msra.mxu0 0
        %2766 = vmatprep.subr.bf16.mxu0 0
        %2767 = vmatpush1.bf16.msra.mxu0 0
        %2768 = vmatprep.subr.bf16.mxu0 0
        %2769 = vmatpush1.bf16.msra.mxu0 0
        %2770 = vmatprep.mubr.bf16.mxu0 0
        %2771 = vmatmul.mubr.bf16.gmra.mrb[0].mxu0 %v2733
        %v2772 = vpop.f32.mrb[0].mxu0
        %v2773 = vadd.f32 0.0, %v2772
        %v2774 = vpop.f32.mrb[0].mxu0
        %v2775 = vpop.f32.mrb[0].mxu0
        %v2776 = vpop.f32.mrb[0].mxu0
        %2777 = vdwg.mxu0
        %2778 = vmatprep.subr.bf16.mxu0 0
        %2779 = vmatpush1.bf16.msra.mxu0 %v2684
        %2780 = vmatprep.subr.bf16.mxu0 0
        %2781 = vmatpush1.bf16.msra.mxu0 0
        %2782 = vmatprep.subr.bf16.mxu0 0
        %2783 = vmatpush1.bf16.msra.mxu0 0
        %2784 = vmatprep.subr.bf16.mxu0 0
        %2785 = vmatpush1.bf16.msra.mxu0 0
        %2786 = vmatprep.subr.bf16.mxu0 0
        %2787 = vmatpush1.bf16.msra.mxu0 0
        %2788 = vmatprep.subr.bf16.mxu0 0
        %2789 = vmatpush1.bf16.msra.mxu0 0
        %2790 = vmatprep.subr.bf16.mxu0 0
        %2791 = vmatpush1.bf16.msra.mxu0 0
        %2792 = vmatprep.subr.bf16.mxu0 0
        %2793 = vmatpush1.bf16.msra.mxu0 0
        %2794 = vmatprep.subr.bf16.mxu0 0
        %2795 = vmatpush1.bf16.msra.mxu0 0
        %2796 = vmatprep.subr.bf16.mxu0 0
        %2797 = vmatpush1.bf16.msra.mxu0 0
        %2798 = vmatprep.subr.bf16.mxu0 0
        %2799 = vmatpush1.bf16.msra.mxu0 0
        %2800 = vmatprep.subr.bf16.mxu0 0
        %2801 = vmatpush1.bf16.msra.mxu0 0
        %2802 = vmatprep.subr.bf16.mxu0 0
        %2803 = vmatpush1.bf16.msra.mxu0 0
        %2804 = vmatprep.subr.bf16.mxu0 0
        %2805 = vmatpush1.bf16.msra.mxu0 0
        %2806 = vmatprep.subr.bf16.mxu0 0
        %2807 = vmatpush1.bf16.msra.mxu0 0
        %2808 = vmatprep.subr.bf16.mxu0 0
        %2809 = vmatpush1.bf16.msra.mxu0 0
        %2810 = vmatprep.mubr.bf16.mxu0 0
        %2811 = vmatmul.mubr.bf16.gmra.mrb[0].mxu0 %v2733
        %v2812 = vpop.f32.mrb[0].mxu0
        %v2813 = vadd.f32 0.0, %v2812
        %v2814 = vpop.f32.mrb[0].mxu0
        %v2815 = vpop.f32.mrb[0].mxu0
        %v2816 = vpop.f32.mrb[0].mxu0
        %2817 = vdwg.mxu0
        %v2818 = vsub.f32 %v2721, %v2773
        %2819 = vmatprep.subr.bf16.mxu0 0
        %2820 = vmatpush1.bf16.msra.mxu0 %v2736
        %2821 = vmatprep.subr.bf16.mxu0 0
        %2822 = vmatpush1.bf16.msra.mxu0 0
        %2823 = vmatprep.subr.bf16.mxu0 0
        %2824 = vmatpush1.bf16.msra.mxu0 0
        %2825 = vmatprep.subr.bf16.mxu0 0
        %2826 = vmatpush1.bf16.msra.mxu0 0
        %2827 = vmatprep.subr.bf16.mxu0 0
        %2828 = vmatpush1.bf16.msra.mxu0 0
        %2829 = vmatprep.subr.bf16.mxu0 0
        %2830 = vmatpush1.bf16.msra.mxu0 0
        %2831 = vmatprep.subr.bf16.mxu0 0
        %2832 = vmatpush1.bf16.msra.mxu0 0
        %2833 = vmatprep.subr.bf16.mxu0 0
        %2834 = vmatpush1.bf16.msra.mxu0 0
        %2835 = vmatprep.subr.bf16.mxu0 0
        %2836 = vmatpush1.bf16.msra.mxu0 0
        %2837 = vmatprep.subr.bf16.mxu0 0
        %2838 = vmatpush1.bf16.msra.mxu0 0
        %2839 = vmatprep.subr.bf16.mxu0 0
        %2840 = vmatpush1.bf16.msra.mxu0 0
        %2841 = vmatprep.subr.bf16.mxu0 0
        %2842 = vmatpush1.bf16.msra.mxu0 0
        %2843 = vmatprep.subr.bf16.mxu0 0
        %2844 = vmatpush1.bf16.msra.mxu0 0
        %2845 = vmatprep.subr.bf16.mxu0 0
        %2846 = vmatpush1.bf16.msra.mxu0 0
        %2847 = vmatprep.subr.bf16.mxu0 0
        %2848 = vmatpush1.bf16.msra.mxu0 0
        %2849 = vmatprep.subr.bf16.mxu0 0
        %2850 = vmatpush1.bf16.msra.mxu0 0
        %2851 = vmatprep.mubr.bf16.mxu0 0
        %2852 = vmatmul.mubr.bf16.gmra.mrb[0].mxu0 %v2681
        %v2853 = vpop.f32.mrb[0].mxu0
        %v2854 = vadd.f32 %v2813, %v2853
        %v2855 = vpop.f32.mrb[0].mxu0
        %v2856 = vpop.f32.mrb[0].mxu0
        %v2857 = vpop.f32.mrb[0].mxu0
        %2858 = vdwg.mxu0
        %v2859 = vadd.f32 %v2668, %v2818
        %v2860 = vadd.f32 %v2669, %v2854
        %s2861 = scalar_lea.vmem %s23, 8
        %v2862 = vld [vmem:[%s2861] sm:$0xf]
        %s2863 = scalar_lea.vmem %s25, 8
        %v2864 = vld [vmem:[%s2863] sm:$0xf]
        %v2866 = vrot.slane %v2489, 1
        %v2868 = vsel %vm1756, %v2866, 0
        %v2871 = vsel %vm1760, %v2862, 0
        %2873 = vmatprep.subr.bf16.mxu0 0
        %2874 = vmatpush1.bf16.msra.mxu0 %v2871
        %2875 = vmatprep.subr.bf16.mxu0 0
        %2876 = vmatpush1.bf16.msra.mxu0 0
        %2877 = vmatprep.subr.bf16.mxu0 0
        %2878 = vmatpush1.bf16.msra.mxu0 0
        %2879 = vmatprep.subr.bf16.mxu0 0
        %2880 = vmatpush1.bf16.msra.mxu0 0
        %2881 = vmatprep.subr.bf16.mxu0 0
        %2882 = vmatpush1.bf16.msra.mxu0 0
        %2883 = vmatprep.subr.bf16.mxu0 0
        %2884 = vmatpush1.bf16.msra.mxu0 0
        %2885 = vmatprep.subr.bf16.mxu0 0
        %2886 = vmatpush1.bf16.msra.mxu0 0
        %2887 = vmatprep.subr.bf16.mxu0 0
        %2888 = vmatpush1.bf16.msra.mxu0 0
        %2889 = vmatprep.subr.bf16.mxu0 0
        %2890 = vmatpush1.bf16.msra.mxu0 0
        %2891 = vmatprep.subr.bf16.mxu0 0
        %2892 = vmatpush1.bf16.msra.mxu0 0
        %2893 = vmatprep.subr.bf16.mxu0 0
        %2894 = vmatpush1.bf16.msra.mxu0 0
        %2895 = vmatprep.subr.bf16.mxu0 0
        %2896 = vmatpush1.bf16.msra.mxu0 0
        %2897 = vmatprep.subr.bf16.mxu0 0
        %2898 = vmatpush1.bf16.msra.mxu0 0
        %2899 = vmatprep.subr.bf16.mxu0 0
        %2900 = vmatpush1.bf16.msra.mxu0 0
        %2901 = vmatprep.subr.bf16.mxu0 0
        %2902 = vmatpush1.bf16.msra.mxu0 0
        %2903 = vmatprep.subr.bf16.mxu0 0
        %2904 = vmatpush1.bf16.msra.mxu0 0
        %2905 = vmatprep.mubr.bf16.mxu0 0
        %2906 = vmatmul.mubr.bf16.gmra.mrb[0].mxu0 %v2868
        %v2907 = vpop.f32.mrb[0].mxu0
        %v2908 = vadd.f32 0.0, %v2907
        %v2909 = vpop.f32.mrb[0].mxu0
        %v2910 = vpop.f32.mrb[0].mxu0
        %v2911 = vpop.f32.mrb[0].mxu0
        %2912 = vdwg.mxu0
        %v2914 = vrot.slane %v2494, 1
        %v2916 = vsel %vm1756, %v2914, 0
        %v2919 = vsel %vm1760, %v2864, 0
        %2921 = vmatprep.subr.bf16.mxu0 0
        %2922 = vmatpush1.bf16.msra.mxu0 %v2919
        %2923 = vmatprep.subr.bf16.mxu0 0
        %2924 = vmatpush1.bf16.msra.mxu0 0
        %2925 = vmatprep.subr.bf16.mxu0 0
        %2926 = vmatpush1.bf16.msra.mxu0 0
        %2927 = vmatprep.subr.bf16.mxu0 0
        %2928 = vmatpush1.bf16.msra.mxu0 0
        %2929 = vmatprep.subr.bf16.mxu0 0
        %2930 = vmatpush1.bf16.msra.mxu0 0
        %2931 = vmatprep.subr.bf16.mxu0 0
        %2932 = vmatpush1.bf16.msra.mxu0 0
        %2933 = vmatprep.subr.bf16.mxu0 0
        %2934 = vmatpush1.bf16.msra.mxu0 0
        %2935 = vmatprep.subr.bf16.mxu0 0
        %2936 = vmatpush1.bf16.msra.mxu0 0
        %2937 = vmatprep.subr.bf16.mxu0 0
        %2938 = vmatpush1.bf16.msra.mxu0 0
        %2939 = vmatprep.subr.bf16.mxu0 0
        %2940 = vmatpush1.bf16.msra.mxu0 0
        %2941 = vmatprep.subr.bf16.mxu0 0
        %2942 = vmatpush1.bf16.msra.mxu0 0
        %2943 = vmatprep.subr.bf16.mxu0 0
        %2944 = vmatpush1.bf16.msra.mxu0 0
        %2945 = vmatprep.subr.bf16.mxu0 0
        %2946 = vmatpush1.bf16.msra.mxu0 0
        %2947 = vmatprep.subr.bf16.mxu0 0
        %2948 = vmatpush1.bf16.msra.mxu0 0
        %2949 = vmatprep.subr.bf16.mxu0 0
        %2950 = vmatpush1.bf16.msra.mxu0 0
        %2951 = vmatprep.subr.bf16.mxu0 0
        %2952 = vmatpush1.bf16.msra.mxu0 0
        %2953 = vmatprep.mubr.bf16.mxu0 0
        %2954 = vmatmul.mubr.bf16.gmra.mrb[0].mxu0 %v2916
        %v2955 = vpop.f32.mrb[0].mxu0
        %v2956 = vadd.f32 0.0, %v2955
        %v2957 = vpop.f32.mrb[0].mxu0
        %v2958 = vpop.f32.mrb[0].mxu0
        %v2959 = vpop.f32.mrb[0].mxu0
        %2960 = vdwg.mxu0
        %2961 = vmatprep.subr.bf16.mxu0 0
        %2962 = vmatpush1.bf16.msra.mxu0 %v2871
        %2963 = vmatprep.subr.bf16.mxu0 0
        %2964 = vmatpush1.bf16.msra.mxu0 0
        %2965 = vmatprep.subr.bf16.mxu0 0
        %2966 = vmatpush1.bf16.msra.mxu0 0
        %2967 = vmatprep.subr.bf16.mxu0 0
        %2968 = vmatpush1.bf16.msra.mxu0 0
        %2969 = vmatprep.subr.bf16.mxu0 0
        %2970 = vmatpush1.bf16.msra.mxu0 0
        %2971 = vmatprep.subr.bf16.mxu0 0
        %2972 = vmatpush1.bf16.msra.mxu0 0
        %2973 = vmatprep.subr.bf16.mxu0 0
        %2974 = vmatpush1.bf16.msra.mxu0 0
        %2975 = vmatprep.subr.bf16.mxu0 0
        %2976 = vmatpush1.bf16.msra.mxu0 0
        %2977 = vmatprep.subr.bf16.mxu0 0
        %2978 = vmatpush1.bf16.msra.mxu0 0
        %2979 = vmatprep.subr.bf16.mxu0 0
        %2980 = vmatpush1.bf16.msra.mxu0 0
        %2981 = vmatprep.subr.bf16.mxu0 0
        %2982 = vmatpush1.bf16.msra.mxu0 0
        %2983 = vmatprep.subr.bf16.mxu0 0
        %2984 = vmatpush1.bf16.msra.mxu0 0
        %2985 = vmatprep.subr.bf16.mxu0 0
        %2986 = vmatpush1.bf16.msra.mxu0 0
        %2987 = vmatprep.subr.bf16.mxu0 0
        %2988 = vmatpush1.bf16.msra.mxu0 0
        %2989 = vmatprep.subr.bf16.mxu0 0
        %2990 = vmatpush1.bf16.msra.mxu0 0
        %2991 = vmatprep.subr.bf16.mxu0 0
        %2992 = vmatpush1.bf16.msra.mxu0 0
        %2993 = vmatprep.mubr.bf16.mxu0 0
        %2994 = vmatmul.mubr.bf16.gmra.mrb[0].mxu0 %v2916
        %v2995 = vpop.f32.mrb[0].mxu0
        %v2996 = vadd.f32 0.0, %v2995
        %v2997 = vpop.f32.mrb[0].mxu0
        %v2998 = vpop.f32.mrb[0].mxu0
        %v2999 = vpop.f32.mrb[0].mxu0
        %3000 = vdwg.mxu0
        %v3001 = vsub.f32 %v2908, %v2956
        %3002 = vmatprep.subr.bf16.mxu0 0
        %3003 = vmatpush1.bf16.msra.mxu0 %v2919
        %3004 = vmatprep.subr.bf16.mxu0 0
        %3005 = vmatpush1.bf16.msra.mxu0 0
        %3006 = vmatprep.subr.bf16.mxu0 0
        %3007 = vmatpush1.bf16.msra.mxu0 0
        %3008 = vmatprep.subr.bf16.mxu0 0
        %3009 = vmatpush1.bf16.msra.mxu0 0
        %3010 = vmatprep.subr.bf16.mxu0 0
        %3011 = vmatpush1.bf16.msra.mxu0 0
        %3012 = vmatprep.subr.bf16.mxu0 0
        %3013 = vmatpush1.bf16.msra.mxu0 0
        %3014 = vmatprep.subr.bf16.mxu0 0
        %3015 = vmatpush1.bf16.msra.mxu0 0
        %3016 = vmatprep.subr.bf16.mxu0 0
        %3017 = vmatpush1.bf16.msra.mxu0 0
        %3018 = vmatprep.subr.bf16.mxu0 0
        %3019 = vmatpush1.bf16.msra.mxu0 0
        %3020 = vmatprep.subr.bf16.mxu0 0
        %3021 = vmatpush1.bf16.msra.mxu0 0
        %3022 = vmatprep.subr.bf16.mxu0 0
        %3023 = vmatpush1.bf16.msra.mxu0 0
        %3024 = vmatprep.subr.bf16.mxu0 0
        %3025 = vmatpush1.bf16.msra.mxu0 0
        %3026 = vmatprep.subr.bf16.mxu0 0
        %3027 = vmatpush1.bf16.msra.mxu0 0
        %3028 = vmatprep.subr.bf16.mxu0 0
        %3029 = vmatpush1.bf16.msra.mxu0 0
        %3030 = vmatprep.subr.bf16.mxu0 0
        %3031 = vmatpush1.bf16.msra.mxu0 0
        %3032 = vmatprep.subr.bf16.mxu0 0
        %3033 = vmatpush1.bf16.msra.mxu0 0
        %3034 = vmatprep.mubr.bf16.mxu0 0
        %3035 = vmatmul.mubr.bf16.gmra.mrb[0].mxu0 %v2868
        %v3036 = vpop.f32.mrb[0].mxu0
        %v3037 = vadd.f32 %v2996, %v3036
        %v3038 = vpop.f32.mrb[0].mxu0
        %v3039 = vpop.f32.mrb[0].mxu0
        %v3040 = vpop.f32.mrb[0].mxu0
        %3041 = vdwg.mxu0
        %v3042 = vadd.f32 %v2859, %v3001
        %v3043 = vadd.f32 %v2860, %v3037
        %s3044 = scalar_lea.vmem %s23, 12
        %v3045 = vld [vmem:[%s3044] sm:$0xf]
        %s3046 = scalar_lea.vmem %s25, 12
        %v3047 = vld [vmem:[%s3046] sm:$0xf]
        %v3048 = vrot.slane %v2674, 1
        %v3049 = vrot.slane %v2676, 2
        %v3050 = vor.u32 %v3048, %v3049
        %v3052 = vsel %vm1756, %v3050, 0
        %v3055 = vsel %vm1760, %v3045, 0
        %3057 = vmatprep.subr.bf16.mxu0 0
        %3058 = vmatpush1.bf16.msra.mxu0 %v3055
        %3059 = vmatprep.subr.bf16.mxu0 0
        %3060 = vmatpush1.bf16.msra.mxu0 0
        %3061 = vmatprep.subr.bf16.mxu0 0
        %3062 = vmatpush1.bf16.msra.mxu0 0
        %3063 = vmatprep.subr.bf16.mxu0 0
        %3064 = vmatpush1.bf16.msra.mxu0 0
        %3065 = vmatprep.subr.bf16.mxu0 0
        %3066 = vmatpush1.bf16.msra.mxu0 0
        %3067 = vmatprep.subr.bf16.mxu0 0
        %3068 = vmatpush1.bf16.msra.mxu0 0
        %3069 = vmatprep.subr.bf16.mxu0 0
        %3070 = vmatpush1.bf16.msra.mxu0 0
        %3071 = vmatprep.subr.bf16.mxu0 0
        %3072 = vmatpush1.bf16.msra.mxu0 0
        %3073 = vmatprep.subr.bf16.mxu0 0
        %3074 = vmatpush1.bf16.msra.mxu0 0
        %3075 = vmatprep.subr.bf16.mxu0 0
        %3076 = vmatpush1.bf16.msra.mxu0 0
        %3077 = vmatprep.subr.bf16.mxu0 0
        %3078 = vmatpush1.bf16.msra.mxu0 0
        %3079 = vmatprep.subr.bf16.mxu0 0
        %3080 = vmatpush1.bf16.msra.mxu0 0
        %3081 = vmatprep.subr.bf16.mxu0 0
        %3082 = vmatpush1.bf16.msra.mxu0 0
        %3083 = vmatprep.subr.bf16.mxu0 0
        %3084 = vmatpush1.bf16.msra.mxu0 0
        %3085 = vmatprep.subr.bf16.mxu0 0
        %3086 = vmatpush1.bf16.msra.mxu0 0
        %3087 = vmatprep.subr.bf16.mxu0 0
        %3088 = vmatpush1.bf16.msra.mxu0 0
        %3089 = vmatprep.mubr.bf16.mxu0 0
        %3090 = vmatmul.mubr.bf16.gmra.mrb[0].mxu0 %v3052
        %v3091 = vpop.f32.mrb[0].mxu0
        %v3092 = vadd.f32 0.0, %v3091
        %v3093 = vpop.f32.mrb[0].mxu0
        %v3094 = vpop.f32.mrb[0].mxu0
        %v3095 = vpop.f32.mrb[0].mxu0
        %3096 = vdwg.mxu0
        %v3097 = vrot.slane %v2726, 1
        %v3098 = vrot.slane %v2728, 2
        %v3099 = vor.u32 %v3097, %v3098
        %v3101 = vsel %vm1756, %v3099, 0
        %v3104 = vsel %vm1760, %v3047, 0
        %3106 = vmatprep.subr.bf16.mxu0 0
        %3107 = vmatpush1.bf16.msra.mxu0 %v3104
        %3108 = vmatprep.subr.bf16.mxu0 0
        %3109 = vmatpush1.bf16.msra.mxu0 0
        %3110 = vmatprep.subr.bf16.mxu0 0
        %3111 = vmatpush1.bf16.msra.mxu0 0
        %3112 = vmatprep.subr.bf16.mxu0 0
        %3113 = vmatpush1.bf16.msra.mxu0 0
        %3114 = vmatprep.subr.bf16.mxu0 0
        %3115 = vmatpush1.bf16.msra.mxu0 0
        %3116 = vmatprep.subr.bf16.mxu0 0
        %3117 = vmatpush1.bf16.msra.mxu0 0
        %3118 = vmatprep.subr.bf16.mxu0 0
        %3119 = vmatpush1.bf16.msra.mxu0 0
        %3120 = vmatprep.subr.bf16.mxu0 0
        %3121 = vmatpush1.bf16.msra.mxu0 0
        %3122 = vmatprep.subr.bf16.mxu0 0
        %3123 = vmatpush1.bf16.msra.mxu0 0
        %3124 = vmatprep.subr.bf16.mxu0 0
        %3125 = vmatpush1.bf16.msra.mxu0 0
        %3126 = vmatprep.subr.bf16.mxu0 0
        %3127 = vmatpush1.bf16.msra.mxu0 0
        %3128 = vmatprep.subr.bf16.mxu0 0
        %3129 = vmatpush1.bf16.msra.mxu0 0
        %3130 = vmatprep.subr.bf16.mxu0 0
        %3131 = vmatpush1.bf16.msra.mxu0 0
        %3132 = vmatprep.subr.bf16.mxu0 0
        %3133 = vmatpush1.bf16.msra.mxu0 0
        %3134 = vmatprep.subr.bf16.mxu0 0
        %3135 = vmatpush1.bf16.msra.mxu0 0
        %3136 = vmatprep.subr.bf16.mxu0 0
        %3137 = vmatpush1.bf16.msra.mxu0 0
        %3138 = vmatprep.mubr.bf16.mxu0 0
        %3139 = vmatmul.mubr.bf16.gmra.mrb[0].mxu0 %v3101
        %v3140 = vpop.f32.mrb[0].mxu0
        %v3141 = vadd.f32 0.0, %v3140
        %v3142 = vpop.f32.mrb[0].mxu0
        %v3143 = vpop.f32.mrb[0].mxu0
        %v3144 = vpop.f32.mrb[0].mxu0
        %3145 = vdwg.mxu0
        %3146 = vmatprep.subr.bf16.mxu0 0
        %3147 = vmatpush1.bf16.msra.mxu0 %v3055
        %3148 = vmatprep.subr.bf16.mxu0 0
        %3149 = vmatpush1.bf16.msra.mxu0 0
        %3150 = vmatprep.subr.bf16.mxu0 0
        %3151 = vmatpush1.bf16.msra.mxu0 0
        %3152 = vmatprep.subr.bf16.mxu0 0
        %3153 = vmatpush1.bf16.msra.mxu0 0
        %3154 = vmatprep.subr.bf16.mxu0 0
        %3155 = vmatpush1.bf16.msra.mxu0 0
        %3156 = vmatprep.subr.bf16.mxu0 0
        %3157 = vmatpush1.bf16.msra.mxu0 0
        %3158 = vmatprep.subr.bf16.mxu0 0
        %3159 = vmatpush1.bf16.msra.mxu0 0
        %3160 = vmatprep.subr.bf16.mxu0 0
        %3161 = vmatpush1.bf16.msra.mxu0 0
        %3162 = vmatprep.subr.bf16.mxu0 0
        %3163 = vmatpush1.bf16.msra.mxu0 0
        %3164 = vmatprep.subr.bf16.mxu0 0
        %3165 = vmatpush1.bf16.msra.mxu0 0
        %3166 = vmatprep.subr.bf16.mxu0 0
        %3167 = vmatpush1.bf16.msra.mxu0 0
        %3168 = vmatprep.subr.bf16.mxu0 0
        %3169 = vmatpush1.bf16.msra.mxu0 0
        %3170 = vmatprep.subr.bf16.mxu0 0
        %3171 = vmatpush1.bf16.msra.mxu0 0
        %3172 = vmatprep.subr.bf16.mxu0 0
        %3173 = vmatpush1.bf16.msra.mxu0 0
        %3174 = vmatprep.subr.bf16.mxu0 0
        %3175 = vmatpush1.bf16.msra.mxu0 0
        %3176 = vmatprep.subr.bf16.mxu0 0
        %3177 = vmatpush1.bf16.msra.mxu0 0
        %3178 = vmatprep.mubr.bf16.mxu0 0
        %3179 = vmatmul.mubr.bf16.gmra.mrb[0].mxu0 %v3101
        %v3180 = vpop.f32.mrb[0].mxu0
        %v3181 = vadd.f32 0.0, %v3180
        %v3182 = vpop.f32.mrb[0].mxu0
        %v3183 = vpop.f32.mrb[0].mxu0
        %v3184 = vpop.f32.mrb[0].mxu0
        %3185 = vdwg.mxu0
        %v3186 = vsub.f32 %v3092, %v3141
        %3187 = vmatprep.subr.bf16.mxu0 0
        %3188 = vmatpush1.bf16.msra.mxu0 %v3104
        %3189 = vmatprep.subr.bf16.mxu0 0
        %3190 = vmatpush1.bf16.msra.mxu0 0
        %3191 = vmatprep.subr.bf16.mxu0 0
        %3192 = vmatpush1.bf16.msra.mxu0 0
        %3193 = vmatprep.subr.bf16.mxu0 0
        %3194 = vmatpush1.bf16.msra.mxu0 0
        %3195 = vmatprep.subr.bf16.mxu0 0
        %3196 = vmatpush1.bf16.msra.mxu0 0
        %3197 = vmatprep.subr.bf16.mxu0 0
        %3198 = vmatpush1.bf16.msra.mxu0 0
        %3199 = vmatprep.subr.bf16.mxu0 0
        %3200 = vmatpush1.bf16.msra.mxu0 0
        %3201 = vmatprep.subr.bf16.mxu0 0
        %3202 = vmatpush1.bf16.msra.mxu0 0
        %3203 = vmatprep.subr.bf16.mxu0 0
        %3204 = vmatpush1.bf16.msra.mxu0 0
        %3205 = vmatprep.subr.bf16.mxu0 0
        %3206 = vmatpush1.bf16.msra.mxu0 0
        %3207 = vmatprep.subr.bf16.mxu0 0
        %3208 = vmatpush1.bf16.msra.mxu0 0
        %3209 = vmatprep.subr.bf16.mxu0 0
        %3210 = vmatpush1.bf16.msra.mxu0 0
        %3211 = vmatprep.subr.bf16.mxu0 0
        %3212 = vmatpush1.bf16.msra.mxu0 0
        %3213 = vmatprep.subr.bf16.mxu0 0
        %3214 = vmatpush1.bf16.msra.mxu0 0
        %3215 = vmatprep.subr.bf16.mxu0 0
        %3216 = vmatpush1.bf16.msra.mxu0 0
        %3217 = vmatprep.subr.bf16.mxu0 0
        %3218 = vmatpush1.bf16.msra.mxu0 0
        %3219 = vmatprep.mubr.bf16.mxu0 0
        %3220 = vmatmul.mubr.bf16.gmra.mrb[0].mxu0 %v3052
        %v3221 = vpop.f32.mrb[0].mxu0
        %v3222 = vadd.f32 %v3181, %v3221
        %v3223 = vpop.f32.mrb[0].mxu0
        %v3224 = vpop.f32.mrb[0].mxu0
        %v3225 = vpop.f32.mrb[0].mxu0
        %3226 = vdwg.mxu0
        %v3227 = vadd.f32 %v3042, %v3186
        %v3228 = vadd.f32 %v3043, %v3222
        %s3229 = scalar_lea.vmem %s23, 16
        %v3230 = vld [vmem:[%s3229] sm:$0xf]
        %s3231 = scalar_lea.vmem %s25, 16
        %v3232 = vld [vmem:[%s3231] sm:$0xf]
        %v3233 = vrot.slane %v2489, 2
        %v3235 = vsel %vm1756, %v3233, 0
        %v3238 = vsel %vm1760, %v3230, 0
        %3240 = vmatprep.subr.bf16.mxu0 0
        %3241 = vmatpush1.bf16.msra.mxu0 %v3238
        %3242 = vmatprep.subr.bf16.mxu0 0
        %3243 = vmatpush1.bf16.msra.mxu0 0
        %3244 = vmatprep.subr.bf16.mxu0 0
        %3245 = vmatpush1.bf16.msra.mxu0 0
        %3246 = vmatprep.subr.bf16.mxu0 0
        %3247 = vmatpush1.bf16.msra.mxu0 0
        %3248 = vmatprep.subr.bf16.mxu0 0
        %3249 = vmatpush1.bf16.msra.mxu0 0
        %3250 = vmatprep.subr.bf16.mxu0 0
        %3251 = vmatpush1.bf16.msra.mxu0 0
        %3252 = vmatprep.subr.bf16.mxu0 0
        %3253 = vmatpush1.bf16.msra.mxu0 0
        %3254 = vmatprep.subr.bf16.mxu0 0
        %3255 = vmatpush1.bf16.msra.mxu0 0
        %3256 = vmatprep.subr.bf16.mxu0 0
        %3257 = vmatpush1.bf16.msra.mxu0 0
        %3258 = vmatprep.subr.bf16.mxu0 0
        %3259 = vmatpush1.bf16.msra.mxu0 0
        %3260 = vmatprep.subr.bf16.mxu0 0
        %3261 = vmatpush1.bf16.msra.mxu0 0
        %3262 = vmatprep.subr.bf16.mxu0 0
        %3263 = vmatpush1.bf16.msra.mxu0 0
        %3264 = vmatprep.subr.bf16.mxu0 0
        %3265 = vmatpush1.bf16.msra.mxu0 0
        %3266 = vmatprep.subr.bf16.mxu0 0
        %3267 = vmatpush1.bf16.msra.mxu0 0
        %3268 = vmatprep.subr.bf16.mxu0 0
        %3269 = vmatpush1.bf16.msra.mxu0 0
        %3270 = vmatprep.subr.bf16.mxu0 0
        %3271 = vmatpush1.bf16.msra.mxu0 0
        %3272 = vmatprep.mubr.bf16.mxu0 0
        %3273 = vmatmul.mubr.bf16.gmra.mrb[0].mxu0 %v3235
        %v3274 = vpop.f32.mrb[0].mxu0
        %v3275 = vadd.f32 0.0, %v3274
        %v3276 = vpop.f32.mrb[0].mxu0
        %v3277 = vpop.f32.mrb[0].mxu0
        %v3278 = vpop.f32.mrb[0].mxu0
        %3279 = vdwg.mxu0
        %v3280 = vrot.slane %v2494, 2
        %v3282 = vsel %vm1756, %v3280, 0
        %v3285 = vsel %vm1760, %v3232, 0
        %3287 = vmatprep.subr.bf16.mxu0 0
        %3288 = vmatpush1.bf16.msra.mxu0 %v3285
        %3289 = vmatprep.subr.bf16.mxu0 0
        %3290 = vmatpush1.bf16.msra.mxu0 0
        %3291 = vmatprep.subr.bf16.mxu0 0
        %3292 = vmatpush1.bf16.msra.mxu0 0
        %3293 = vmatprep.subr.bf16.mxu0 0
        %3294 = vmatpush1.bf16.msra.mxu0 0
        %3295 = vmatprep.subr.bf16.mxu0 0
        %3296 = vmatpush1.bf16.msra.mxu0 0
        %3297 = vmatprep.subr.bf16.mxu0 0
        %3298 = vmatpush1.bf16.msra.mxu0 0
        %3299 = vmatprep.subr.bf16.mxu0 0
        %3300 = vmatpush1.bf16.msra.mxu0 0
        %3301 = vmatprep.subr.bf16.mxu0 0
        %3302 = vmatpush1.bf16.msra.mxu0 0
        %3303 = vmatprep.subr.bf16.mxu0 0
        %3304 = vmatpush1.bf16.msra.mxu0 0
        %3305 = vmatprep.subr.bf16.mxu0 0
        %3306 = vmatpush1.bf16.msra.mxu0 0
        %3307 = vmatprep.subr.bf16.mxu0 0
        %3308 = vmatpush1.bf16.msra.mxu0 0
        %3309 = vmatprep.subr.bf16.mxu0 0
        %3310 = vmatpush1.bf16.msra.mxu0 0
        %3311 = vmatprep.subr.bf16.mxu0 0
        %3312 = vmatpush1.bf16.msra.mxu0 0
        %3313 = vmatprep.subr.bf16.mxu0 0
        %3314 = vmatpush1.bf16.msra.mxu0 0
        %3315 = vmatprep.subr.bf16.mxu0 0
        %3316 = vmatpush1.bf16.msra.mxu0 0
        %3317 = vmatprep.subr.bf16.mxu0 0
        %3318 = vmatpush1.bf16.msra.mxu0 0
        %3319 = vmatprep.mubr.bf16.mxu0 0
        %3320 = vmatmul.mubr.bf16.gmra.mrb[0].mxu0 %v3282
        %v3321 = vpop.f32.mrb[0].mxu0
        %v3322 = vadd.f32 0.0, %v3321
        %v3323 = vpop.f32.mrb[0].mxu0
        %v3324 = vpop.f32.mrb[0].mxu0
        %v3325 = vpop.f32.mrb[0].mxu0
        %3326 = vdwg.mxu0
        %3327 = vmatprep.subr.bf16.mxu0 0
        %3328 = vmatpush1.bf16.msra.mxu0 %v3238
        %3329 = vmatprep.subr.bf16.mxu0 0
        %3330 = vmatpush1.bf16.msra.mxu0 0
        %3331 = vmatprep.subr.bf16.mxu0 0
        %3332 = vmatpush1.bf16.msra.mxu0 0
        %3333 = vmatprep.subr.bf16.mxu0 0
        %3334 = vmatpush1.bf16.msra.mxu0 0
        %3335 = vmatprep.subr.bf16.mxu0 0
        %3336 = vmatpush1.bf16.msra.mxu0 0
        %3337 = vmatprep.subr.bf16.mxu0 0
        %3338 = vmatpush1.bf16.msra.mxu0 0
        %3339 = vmatprep.subr.bf16.mxu0 0
        %3340 = vmatpush1.bf16.msra.mxu0 0
        %3341 = vmatprep.subr.bf16.mxu0 0
        %3342 = vmatpush1.bf16.msra.mxu0 0
        %3343 = vmatprep.subr.bf16.mxu0 0
        %3344 = vmatpush1.bf16.msra.mxu0 0
        %3345 = vmatprep.subr.bf16.mxu0 0
        %3346 = vmatpush1.bf16.msra.mxu0 0
        %3347 = vmatprep.subr.bf16.mxu0 0
        %3348 = vmatpush1.bf16.msra.mxu0 0
        %3349 = vmatprep.subr.bf16.mxu0 0
        %3350 = vmatpush1.bf16.msra.mxu0 0
        %3351 = vmatprep.subr.bf16.mxu0 0
        %3352 = vmatpush1.bf16.msra.mxu0 0
        %3353 = vmatprep.subr.bf16.mxu0 0
        %3354 = vmatpush1.bf16.msra.mxu0 0
        %3355 = vmatprep.subr.bf16.mxu0 0
        %3356 = vmatpush1.bf16.msra.mxu0 0
        %3357 = vmatprep.subr.bf16.mxu0 0
        %3358 = vmatpush1.bf16.msra.mxu0 0
        %3359 = vmatprep.mubr.bf16.mxu0 0
        %3360 = vmatmul.mubr.bf16.gmra.mrb[0].mxu0 %v3282
        %v3361 = vpop.f32.mrb[0].mxu0
        %v3362 = vadd.f32 0.0, %v3361
        %v3363 = vpop.f32.mrb[0].mxu0
        %v3364 = vpop.f32.mrb[0].mxu0
        %v3365 = vpop.f32.mrb[0].mxu0
        %3366 = vdwg.mxu0
        %v3367 = vsub.f32 %v3275, %v3322
        %3368 = vmatprep.subr.bf16.mxu0 0
        %3369 = vmatpush1.bf16.msra.mxu0 %v3285
        %3370 = vmatprep.subr.bf16.mxu0 0
        %3371 = vmatpush1.bf16.msra.mxu0 0
        %3372 = vmatprep.subr.bf16.mxu0 0
        %3373 = vmatpush1.bf16.msra.mxu0 0
        %3374 = vmatprep.subr.bf16.mxu0 0
        %3375 = vmatpush1.bf16.msra.mxu0 0
        %3376 = vmatprep.subr.bf16.mxu0 0
        %3377 = vmatpush1.bf16.msra.mxu0 0
        %3378 = vmatprep.subr.bf16.mxu0 0
        %3379 = vmatpush1.bf16.msra.mxu0 0
        %3380 = vmatprep.subr.bf16.mxu0 0
        %3381 = vmatpush1.bf16.msra.mxu0 0
        %3382 = vmatprep.subr.bf16.mxu0 0
        %3383 = vmatpush1.bf16.msra.mxu0 0
        %3384 = vmatprep.subr.bf16.mxu0 0
        %3385 = vmatpush1.bf16.msra.mxu0 0
        %3386 = vmatprep.subr.bf16.mxu0 0
        %3387 = vmatpush1.bf16.msra.mxu0 0
        %3388 = vmatprep.subr.bf16.mxu0 0
        %3389 = vmatpush1.bf16.msra.mxu0 0
        %3390 = vmatprep.subr.bf16.mxu0 0
        %3391 = vmatpush1.bf16.msra.mxu0 0
        %3392 = vmatprep.subr.bf16.mxu0 0
        %3393 = vmatpush1.bf16.msra.mxu0 0
        %3394 = vmatprep.subr.bf16.mxu0 0
        %3395 = vmatpush1.bf16.msra.mxu0 0
        %3396 = vmatprep.subr.bf16.mxu0 0
        %3397 = vmatpush1.bf16.msra.mxu0 0
        %3398 = vmatprep.subr.bf16.mxu0 0
        %3399 = vmatpush1.bf16.msra.mxu0 0
        %3400 = vmatprep.mubr.bf16.mxu0 0
        %3401 = vmatmul.mubr.bf16.gmra.mrb[0].mxu0 %v3235
        %v3402 = vpop.f32.mrb[0].mxu0
        %v3403 = vadd.f32 %v3362, %v3402
        %v3404 = vpop.f32.mrb[0].mxu0
        %v3405 = vpop.f32.mrb[0].mxu0
        %v3406 = vpop.f32.mrb[0].mxu0
        %3407 = vdwg.mxu0
        %v3408 = vadd.f32 %v3227, %v3367
        %v3409 = vadd.f32 %v3228, %v3403
        %v3410 = vld [vmem:[%s27] sm:$0x1]
        %v3412 = vlaneseq
        %v3413 = vshrl.u32 %v3412, 7
        %v3414 = vsub.s32 0, %v3413
        %v3415 = vrot.slane %v3410, %v3414
        %v3417 = vadd.f32 %v3408, %v3415
        %v3418 = vld [vmem:[%s29] sm:$0x1]
        %v3420 = vlaneseq
        %v3421 = vshrl.u32 %v3420, 7
        %v3422 = vsub.s32 0, %v3421
        %v3423 = vrot.slane %v3418, %v3422
        %v3425 = vadd.f32 %v3409, %v3423
        %v3426 = vmul.f32 %v3417, %v3417
        %v3427 = vmul.f32 %v3425, %v3425
        %v3428 = vadd.f32 %v3426, %v3427
        %v3429 = vmax.f32 %v3428, 1e-10
        %v3430 = vrsqrt.pop %v3429
        %v3431 = vmul.f32 %v3430, 0.5
        %v3432 = vsub.f32 1.0, %v3431
        %v3433 = vmax.f32 %v3432, 0.0
        %v3434 = vmul.f32 %v3417, %v3433
        %v3435 = vmul.f32 %v3425, %v3433
        %v3436 = vpack.c.bf16 %v3434, %v3434
        %v3437 = vpack.c.bf16 %v3435, %v3435
        %v3438 = vld [vmem:[%s39] sm:$0x1]
        %vm3439 = vcmask 48128
        %v3441 = vsel %vm3439, %v3438, 0
        %vm3443 = vcmask 1042432
        %v3445 = vsel %vm3443, %v3436, 0
        %3447 = vmatprep.subr.bf16.mxu0 0
        %3448 = vmatpush1.bf16.msra.mxu0 %v3445
        %3449 = vmatprep.subr.bf16.mxu0 0
        %3450 = vmatpush1.bf16.msra.mxu0 0
        %3451 = vmatprep.subr.bf16.mxu0 0
        %3452 = vmatpush1.bf16.msra.mxu0 0
        %3453 = vmatprep.subr.bf16.mxu0 0
        %3454 = vmatpush1.bf16.msra.mxu0 0
        %3455 = vmatprep.subr.bf16.mxu0 0
        %3456 = vmatpush1.bf16.msra.mxu0 0
        %3457 = vmatprep.subr.bf16.mxu0 0
        %3458 = vmatpush1.bf16.msra.mxu0 0
        %3459 = vmatprep.subr.bf16.mxu0 0
        %3460 = vmatpush1.bf16.msra.mxu0 0
        %3461 = vmatprep.subr.bf16.mxu0 0
        %3462 = vmatpush1.bf16.msra.mxu0 0
        %3463 = vmatprep.subr.bf16.mxu0 0
        %3464 = vmatpush1.bf16.msra.mxu0 0
        %3465 = vmatprep.subr.bf16.mxu0 0
        %3466 = vmatpush1.bf16.msra.mxu0 0
        %3467 = vmatprep.subr.bf16.mxu0 0
        %3468 = vmatpush1.bf16.msra.mxu0 0
        %3469 = vmatprep.subr.bf16.mxu0 0
        %3470 = vmatpush1.bf16.msra.mxu0 0
        %3471 = vmatprep.subr.bf16.mxu0 0
        %3472 = vmatpush1.bf16.msra.mxu0 0
        %3473 = vmatprep.subr.bf16.mxu0 0
        %3474 = vmatpush1.bf16.msra.mxu0 0
        %3475 = vmatprep.subr.bf16.mxu0 0
        %3476 = vmatpush1.bf16.msra.mxu0 0
        %3477 = vmatprep.subr.bf16.mxu0 0
        %3478 = vmatpush1.bf16.msra.mxu0 0
        %3479 = vmatprep.mubr.bf16.mxu0 0
        %3480 = vmatmul.mubr.bf16.gmra.mrb[0].mxu0 %v3441
        %v3481 = vpop.f32.mrb[0].mxu0
        %v3482 = vadd.f32 0.0, %v3481
        %v3483 = vpop.f32.mrb[0].mxu0
        %v3484 = vpop.f32.mrb[0].mxu0
        %v3485 = vpop.f32.mrb[0].mxu0
        %3486 = vdwg.mxu0
        %v3487 = vpack.c.bf16 %v3482, %v3482
        %v3489 = vsel %vm3443, %v3437, 0
        %3491 = vmatprep.subr.bf16.mxu0 0
        %3492 = vmatpush1.bf16.msra.mxu0 %v3489
        %3493 = vmatprep.subr.bf16.mxu0 0
        %3494 = vmatpush1.bf16.msra.mxu0 0
        %3495 = vmatprep.subr.bf16.mxu0 0
        %3496 = vmatpush1.bf16.msra.mxu0 0
        %3497 = vmatprep.subr.bf16.mxu0 0
        %3498 = vmatpush1.bf16.msra.mxu0 0
        %3499 = vmatprep.subr.bf16.mxu0 0
        %3500 = vmatpush1.bf16.msra.mxu0 0
        %3501 = vmatprep.subr.bf16.mxu0 0
        %3502 = vmatpush1.bf16.msra.mxu0 0
        %3503 = vmatprep.subr.bf16.mxu0 0
        %3504 = vmatpush1.bf16.msra.mxu0 0
        %3505 = vmatprep.subr.bf16.mxu0 0
        %3506 = vmatpush1.bf16.msra.mxu0 0
        %3507 = vmatprep.subr.bf16.mxu0 0
        %3508 = vmatpush1.bf16.msra.mxu0 0
        %3509 = vmatprep.subr.bf16.mxu0 0
        %3510 = vmatpush1.bf16.msra.mxu0 0
        %3511 = vmatprep.subr.bf16.mxu0 0
        %3512 = vmatpush1.bf16.msra.mxu0 0
        %3513 = vmatprep.subr.bf16.mxu0 0
        %3514 = vmatpush1.bf16.msra.mxu0 0
        %3515 = vmatprep.subr.bf16.mxu0 0
        %3516 = vmatpush1.bf16.msra.mxu0 0
        %3517 = vmatprep.subr.bf16.mxu0 0
        %3518 = vmatpush1.bf16.msra.mxu0 0
        %3519 = vmatprep.subr.bf16.mxu0 0
        %3520 = vmatpush1.bf16.msra.mxu0 0
        %3521 = vmatprep.subr.bf16.mxu0 0
        %3522 = vmatpush1.bf16.msra.mxu0 0
        %3523 = vmatprep.mubr.bf16.mxu0 0
        %3524 = vmatmul.mubr.bf16.gmra.mrb[0].mxu0 %v3441
        %v3525 = vpop.f32.mrb[0].mxu0
        %v3526 = vadd.f32 0.0, %v3525
        %v3527 = vpop.f32.mrb[0].mxu0
        %v3528 = vpop.f32.mrb[0].mxu0
        %v3529 = vpop.f32.mrb[0].mxu0
        %3530 = vdwg.mxu0
        %v3531 = vpack.c.bf16 %v3526, %v3526
        %v3532 = vld [vmem:[%s31] sm:$0xf]
        %v3533 = vld [vmem:[%s31 + $0x4] sm:$0xf]
        %v3534 = vld [vmem:[%s33] sm:$0xf]
        %v3535 = vld [vmem:[%s33 + $0x4] sm:$0xf]
        %v3538 = vunpack.c.l.b16 %v3532
        %v3539 = vunpack.c.l.b16 %v3533
        %v3540 = vpack.c.b16 %v3539, %v3538
        %vm3542 = vcmask 130048
        %v3544 = vsel %vm3542, %v3487, 0
        %3546 = vmatprep.subr.bf16.mxu0 0
        %3547 = vmatpush1.bf16.msra.mxu0 %v3540
        %3548 = vmatprep.subr.bf16.mxu0 0
        %3549 = vmatpush1.bf16.msra.mxu0 0
        %3550 = vmatprep.subr.bf16.mxu0 0
        %3551 = vmatpush1.bf16.msra.mxu0 0
        %3552 = vmatprep.subr.bf16.mxu0 0
        %3553 = vmatpush1.bf16.msra.mxu0 0
        %3554 = vmatprep.subr.bf16.mxu0 0
        %3555 = vmatpush1.bf16.msra.mxu0 0
        %3556 = vmatprep.subr.bf16.mxu0 0
        %3557 = vmatpush1.bf16.msra.mxu0 0
        %3558 = vmatprep.subr.bf16.mxu0 0
        %3559 = vmatpush1.bf16.msra.mxu0 0
        %3560 = vmatprep.subr.bf16.mxu0 0
        %3561 = vmatpush1.bf16.msra.mxu0 0
        %3562 = vmatprep.subr.bf16.mxu0 0
        %3563 = vmatpush1.bf16.msra.mxu0 0
        %3564 = vmatprep.subr.bf16.mxu0 0
        %3565 = vmatpush1.bf16.msra.mxu0 0
        %3566 = vmatprep.subr.bf16.mxu0 0
        %3567 = vmatpush1.bf16.msra.mxu0 0
        %3568 = vmatprep.subr.bf16.mxu0 0
        %3569 = vmatpush1.bf16.msra.mxu0 0
        %3570 = vmatprep.subr.bf16.mxu0 0
        %3571 = vmatpush1.bf16.msra.mxu0 0
        %3572 = vmatprep.subr.bf16.mxu0 0
        %3573 = vmatpush1.bf16.msra.mxu0 0
        %3574 = vmatprep.subr.bf16.mxu0 0
        %3575 = vmatpush1.bf16.msra.mxu0 0
        %3576 = vmatprep.subr.bf16.mxu0 0
        %3577 = vmatpush1.bf16.msra.mxu0 0
        %3578 = vmatprep.mubr.bf16.mxu0 0
        %3579 = vmatmul.mubr.bf16.gmra.mrb[0].mxu0 %v3544
        %v3580 = vpop.f32.mrb[0].mxu0
        %v3581 = vadd.f32 0.0, %v3580
        %v3582 = vpop.f32.mrb[0].mxu0
        %v3583 = vpop.f32.mrb[0].mxu0
        %v3584 = vpop.f32.mrb[0].mxu0
        %3585 = vdwg.mxu0
        %v3588 = vunpack.c.l.b16 %v3534
        %v3589 = vunpack.c.l.b16 %v3535
        %v3590 = vpack.c.b16 %v3589, %v3588
        %v3593 = vsel %vm3542, %v3531, 0
        %3595 = vmatprep.subr.bf16.mxu0 0
        %3596 = vmatpush1.bf16.msra.mxu0 %v3590
        %3597 = vmatprep.subr.bf16.mxu0 0
        %3598 = vmatpush1.bf16.msra.mxu0 0
        %3599 = vmatprep.subr.bf16.mxu0 0
        %3600 = vmatpush1.bf16.msra.mxu0 0
        %3601 = vmatprep.subr.bf16.mxu0 0
        %3602 = vmatpush1.bf16.msra.mxu0 0
        %3603 = vmatprep.subr.bf16.mxu0 0
        %3604 = vmatpush1.bf16.msra.mxu0 0
        %3605 = vmatprep.subr.bf16.mxu0 0
        %3606 = vmatpush1.bf16.msra.mxu0 0
        %3607 = vmatprep.subr.bf16.mxu0 0
        %3608 = vmatpush1.bf16.msra.mxu0 0
        %3609 = vmatprep.subr.bf16.mxu0 0
        %3610 = vmatpush1.bf16.msra.mxu0 0
        %3611 = vmatprep.subr.bf16.mxu0 0
        %3612 = vmatpush1.bf16.msra.mxu0 0
        %3613 = vmatprep.subr.bf16.mxu0 0
        %3614 = vmatpush1.bf16.msra.mxu0 0
        %3615 = vmatprep.subr.bf16.mxu0 0
        %3616 = vmatpush1.bf16.msra.mxu0 0
        %3617 = vmatprep.subr.bf16.mxu0 0
        %3618 = vmatpush1.bf16.msra.mxu0 0
        %3619 = vmatprep.subr.bf16.mxu0 0
        %3620 = vmatpush1.bf16.msra.mxu0 0
        %3621 = vmatprep.subr.bf16.mxu0 0
        %3622 = vmatpush1.bf16.msra.mxu0 0
        %3623 = vmatprep.subr.bf16.mxu0 0
        %3624 = vmatpush1.bf16.msra.mxu0 0
        %3625 = vmatprep.subr.bf16.mxu0 0
        %3626 = vmatpush1.bf16.msra.mxu0 0
        %3627 = vmatprep.mubr.bf16.mxu0 0
        %3628 = vmatmul.mubr.bf16.gmra.mrb[0].mxu0 %v3593
        %v3629 = vpop.f32.mrb[0].mxu0
        %v3630 = vadd.f32 0.0, %v3629
        %v3631 = vpop.f32.mrb[0].mxu0
        %v3632 = vpop.f32.mrb[0].mxu0
        %v3633 = vpop.f32.mrb[0].mxu0
        %3634 = vdwg.mxu0
        %3635 = vmatprep.subr.bf16.mxu0 0
        %3636 = vmatpush1.bf16.msra.mxu0 %v3540
        %3637 = vmatprep.subr.bf16.mxu0 0
        %3638 = vmatpush1.bf16.msra.mxu0 0
        %3639 = vmatprep.subr.bf16.mxu0 0
        %3640 = vmatpush1.bf16.msra.mxu0 0
        %3641 = vmatprep.subr.bf16.mxu0 0
        %3642 = vmatpush1.bf16.msra.mxu0 0
        %3643 = vmatprep.subr.bf16.mxu0 0
        %3644 = vmatpush1.bf16.msra.mxu0 0
        %3645 = vmatprep.subr.bf16.mxu0 0
        %3646 = vmatpush1.bf16.msra.mxu0 0
        %3647 = vmatprep.subr.bf16.mxu0 0
        %3648 = vmatpush1.bf16.msra.mxu0 0
        %3649 = vmatprep.subr.bf16.mxu0 0
        %3650 = vmatpush1.bf16.msra.mxu0 0
        %3651 = vmatprep.subr.bf16.mxu0 0
        %3652 = vmatpush1.bf16.msra.mxu0 0
        %3653 = vmatprep.subr.bf16.mxu0 0
        %3654 = vmatpush1.bf16.msra.mxu0 0
        %3655 = vmatprep.subr.bf16.mxu0 0
        %3656 = vmatpush1.bf16.msra.mxu0 0
        %3657 = vmatprep.subr.bf16.mxu0 0
        %3658 = vmatpush1.bf16.msra.mxu0 0
        %3659 = vmatprep.subr.bf16.mxu0 0
        %3660 = vmatpush1.bf16.msra.mxu0 0
        %3661 = vmatprep.subr.bf16.mxu0 0
        %3662 = vmatpush1.bf16.msra.mxu0 0
        %3663 = vmatprep.subr.bf16.mxu0 0
        %3664 = vmatpush1.bf16.msra.mxu0 0
        %3665 = vmatprep.subr.bf16.mxu0 0
        %3666 = vmatpush1.bf16.msra.mxu0 0
        %3667 = vmatprep.mubr.bf16.mxu0 0
        %3668 = vmatmul.mubr.bf16.gmra.mrb[0].mxu0 %v3593
        %v3669 = vpop.f32.mrb[0].mxu0
        %v3670 = vadd.f32 0.0, %v3669
        %v3671 = vpop.f32.mrb[0].mxu0
        %v3672 = vpop.f32.mrb[0].mxu0
        %v3673 = vpop.f32.mrb[0].mxu0
        %3674 = vdwg.mxu0
        %v3675 = vsub.f32 %v3581, %v3630
        %3676 = vmatprep.subr.bf16.mxu0 0
        %3677 = vmatpush1.bf16.msra.mxu0 %v3590
        %3678 = vmatprep.subr.bf16.mxu0 0
        %3679 = vmatpush1.bf16.msra.mxu0 0
        %3680 = vmatprep.subr.bf16.mxu0 0
        %3681 = vmatpush1.bf16.msra.mxu0 0
        %3682 = vmatprep.subr.bf16.mxu0 0
        %3683 = vmatpush1.bf16.msra.mxu0 0
        %3684 = vmatprep.subr.bf16.mxu0 0
        %3685 = vmatpush1.bf16.msra.mxu0 0
        %3686 = vmatprep.subr.bf16.mxu0 0
        %3687 = vmatpush1.bf16.msra.mxu0 0
        %3688 = vmatprep.subr.bf16.mxu0 0
        %3689 = vmatpush1.bf16.msra.mxu0 0
        %3690 = vmatprep.subr.bf16.mxu0 0
        %3691 = vmatpush1.bf16.msra.mxu0 0
        %3692 = vmatprep.subr.bf16.mxu0 0
        %3693 = vmatpush1.bf16.msra.mxu0 0
        %3694 = vmatprep.subr.bf16.mxu0 0
        %3695 = vmatpush1.bf16.msra.mxu0 0
        %3696 = vmatprep.subr.bf16.mxu0 0
        %3697 = vmatpush1.bf16.msra.mxu0 0
        %3698 = vmatprep.subr.bf16.mxu0 0
        %3699 = vmatpush1.bf16.msra.mxu0 0
        %3700 = vmatprep.subr.bf16.mxu0 0
        %3701 = vmatpush1.bf16.msra.mxu0 0
        %3702 = vmatprep.subr.bf16.mxu0 0
        %3703 = vmatpush1.bf16.msra.mxu0 0
        %3704 = vmatprep.subr.bf16.mxu0 0
        %3705 = vmatpush1.bf16.msra.mxu0 0
        %3706 = vmatprep.subr.bf16.mxu0 0
        %3707 = vmatpush1.bf16.msra.mxu0 0
        %3708 = vmatprep.mubr.bf16.mxu0 0
        %3709 = vmatmul.mubr.bf16.gmra.mrb[0].mxu0 %v3544
        %v3710 = vpop.f32.mrb[0].mxu0
        %v3711 = vadd.f32 %v3670, %v3710
        %v3712 = vpop.f32.mrb[0].mxu0
        %v3713 = vpop.f32.mrb[0].mxu0
        %v3714 = vpop.f32.mrb[0].mxu0
        %3715 = vdwg.mxu0
        %v3716 = vadd.f32 %v3675, 0.0
        %v3717 = vadd.f32 %v3711, 0.0
        %s3718 = scalar_lea.vmem %s39, 1
        %v3719 = vld [vmem:[%s3718] sm:$0x1]
        %v3721 = vsel %vm3439, %v3719, 0
        %3723 = vmatprep.subr.bf16.mxu0 0
        %3724 = vmatpush1.bf16.msra.mxu0 %v3445
        %3725 = vmatprep.subr.bf16.mxu0 0
        %3726 = vmatpush1.bf16.msra.mxu0 0
        %3727 = vmatprep.subr.bf16.mxu0 0
        %3728 = vmatpush1.bf16.msra.mxu0 0
        %3729 = vmatprep.subr.bf16.mxu0 0
        %3730 = vmatpush1.bf16.msra.mxu0 0
        %3731 = vmatprep.subr.bf16.mxu0 0
        %3732 = vmatpush1.bf16.msra.mxu0 0
        %3733 = vmatprep.subr.bf16.mxu0 0
        %3734 = vmatpush1.bf16.msra.mxu0 0
        %3735 = vmatprep.subr.bf16.mxu0 0
        %3736 = vmatpush1.bf16.msra.mxu0 0
        %3737 = vmatprep.subr.bf16.mxu0 0
        %3738 = vmatpush1.bf16.msra.mxu0 0
        %3739 = vmatprep.subr.bf16.mxu0 0
        %3740 = vmatpush1.bf16.msra.mxu0 0
        %3741 = vmatprep.subr.bf16.mxu0 0
        %3742 = vmatpush1.bf16.msra.mxu0 0
        %3743 = vmatprep.subr.bf16.mxu0 0
        %3744 = vmatpush1.bf16.msra.mxu0 0
        %3745 = vmatprep.subr.bf16.mxu0 0
        %3746 = vmatpush1.bf16.msra.mxu0 0
        %3747 = vmatprep.subr.bf16.mxu0 0
        %3748 = vmatpush1.bf16.msra.mxu0 0
        %3749 = vmatprep.subr.bf16.mxu0 0
        %3750 = vmatpush1.bf16.msra.mxu0 0
        %3751 = vmatprep.subr.bf16.mxu0 0
        %3752 = vmatpush1.bf16.msra.mxu0 0
        %3753 = vmatprep.subr.bf16.mxu0 0
        %3754 = vmatpush1.bf16.msra.mxu0 0
        %3755 = vmatprep.mubr.bf16.mxu0 0
        %3756 = vmatmul.mubr.bf16.gmra.mrb[0].mxu0 %v3721
        %v3757 = vpop.f32.mrb[0].mxu0
        %v3758 = vadd.f32 0.0, %v3757
        %v3759 = vpop.f32.mrb[0].mxu0
        %v3760 = vpop.f32.mrb[0].mxu0
        %v3761 = vpop.f32.mrb[0].mxu0
        %3762 = vdwg.mxu0
        %v3763 = vpack.c.bf16 %v3758, %v3758
        %3764 = vmatprep.subr.bf16.mxu0 0
        %3765 = vmatpush1.bf16.msra.mxu0 %v3489
        %3766 = vmatprep.subr.bf16.mxu0 0
        %3767 = vmatpush1.bf16.msra.mxu0 0
        %3768 = vmatprep.subr.bf16.mxu0 0
        %3769 = vmatpush1.bf16.msra.mxu0 0
        %3770 = vmatprep.subr.bf16.mxu0 0
        %3771 = vmatpush1.bf16.msra.mxu0 0
        %3772 = vmatprep.subr.bf16.mxu0 0
        %3773 = vmatpush1.bf16.msra.mxu0 0
        %3774 = vmatprep.subr.bf16.mxu0 0
        %3775 = vmatpush1.bf16.msra.mxu0 0
        %3776 = vmatprep.subr.bf16.mxu0 0
        %3777 = vmatpush1.bf16.msra.mxu0 0
        %3778 = vmatprep.subr.bf16.mxu0 0
        %3779 = vmatpush1.bf16.msra.mxu0 0
        %3780 = vmatprep.subr.bf16.mxu0 0
        %3781 = vmatpush1.bf16.msra.mxu0 0
        %3782 = vmatprep.subr.bf16.mxu0 0
        %3783 = vmatpush1.bf16.msra.mxu0 0
        %3784 = vmatprep.subr.bf16.mxu0 0
        %3785 = vmatpush1.bf16.msra.mxu0 0
        %3786 = vmatprep.subr.bf16.mxu0 0
        %3787 = vmatpush1.bf16.msra.mxu0 0
        %3788 = vmatprep.subr.bf16.mxu0 0
        %3789 = vmatpush1.bf16.msra.mxu0 0
        %3790 = vmatprep.subr.bf16.mxu0 0
        %3791 = vmatpush1.bf16.msra.mxu0 0
        %3792 = vmatprep.subr.bf16.mxu0 0
        %3793 = vmatpush1.bf16.msra.mxu0 0
        %3794 = vmatprep.subr.bf16.mxu0 0
        %3795 = vmatpush1.bf16.msra.mxu0 0
        %3796 = vmatprep.mubr.bf16.mxu0 0
        %3797 = vmatmul.mubr.bf16.gmra.mrb[0].mxu0 %v3721
        %v3798 = vpop.f32.mrb[0].mxu0
        %v3799 = vadd.f32 0.0, %v3798
        %v3800 = vpop.f32.mrb[0].mxu0
        %v3801 = vpop.f32.mrb[0].mxu0
        %v3802 = vpop.f32.mrb[0].mxu0
        %3803 = vdwg.mxu0
        %v3804 = vpack.c.bf16 %v3799, %v3799
        %s3805 = scalar_lea.vmem %s31, 8
        %v3806 = vld [vmem:[%s3805] sm:$0xf]
        %v3807 = vld [vmem:[%s3805 + $0x4] sm:$0xf]
        %s3808 = scalar_lea.vmem %s33, 8
        %v3809 = vld [vmem:[%s3808] sm:$0xf]
        %v3810 = vld [vmem:[%s3808 + $0x4] sm:$0xf]
        %v3813 = vunpack.c.l.b16 %v3806
        %v3814 = vunpack.c.l.b16 %v3807
        %v3815 = vpack.c.b16 %v3814, %v3813
        %v3818 = vsel %vm3542, %v3763, 0
        %3820 = vmatprep.subr.bf16.mxu0 0
        %3821 = vmatpush1.bf16.msra.mxu0 %v3815
        %3822 = vmatprep.subr.bf16.mxu0 0
        %3823 = vmatpush1.bf16.msra.mxu0 0
        %3824 = vmatprep.subr.bf16.mxu0 0
        %3825 = vmatpush1.bf16.msra.mxu0 0
        %3826 = vmatprep.subr.bf16.mxu0 0
        %3827 = vmatpush1.bf16.msra.mxu0 0
        %3828 = vmatprep.subr.bf16.mxu0 0
        %3829 = vmatpush1.bf16.msra.mxu0 0
        %3830 = vmatprep.subr.bf16.mxu0 0
        %3831 = vmatpush1.bf16.msra.mxu0 0
        %3832 = vmatprep.subr.bf16.mxu0 0
        %3833 = vmatpush1.bf16.msra.mxu0 0
        %3834 = vmatprep.subr.bf16.mxu0 0
        %3835 = vmatpush1.bf16.msra.mxu0 0
        %3836 = vmatprep.subr.bf16.mxu0 0
        %3837 = vmatpush1.bf16.msra.mxu0 0
        %3838 = vmatprep.subr.bf16.mxu0 0
        %3839 = vmatpush1.bf16.msra.mxu0 0
        %3840 = vmatprep.subr.bf16.mxu0 0
        %3841 = vmatpush1.bf16.msra.mxu0 0
        %3842 = vmatprep.subr.bf16.mxu0 0
        %3843 = vmatpush1.bf16.msra.mxu0 0
        %3844 = vmatprep.subr.bf16.mxu0 0
        %3845 = vmatpush1.bf16.msra.mxu0 0
        %3846 = vmatprep.subr.bf16.mxu0 0
        %3847 = vmatpush1.bf16.msra.mxu0 0
        %3848 = vmatprep.subr.bf16.mxu0 0
        %3849 = vmatpush1.bf16.msra.mxu0 0
        %3850 = vmatprep.subr.bf16.mxu0 0
        %3851 = vmatpush1.bf16.msra.mxu0 0
        %3852 = vmatprep.mubr.bf16.mxu0 0
        %3853 = vmatmul.mubr.bf16.gmra.mrb[0].mxu0 %v3818
        %v3854 = vpop.f32.mrb[0].mxu0
        %v3855 = vadd.f32 0.0, %v3854
        %v3856 = vpop.f32.mrb[0].mxu0
        %v3857 = vpop.f32.mrb[0].mxu0
        %v3858 = vpop.f32.mrb[0].mxu0
        %3859 = vdwg.mxu0
        %v3862 = vunpack.c.l.b16 %v3809
        %v3863 = vunpack.c.l.b16 %v3810
        %v3864 = vpack.c.b16 %v3863, %v3862
        %v3867 = vsel %vm3542, %v3804, 0
        %3869 = vmatprep.subr.bf16.mxu0 0
        %3870 = vmatpush1.bf16.msra.mxu0 %v3864
        %3871 = vmatprep.subr.bf16.mxu0 0
        %3872 = vmatpush1.bf16.msra.mxu0 0
        %3873 = vmatprep.subr.bf16.mxu0 0
        %3874 = vmatpush1.bf16.msra.mxu0 0
        %3875 = vmatprep.subr.bf16.mxu0 0
        %3876 = vmatpush1.bf16.msra.mxu0 0
        %3877 = vmatprep.subr.bf16.mxu0 0
        %3878 = vmatpush1.bf16.msra.mxu0 0
        %3879 = vmatprep.subr.bf16.mxu0 0
        %3880 = vmatpush1.bf16.msra.mxu0 0
        %3881 = vmatprep.subr.bf16.mxu0 0
        %3882 = vmatpush1.bf16.msra.mxu0 0
        %3883 = vmatprep.subr.bf16.mxu0 0
        %3884 = vmatpush1.bf16.msra.mxu0 0
        %3885 = vmatprep.subr.bf16.mxu0 0
        %3886 = vmatpush1.bf16.msra.mxu0 0
        %3887 = vmatprep.subr.bf16.mxu0 0
        %3888 = vmatpush1.bf16.msra.mxu0 0
        %3889 = vmatprep.subr.bf16.mxu0 0
        %3890 = vmatpush1.bf16.msra.mxu0 0
        %3891 = vmatprep.subr.bf16.mxu0 0
        %3892 = vmatpush1.bf16.msra.mxu0 0
        %3893 = vmatprep.subr.bf16.mxu0 0
        %3894 = vmatpush1.bf16.msra.mxu0 0
        %3895 = vmatprep.subr.bf16.mxu0 0
        %3896 = vmatpush1.bf16.msra.mxu0 0
        %3897 = vmatprep.subr.bf16.mxu0 0
        %3898 = vmatpush1.bf16.msra.mxu0 0
        %3899 = vmatprep.subr.bf16.mxu0 0
        %3900 = vmatpush1.bf16.msra.mxu0 0
        %3901 = vmatprep.mubr.bf16.mxu0 0
        %3902 = vmatmul.mubr.bf16.gmra.mrb[0].mxu0 %v3867
        %v3903 = vpop.f32.mrb[0].mxu0
        %v3904 = vadd.f32 0.0, %v3903
        %v3905 = vpop.f32.mrb[0].mxu0
        %v3906 = vpop.f32.mrb[0].mxu0
        %v3907 = vpop.f32.mrb[0].mxu0
        %3908 = vdwg.mxu0
        %3909 = vmatprep.subr.bf16.mxu0 0
        %3910 = vmatpush1.bf16.msra.mxu0 %v3815
        %3911 = vmatprep.subr.bf16.mxu0 0
        %3912 = vmatpush1.bf16.msra.mxu0 0
        %3913 = vmatprep.subr.bf16.mxu0 0
        %3914 = vmatpush1.bf16.msra.mxu0 0
        %3915 = vmatprep.subr.bf16.mxu0 0
        %3916 = vmatpush1.bf16.msra.mxu0 0
        %3917 = vmatprep.subr.bf16.mxu0 0
        %3918 = vmatpush1.bf16.msra.mxu0 0
        %3919 = vmatprep.subr.bf16.mxu0 0
        %3920 = vmatpush1.bf16.msra.mxu0 0
        %3921 = vmatprep.subr.bf16.mxu0 0
        %3922 = vmatpush1.bf16.msra.mxu0 0
        %3923 = vmatprep.subr.bf16.mxu0 0
        %3924 = vmatpush1.bf16.msra.mxu0 0
        %3925 = vmatprep.subr.bf16.mxu0 0
        %3926 = vmatpush1.bf16.msra.mxu0 0
        %3927 = vmatprep.subr.bf16.mxu0 0
        %3928 = vmatpush1.bf16.msra.mxu0 0
        %3929 = vmatprep.subr.bf16.mxu0 0
        %3930 = vmatpush1.bf16.msra.mxu0 0
        %3931 = vmatprep.subr.bf16.mxu0 0
        %3932 = vmatpush1.bf16.msra.mxu0 0
        %3933 = vmatprep.subr.bf16.mxu0 0
        %3934 = vmatpush1.bf16.msra.mxu0 0
        %3935 = vmatprep.subr.bf16.mxu0 0
        %3936 = vmatpush1.bf16.msra.mxu0 0
        %3937 = vmatprep.subr.bf16.mxu0 0
        %3938 = vmatpush1.bf16.msra.mxu0 0
        %3939 = vmatprep.subr.bf16.mxu0 0
        %3940 = vmatpush1.bf16.msra.mxu0 0
        %3941 = vmatprep.mubr.bf16.mxu0 0
        %3942 = vmatmul.mubr.bf16.gmra.mrb[0].mxu0 %v3867
        %v3943 = vpop.f32.mrb[0].mxu0
        %v3944 = vadd.f32 0.0, %v3943
        %v3945 = vpop.f32.mrb[0].mxu0
        %v3946 = vpop.f32.mrb[0].mxu0
        %v3947 = vpop.f32.mrb[0].mxu0
        %3948 = vdwg.mxu0
        %v3949 = vsub.f32 %v3855, %v3904
        %3950 = vmatprep.subr.bf16.mxu0 0
        %3951 = vmatpush1.bf16.msra.mxu0 %v3864
        %3952 = vmatprep.subr.bf16.mxu0 0
        %3953 = vmatpush1.bf16.msra.mxu0 0
        %3954 = vmatprep.subr.bf16.mxu0 0
        %3955 = vmatpush1.bf16.msra.mxu0 0
        %3956 = vmatprep.subr.bf16.mxu0 0
        %3957 = vmatpush1.bf16.msra.mxu0 0
        %3958 = vmatprep.subr.bf16.mxu0 0
        %3959 = vmatpush1.bf16.msra.mxu0 0
        %3960 = vmatprep.subr.bf16.mxu0 0
        %3961 = vmatpush1.bf16.msra.mxu0 0
        %3962 = vmatprep.subr.bf16.mxu0 0
        %3963 = vmatpush1.bf16.msra.mxu0 0
        %3964 = vmatprep.subr.bf16.mxu0 0
        %3965 = vmatpush1.bf16.msra.mxu0 0
        %3966 = vmatprep.subr.bf16.mxu0 0
        %3967 = vmatpush1.bf16.msra.mxu0 0
        %3968 = vmatprep.subr.bf16.mxu0 0
        %3969 = vmatpush1.bf16.msra.mxu0 0
        %3970 = vmatprep.subr.bf16.mxu0 0
        %3971 = vmatpush1.bf16.msra.mxu0 0
        %3972 = vmatprep.subr.bf16.mxu0 0
        %3973 = vmatpush1.bf16.msra.mxu0 0
        %3974 = vmatprep.subr.bf16.mxu0 0
        %3975 = vmatpush1.bf16.msra.mxu0 0
        %3976 = vmatprep.subr.bf16.mxu0 0
        %3977 = vmatpush1.bf16.msra.mxu0 0
        %3978 = vmatprep.subr.bf16.mxu0 0
        %3979 = vmatpush1.bf16.msra.mxu0 0
        %3980 = vmatprep.subr.bf16.mxu0 0
        %3981 = vmatpush1.bf16.msra.mxu0 0
        %3982 = vmatprep.mubr.bf16.mxu0 0
        %3983 = vmatmul.mubr.bf16.gmra.mrb[0].mxu0 %v3818
        %v3984 = vpop.f32.mrb[0].mxu0
        %v3985 = vadd.f32 %v3944, %v3984
        %v3986 = vpop.f32.mrb[0].mxu0
        %v3987 = vpop.f32.mrb[0].mxu0
        %v3988 = vpop.f32.mrb[0].mxu0
        %3989 = vdwg.mxu0
        %v3990 = vadd.f32 %v3716, %v3949
        %v3991 = vadd.f32 %v3717, %v3985
        %s3992 = scalar_lea.vmem %s39, 2
        %v3993 = vld [vmem:[%s3992] sm:$0x1]
        %v3995 = vsel %vm3439, %v3993, 0
        %3997 = vmatprep.subr.bf16.mxu0 0
        %3998 = vmatpush1.bf16.msra.mxu0 %v3445
        %3999 = vmatprep.subr.bf16.mxu0 0
        %4000 = vmatpush1.bf16.msra.mxu0 0
        %4001 = vmatprep.subr.bf16.mxu0 0
        %4002 = vmatpush1.bf16.msra.mxu0 0
        %4003 = vmatprep.subr.bf16.mxu0 0
        %4004 = vmatpush1.bf16.msra.mxu0 0
        %4005 = vmatprep.subr.bf16.mxu0 0
        %4006 = vmatpush1.bf16.msra.mxu0 0
        %4007 = vmatprep.subr.bf16.mxu0 0
        %4008 = vmatpush1.bf16.msra.mxu0 0
        %4009 = vmatprep.subr.bf16.mxu0 0
        %4010 = vmatpush1.bf16.msra.mxu0 0
        %4011 = vmatprep.subr.bf16.mxu0 0
        %4012 = vmatpush1.bf16.msra.mxu0 0
        %4013 = vmatprep.subr.bf16.mxu0 0
        %4014 = vmatpush1.bf16.msra.mxu0 0
        %4015 = vmatprep.subr.bf16.mxu0 0
        %4016 = vmatpush1.bf16.msra.mxu0 0
        %4017 = vmatprep.subr.bf16.mxu0 0
        %4018 = vmatpush1.bf16.msra.mxu0 0
        %4019 = vmatprep.subr.bf16.mxu0 0
        %4020 = vmatpush1.bf16.msra.mxu0 0
        %4021 = vmatprep.subr.bf16.mxu0 0
        %4022 = vmatpush1.bf16.msra.mxu0 0
        %4023 = vmatprep.subr.bf16.mxu0 0
        %4024 = vmatpush1.bf16.msra.mxu0 0
        %4025 = vmatprep.subr.bf16.mxu0 0
        %4026 = vmatpush1.bf16.msra.mxu0 0
        %4027 = vmatprep.subr.bf16.mxu0 0
        %4028 = vmatpush1.bf16.msra.mxu0 0
        %4029 = vmatprep.mubr.bf16.mxu0 0
        %4030 = vmatmul.mubr.bf16.gmra.mrb[0].mxu0 %v3995
        %v4031 = vpop.f32.mrb[0].mxu0
        %v4032 = vadd.f32 0.0, %v4031
        %v4033 = vpop.f32.mrb[0].mxu0
        %v4034 = vpop.f32.mrb[0].mxu0
        %v4035 = vpop.f32.mrb[0].mxu0
        %4036 = vdwg.mxu0
        %v4037 = vpack.c.bf16 %v4032, %v4032
        %4038 = vmatprep.subr.bf16.mxu0 0
        %4039 = vmatpush1.bf16.msra.mxu0 %v3489
        %4040 = vmatprep.subr.bf16.mxu0 0
        %4041 = vmatpush1.bf16.msra.mxu0 0
        %4042 = vmatprep.subr.bf16.mxu0 0
        %4043 = vmatpush1.bf16.msra.mxu0 0
        %4044 = vmatprep.subr.bf16.mxu0 0
        %4045 = vmatpush1.bf16.msra.mxu0 0
        %4046 = vmatprep.subr.bf16.mxu0 0
        %4047 = vmatpush1.bf16.msra.mxu0 0
        %4048 = vmatprep.subr.bf16.mxu0 0
        %4049 = vmatpush1.bf16.msra.mxu0 0
        %4050 = vmatprep.subr.bf16.mxu0 0
        %4051 = vmatpush1.bf16.msra.mxu0 0
        %4052 = vmatprep.subr.bf16.mxu0 0
        %4053 = vmatpush1.bf16.msra.mxu0 0
        %4054 = vmatprep.subr.bf16.mxu0 0
        %4055 = vmatpush1.bf16.msra.mxu0 0
        %4056 = vmatprep.subr.bf16.mxu0 0
        %4057 = vmatpush1.bf16.msra.mxu0 0
        %4058 = vmatprep.subr.bf16.mxu0 0
        %4059 = vmatpush1.bf16.msra.mxu0 0
        %4060 = vmatprep.subr.bf16.mxu0 0
        %4061 = vmatpush1.bf16.msra.mxu0 0
        %4062 = vmatprep.subr.bf16.mxu0 0
        %4063 = vmatpush1.bf16.msra.mxu0 0
        %4064 = vmatprep.subr.bf16.mxu0 0
        %4065 = vmatpush1.bf16.msra.mxu0 0
        %4066 = vmatprep.subr.bf16.mxu0 0
        %4067 = vmatpush1.bf16.msra.mxu0 0
        %4068 = vmatprep.subr.bf16.mxu0 0
        %4069 = vmatpush1.bf16.msra.mxu0 0
        %4070 = vmatprep.mubr.bf16.mxu0 0
        %4071 = vmatmul.mubr.bf16.gmra.mrb[0].mxu0 %v3995
        %v4072 = vpop.f32.mrb[0].mxu0
        %v4073 = vadd.f32 0.0, %v4072
        %v4074 = vpop.f32.mrb[0].mxu0
        %v4075 = vpop.f32.mrb[0].mxu0
        %v4076 = vpop.f32.mrb[0].mxu0
        %4077 = vdwg.mxu0
        %v4078 = vpack.c.bf16 %v4073, %v4073
        %s4079 = scalar_lea.vmem %s31, 16
        %v4080 = vld [vmem:[%s4079] sm:$0xf]
        %v4081 = vld [vmem:[%s4079 + $0x4] sm:$0xf]
        %s4082 = scalar_lea.vmem %s33, 16
        %v4083 = vld [vmem:[%s4082] sm:$0xf]
        %v4084 = vld [vmem:[%s4082 + $0x4] sm:$0xf]
        %v4087 = vunpack.c.l.b16 %v4080
        %v4088 = vunpack.c.l.b16 %v4081
        %v4089 = vpack.c.b16 %v4088, %v4087
        %v4092 = vsel %vm3542, %v4037, 0
        %4094 = vmatprep.subr.bf16.mxu0 0
        %4095 = vmatpush1.bf16.msra.mxu0 %v4089
        %4096 = vmatprep.subr.bf16.mxu0 0
        %4097 = vmatpush1.bf16.msra.mxu0 0
        %4098 = vmatprep.subr.bf16.mxu0 0
        %4099 = vmatpush1.bf16.msra.mxu0 0
        %4100 = vmatprep.subr.bf16.mxu0 0
        %4101 = vmatpush1.bf16.msra.mxu0 0
        %4102 = vmatprep.subr.bf16.mxu0 0
        %4103 = vmatpush1.bf16.msra.mxu0 0
        %4104 = vmatprep.subr.bf16.mxu0 0
        %4105 = vmatpush1.bf16.msra.mxu0 0
        %4106 = vmatprep.subr.bf16.mxu0 0
        %4107 = vmatpush1.bf16.msra.mxu0 0
        %4108 = vmatprep.subr.bf16.mxu0 0
        %4109 = vmatpush1.bf16.msra.mxu0 0
        %4110 = vmatprep.subr.bf16.mxu0 0
        %4111 = vmatpush1.bf16.msra.mxu0 0
        %4112 = vmatprep.subr.bf16.mxu0 0
        %4113 = vmatpush1.bf16.msra.mxu0 0
        %4114 = vmatprep.subr.bf16.mxu0 0
        %4115 = vmatpush1.bf16.msra.mxu0 0
        %4116 = vmatprep.subr.bf16.mxu0 0
        %4117 = vmatpush1.bf16.msra.mxu0 0
        %4118 = vmatprep.subr.bf16.mxu0 0
        %4119 = vmatpush1.bf16.msra.mxu0 0
        %4120 = vmatprep.subr.bf16.mxu0 0
        %4121 = vmatpush1.bf16.msra.mxu0 0
        %4122 = vmatprep.subr.bf16.mxu0 0
        %4123 = vmatpush1.bf16.msra.mxu0 0
        %4124 = vmatprep.subr.bf16.mxu0 0
        %4125 = vmatpush1.bf16.msra.mxu0 0
        %4126 = vmatprep.mubr.bf16.mxu0 0
        %4127 = vmatmul.mubr.bf16.gmra.mrb[0].mxu0 %v4092
        %v4128 = vpop.f32.mrb[0].mxu0
        %v4129 = vadd.f32 0.0, %v4128
        %v4130 = vpop.f32.mrb[0].mxu0
        %v4131 = vpop.f32.mrb[0].mxu0
        %v4132 = vpop.f32.mrb[0].mxu0
        %4133 = vdwg.mxu0
        %v4136 = vunpack.c.l.b16 %v4083
        %v4137 = vunpack.c.l.b16 %v4084
        %v4138 = vpack.c.b16 %v4137, %v4136
        %v4141 = vsel %vm3542, %v4078, 0
        %4143 = vmatprep.subr.bf16.mxu0 0
        %4144 = vmatpush1.bf16.msra.mxu0 %v4138
        %4145 = vmatprep.subr.bf16.mxu0 0
        %4146 = vmatpush1.bf16.msra.mxu0 0
        %4147 = vmatprep.subr.bf16.mxu0 0
        %4148 = vmatpush1.bf16.msra.mxu0 0
        %4149 = vmatprep.subr.bf16.mxu0 0
        %4150 = vmatpush1.bf16.msra.mxu0 0
        %4151 = vmatprep.subr.bf16.mxu0 0
        %4152 = vmatpush1.bf16.msra.mxu0 0
        %4153 = vmatprep.subr.bf16.mxu0 0
        %4154 = vmatpush1.bf16.msra.mxu0 0
        %4155 = vmatprep.subr.bf16.mxu0 0
        %4156 = vmatpush1.bf16.msra.mxu0 0
        %4157 = vmatprep.subr.bf16.mxu0 0
        %4158 = vmatpush1.bf16.msra.mxu0 0
        %4159 = vmatprep.subr.bf16.mxu0 0
        %4160 = vmatpush1.bf16.msra.mxu0 0
        %4161 = vmatprep.subr.bf16.mxu0 0
        %4162 = vmatpush1.bf16.msra.mxu0 0
        %4163 = vmatprep.subr.bf16.mxu0 0
        %4164 = vmatpush1.bf16.msra.mxu0 0
        %4165 = vmatprep.subr.bf16.mxu0 0
        %4166 = vmatpush1.bf16.msra.mxu0 0
        %4167 = vmatprep.subr.bf16.mxu0 0
        %4168 = vmatpush1.bf16.msra.mxu0 0
        %4169 = vmatprep.subr.bf16.mxu0 0
        %4170 = vmatpush1.bf16.msra.mxu0 0
        %4171 = vmatprep.subr.bf16.mxu0 0
        %4172 = vmatpush1.bf16.msra.mxu0 0
        %4173 = vmatprep.subr.bf16.mxu0 0
        %4174 = vmatpush1.bf16.msra.mxu0 0
        %4175 = vmatprep.mubr.bf16.mxu0 0
        %4176 = vmatmul.mubr.bf16.gmra.mrb[0].mxu0 %v4141
        %v4177 = vpop.f32.mrb[0].mxu0
        %v4178 = vadd.f32 0.0, %v4177
        %v4179 = vpop.f32.mrb[0].mxu0
        %v4180 = vpop.f32.mrb[0].mxu0
        %v4181 = vpop.f32.mrb[0].mxu0
        %4182 = vdwg.mxu0
        %4183 = vmatprep.subr.bf16.mxu0 0
        %4184 = vmatpush1.bf16.msra.mxu0 %v4089
        %4185 = vmatprep.subr.bf16.mxu0 0
        %4186 = vmatpush1.bf16.msra.mxu0 0
        %4187 = vmatprep.subr.bf16.mxu0 0
        %4188 = vmatpush1.bf16.msra.mxu0 0
        %4189 = vmatprep.subr.bf16.mxu0 0
        %4190 = vmatpush1.bf16.msra.mxu0 0
        %4191 = vmatprep.subr.bf16.mxu0 0
        %4192 = vmatpush1.bf16.msra.mxu0 0
        %4193 = vmatprep.subr.bf16.mxu0 0
        %4194 = vmatpush1.bf16.msra.mxu0 0
        %4195 = vmatprep.subr.bf16.mxu0 0
        %4196 = vmatpush1.bf16.msra.mxu0 0
        %4197 = vmatprep.subr.bf16.mxu0 0
        %4198 = vmatpush1.bf16.msra.mxu0 0
        %4199 = vmatprep.subr.bf16.mxu0 0
        %4200 = vmatpush1.bf16.msra.mxu0 0
        %4201 = vmatprep.subr.bf16.mxu0 0
        %4202 = vmatpush1.bf16.msra.mxu0 0
        %4203 = vmatprep.subr.bf16.mxu0 0
        %4204 = vmatpush1.bf16.msra.mxu0 0
        %4205 = vmatprep.subr.bf16.mxu0 0
        %4206 = vmatpush1.bf16.msra.mxu0 0
        %4207 = vmatprep.subr.bf16.mxu0 0
        %4208 = vmatpush1.bf16.msra.mxu0 0
        %4209 = vmatprep.subr.bf16.mxu0 0
        %4210 = vmatpush1.bf16.msra.mxu0 0
        %4211 = vmatprep.subr.bf16.mxu0 0
        %4212 = vmatpush1.bf16.msra.mxu0 0
        %4213 = vmatprep.subr.bf16.mxu0 0
        %4214 = vmatpush1.bf16.msra.mxu0 0
        %4215 = vmatprep.mubr.bf16.mxu0 0
        %4216 = vmatmul.mubr.bf16.gmra.mrb[0].mxu0 %v4141
        %v4217 = vpop.f32.mrb[0].mxu0
        %v4218 = vadd.f32 0.0, %v4217
        %v4219 = vpop.f32.mrb[0].mxu0
        %v4220 = vpop.f32.mrb[0].mxu0
        %v4221 = vpop.f32.mrb[0].mxu0
        %4222 = vdwg.mxu0
        %v4223 = vsub.f32 %v4129, %v4178
        %4224 = vmatprep.subr.bf16.mxu0 0
        %4225 = vmatpush1.bf16.msra.mxu0 %v4138
        %4226 = vmatprep.subr.bf16.mxu0 0
        %4227 = vmatpush1.bf16.msra.mxu0 0
        %4228 = vmatprep.subr.bf16.mxu0 0
        %4229 = vmatpush1.bf16.msra.mxu0 0
        %4230 = vmatprep.subr.bf16.mxu0 0
        %4231 = vmatpush1.bf16.msra.mxu0 0
        %4232 = vmatprep.subr.bf16.mxu0 0
        %4233 = vmatpush1.bf16.msra.mxu0 0
        %4234 = vmatprep.subr.bf16.mxu0 0
        %4235 = vmatpush1.bf16.msra.mxu0 0
        %4236 = vmatprep.subr.bf16.mxu0 0
        %4237 = vmatpush1.bf16.msra.mxu0 0
        %4238 = vmatprep.subr.bf16.mxu0 0
        %4239 = vmatpush1.bf16.msra.mxu0 0
        %4240 = vmatprep.subr.bf16.mxu0 0
        %4241 = vmatpush1.bf16.msra.mxu0 0
        %4242 = vmatprep.subr.bf16.mxu0 0
        %4243 = vmatpush1.bf16.msra.mxu0 0
        %4244 = vmatprep.subr.bf16.mxu0 0
        %4245 = vmatpush1.bf16.msra.mxu0 0
        %4246 = vmatprep.subr.bf16.mxu0 0
        %4247 = vmatpush1.bf16.msra.mxu0 0
        %4248 = vmatprep.subr.bf16.mxu0 0
        %4249 = vmatpush1.bf16.msra.mxu0 0
        %4250 = vmatprep.subr.bf16.mxu0 0
        %4251 = vmatpush1.bf16.msra.mxu0 0
        %4252 = vmatprep.subr.bf16.mxu0 0
        %4253 = vmatpush1.bf16.msra.mxu0 0
        %4254 = vmatprep.subr.bf16.mxu0 0
        %4255 = vmatpush1.bf16.msra.mxu0 0
        %4256 = vmatprep.mubr.bf16.mxu0 0
        %4257 = vmatmul.mubr.bf16.gmra.mrb[0].mxu0 %v4092
        %v4258 = vpop.f32.mrb[0].mxu0
        %v4259 = vadd.f32 %v4218, %v4258
        %v4260 = vpop.f32.mrb[0].mxu0
        %v4261 = vpop.f32.mrb[0].mxu0
        %v4262 = vpop.f32.mrb[0].mxu0
        %4263 = vdwg.mxu0
        %v4264 = vadd.f32 %v3990, %v4223
        %v4265 = vadd.f32 %v3991, %v4259
        %v4266 = vld [vmem:[%s35] sm:$0x1]
        %v4268 = vlaneseq
        %v4269 = vshrl.u32 %v4268, 7
        %v4270 = vsub.s32 0, %v4269
        %v4271 = vrot.slane %v4266, %v4270
        %v4273 = vadd.f32 %v4264, %v4271
        %v4274 = vld [vmem:[%s37] sm:$0x1]
        %v4276 = vlaneseq
        %v4277 = vshrl.u32 %v4276, 7
        %v4278 = vsub.s32 0, %v4277
        %v4279 = vrot.slane %v4274, %v4278
        %v4281 = vadd.f32 %v4265, %v4279
        %v4282 = vpack.c.bf16 %v4273, %v4273
        %v4283 = vpack.c.bf16 %v4281, %v4281
        %v4285 = vshrl.u32 %v4282, 16
        %v4287 = vrot.slane %v4285, 7
        %v4288 = vshll.u32 %v4282, 16
        %v4290 = vor.u32 %v4287, %v4288
        %vm4292 = vcmask 1040384
        %vm4293 = vsmask.f32 256
        %vm4294 = vmand %vm4292, %vm4293
        %v4295 = vsel %vm4294, 0, %v4290
        %vm4296 = vcmask 1041408
        %vm4297 = vsmask.f32 1280
        %vm4298 = vmand %vm4296, %vm4297
        %v4299 = vsel %vm4298, %v4295, 0
        %v4301 = vshrl.u32 %v4283, 16
        %v4303 = vrot.slane %v4301, 7
        %v4304 = vshll.u32 %v4283, 16
        %v4306 = vor.u32 %v4303, %v4304
        %v4308 = vsel %vm4294, 0, %v4306
        %v4309 = vsel %vm4298, %v4308, 0
        %v4310 = vld [vmem:[%s41] sm:$0xf]
        %v4311 = vld [vmem:[%s41 + $0x4] sm:$0xf]
        %v4312 = vld [vmem:[%s43] sm:$0xf]
        %v4313 = vld [vmem:[%s43 + $0x4] sm:$0xf]
        %v4316 = vunpack.c.l.b16 %v4310
        %v4317 = vunpack.c.l.b16 %v4311
        %v4318 = vpack.c.b16 %v4317, %v4316
        %v4321 = vsel %vm3542, %v4299, 0
        %4323 = vmatprep.subr.bf16.mxu0 0
        %4324 = vmatpush1.bf16.msra.mxu0 %v4318
        %4325 = vmatprep.subr.bf16.mxu0 0
        %4326 = vmatpush1.bf16.msra.mxu0 0
        %4327 = vmatprep.subr.bf16.mxu0 0
        %4328 = vmatpush1.bf16.msra.mxu0 0
        %4329 = vmatprep.subr.bf16.mxu0 0
        %4330 = vmatpush1.bf16.msra.mxu0 0
        %4331 = vmatprep.subr.bf16.mxu0 0
        %4332 = vmatpush1.bf16.msra.mxu0 0
        %4333 = vmatprep.subr.bf16.mxu0 0
        %4334 = vmatpush1.bf16.msra.mxu0 0
        %4335 = vmatprep.subr.bf16.mxu0 0
        %4336 = vmatpush1.bf16.msra.mxu0 0
        %4337 = vmatprep.subr.bf16.mxu0 0
        %4338 = vmatpush1.bf16.msra.mxu0 0
        %4339 = vmatprep.subr.bf16.mxu0 0
        %4340 = vmatpush1.bf16.msra.mxu0 0
        %4341 = vmatprep.subr.bf16.mxu0 0
        %4342 = vmatpush1.bf16.msra.mxu0 0
        %4343 = vmatprep.subr.bf16.mxu0 0
        %4344 = vmatpush1.bf16.msra.mxu0 0
        %4345 = vmatprep.subr.bf16.mxu0 0
        %4346 = vmatpush1.bf16.msra.mxu0 0
        %4347 = vmatprep.subr.bf16.mxu0 0
        %4348 = vmatpush1.bf16.msra.mxu0 0
        %4349 = vmatprep.subr.bf16.mxu0 0
        %4350 = vmatpush1.bf16.msra.mxu0 0
        %4351 = vmatprep.subr.bf16.mxu0 0
        %4352 = vmatpush1.bf16.msra.mxu0 0
        %4353 = vmatprep.subr.bf16.mxu0 0
        %4354 = vmatpush1.bf16.msra.mxu0 0
        %4355 = vmatprep.mubr.bf16.mxu0 0
        %4356 = vmatmul.mubr.bf16.gmra.mrb[0].mxu0 %v4321
        %v4357 = vpop.f32.mrb[0].mxu0
        %v4358 = vadd.f32 0.0, %v4357
        %v4359 = vpop.f32.mrb[0].mxu0
        %v4360 = vpop.f32.mrb[0].mxu0
        %v4361 = vpop.f32.mrb[0].mxu0
        %4362 = vdwg.mxu0
        %v4365 = vunpack.c.l.b16 %v4312
        %v4366 = vunpack.c.l.b16 %v4313
        %v4367 = vpack.c.b16 %v4366, %v4365
        %v4370 = vsel %vm3542, %v4309, 0
        %4372 = vmatprep.subr.bf16.mxu0 0
        %4373 = vmatpush1.bf16.msra.mxu0 %v4367
        %4374 = vmatprep.subr.bf16.mxu0 0
        %4375 = vmatpush1.bf16.msra.mxu0 0
        %4376 = vmatprep.subr.bf16.mxu0 0
        %4377 = vmatpush1.bf16.msra.mxu0 0
        %4378 = vmatprep.subr.bf16.mxu0 0
        %4379 = vmatpush1.bf16.msra.mxu0 0
        %4380 = vmatprep.subr.bf16.mxu0 0
        %4381 = vmatpush1.bf16.msra.mxu0 0
        %4382 = vmatprep.subr.bf16.mxu0 0
        %4383 = vmatpush1.bf16.msra.mxu0 0
        %4384 = vmatprep.subr.bf16.mxu0 0
        %4385 = vmatpush1.bf16.msra.mxu0 0
        %4386 = vmatprep.subr.bf16.mxu0 0
        %4387 = vmatpush1.bf16.msra.mxu0 0
        %4388 = vmatprep.subr.bf16.mxu0 0
        %4389 = vmatpush1.bf16.msra.mxu0 0
        %4390 = vmatprep.subr.bf16.mxu0 0
        %4391 = vmatpush1.bf16.msra.mxu0 0
        %4392 = vmatprep.subr.bf16.mxu0 0
        %4393 = vmatpush1.bf16.msra.mxu0 0
        %4394 = vmatprep.subr.bf16.mxu0 0
        %4395 = vmatpush1.bf16.msra.mxu0 0
        %4396 = vmatprep.subr.bf16.mxu0 0
        %4397 = vmatpush1.bf16.msra.mxu0 0
        %4398 = vmatprep.subr.bf16.mxu0 0
        %4399 = vmatpush1.bf16.msra.mxu0 0
        %4400 = vmatprep.subr.bf16.mxu0 0
        %4401 = vmatpush1.bf16.msra.mxu0 0
        %4402 = vmatprep.subr.bf16.mxu0 0
        %4403 = vmatpush1.bf16.msra.mxu0 0
        %4404 = vmatprep.mubr.bf16.mxu0 0
        %4405 = vmatmul.mubr.bf16.gmra.mrb[0].mxu0 %v4370
        %v4406 = vpop.f32.mrb[0].mxu0
        %v4407 = vadd.f32 0.0, %v4406
        %v4408 = vpop.f32.mrb[0].mxu0
        %v4409 = vpop.f32.mrb[0].mxu0
        %v4410 = vpop.f32.mrb[0].mxu0
        %4411 = vdwg.mxu0
        %4412 = vmatprep.subr.bf16.mxu0 0
        %4413 = vmatpush1.bf16.msra.mxu0 %v4318
        %4414 = vmatprep.subr.bf16.mxu0 0
        %4415 = vmatpush1.bf16.msra.mxu0 0
        %4416 = vmatprep.subr.bf16.mxu0 0
        %4417 = vmatpush1.bf16.msra.mxu0 0
        %4418 = vmatprep.subr.bf16.mxu0 0
        %4419 = vmatpush1.bf16.msra.mxu0 0
        %4420 = vmatprep.subr.bf16.mxu0 0
        %4421 = vmatpush1.bf16.msra.mxu0 0
        %4422 = vmatprep.subr.bf16.mxu0 0
        %4423 = vmatpush1.bf16.msra.mxu0 0
        %4424 = vmatprep.subr.bf16.mxu0 0
        %4425 = vmatpush1.bf16.msra.mxu0 0
        %4426 = vmatprep.subr.bf16.mxu0 0
        %4427 = vmatpush1.bf16.msra.mxu0 0
        %4428 = vmatprep.subr.bf16.mxu0 0
        %4429 = vmatpush1.bf16.msra.mxu0 0
        %4430 = vmatprep.subr.bf16.mxu0 0
        %4431 = vmatpush1.bf16.msra.mxu0 0
        %4432 = vmatprep.subr.bf16.mxu0 0
        %4433 = vmatpush1.bf16.msra.mxu0 0
        %4434 = vmatprep.subr.bf16.mxu0 0
        %4435 = vmatpush1.bf16.msra.mxu0 0
        %4436 = vmatprep.subr.bf16.mxu0 0
        %4437 = vmatpush1.bf16.msra.mxu0 0
        %4438 = vmatprep.subr.bf16.mxu0 0
        %4439 = vmatpush1.bf16.msra.mxu0 0
        %4440 = vmatprep.subr.bf16.mxu0 0
        %4441 = vmatpush1.bf16.msra.mxu0 0
        %4442 = vmatprep.subr.bf16.mxu0 0
        %4443 = vmatpush1.bf16.msra.mxu0 0
        %4444 = vmatprep.mubr.bf16.mxu0 0
        %4445 = vmatmul.mubr.bf16.gmra.mrb[0].mxu0 %v4370
        %v4446 = vpop.f32.mrb[0].mxu0
        %v4447 = vadd.f32 0.0, %v4446
        %v4448 = vpop.f32.mrb[0].mxu0
        %v4449 = vpop.f32.mrb[0].mxu0
        %v4450 = vpop.f32.mrb[0].mxu0
        %4451 = vdwg.mxu0
        %v4452 = vsub.f32 %v4358, %v4407
        %4453 = vmatprep.subr.bf16.mxu0 0
        %4454 = vmatpush1.bf16.msra.mxu0 %v4367
        %4455 = vmatprep.subr.bf16.mxu0 0
        %4456 = vmatpush1.bf16.msra.mxu0 0
        %4457 = vmatprep.subr.bf16.mxu0 0
        %4458 = vmatpush1.bf16.msra.mxu0 0
        %4459 = vmatprep.subr.bf16.mxu0 0
        %4460 = vmatpush1.bf16.msra.mxu0 0
        %4461 = vmatprep.subr.bf16.mxu0 0
        %4462 = vmatpush1.bf16.msra.mxu0 0
        %4463 = vmatprep.subr.bf16.mxu0 0
        %4464 = vmatpush1.bf16.msra.mxu0 0
        %4465 = vmatprep.subr.bf16.mxu0 0
        %4466 = vmatpush1.bf16.msra.mxu0 0
        %4467 = vmatprep.subr.bf16.mxu0 0
        %4468 = vmatpush1.bf16.msra.mxu0 0
        %4469 = vmatprep.subr.bf16.mxu0 0
        %4470 = vmatpush1.bf16.msra.mxu0 0
        %4471 = vmatprep.subr.bf16.mxu0 0
        %4472 = vmatpush1.bf16.msra.mxu0 0
        %4473 = vmatprep.subr.bf16.mxu0 0
        %4474 = vmatpush1.bf16.msra.mxu0 0
        %4475 = vmatprep.subr.bf16.mxu0 0
        %4476 = vmatpush1.bf16.msra.mxu0 0
        %4477 = vmatprep.subr.bf16.mxu0 0
        %4478 = vmatpush1.bf16.msra.mxu0 0
        %4479 = vmatprep.subr.bf16.mxu0 0
        %4480 = vmatpush1.bf16.msra.mxu0 0
        %4481 = vmatprep.subr.bf16.mxu0 0
        %4482 = vmatpush1.bf16.msra.mxu0 0
        %4483 = vmatprep.subr.bf16.mxu0 0
        %4484 = vmatpush1.bf16.msra.mxu0 0
        %4485 = vmatprep.mubr.bf16.mxu0 0
        %4486 = vmatmul.mubr.bf16.gmra.mrb[0].mxu0 %v4321
        %v4487 = vpop.f32.mrb[0].mxu0
        %v4488 = vadd.f32 %v4447, %v4487
        %v4489 = vpop.f32.mrb[0].mxu0
        %v4490 = vpop.f32.mrb[0].mxu0
        %v4491 = vpop.f32.mrb[0].mxu0
        %4492 = vdwg.mxu0
        %v4493 = vadd.f32 %v4452, 0.0
        %v4494 = vadd.f32 %v4488, 0.0
        %s4495 = scalar_lea.vmem %s41, 8
        %v4496 = vld [vmem:[%s4495] sm:$0xf]
        %v4497 = vld [vmem:[%s4495 + $0x4] sm:$0xf]
        %s4498 = scalar_lea.vmem %s43, 8
        %v4499 = vld [vmem:[%s4498] sm:$0xf]
        %v4500 = vld [vmem:[%s4498 + $0x4] sm:$0xf]
        %v4501 = vshrl.u32 %v4299, 16
        %v4503 = vshll.u32 %v4299, 16
        %v4505 = vrot.slane %v4503, 1
        %v4506 = vor.u32 %v4501, %v4505
        %v4509 = vunpack.c.l.b16 %v4496
        %v4510 = vunpack.c.l.b16 %v4497
        %v4511 = vpack.c.b16 %v4510, %v4509
        %v4514 = vsel %vm3542, %v4506, 0
        %4516 = vmatprep.subr.bf16.mxu0 0
        %4517 = vmatpush1.bf16.msra.mxu0 %v4511
        %4518 = vmatprep.subr.bf16.mxu0 0
        %4519 = vmatpush1.bf16.msra.mxu0 0
        %4520 = vmatprep.subr.bf16.mxu0 0
        %4521 = vmatpush1.bf16.msra.mxu0 0
        %4522 = vmatprep.subr.bf16.mxu0 0
        %4523 = vmatpush1.bf16.msra.mxu0 0
        %4524 = vmatprep.subr.bf16.mxu0 0
        %4525 = vmatpush1.bf16.msra.mxu0 0
        %4526 = vmatprep.subr.bf16.mxu0 0
        %4527 = vmatpush1.bf16.msra.mxu0 0
        %4528 = vmatprep.subr.bf16.mxu0 0
        %4529 = vmatpush1.bf16.msra.mxu0 0
        %4530 = vmatprep.subr.bf16.mxu0 0
        %4531 = vmatpush1.bf16.msra.mxu0 0
        %4532 = vmatprep.subr.bf16.mxu0 0
        %4533 = vmatpush1.bf16.msra.mxu0 0
        %4534 = vmatprep.subr.bf16.mxu0 0
        %4535 = vmatpush1.bf16.msra.mxu0 0
        %4536 = vmatprep.subr.bf16.mxu0 0
        %4537 = vmatpush1.bf16.msra.mxu0 0
        %4538 = vmatprep.subr.bf16.mxu0 0
        %4539 = vmatpush1.bf16.msra.mxu0 0
        %4540 = vmatprep.subr.bf16.mxu0 0
        %4541 = vmatpush1.bf16.msra.mxu0 0
        %4542 = vmatprep.subr.bf16.mxu0 0
        %4543 = vmatpush1.bf16.msra.mxu0 0
        %4544 = vmatprep.subr.bf16.mxu0 0
        %4545 = vmatpush1.bf16.msra.mxu0 0
        %4546 = vmatprep.subr.bf16.mxu0 0
        %4547 = vmatpush1.bf16.msra.mxu0 0
        %4548 = vmatprep.mubr.bf16.mxu0 0
        %4549 = vmatmul.mubr.bf16.gmra.mrb[0].mxu0 %v4514
        %v4550 = vpop.f32.mrb[0].mxu0
        %v4551 = vadd.f32 0.0, %v4550
        %v4552 = vpop.f32.mrb[0].mxu0
        %v4553 = vpop.f32.mrb[0].mxu0
        %v4554 = vpop.f32.mrb[0].mxu0
        %4555 = vdwg.mxu0
        %v4556 = vshrl.u32 %v4309, 16
        %v4558 = vshll.u32 %v4309, 16
        %v4560 = vrot.slane %v4558, 1
        %v4561 = vor.u32 %v4556, %v4560
        %v4564 = vunpack.c.l.b16 %v4499
        %v4565 = vunpack.c.l.b16 %v4500
        %v4566 = vpack.c.b16 %v4565, %v4564
        %v4569 = vsel %vm3542, %v4561, 0
        %4571 = vmatprep.subr.bf16.mxu0 0
        %4572 = vmatpush1.bf16.msra.mxu0 %v4566
        %4573 = vmatprep.subr.bf16.mxu0 0
        %4574 = vmatpush1.bf16.msra.mxu0 0
        %4575 = vmatprep.subr.bf16.mxu0 0
        %4576 = vmatpush1.bf16.msra.mxu0 0
        %4577 = vmatprep.subr.bf16.mxu0 0
        %4578 = vmatpush1.bf16.msra.mxu0 0
        %4579 = vmatprep.subr.bf16.mxu0 0
        %4580 = vmatpush1.bf16.msra.mxu0 0
        %4581 = vmatprep.subr.bf16.mxu0 0
        %4582 = vmatpush1.bf16.msra.mxu0 0
        %4583 = vmatprep.subr.bf16.mxu0 0
        %4584 = vmatpush1.bf16.msra.mxu0 0
        %4585 = vmatprep.subr.bf16.mxu0 0
        %4586 = vmatpush1.bf16.msra.mxu0 0
        %4587 = vmatprep.subr.bf16.mxu0 0
        %4588 = vmatpush1.bf16.msra.mxu0 0
        %4589 = vmatprep.subr.bf16.mxu0 0
        %4590 = vmatpush1.bf16.msra.mxu0 0
        %4591 = vmatprep.subr.bf16.mxu0 0
        %4592 = vmatpush1.bf16.msra.mxu0 0
        %4593 = vmatprep.subr.bf16.mxu0 0
        %4594 = vmatpush1.bf16.msra.mxu0 0
        %4595 = vmatprep.subr.bf16.mxu0 0
        %4596 = vmatpush1.bf16.msra.mxu0 0
        %4597 = vmatprep.subr.bf16.mxu0 0
        %4598 = vmatpush1.bf16.msra.mxu0 0
        %4599 = vmatprep.subr.bf16.mxu0 0
        %4600 = vmatpush1.bf16.msra.mxu0 0
        %4601 = vmatprep.subr.bf16.mxu0 0
        %4602 = vmatpush1.bf16.msra.mxu0 0
        %4603 = vmatprep.mubr.bf16.mxu0 0
        %4604 = vmatmul.mubr.bf16.gmra.mrb[0].mxu0 %v4569
        %v4605 = vpop.f32.mrb[0].mxu0
        %v4606 = vadd.f32 0.0, %v4605
        %v4607 = vpop.f32.mrb[0].mxu0
        %v4608 = vpop.f32.mrb[0].mxu0
        %v4609 = vpop.f32.mrb[0].mxu0
        %4610 = vdwg.mxu0
        %4611 = vmatprep.subr.bf16.mxu0 0
        %4612 = vmatpush1.bf16.msra.mxu0 %v4511
        %4613 = vmatprep.subr.bf16.mxu0 0
        %4614 = vmatpush1.bf16.msra.mxu0 0
        %4615 = vmatprep.subr.bf16.mxu0 0
        %4616 = vmatpush1.bf16.msra.mxu0 0
        %4617 = vmatprep.subr.bf16.mxu0 0
        %4618 = vmatpush1.bf16.msra.mxu0 0
        %4619 = vmatprep.subr.bf16.mxu0 0
        %4620 = vmatpush1.bf16.msra.mxu0 0
        %4621 = vmatprep.subr.bf16.mxu0 0
        %4622 = vmatpush1.bf16.msra.mxu0 0
        %4623 = vmatprep.subr.bf16.mxu0 0
        %4624 = vmatpush1.bf16.msra.mxu0 0
        %4625 = vmatprep.subr.bf16.mxu0 0
        %4626 = vmatpush1.bf16.msra.mxu0 0
        %4627 = vmatprep.subr.bf16.mxu0 0
        %4628 = vmatpush1.bf16.msra.mxu0 0
        %4629 = vmatprep.subr.bf16.mxu0 0
        %4630 = vmatpush1.bf16.msra.mxu0 0
        %4631 = vmatprep.subr.bf16.mxu0 0
        %4632 = vmatpush1.bf16.msra.mxu0 0
        %4633 = vmatprep.subr.bf16.mxu0 0
        %4634 = vmatpush1.bf16.msra.mxu0 0
        %4635 = vmatprep.subr.bf16.mxu0 0
        %4636 = vmatpush1.bf16.msra.mxu0 0
        %4637 = vmatprep.subr.bf16.mxu0 0
        %4638 = vmatpush1.bf16.msra.mxu0 0
        %4639 = vmatprep.subr.bf16.mxu0 0
        %4640 = vmatpush1.bf16.msra.mxu0 0
        %4641 = vmatprep.subr.bf16.mxu0 0
        %4642 = vmatpush1.bf16.msra.mxu0 0
        %4643 = vmatprep.mubr.bf16.mxu0 0
        %4644 = vmatmul.mubr.bf16.gmra.mrb[0].mxu0 %v4569
        %v4645 = vpop.f32.mrb[0].mxu0
        %v4646 = vadd.f32 0.0, %v4645
        %v4647 = vpop.f32.mrb[0].mxu0
        %v4648 = vpop.f32.mrb[0].mxu0
        %v4649 = vpop.f32.mrb[0].mxu0
        %4650 = vdwg.mxu0
        %v4651 = vsub.f32 %v4551, %v4606
        %4652 = vmatprep.subr.bf16.mxu0 0
        %4653 = vmatpush1.bf16.msra.mxu0 %v4566
        %4654 = vmatprep.subr.bf16.mxu0 0
        %4655 = vmatpush1.bf16.msra.mxu0 0
        %4656 = vmatprep.subr.bf16.mxu0 0
        %4657 = vmatpush1.bf16.msra.mxu0 0
        %4658 = vmatprep.subr.bf16.mxu0 0
        %4659 = vmatpush1.bf16.msra.mxu0 0
        %4660 = vmatprep.subr.bf16.mxu0 0
        %4661 = vmatpush1.bf16.msra.mxu0 0
        %4662 = vmatprep.subr.bf16.mxu0 0
        %4663 = vmatpush1.bf16.msra.mxu0 0
        %4664 = vmatprep.subr.bf16.mxu0 0
        %4665 = vmatpush1.bf16.msra.mxu0 0
        %4666 = vmatprep.subr.bf16.mxu0 0
        %4667 = vmatpush1.bf16.msra.mxu0 0
        %4668 = vmatprep.subr.bf16.mxu0 0
        %4669 = vmatpush1.bf16.msra.mxu0 0
        %4670 = vmatprep.subr.bf16.mxu0 0
        %4671 = vmatpush1.bf16.msra.mxu0 0
        %4672 = vmatprep.subr.bf16.mxu0 0
        %4673 = vmatpush1.bf16.msra.mxu0 0
        %4674 = vmatprep.subr.bf16.mxu0 0
        %4675 = vmatpush1.bf16.msra.mxu0 0
        %4676 = vmatprep.subr.bf16.mxu0 0
        %4677 = vmatpush1.bf16.msra.mxu0 0
        %4678 = vmatprep.subr.bf16.mxu0 0
        %4679 = vmatpush1.bf16.msra.mxu0 0
        %4680 = vmatprep.subr.bf16.mxu0 0
        %4681 = vmatpush1.bf16.msra.mxu0 0
        %4682 = vmatprep.subr.bf16.mxu0 0
        %4683 = vmatpush1.bf16.msra.mxu0 0
        %4684 = vmatprep.mubr.bf16.mxu0 0
        %4685 = vmatmul.mubr.bf16.gmra.mrb[0].mxu0 %v4514
        %v4686 = vpop.f32.mrb[0].mxu0
        %v4687 = vadd.f32 %v4646, %v4686
        %v4688 = vpop.f32.mrb[0].mxu0
        %v4689 = vpop.f32.mrb[0].mxu0
        %v4690 = vpop.f32.mrb[0].mxu0
        %4691 = vdwg.mxu0
        %v4692 = vadd.f32 %v4493, %v4651
        %v4693 = vadd.f32 %v4494, %v4687
        %s4694 = scalar_lea.vmem %s41, 16
        %v4695 = vld [vmem:[%s4694] sm:$0xf]
        %v4696 = vld [vmem:[%s4694 + $0x4] sm:$0xf]
        %s4697 = scalar_lea.vmem %s43, 16
        %v4698 = vld [vmem:[%s4697] sm:$0xf]
        %v4699 = vld [vmem:[%s4697 + $0x4] sm:$0xf]
        %v4701 = vrot.slane %v4299, 1
        %v4704 = vunpack.c.l.b16 %v4695
        %v4705 = vunpack.c.l.b16 %v4696
        %v4706 = vpack.c.b16 %v4705, %v4704
        %v4709 = vsel %vm3542, %v4701, 0
        %4711 = vmatprep.subr.bf16.mxu0 0
        %4712 = vmatpush1.bf16.msra.mxu0 %v4706
        %4713 = vmatprep.subr.bf16.mxu0 0
        %4714 = vmatpush1.bf16.msra.mxu0 0
        %4715 = vmatprep.subr.bf16.mxu0 0
        %4716 = vmatpush1.bf16.msra.mxu0 0
        %4717 = vmatprep.subr.bf16.mxu0 0
        %4718 = vmatpush1.bf16.msra.mxu0 0
        %4719 = vmatprep.subr.bf16.mxu0 0
        %4720 = vmatpush1.bf16.msra.mxu0 0
        %4721 = vmatprep.subr.bf16.mxu0 0
        %4722 = vmatpush1.bf16.msra.mxu0 0
        %4723 = vmatprep.subr.bf16.mxu0 0
        %4724 = vmatpush1.bf16.msra.mxu0 0
        %4725 = vmatprep.subr.bf16.mxu0 0
        %4726 = vmatpush1.bf16.msra.mxu0 0
        %4727 = vmatprep.subr.bf16.mxu0 0
        %4728 = vmatpush1.bf16.msra.mxu0 0
        %4729 = vmatprep.subr.bf16.mxu0 0
        %4730 = vmatpush1.bf16.msra.mxu0 0
        %4731 = vmatprep.subr.bf16.mxu0 0
        %4732 = vmatpush1.bf16.msra.mxu0 0
        %4733 = vmatprep.subr.bf16.mxu0 0
        %4734 = vmatpush1.bf16.msra.mxu0 0
        %4735 = vmatprep.subr.bf16.mxu0 0
        %4736 = vmatpush1.bf16.msra.mxu0 0
        %4737 = vmatprep.subr.bf16.mxu0 0
        %4738 = vmatpush1.bf16.msra.mxu0 0
        %4739 = vmatprep.subr.bf16.mxu0 0
        %4740 = vmatpush1.bf16.msra.mxu0 0
        %4741 = vmatprep.subr.bf16.mxu0 0
        %4742 = vmatpush1.bf16.msra.mxu0 0
        %4743 = vmatprep.mubr.bf16.mxu0 0
        %4744 = vmatmul.mubr.bf16.gmra.mrb[0].mxu0 %v4709
        %v4745 = vpop.f32.mrb[0].mxu0
        %v4746 = vadd.f32 0.0, %v4745
        %v4747 = vpop.f32.mrb[0].mxu0
        %v4748 = vpop.f32.mrb[0].mxu0
        %v4749 = vpop.f32.mrb[0].mxu0
        %4750 = vdwg.mxu0
        %v4752 = vrot.slane %v4309, 1
        %v4755 = vunpack.c.l.b16 %v4698
        %v4756 = vunpack.c.l.b16 %v4699
        %v4757 = vpack.c.b16 %v4756, %v4755
        %v4760 = vsel %vm3542, %v4752, 0
        %4762 = vmatprep.subr.bf16.mxu0 0
        %4763 = vmatpush1.bf16.msra.mxu0 %v4757
        %4764 = vmatprep.subr.bf16.mxu0 0
        %4765 = vmatpush1.bf16.msra.mxu0 0
        %4766 = vmatprep.subr.bf16.mxu0 0
        %4767 = vmatpush1.bf16.msra.mxu0 0
        %4768 = vmatprep.subr.bf16.mxu0 0
        %4769 = vmatpush1.bf16.msra.mxu0 0
        %4770 = vmatprep.subr.bf16.mxu0 0
        %4771 = vmatpush1.bf16.msra.mxu0 0
        %4772 = vmatprep.subr.bf16.mxu0 0
        %4773 = vmatpush1.bf16.msra.mxu0 0
        %4774 = vmatprep.subr.bf16.mxu0 0
        %4775 = vmatpush1.bf16.msra.mxu0 0
        %4776 = vmatprep.subr.bf16.mxu0 0
        %4777 = vmatpush1.bf16.msra.mxu0 0
        %4778 = vmatprep.subr.bf16.mxu0 0
        %4779 = vmatpush1.bf16.msra.mxu0 0
        %4780 = vmatprep.subr.bf16.mxu0 0
        %4781 = vmatpush1.bf16.msra.mxu0 0
        %4782 = vmatprep.subr.bf16.mxu0 0
        %4783 = vmatpush1.bf16.msra.mxu0 0
        %4784 = vmatprep.subr.bf16.mxu0 0
        %4785 = vmatpush1.bf16.msra.mxu0 0
        %4786 = vmatprep.subr.bf16.mxu0 0
        %4787 = vmatpush1.bf16.msra.mxu0 0
        %4788 = vmatprep.subr.bf16.mxu0 0
        %4789 = vmatpush1.bf16.msra.mxu0 0
        %4790 = vmatprep.subr.bf16.mxu0 0
        %4791 = vmatpush1.bf16.msra.mxu0 0
        %4792 = vmatprep.subr.bf16.mxu0 0
        %4793 = vmatpush1.bf16.msra.mxu0 0
        %4794 = vmatprep.mubr.bf16.mxu0 0
        %4795 = vmatmul.mubr.bf16.gmra.mrb[0].mxu0 %v4760
        %v4796 = vpop.f32.mrb[0].mxu0
        %v4797 = vadd.f32 0.0, %v4796
        %v4798 = vpop.f32.mrb[0].mxu0
        %v4799 = vpop.f32.mrb[0].mxu0
        %v4800 = vpop.f32.mrb[0].mxu0
        %4801 = vdwg.mxu0
        %4802 = vmatprep.subr.bf16.mxu0 0
        %4803 = vmatpush1.bf16.msra.mxu0 %v4706
        %4804 = vmatprep.subr.bf16.mxu0 0
        %4805 = vmatpush1.bf16.msra.mxu0 0
        %4806 = vmatprep.subr.bf16.mxu0 0
        %4807 = vmatpush1.bf16.msra.mxu0 0
        %4808 = vmatprep.subr.bf16.mxu0 0
        %4809 = vmatpush1.bf16.msra.mxu0 0
        %4810 = vmatprep.subr.bf16.mxu0 0
        %4811 = vmatpush1.bf16.msra.mxu0 0
        %4812 = vmatprep.subr.bf16.mxu0 0
        %4813 = vmatpush1.bf16.msra.mxu0 0
        %4814 = vmatprep.subr.bf16.mxu0 0
        %4815 = vmatpush1.bf16.msra.mxu0 0
        %4816 = vmatprep.subr.bf16.mxu0 0
        %4817 = vmatpush1.bf16.msra.mxu0 0
        %4818 = vmatprep.subr.bf16.mxu0 0
        %4819 = vmatpush1.bf16.msra.mxu0 0
        %4820 = vmatprep.subr.bf16.mxu0 0
        %4821 = vmatpush1.bf16.msra.mxu0 0
        %4822 = vmatprep.subr.bf16.mxu0 0
        %4823 = vmatpush1.bf16.msra.mxu0 0
        %4824 = vmatprep.subr.bf16.mxu0 0
        %4825 = vmatpush1.bf16.msra.mxu0 0
        %4826 = vmatprep.subr.bf16.mxu0 0
        %4827 = vmatpush1.bf16.msra.mxu0 0
        %4828 = vmatprep.subr.bf16.mxu0 0
        %4829 = vmatpush1.bf16.msra.mxu0 0
        %4830 = vmatprep.subr.bf16.mxu0 0
        %4831 = vmatpush1.bf16.msra.mxu0 0
        %4832 = vmatprep.subr.bf16.mxu0 0
        %4833 = vmatpush1.bf16.msra.mxu0 0
        %4834 = vmatprep.mubr.bf16.mxu0 0
        %4835 = vmatmul.mubr.bf16.gmra.mrb[0].mxu0 %v4760
        %v4836 = vpop.f32.mrb[0].mxu0
        %v4837 = vadd.f32 0.0, %v4836
        %v4838 = vpop.f32.mrb[0].mxu0
        %v4839 = vpop.f32.mrb[0].mxu0
        %v4840 = vpop.f32.mrb[0].mxu0
        %4841 = vdwg.mxu0
        %v4842 = vsub.f32 %v4746, %v4797
        %4843 = vmatprep.subr.bf16.mxu0 0
        %4844 = vmatpush1.bf16.msra.mxu0 %v4757
        %4845 = vmatprep.subr.bf16.mxu0 0
        %4846 = vmatpush1.bf16.msra.mxu0 0
        %4847 = vmatprep.subr.bf16.mxu0 0
        %4848 = vmatpush1.bf16.msra.mxu0 0
        %4849 = vmatprep.subr.bf16.mxu0 0
        %4850 = vmatpush1.bf16.msra.mxu0 0
        %4851 = vmatprep.subr.bf16.mxu0 0
        %4852 = vmatpush1.bf16.msra.mxu0 0
        %4853 = vmatprep.subr.bf16.mxu0 0
        %4854 = vmatpush1.bf16.msra.mxu0 0
        %4855 = vmatprep.subr.bf16.mxu0 0
        %4856 = vmatpush1.bf16.msra.mxu0 0
        %4857 = vmatprep.subr.bf16.mxu0 0
        %4858 = vmatpush1.bf16.msra.mxu0 0
        %4859 = vmatprep.subr.bf16.mxu0 0
        %4860 = vmatpush1.bf16.msra.mxu0 0
        %4861 = vmatprep.subr.bf16.mxu0 0
        %4862 = vmatpush1.bf16.msra.mxu0 0
        %4863 = vmatprep.subr.bf16.mxu0 0
        %4864 = vmatpush1.bf16.msra.mxu0 0
        %4865 = vmatprep.subr.bf16.mxu0 0
        %4866 = vmatpush1.bf16.msra.mxu0 0
        %4867 = vmatprep.subr.bf16.mxu0 0
        %4868 = vmatpush1.bf16.msra.mxu0 0
        %4869 = vmatprep.subr.bf16.mxu0 0
        %4870 = vmatpush1.bf16.msra.mxu0 0
        %4871 = vmatprep.subr.bf16.mxu0 0
        %4872 = vmatpush1.bf16.msra.mxu0 0
        %4873 = vmatprep.subr.bf16.mxu0 0
        %4874 = vmatpush1.bf16.msra.mxu0 0
        %4875 = vmatprep.mubr.bf16.mxu0 0
        %4876 = vmatmul.mubr.bf16.gmra.mrb[0].mxu0 %v4709
        %v4877 = vpop.f32.mrb[0].mxu0
        %v4878 = vadd.f32 %v4837, %v4877
        %v4879 = vpop.f32.mrb[0].mxu0
        %v4880 = vpop.f32.mrb[0].mxu0
        %v4881 = vpop.f32.mrb[0].mxu0
        %4882 = vdwg.mxu0
        %v4883 = vadd.f32 %v4692, %v4842
        %v4884 = vadd.f32 %v4693, %v4878
        %v4885 = vld [vmem:[%s45] sm:$0x1]
        %v4887 = vlaneseq
        %v4888 = vshrl.u32 %v4887, 7
        %v4889 = vsub.s32 0, %v4888
        %v4890 = vrot.slane %v4885, %v4889
        %v4892 = vadd.f32 %v4883, %v4890
        %v4893 = vld [vmem:[%s47] sm:$0x1]
        %v4895 = vlaneseq
        %v4896 = vshrl.u32 %v4895, 7
        %v4897 = vsub.s32 0, %v4896
        %v4898 = vrot.slane %v4893, %v4897
        %v4900 = vadd.f32 %v4884, %v4898
        %v4901 = vmul.f32 %v4892, %v4892
        %v4902 = vmul.f32 %v4900, %v4900
        %v4903 = vadd.f32 %v4901, %v4902
        %v4904 = vmax.f32 %v4903, 1e-10
        %v4905 = vrsqrt.pop %v4904
        %v4906 = vmul.f32 %v4905, 0.5
        %v4907 = vsub.f32 1.0, %v4906
        %v4908 = vmax.f32 %v4907, 0.0
        %v4909 = vmul.f32 %v4892, %v4908
        %v4910 = vmul.f32 %v4900, %v4908
        %v4911 = vpack.c.bf16 %v4909, %v4909
        %v4912 = vpack.c.bf16 %v4910, %v4910
        %v4914 = vshrl.u32 %v4911, 16
        %v4916 = vrot.slane %v4914, 7
        %v4917 = vshll.u32 %v4911, 16
        %v4919 = vor.u32 %v4916, %v4917
        %v4921 = vsel %vm4294, 0, %v4919
        %v4922 = vsel %vm4298, %v4921, 0
        %v4924 = vshrl.u32 %v4912, 16
        %v4926 = vrot.slane %v4924, 7
        %v4927 = vshll.u32 %v4912, 16
        %v4929 = vor.u32 %v4926, %v4927
        %v4931 = vsel %vm4294, 0, %v4929
        %v4932 = vsel %vm4298, %v4931, 0
        %v4933 = vld [vmem:[%s49] sm:$0xf]
        %v4934 = vld [vmem:[%s49 + $0x4] sm:$0xf]
        %v4935 = vld [vmem:[%s49 + $0x8] sm:$0xf]
        %v4936 = vld [vmem:[%s51] sm:$0xf]
        %v4937 = vld [vmem:[%s51 + $0x4] sm:$0xf]
        %v4938 = vld [vmem:[%s51 + $0x8] sm:$0xf]
        %v4942 = vunpack.c.l.b16 %v4933
        %v4943 = vunpack.c.l.b16 %v4934
        %v4944 = vunpack.c.l.b16 %v4935
        %v4945 = vpack.c.b16 %v4943, %v4942
        %v4946 = vpack.c.b16 %v4944, %v4944
        %vm4948 = vcmask 195584
        %v4950 = vsel %vm4948, %v4922, 0
        %v4953 = vsel %vm1760, %v4946, 0
        %4955 = vmatprep.subr.bf16.mxu0 0
        %4956 = vmatpush1.bf16.msra.mxu0 %v4945
        %4957 = vmatprep.subr.bf16.mxu0 0
        %4958 = vmatpush1.bf16.msra.mxu0 %v4953
        %4959 = vmatprep.subr.bf16.mxu0 0
        %4960 = vmatpush1.bf16.msra.mxu0 0
        %4961 = vmatprep.subr.bf16.mxu0 0
        %4962 = vmatpush1.bf16.msra.mxu0 0
        %4963 = vmatprep.subr.bf16.mxu0 0
        %4964 = vmatpush1.bf16.msra.mxu0 0
        %4965 = vmatprep.subr.bf16.mxu0 0
        %4966 = vmatpush1.bf16.msra.mxu0 0
        %4967 = vmatprep.subr.bf16.mxu0 0
        %4968 = vmatpush1.bf16.msra.mxu0 0
        %4969 = vmatprep.subr.bf16.mxu0 0
        %4970 = vmatpush1.bf16.msra.mxu0 0
        %4971 = vmatprep.subr.bf16.mxu0 0
        %4972 = vmatpush1.bf16.msra.mxu0 0
        %4973 = vmatprep.subr.bf16.mxu0 0
        %4974 = vmatpush1.bf16.msra.mxu0 0
        %4975 = vmatprep.subr.bf16.mxu0 0
        %4976 = vmatpush1.bf16.msra.mxu0 0
        %4977 = vmatprep.subr.bf16.mxu0 0
        %4978 = vmatpush1.bf16.msra.mxu0 0
        %4979 = vmatprep.subr.bf16.mxu0 0
        %4980 = vmatpush1.bf16.msra.mxu0 0
        %4981 = vmatprep.subr.bf16.mxu0 0
        %4982 = vmatpush1.bf16.msra.mxu0 0
        %4983 = vmatprep.subr.bf16.mxu0 0
        %4984 = vmatpush1.bf16.msra.mxu0 0
        %4985 = vmatprep.subr.bf16.mxu0 0
        %4986 = vmatpush1.bf16.msra.mxu0 0
        %4987 = vmatprep.mubr.bf16.mxu0 0
        %4988 = vmatmul.mubr.bf16.gmra.mrb[0].mxu0 %v4950
        %v4989 = vpop.f32.mrb[0].mxu0
        %v4990 = vadd.f32 0.0, %v4989
        %v4991 = vpop.f32.mrb[0].mxu0
        %v4992 = vpop.f32.mrb[0].mxu0
        %v4993 = vpop.f32.mrb[0].mxu0
        %4994 = vdwg.mxu0
        %v4998 = vunpack.c.l.b16 %v4936
        %v4999 = vunpack.c.l.b16 %v4937
        %v5000 = vunpack.c.l.b16 %v4938
        %v5001 = vpack.c.b16 %v4999, %v4998
        %v5002 = vpack.c.b16 %v5000, %v5000
        %v5005 = vsel %vm4948, %v4932, 0
        %v5008 = vsel %vm1760, %v5002, 0
        %5010 = vmatprep.subr.bf16.mxu0 0
        %5011 = vmatpush1.bf16.msra.mxu0 %v5001
        %5012 = vmatprep.subr.bf16.mxu0 0
        %5013 = vmatpush1.bf16.msra.mxu0 %v5008
        %5014 = vmatprep.subr.bf16.mxu0 0
        %5015 = vmatpush1.bf16.msra.mxu0 0
        %5016 = vmatprep.subr.bf16.mxu0 0
        %5017 = vmatpush1.bf16.msra.mxu0 0
        %5018 = vmatprep.subr.bf16.mxu0 0
        %5019 = vmatpush1.bf16.msra.mxu0 0
        %5020 = vmatprep.subr.bf16.mxu0 0
        %5021 = vmatpush1.bf16.msra.mxu0 0
        %5022 = vmatprep.subr.bf16.mxu0 0
        %5023 = vmatpush1.bf16.msra.mxu0 0
        %5024 = vmatprep.subr.bf16.mxu0 0
        %5025 = vmatpush1.bf16.msra.mxu0 0
        %5026 = vmatprep.subr.bf16.mxu0 0
        %5027 = vmatpush1.bf16.msra.mxu0 0
        %5028 = vmatprep.subr.bf16.mxu0 0
        %5029 = vmatpush1.bf16.msra.mxu0 0
        %5030 = vmatprep.subr.bf16.mxu0 0
        %5031 = vmatpush1.bf16.msra.mxu0 0
        %5032 = vmatprep.subr.bf16.mxu0 0
        %5033 = vmatpush1.bf16.msra.mxu0 0
        %5034 = vmatprep.subr.bf16.mxu0 0
        %5035 = vmatpush1.bf16.msra.mxu0 0
        %5036 = vmatprep.subr.bf16.mxu0 0
        %5037 = vmatpush1.bf16.msra.mxu0 0
        %5038 = vmatprep.subr.bf16.mxu0 0
        %5039 = vmatpush1.bf16.msra.mxu0 0
        %5040 = vmatprep.subr.bf16.mxu0 0
        %5041 = vmatpush1.bf16.msra.mxu0 0
        %5042 = vmatprep.mubr.bf16.mxu0 0
        %5043 = vmatmul.mubr.bf16.gmra.mrb[0].mxu0 %v5005
        %v5044 = vpop.f32.mrb[0].mxu0
        %v5045 = vadd.f32 0.0, %v5044
        %v5046 = vpop.f32.mrb[0].mxu0
        %v5047 = vpop.f32.mrb[0].mxu0
        %v5048 = vpop.f32.mrb[0].mxu0
        %5049 = vdwg.mxu0
        %5050 = vmatprep.subr.bf16.mxu0 0
        %5051 = vmatpush1.bf16.msra.mxu0 %v4945
        %5052 = vmatprep.subr.bf16.mxu0 0
        %5053 = vmatpush1.bf16.msra.mxu0 %v4953
        %5054 = vmatprep.subr.bf16.mxu0 0
        %5055 = vmatpush1.bf16.msra.mxu0 0
        %5056 = vmatprep.subr.bf16.mxu0 0
        %5057 = vmatpush1.bf16.msra.mxu0 0
        %5058 = vmatprep.subr.bf16.mxu0 0
        %5059 = vmatpush1.bf16.msra.mxu0 0
        %5060 = vmatprep.subr.bf16.mxu0 0
        %5061 = vmatpush1.bf16.msra.mxu0 0
        %5062 = vmatprep.subr.bf16.mxu0 0
        %5063 = vmatpush1.bf16.msra.mxu0 0
        %5064 = vmatprep.subr.bf16.mxu0 0
        %5065 = vmatpush1.bf16.msra.mxu0 0
        %5066 = vmatprep.subr.bf16.mxu0 0
        %5067 = vmatpush1.bf16.msra.mxu0 0
        %5068 = vmatprep.subr.bf16.mxu0 0
        %5069 = vmatpush1.bf16.msra.mxu0 0
        %5070 = vmatprep.subr.bf16.mxu0 0
        %5071 = vmatpush1.bf16.msra.mxu0 0
        %5072 = vmatprep.subr.bf16.mxu0 0
        %5073 = vmatpush1.bf16.msra.mxu0 0
        %5074 = vmatprep.subr.bf16.mxu0 0
        %5075 = vmatpush1.bf16.msra.mxu0 0
        %5076 = vmatprep.subr.bf16.mxu0 0
        %5077 = vmatpush1.bf16.msra.mxu0 0
        %5078 = vmatprep.subr.bf16.mxu0 0
        %5079 = vmatpush1.bf16.msra.mxu0 0
        %5080 = vmatprep.subr.bf16.mxu0 0
        %5081 = vmatpush1.bf16.msra.mxu0 0
        %5082 = vmatprep.mubr.bf16.mxu0 0
        %5083 = vmatmul.mubr.bf16.gmra.mrb[0].mxu0 %v5005
        %v5084 = vpop.f32.mrb[0].mxu0
        %v5085 = vadd.f32 0.0, %v5084
        %v5086 = vpop.f32.mrb[0].mxu0
        %v5087 = vpop.f32.mrb[0].mxu0
        %v5088 = vpop.f32.mrb[0].mxu0
        %5089 = vdwg.mxu0
        %v5090 = vsub.f32 %v4990, %v5045
        %5091 = vmatprep.subr.bf16.mxu0 0
        %5092 = vmatpush1.bf16.msra.mxu0 %v5001
        %5093 = vmatprep.subr.bf16.mxu0 0
        %5094 = vmatpush1.bf16.msra.mxu0 %v5008
        %5095 = vmatprep.subr.bf16.mxu0 0
        %5096 = vmatpush1.bf16.msra.mxu0 0
        %5097 = vmatprep.subr.bf16.mxu0 0
        %5098 = vmatpush1.bf16.msra.mxu0 0
        %5099 = vmatprep.subr.bf16.mxu0 0
        %5100 = vmatpush1.bf16.msra.mxu0 0
        %5101 = vmatprep.subr.bf16.mxu0 0
        %5102 = vmatpush1.bf16.msra.mxu0 0
        %5103 = vmatprep.subr.bf16.mxu0 0
        %5104 = vmatpush1.bf16.msra.mxu0 0
        %5105 = vmatprep.subr.bf16.mxu0 0
        %5106 = vmatpush1.bf16.msra.mxu0 0
        %5107 = vmatprep.subr.bf16.mxu0 0
        %5108 = vmatpush1.bf16.msra.mxu0 0
        %5109 = vmatprep.subr.bf16.mxu0 0
        %5110 = vmatpush1.bf16.msra.mxu0 0
        %5111 = vmatprep.subr.bf16.mxu0 0
        %5112 = vmatpush1.bf16.msra.mxu0 0
        %5113 = vmatprep.subr.bf16.mxu0 0
        %5114 = vmatpush1.bf16.msra.mxu0 0
        %5115 = vmatprep.subr.bf16.mxu0 0
        %5116 = vmatpush1.bf16.msra.mxu0 0
        %5117 = vmatprep.subr.bf16.mxu0 0
        %5118 = vmatpush1.bf16.msra.mxu0 0
        %5119 = vmatprep.subr.bf16.mxu0 0
        %5120 = vmatpush1.bf16.msra.mxu0 0
        %5121 = vmatprep.subr.bf16.mxu0 0
        %5122 = vmatpush1.bf16.msra.mxu0 0
        %5123 = vmatprep.mubr.bf16.mxu0 0
        %5124 = vmatmul.mubr.bf16.gmra.mrb[0].mxu0 %v4950
        %v5125 = vpop.f32.mrb[0].mxu0
        %v5126 = vadd.f32 %v5085, %v5125
        %v5127 = vpop.f32.mrb[0].mxu0
        %v5128 = vpop.f32.mrb[0].mxu0
        %v5129 = vpop.f32.mrb[0].mxu0
        %5130 = vdwg.mxu0
        %v5131 = vadd.f32 %v5090, 0.0
        %v5132 = vadd.f32 %v5126, 0.0
        %s5133 = scalar_lea.vmem %s49, 12
        %v5134 = vld [vmem:[%s5133] sm:$0xf]
        %v5135 = vld [vmem:[%s5133 + $0x4] sm:$0xf]
        %v5136 = vld [vmem:[%s5133 + $0x8] sm:$0xf]
        %s5137 = scalar_lea.vmem %s51, 12
        %v5138 = vld [vmem:[%s5137] sm:$0xf]
        %v5139 = vld [vmem:[%s5137 + $0x4] sm:$0xf]
        %v5140 = vld [vmem:[%s5137 + $0x8] sm:$0xf]
        %v5141 = vshrl.u32 %v4922, 16
        %v5143 = vshll.u32 %v4922, 16
        %v5145 = vrot.slane %v5143, 1
        %v5146 = vor.u32 %v5141, %v5145
        %v5150 = vunpack.c.l.b16 %v5134
        %v5151 = vunpack.c.l.b16 %v5135
        %v5152 = vunpack.c.l.b16 %v5136
        %v5153 = vpack.c.b16 %v5151, %v5150
        %v5154 = vpack.c.b16 %v5152, %v5152
        %v5157 = vsel %vm4948, %v5146, 0
        %v5160 = vsel %vm1760, %v5154, 0
        %5162 = vmatprep.subr.bf16.mxu0 0
        %5163 = vmatpush1.bf16.msra.mxu0 %v5153
        %5164 = vmatprep.subr.bf16.mxu0 0
        %5165 = vmatpush1.bf16.msra.mxu0 %v5160
        %5166 = vmatprep.subr.bf16.mxu0 0
        %5167 = vmatpush1.bf16.msra.mxu0 0
        %5168 = vmatprep.subr.bf16.mxu0 0
        %5169 = vmatpush1.bf16.msra.mxu0 0
        %5170 = vmatprep.subr.bf16.mxu0 0
        %5171 = vmatpush1.bf16.msra.mxu0 0
        %5172 = vmatprep.subr.bf16.mxu0 0
        %5173 = vmatpush1.bf16.msra.mxu0 0
        %5174 = vmatprep.subr.bf16.mxu0 0
        %5175 = vmatpush1.bf16.msra.mxu0 0
        %5176 = vmatprep.subr.bf16.mxu0 0
        %5177 = vmatpush1.bf16.msra.mxu0 0
        %5178 = vmatprep.subr.bf16.mxu0 0
        %5179 = vmatpush1.bf16.msra.mxu0 0
        %5180 = vmatprep.subr.bf16.mxu0 0
        %5181 = vmatpush1.bf16.msra.mxu0 0
        %5182 = vmatprep.subr.bf16.mxu0 0
        %5183 = vmatpush1.bf16.msra.mxu0 0
        %5184 = vmatprep.subr.bf16.mxu0 0
        %5185 = vmatpush1.bf16.msra.mxu0 0
        %5186 = vmatprep.subr.bf16.mxu0 0
        %5187 = vmatpush1.bf16.msra.mxu0 0
        %5188 = vmatprep.subr.bf16.mxu0 0
        %5189 = vmatpush1.bf16.msra.mxu0 0
        %5190 = vmatprep.subr.bf16.mxu0 0
        %5191 = vmatpush1.bf16.msra.mxu0 0
        %5192 = vmatprep.subr.bf16.mxu0 0
        %5193 = vmatpush1.bf16.msra.mxu0 0
        %5194 = vmatprep.mubr.bf16.mxu0 0
        %5195 = vmatmul.mubr.bf16.gmra.mrb[0].mxu0 %v5157
        %v5196 = vpop.f32.mrb[0].mxu0
        %v5197 = vadd.f32 0.0, %v5196
        %v5198 = vpop.f32.mrb[0].mxu0
        %v5199 = vpop.f32.mrb[0].mxu0
        %v5200 = vpop.f32.mrb[0].mxu0
        %5201 = vdwg.mxu0
        %v5202 = vshrl.u32 %v4932, 16
        %v5204 = vshll.u32 %v4932, 16
        %v5206 = vrot.slane %v5204, 1
        %v5207 = vor.u32 %v5202, %v5206
        %v5211 = vunpack.c.l.b16 %v5138
        %v5212 = vunpack.c.l.b16 %v5139
        %v5213 = vunpack.c.l.b16 %v5140
        %v5214 = vpack.c.b16 %v5212, %v5211
        %v5215 = vpack.c.b16 %v5213, %v5213
        %v5218 = vsel %vm4948, %v5207, 0
        %v5221 = vsel %vm1760, %v5215, 0
        %5223 = vmatprep.subr.bf16.mxu0 0
        %5224 = vmatpush1.bf16.msra.mxu0 %v5214
        %5225 = vmatprep.subr.bf16.mxu0 0
        %5226 = vmatpush1.bf16.msra.mxu0 %v5221
        %5227 = vmatprep.subr.bf16.mxu0 0
        %5228 = vmatpush1.bf16.msra.mxu0 0
        %5229 = vmatprep.subr.bf16.mxu0 0
        %5230 = vmatpush1.bf16.msra.mxu0 0
        %5231 = vmatprep.subr.bf16.mxu0 0
        %5232 = vmatpush1.bf16.msra.mxu0 0
        %5233 = vmatprep.subr.bf16.mxu0 0
        %5234 = vmatpush1.bf16.msra.mxu0 0
        %5235 = vmatprep.subr.bf16.mxu0 0
        %5236 = vmatpush1.bf16.msra.mxu0 0
        %5237 = vmatprep.subr.bf16.mxu0 0
        %5238 = vmatpush1.bf16.msra.mxu0 0
        %5239 = vmatprep.subr.bf16.mxu0 0
        %5240 = vmatpush1.bf16.msra.mxu0 0
        %5241 = vmatprep.subr.bf16.mxu0 0
        %5242 = vmatpush1.bf16.msra.mxu0 0
        %5243 = vmatprep.subr.bf16.mxu0 0
        %5244 = vmatpush1.bf16.msra.mxu0 0
        %5245 = vmatprep.subr.bf16.mxu0 0
        %5246 = vmatpush1.bf16.msra.mxu0 0
        %5247 = vmatprep.subr.bf16.mxu0 0
        %5248 = vmatpush1.bf16.msra.mxu0 0
        %5249 = vmatprep.subr.bf16.mxu0 0
        %5250 = vmatpush1.bf16.msra.mxu0 0
        %5251 = vmatprep.subr.bf16.mxu0 0
        %5252 = vmatpush1.bf16.msra.mxu0 0
        %5253 = vmatprep.subr.bf16.mxu0 0
        %5254 = vmatpush1.bf16.msra.mxu0 0
        %5255 = vmatprep.mubr.bf16.mxu0 0
        %5256 = vmatmul.mubr.bf16.gmra.mrb[0].mxu0 %v5218
        %v5257 = vpop.f32.mrb[0].mxu0
        %v5258 = vadd.f32 0.0, %v5257
        %v5259 = vpop.f32.mrb[0].mxu0
        %v5260 = vpop.f32.mrb[0].mxu0
        %v5261 = vpop.f32.mrb[0].mxu0
        %5262 = vdwg.mxu0
        %5263 = vmatprep.subr.bf16.mxu0 0
        %5264 = vmatpush1.bf16.msra.mxu0 %v5153
        %5265 = vmatprep.subr.bf16.mxu0 0
        %5266 = vmatpush1.bf16.msra.mxu0 %v5160
        %5267 = vmatprep.subr.bf16.mxu0 0
        %5268 = vmatpush1.bf16.msra.mxu0 0
        %5269 = vmatprep.subr.bf16.mxu0 0
        %5270 = vmatpush1.bf16.msra.mxu0 0
        %5271 = vmatprep.subr.bf16.mxu0 0
        %5272 = vmatpush1.bf16.msra.mxu0 0
        %5273 = vmatprep.subr.bf16.mxu0 0
        %5274 = vmatpush1.bf16.msra.mxu0 0
        %5275 = vmatprep.subr.bf16.mxu0 0
        %5276 = vmatpush1.bf16.msra.mxu0 0
        %5277 = vmatprep.subr.bf16.mxu0 0
        %5278 = vmatpush1.bf16.msra.mxu0 0
        %5279 = vmatprep.subr.bf16.mxu0 0
        %5280 = vmatpush1.bf16.msra.mxu0 0
        %5281 = vmatprep.subr.bf16.mxu0 0
        %5282 = vmatpush1.bf16.msra.mxu0 0
        %5283 = vmatprep.subr.bf16.mxu0 0
        %5284 = vmatpush1.bf16.msra.mxu0 0
        %5285 = vmatprep.subr.bf16.mxu0 0
        %5286 = vmatpush1.bf16.msra.mxu0 0
        %5287 = vmatprep.subr.bf16.mxu0 0
        %5288 = vmatpush1.bf16.msra.mxu0 0
        %5289 = vmatprep.subr.bf16.mxu0 0
        %5290 = vmatpush1.bf16.msra.mxu0 0
        %5291 = vmatprep.subr.bf16.mxu0 0
        %5292 = vmatpush1.bf16.msra.mxu0 0
        %5293 = vmatprep.subr.bf16.mxu0 0
        %5294 = vmatpush1.bf16.msra.mxu0 0
        %5295 = vmatprep.mubr.bf16.mxu0 0
        %5296 = vmatmul.mubr.bf16.gmra.mrb[0].mxu0 %v5218
        %v5297 = vpop.f32.mrb[0].mxu0
        %v5298 = vadd.f32 0.0, %v5297
        %v5299 = vpop.f32.mrb[0].mxu0
        %v5300 = vpop.f32.mrb[0].mxu0
        %v5301 = vpop.f32.mrb[0].mxu0
        %5302 = vdwg.mxu0
        %v5303 = vsub.f32 %v5197, %v5258
        %5304 = vmatprep.subr.bf16.mxu0 0
        %5305 = vmatpush1.bf16.msra.mxu0 %v5214
        %5306 = vmatprep.subr.bf16.mxu0 0
        %5307 = vmatpush1.bf16.msra.mxu0 %v5221
        %5308 = vmatprep.subr.bf16.mxu0 0
        %5309 = vmatpush1.bf16.msra.mxu0 0
        %5310 = vmatprep.subr.bf16.mxu0 0
        %5311 = vmatpush1.bf16.msra.mxu0 0
        %5312 = vmatprep.subr.bf16.mxu0 0
        %5313 = vmatpush1.bf16.msra.mxu0 0
        %5314 = vmatprep.subr.bf16.mxu0 0
        %5315 = vmatpush1.bf16.msra.mxu0 0
        %5316 = vmatprep.subr.bf16.mxu0 0
        %5317 = vmatpush1.bf16.msra.mxu0 0
        %5318 = vmatprep.subr.bf16.mxu0 0
        %5319 = vmatpush1.bf16.msra.mxu0 0
        %5320 = vmatprep.subr.bf16.mxu0 0
        %5321 = vmatpush1.bf16.msra.mxu0 0
        %5322 = vmatprep.subr.bf16.mxu0 0
        %5323 = vmatpush1.bf16.msra.mxu0 0
        %5324 = vmatprep.subr.bf16.mxu0 0
        %5325 = vmatpush1.bf16.msra.mxu0 0
        %5326 = vmatprep.subr.bf16.mxu0 0
        %5327 = vmatpush1.bf16.msra.mxu0 0
        %5328 = vmatprep.subr.bf16.mxu0 0
        %5329 = vmatpush1.bf16.msra.mxu0 0
        %5330 = vmatprep.subr.bf16.mxu0 0
        %5331 = vmatpush1.bf16.msra.mxu0 0
        %5332 = vmatprep.subr.bf16.mxu0 0
        %5333 = vmatpush1.bf16.msra.mxu0 0
        %5334 = vmatprep.subr.bf16.mxu0 0
        %5335 = vmatpush1.bf16.msra.mxu0 0
        %5336 = vmatprep.mubr.bf16.mxu0 0
        %5337 = vmatmul.mubr.bf16.gmra.mrb[0].mxu0 %v5157
        %v5338 = vpop.f32.mrb[0].mxu0
        %v5339 = vadd.f32 %v5298, %v5338
        %v5340 = vpop.f32.mrb[0].mxu0
        %v5341 = vpop.f32.mrb[0].mxu0
        %v5342 = vpop.f32.mrb[0].mxu0
        %5343 = vdwg.mxu0
        %v5344 = vadd.f32 %v5131, %v5303
        %v5345 = vadd.f32 %v5132, %v5339
        %s5346 = scalar_lea.vmem %s49, 24
        %v5347 = vld [vmem:[%s5346] sm:$0xf]
        %v5348 = vld [vmem:[%s5346 + $0x4] sm:$0xf]
        %v5349 = vld [vmem:[%s5346 + $0x8] sm:$0xf]
        %s5350 = scalar_lea.vmem %s51, 24
        %v5351 = vld [vmem:[%s5350] sm:$0xf]
        %v5352 = vld [vmem:[%s5350 + $0x4] sm:$0xf]
        %v5353 = vld [vmem:[%s5350 + $0x8] sm:$0xf]
        %v5355 = vrot.slane %v4922, 1
        %v5359 = vunpack.c.l.b16 %v5347
        %v5360 = vunpack.c.l.b16 %v5348
        %v5361 = vunpack.c.l.b16 %v5349
        %v5362 = vpack.c.b16 %v5360, %v5359
        %v5363 = vpack.c.b16 %v5361, %v5361
        %v5366 = vsel %vm4948, %v5355, 0
        %v5369 = vsel %vm1760, %v5363, 0
        %5371 = vmatprep.subr.bf16.mxu0 0
        %5372 = vmatpush1.bf16.msra.mxu0 %v5362
        %5373 = vmatprep.subr.bf16.mxu0 0
        %5374 = vmatpush1.bf16.msra.mxu0 %v5369
        %5375 = vmatprep.subr.bf16.mxu0 0
        %5376 = vmatpush1.bf16.msra.mxu0 0
        %5377 = vmatprep.subr.bf16.mxu0 0
        %5378 = vmatpush1.bf16.msra.mxu0 0
        %5379 = vmatprep.subr.bf16.mxu0 0
        %5380 = vmatpush1.bf16.msra.mxu0 0
        %5381 = vmatprep.subr.bf16.mxu0 0
        %5382 = vmatpush1.bf16.msra.mxu0 0
        %5383 = vmatprep.subr.bf16.mxu0 0
        %5384 = vmatpush1.bf16.msra.mxu0 0
        %5385 = vmatprep.subr.bf16.mxu0 0
        %5386 = vmatpush1.bf16.msra.mxu0 0
        %5387 = vmatprep.subr.bf16.mxu0 0
        %5388 = vmatpush1.bf16.msra.mxu0 0
        %5389 = vmatprep.subr.bf16.mxu0 0
        %5390 = vmatpush1.bf16.msra.mxu0 0
        %5391 = vmatprep.subr.bf16.mxu0 0
        %5392 = vmatpush1.bf16.msra.mxu0 0
        %5393 = vmatprep.subr.bf16.mxu0 0
        %5394 = vmatpush1.bf16.msra.mxu0 0
        %5395 = vmatprep.subr.bf16.mxu0 0
        %5396 = vmatpush1.bf16.msra.mxu0 0
        %5397 = vmatprep.subr.bf16.mxu0 0
        %5398 = vmatpush1.bf16.msra.mxu0 0
        %5399 = vmatprep.subr.bf16.mxu0 0
        %5400 = vmatpush1.bf16.msra.mxu0 0
        %5401 = vmatprep.subr.bf16.mxu0 0
        %5402 = vmatpush1.bf16.msra.mxu0 0
        %5403 = vmatprep.mubr.bf16.mxu0 0
        %5404 = vmatmul.mubr.bf16.gmra.mrb[0].mxu0 %v5366
        %v5405 = vpop.f32.mrb[0].mxu0
        %v5406 = vadd.f32 0.0, %v5405
        %v5407 = vpop.f32.mrb[0].mxu0
        %v5408 = vpop.f32.mrb[0].mxu0
        %v5409 = vpop.f32.mrb[0].mxu0
        %5410 = vdwg.mxu0
        %v5412 = vrot.slane %v4932, 1
        %v5416 = vunpack.c.l.b16 %v5351
        %v5417 = vunpack.c.l.b16 %v5352
        %v5418 = vunpack.c.l.b16 %v5353
        %v5419 = vpack.c.b16 %v5417, %v5416
        %v5420 = vpack.c.b16 %v5418, %v5418
        %v5423 = vsel %vm4948, %v5412, 0
        %v5426 = vsel %vm1760, %v5420, 0
        %5428 = vmatprep.subr.bf16.mxu0 0
        %5429 = vmatpush1.bf16.msra.mxu0 %v5419
        %5430 = vmatprep.subr.bf16.mxu0 0
        %5431 = vmatpush1.bf16.msra.mxu0 %v5426
        %5432 = vmatprep.subr.bf16.mxu0 0
        %5433 = vmatpush1.bf16.msra.mxu0 0
        %5434 = vmatprep.subr.bf16.mxu0 0
        %5435 = vmatpush1.bf16.msra.mxu0 0
        %5436 = vmatprep.subr.bf16.mxu0 0
        %5437 = vmatpush1.bf16.msra.mxu0 0
        %5438 = vmatprep.subr.bf16.mxu0 0
        %5439 = vmatpush1.bf16.msra.mxu0 0
        %5440 = vmatprep.subr.bf16.mxu0 0
        %5441 = vmatpush1.bf16.msra.mxu0 0
        %5442 = vmatprep.subr.bf16.mxu0 0
        %5443 = vmatpush1.bf16.msra.mxu0 0
        %5444 = vmatprep.subr.bf16.mxu0 0
        %5445 = vmatpush1.bf16.msra.mxu0 0
        %5446 = vmatprep.subr.bf16.mxu0 0
        %5447 = vmatpush1.bf16.msra.mxu0 0
        %5448 = vmatprep.subr.bf16.mxu0 0
        %5449 = vmatpush1.bf16.msra.mxu0 0
        %5450 = vmatprep.subr.bf16.mxu0 0
        %5451 = vmatpush1.bf16.msra.mxu0 0
        %5452 = vmatprep.subr.bf16.mxu0 0
        %5453 = vmatpush1.bf16.msra.mxu0 0
        %5454 = vmatprep.subr.bf16.mxu0 0
        %5455 = vmatpush1.bf16.msra.mxu0 0
        %5456 = vmatprep.subr.bf16.mxu0 0
        %5457 = vmatpush1.bf16.msra.mxu0 0
        %5458 = vmatprep.subr.bf16.mxu0 0
        %5459 = vmatpush1.bf16.msra.mxu0 0
        %5460 = vmatprep.mubr.bf16.mxu0 0
        %5461 = vmatmul.mubr.bf16.gmra.mrb[0].mxu0 %v5423
        %v5462 = vpop.f32.mrb[0].mxu0
        %v5463 = vadd.f32 0.0, %v5462
        %v5464 = vpop.f32.mrb[0].mxu0
        %v5465 = vpop.f32.mrb[0].mxu0
        %v5466 = vpop.f32.mrb[0].mxu0
        %5467 = vdwg.mxu0
        %5468 = vmatprep.subr.bf16.mxu0 0
        %5469 = vmatpush1.bf16.msra.mxu0 %v5362
        %5470 = vmatprep.subr.bf16.mxu0 0
        %5471 = vmatpush1.bf16.msra.mxu0 %v5369
        %5472 = vmatprep.subr.bf16.mxu0 0
        %5473 = vmatpush1.bf16.msra.mxu0 0
        %5474 = vmatprep.subr.bf16.mxu0 0
        %5475 = vmatpush1.bf16.msra.mxu0 0
        %5476 = vmatprep.subr.bf16.mxu0 0
        %5477 = vmatpush1.bf16.msra.mxu0 0
        %5478 = vmatprep.subr.bf16.mxu0 0
        %5479 = vmatpush1.bf16.msra.mxu0 0
        %5480 = vmatprep.subr.bf16.mxu0 0
        %5481 = vmatpush1.bf16.msra.mxu0 0
        %5482 = vmatprep.subr.bf16.mxu0 0
        %5483 = vmatpush1.bf16.msra.mxu0 0
        %5484 = vmatprep.subr.bf16.mxu0 0
        %5485 = vmatpush1.bf16.msra.mxu0 0
        %5486 = vmatprep.subr.bf16.mxu0 0
        %5487 = vmatpush1.bf16.msra.mxu0 0
        %5488 = vmatprep.subr.bf16.mxu0 0
        %5489 = vmatpush1.bf16.msra.mxu0 0
        %5490 = vmatprep.subr.bf16.mxu0 0
        %5491 = vmatpush1.bf16.msra.mxu0 0
        %5492 = vmatprep.subr.bf16.mxu0 0
        %5493 = vmatpush1.bf16.msra.mxu0 0
        %5494 = vmatprep.subr.bf16.mxu0 0
        %5495 = vmatpush1.bf16.msra.mxu0 0
        %5496 = vmatprep.subr.bf16.mxu0 0
        %5497 = vmatpush1.bf16.msra.mxu0 0
        %5498 = vmatprep.subr.bf16.mxu0 0
        %5499 = vmatpush1.bf16.msra.mxu0 0
        %5500 = vmatprep.mubr.bf16.mxu0 0
        %5501 = vmatmul.mubr.bf16.gmra.mrb[0].mxu0 %v5423
        %v5502 = vpop.f32.mrb[0].mxu0
        %v5503 = vadd.f32 0.0, %v5502
        %v5504 = vpop.f32.mrb[0].mxu0
        %v5505 = vpop.f32.mrb[0].mxu0
        %v5506 = vpop.f32.mrb[0].mxu0
        %5507 = vdwg.mxu0
        %v5508 = vsub.f32 %v5406, %v5463
        %5509 = vmatprep.subr.bf16.mxu0 0
        %5510 = vmatpush1.bf16.msra.mxu0 %v5419
        %5511 = vmatprep.subr.bf16.mxu0 0
        %5512 = vmatpush1.bf16.msra.mxu0 %v5426
        %5513 = vmatprep.subr.bf16.mxu0 0
        %5514 = vmatpush1.bf16.msra.mxu0 0
        %5515 = vmatprep.subr.bf16.mxu0 0
        %5516 = vmatpush1.bf16.msra.mxu0 0
        %5517 = vmatprep.subr.bf16.mxu0 0
        %5518 = vmatpush1.bf16.msra.mxu0 0
        %5519 = vmatprep.subr.bf16.mxu0 0
        %5520 = vmatpush1.bf16.msra.mxu0 0
        %5521 = vmatprep.subr.bf16.mxu0 0
        %5522 = vmatpush1.bf16.msra.mxu0 0
        %5523 = vmatprep.subr.bf16.mxu0 0
        %5524 = vmatpush1.bf16.msra.mxu0 0
        %5525 = vmatprep.subr.bf16.mxu0 0
        %5526 = vmatpush1.bf16.msra.mxu0 0
        %5527 = vmatprep.subr.bf16.mxu0 0
        %5528 = vmatpush1.bf16.msra.mxu0 0
        %5529 = vmatprep.subr.bf16.mxu0 0
        %5530 = vmatpush1.bf16.msra.mxu0 0
        %5531 = vmatprep.subr.bf16.mxu0 0
        %5532 = vmatpush1.bf16.msra.mxu0 0
        %5533 = vmatprep.subr.bf16.mxu0 0
        %5534 = vmatpush1.bf16.msra.mxu0 0
        %5535 = vmatprep.subr.bf16.mxu0 0
        %5536 = vmatpush1.bf16.msra.mxu0 0
        %5537 = vmatprep.subr.bf16.mxu0 0
        %5538 = vmatpush1.bf16.msra.mxu0 0
        %5539 = vmatprep.subr.bf16.mxu0 0
        %5540 = vmatpush1.bf16.msra.mxu0 0
        %5541 = vmatprep.mubr.bf16.mxu0 0
        %5542 = vmatmul.mubr.bf16.gmra.mrb[0].mxu0 %v5366
        %v5543 = vpop.f32.mrb[0].mxu0
        %v5544 = vadd.f32 %v5503, %v5543
        %v5545 = vpop.f32.mrb[0].mxu0
        %v5546 = vpop.f32.mrb[0].mxu0
        %v5547 = vpop.f32.mrb[0].mxu0
        %5548 = vdwg.mxu0
        %v5549 = vadd.f32 %v5344, %v5508
        %v5550 = vadd.f32 %v5345, %v5544
        %v5551 = vld [vmem:[%s53] sm:$0x1]
        %v5553 = vlaneseq
        %v5554 = vshrl.u32 %v5553, 7
        %v5555 = vsub.s32 0, %v5554
        %v5556 = vrot.slane %v5551, %v5555
        %v5558 = vadd.f32 %v5549, %v5556
        %v5559 = vld [vmem:[%s55] sm:$0x1]
        %v5561 = vlaneseq
        %v5562 = vshrl.u32 %v5561, 7
        %v5563 = vsub.s32 0, %v5562
        %v5564 = vrot.slane %v5559, %v5563
        %v5566 = vadd.f32 %v5550, %v5564
        %v5567 = vmul.f32 %v5558, %v5558
        %v5568 = vmul.f32 %v5566, %v5566
        %v5569 = vadd.f32 %v5567, %v5568
        %v5570 = vmax.f32 %v5569, 1e-10
        %v5571 = vrsqrt.pop %v5570
        %v5572 = vmul.f32 %v5571, 0.5
        %v5573 = vsub.f32 1.0, %v5572
        %v5574 = vmax.f32 %v5573, 0.0
        %v5575 = vmul.f32 %v5558, %v5574
        %v5576 = vmul.f32 %v5566, %v5574
        %v5577 = vpack.c.bf16 %v5575, %v5575
        %v5578 = vpack.c.bf16 %v5576, %v5576
        %v5580 = vshrl.u32 %v5577, 16
        %v5582 = vrot.slane %v5580, 7
        %v5583 = vshll.u32 %v5577, 16
        %v5585 = vor.u32 %v5582, %v5583
        %v5587 = vsel %vm4294, 0, %v5585
        %v5588 = vsel %vm4298, %v5587, 0
        %v5590 = vshrl.u32 %v5578, 16
        %v5592 = vrot.slane %v5590, 7
        %v5593 = vshll.u32 %v5578, 16
        %v5595 = vor.u32 %v5592, %v5593
        %v5597 = vsel %vm4294, 0, %v5595
        %v5598 = vsel %vm4298, %v5597, 0
        %v5599 = vld [vmem:[%s57] sm:$0xf]
        %v5600 = vld [vmem:[%s57 + $0x4] sm:$0xf]
        %v5601 = vld [vmem:[%s57 + $0x8] sm:$0xf]
        %v5602 = vld [vmem:[%s59] sm:$0xf]
        %v5603 = vld [vmem:[%s59 + $0x4] sm:$0xf]
        %v5604 = vld [vmem:[%s59 + $0x8] sm:$0xf]
        %v5608 = vunpack.c.l.b16 %v5599
        %v5609 = vunpack.c.l.b16 %v5600
        %v5610 = vunpack.c.l.b16 %v5601
        %v5611 = vpack.c.b16 %v5609, %v5608
        %v5612 = vpack.c.b16 %v5610, %v5610
        %v5615 = vsel %vm4948, %v5588, 0
        %v5618 = vsel %vm1760, %v5612, 0
        %5620 = vmatprep.subr.bf16.mxu0 0
        %5621 = vmatpush1.bf16.msra.mxu0 %v5611
        %5622 = vmatprep.subr.bf16.mxu0 0
        %5623 = vmatpush1.bf16.msra.mxu0 %v5618
        %5624 = vmatprep.subr.bf16.mxu0 0
        %5625 = vmatpush1.bf16.msra.mxu0 0
        %5626 = vmatprep.subr.bf16.mxu0 0
        %5627 = vmatpush1.bf16.msra.mxu0 0
        %5628 = vmatprep.subr.bf16.mxu0 0
        %5629 = vmatpush1.bf16.msra.mxu0 0
        %5630 = vmatprep.subr.bf16.mxu0 0
        %5631 = vmatpush1.bf16.msra.mxu0 0
        %5632 = vmatprep.subr.bf16.mxu0 0
        %5633 = vmatpush1.bf16.msra.mxu0 0
        %5634 = vmatprep.subr.bf16.mxu0 0
        %5635 = vmatpush1.bf16.msra.mxu0 0
        %5636 = vmatprep.subr.bf16.mxu0 0
        %5637 = vmatpush1.bf16.msra.mxu0 0
        %5638 = vmatprep.subr.bf16.mxu0 0
        %5639 = vmatpush1.bf16.msra.mxu0 0
        %5640 = vmatprep.subr.bf16.mxu0 0
        %5641 = vmatpush1.bf16.msra.mxu0 0
        %5642 = vmatprep.subr.bf16.mxu0 0
        %5643 = vmatpush1.bf16.msra.mxu0 0
        %5644 = vmatprep.subr.bf16.mxu0 0
        %5645 = vmatpush1.bf16.msra.mxu0 0
        %5646 = vmatprep.subr.bf16.mxu0 0
        %5647 = vmatpush1.bf16.msra.mxu0 0
        %5648 = vmatprep.subr.bf16.mxu0 0
        %5649 = vmatpush1.bf16.msra.mxu0 0
        %5650 = vmatprep.subr.bf16.mxu0 0
        %5651 = vmatpush1.bf16.msra.mxu0 0
        %5652 = vmatprep.mubr.bf16.mxu0 0
        %5653 = vmatmul.mubr.bf16.gmra.mrb[0].mxu0 %v5615
        %v5654 = vpop.f32.mrb[0].mxu0
        %v5655 = vadd.f32 0.0, %v5654
        %v5656 = vpop.f32.mrb[0].mxu0
        %v5657 = vpop.f32.mrb[0].mxu0
        %v5658 = vpop.f32.mrb[0].mxu0
        %5659 = vdwg.mxu0
        %v5663 = vunpack.c.l.b16 %v5602
        %v5664 = vunpack.c.l.b16 %v5603
        %v5665 = vunpack.c.l.b16 %v5604
        %v5666 = vpack.c.b16 %v5664, %v5663
        %v5667 = vpack.c.b16 %v5665, %v5665
        %v5670 = vsel %vm4948, %v5598, 0
        %v5673 = vsel %vm1760, %v5667, 0
        %5675 = vmatprep.subr.bf16.mxu0 0
        %5676 = vmatpush1.bf16.msra.mxu0 %v5666
        %5677 = vmatprep.subr.bf16.mxu0 0
        %5678 = vmatpush1.bf16.msra.mxu0 %v5673
        %5679 = vmatprep.subr.bf16.mxu0 0
        %5680 = vmatpush1.bf16.msra.mxu0 0
        %5681 = vmatprep.subr.bf16.mxu0 0
        %5682 = vmatpush1.bf16.msra.mxu0 0
        %5683 = vmatprep.subr.bf16.mxu0 0
        %5684 = vmatpush1.bf16.msra.mxu0 0
        %5685 = vmatprep.subr.bf16.mxu0 0
        %5686 = vmatpush1.bf16.msra.mxu0 0
        %5687 = vmatprep.subr.bf16.mxu0 0
        %5688 = vmatpush1.bf16.msra.mxu0 0
        %5689 = vmatprep.subr.bf16.mxu0 0
        %5690 = vmatpush1.bf16.msra.mxu0 0
        %5691 = vmatprep.subr.bf16.mxu0 0
        %5692 = vmatpush1.bf16.msra.mxu0 0
        %5693 = vmatprep.subr.bf16.mxu0 0
        %5694 = vmatpush1.bf16.msra.mxu0 0
        %5695 = vmatprep.subr.bf16.mxu0 0
        %5696 = vmatpush1.bf16.msra.mxu0 0
        %5697 = vmatprep.subr.bf16.mxu0 0
        %5698 = vmatpush1.bf16.msra.mxu0 0
        %5699 = vmatprep.subr.bf16.mxu0 0
        %5700 = vmatpush1.bf16.msra.mxu0 0
        %5701 = vmatprep.subr.bf16.mxu0 0
        %5702 = vmatpush1.bf16.msra.mxu0 0
        %5703 = vmatprep.subr.bf16.mxu0 0
        %5704 = vmatpush1.bf16.msra.mxu0 0
        %5705 = vmatprep.subr.bf16.mxu0 0
        %5706 = vmatpush1.bf16.msra.mxu0 0
        %5707 = vmatprep.mubr.bf16.mxu0 0
        %5708 = vmatmul.mubr.bf16.gmra.mrb[0].mxu0 %v5670
        %v5709 = vpop.f32.mrb[0].mxu0
        %v5710 = vadd.f32 0.0, %v5709
        %v5711 = vpop.f32.mrb[0].mxu0
        %v5712 = vpop.f32.mrb[0].mxu0
        %v5713 = vpop.f32.mrb[0].mxu0
        %5714 = vdwg.mxu0
        %5715 = vmatprep.subr.bf16.mxu0 0
        %5716 = vmatpush1.bf16.msra.mxu0 %v5611
        %5717 = vmatprep.subr.bf16.mxu0 0
        %5718 = vmatpush1.bf16.msra.mxu0 %v5618
        %5719 = vmatprep.subr.bf16.mxu0 0
        %5720 = vmatpush1.bf16.msra.mxu0 0
        %5721 = vmatprep.subr.bf16.mxu0 0
        %5722 = vmatpush1.bf16.msra.mxu0 0
        %5723 = vmatprep.subr.bf16.mxu0 0
        %5724 = vmatpush1.bf16.msra.mxu0 0
        %5725 = vmatprep.subr.bf16.mxu0 0
        %5726 = vmatpush1.bf16.msra.mxu0 0
        %5727 = vmatprep.subr.bf16.mxu0 0
        %5728 = vmatpush1.bf16.msra.mxu0 0
        %5729 = vmatprep.subr.bf16.mxu0 0
        %5730 = vmatpush1.bf16.msra.mxu0 0
        %5731 = vmatprep.subr.bf16.mxu0 0
        %5732 = vmatpush1.bf16.msra.mxu0 0
        %5733 = vmatprep.subr.bf16.mxu0 0
        %5734 = vmatpush1.bf16.msra.mxu0 0
        %5735 = vmatprep.subr.bf16.mxu0 0
        %5736 = vmatpush1.bf16.msra.mxu0 0
        %5737 = vmatprep.subr.bf16.mxu0 0
        %5738 = vmatpush1.bf16.msra.mxu0 0
        %5739 = vmatprep.subr.bf16.mxu0 0
        %5740 = vmatpush1.bf16.msra.mxu0 0
        %5741 = vmatprep.subr.bf16.mxu0 0
        %5742 = vmatpush1.bf16.msra.mxu0 0
        %5743 = vmatprep.subr.bf16.mxu0 0
        %5744 = vmatpush1.bf16.msra.mxu0 0
        %5745 = vmatprep.subr.bf16.mxu0 0
        %5746 = vmatpush1.bf16.msra.mxu0 0
        %5747 = vmatprep.mubr.bf16.mxu0 0
        %5748 = vmatmul.mubr.bf16.gmra.mrb[0].mxu0 %v5670
        %v5749 = vpop.f32.mrb[0].mxu0
        %v5750 = vadd.f32 0.0, %v5749
        %v5751 = vpop.f32.mrb[0].mxu0
        %v5752 = vpop.f32.mrb[0].mxu0
        %v5753 = vpop.f32.mrb[0].mxu0
        %5754 = vdwg.mxu0
        %v5755 = vsub.f32 %v5655, %v5710
        %5756 = vmatprep.subr.bf16.mxu0 0
        %5757 = vmatpush1.bf16.msra.mxu0 %v5666
        %5758 = vmatprep.subr.bf16.mxu0 0
        %5759 = vmatpush1.bf16.msra.mxu0 %v5673
        %5760 = vmatprep.subr.bf16.mxu0 0
        %5761 = vmatpush1.bf16.msra.mxu0 0
        %5762 = vmatprep.subr.bf16.mxu0 0
        %5763 = vmatpush1.bf16.msra.mxu0 0
        %5764 = vmatprep.subr.bf16.mxu0 0
        %5765 = vmatpush1.bf16.msra.mxu0 0
        %5766 = vmatprep.subr.bf16.mxu0 0
        %5767 = vmatpush1.bf16.msra.mxu0 0
        %5768 = vmatprep.subr.bf16.mxu0 0
        %5769 = vmatpush1.bf16.msra.mxu0 0
        %5770 = vmatprep.subr.bf16.mxu0 0
        %5771 = vmatpush1.bf16.msra.mxu0 0
        %5772 = vmatprep.subr.bf16.mxu0 0
        %5773 = vmatpush1.bf16.msra.mxu0 0
        %5774 = vmatprep.subr.bf16.mxu0 0
        %5775 = vmatpush1.bf16.msra.mxu0 0
        %5776 = vmatprep.subr.bf16.mxu0 0
        %5777 = vmatpush1.bf16.msra.mxu0 0
        %5778 = vmatprep.subr.bf16.mxu0 0
        %5779 = vmatpush1.bf16.msra.mxu0 0
        %5780 = vmatprep.subr.bf16.mxu0 0
        %5781 = vmatpush1.bf16.msra.mxu0 0
        %5782 = vmatprep.subr.bf16.mxu0 0
        %5783 = vmatpush1.bf16.msra.mxu0 0
        %5784 = vmatprep.subr.bf16.mxu0 0
        %5785 = vmatpush1.bf16.msra.mxu0 0
        %5786 = vmatprep.subr.bf16.mxu0 0
        %5787 = vmatpush1.bf16.msra.mxu0 0
        %5788 = vmatprep.mubr.bf16.mxu0 0
        %5789 = vmatmul.mubr.bf16.gmra.mrb[0].mxu0 %v5615
        %v5790 = vpop.f32.mrb[0].mxu0
        %v5791 = vadd.f32 %v5750, %v5790
        %v5792 = vpop.f32.mrb[0].mxu0
        %v5793 = vpop.f32.mrb[0].mxu0
        %v5794 = vpop.f32.mrb[0].mxu0
        %5795 = vdwg.mxu0
        %v5796 = vadd.f32 %v5755, 0.0
        %v5797 = vadd.f32 %v5791, 0.0
        %s5798 = scalar_lea.vmem %s57, 12
        %v5799 = vld [vmem:[%s5798] sm:$0xf]
        %v5800 = vld [vmem:[%s5798 + $0x4] sm:$0xf]
        %v5801 = vld [vmem:[%s5798 + $0x8] sm:$0xf]
        %s5802 = scalar_lea.vmem %s59, 12
        %v5803 = vld [vmem:[%s5802] sm:$0xf]
        %v5804 = vld [vmem:[%s5802 + $0x4] sm:$0xf]
        %v5805 = vld [vmem:[%s5802 + $0x8] sm:$0xf]
        %v5806 = vshrl.u32 %v5588, 16
        %v5808 = vshll.u32 %v5588, 16
        %v5810 = vrot.slane %v5808, 1
        %v5811 = vor.u32 %v5806, %v5810
        %v5815 = vunpack.c.l.b16 %v5799
        %v5816 = vunpack.c.l.b16 %v5800
        %v5817 = vunpack.c.l.b16 %v5801
        %v5818 = vpack.c.b16 %v5816, %v5815
        %v5819 = vpack.c.b16 %v5817, %v5817
        %v5822 = vsel %vm4948, %v5811, 0
        %v5825 = vsel %vm1760, %v5819, 0
        %5827 = vmatprep.subr.bf16.mxu0 0
        %5828 = vmatpush1.bf16.msra.mxu0 %v5818
        %5829 = vmatprep.subr.bf16.mxu0 0
        %5830 = vmatpush1.bf16.msra.mxu0 %v5825
        %5831 = vmatprep.subr.bf16.mxu0 0
        %5832 = vmatpush1.bf16.msra.mxu0 0
        %5833 = vmatprep.subr.bf16.mxu0 0
        %5834 = vmatpush1.bf16.msra.mxu0 0
        %5835 = vmatprep.subr.bf16.mxu0 0
        %5836 = vmatpush1.bf16.msra.mxu0 0
        %5837 = vmatprep.subr.bf16.mxu0 0
        %5838 = vmatpush1.bf16.msra.mxu0 0
        %5839 = vmatprep.subr.bf16.mxu0 0
        %5840 = vmatpush1.bf16.msra.mxu0 0
        %5841 = vmatprep.subr.bf16.mxu0 0
        %5842 = vmatpush1.bf16.msra.mxu0 0
        %5843 = vmatprep.subr.bf16.mxu0 0
        %5844 = vmatpush1.bf16.msra.mxu0 0
        %5845 = vmatprep.subr.bf16.mxu0 0
        %5846 = vmatpush1.bf16.msra.mxu0 0
        %5847 = vmatprep.subr.bf16.mxu0 0
        %5848 = vmatpush1.bf16.msra.mxu0 0
        %5849 = vmatprep.subr.bf16.mxu0 0
        %5850 = vmatpush1.bf16.msra.mxu0 0
        %5851 = vmatprep.subr.bf16.mxu0 0
        %5852 = vmatpush1.bf16.msra.mxu0 0
        %5853 = vmatprep.subr.bf16.mxu0 0
        %5854 = vmatpush1.bf16.msra.mxu0 0
        %5855 = vmatprep.subr.bf16.mxu0 0
        %5856 = vmatpush1.bf16.msra.mxu0 0
        %5857 = vmatprep.subr.bf16.mxu0 0
        %5858 = vmatpush1.bf16.msra.mxu0 0
        %5859 = vmatprep.mubr.bf16.mxu0 0
        %5860 = vmatmul.mubr.bf16.gmra.mrb[0].mxu0 %v5822
        %v5861 = vpop.f32.mrb[0].mxu0
        %v5862 = vadd.f32 0.0, %v5861
        %v5863 = vpop.f32.mrb[0].mxu0
        %v5864 = vpop.f32.mrb[0].mxu0
        %v5865 = vpop.f32.mrb[0].mxu0
        %5866 = vdwg.mxu0
        %v5867 = vshrl.u32 %v5598, 16
        %v5869 = vshll.u32 %v5598, 16
        %v5871 = vrot.slane %v5869, 1
        %v5872 = vor.u32 %v5867, %v5871
        %v5876 = vunpack.c.l.b16 %v5803
        %v5877 = vunpack.c.l.b16 %v5804
        %v5878 = vunpack.c.l.b16 %v5805
        %v5879 = vpack.c.b16 %v5877, %v5876
        %v5880 = vpack.c.b16 %v5878, %v5878
        %v5883 = vsel %vm4948, %v5872, 0
        %v5886 = vsel %vm1760, %v5880, 0
        %5888 = vmatprep.subr.bf16.mxu0 0
        %5889 = vmatpush1.bf16.msra.mxu0 %v5879
        %5890 = vmatprep.subr.bf16.mxu0 0
        %5891 = vmatpush1.bf16.msra.mxu0 %v5886
        %5892 = vmatprep.subr.bf16.mxu0 0
        %5893 = vmatpush1.bf16.msra.mxu0 0
        %5894 = vmatprep.subr.bf16.mxu0 0
        %5895 = vmatpush1.bf16.msra.mxu0 0
        %5896 = vmatprep.subr.bf16.mxu0 0
        %5897 = vmatpush1.bf16.msra.mxu0 0
        %5898 = vmatprep.subr.bf16.mxu0 0
        %5899 = vmatpush1.bf16.msra.mxu0 0
        %5900 = vmatprep.subr.bf16.mxu0 0
        %5901 = vmatpush1.bf16.msra.mxu0 0
        %5902 = vmatprep.subr.bf16.mxu0 0
        %5903 = vmatpush1.bf16.msra.mxu0 0
        %5904 = vmatprep.subr.bf16.mxu0 0
        %5905 = vmatpush1.bf16.msra.mxu0 0
        %5906 = vmatprep.subr.bf16.mxu0 0
        %5907 = vmatpush1.bf16.msra.mxu0 0
        %5908 = vmatprep.subr.bf16.mxu0 0
        %5909 = vmatpush1.bf16.msra.mxu0 0
        %5910 = vmatprep.subr.bf16.mxu0 0
        %5911 = vmatpush1.bf16.msra.mxu0 0
        %5912 = vmatprep.subr.bf16.mxu0 0
        %5913 = vmatpush1.bf16.msra.mxu0 0
        %5914 = vmatprep.subr.bf16.mxu0 0
        %5915 = vmatpush1.bf16.msra.mxu0 0
        %5916 = vmatprep.subr.bf16.mxu0 0
        %5917 = vmatpush1.bf16.msra.mxu0 0
        %5918 = vmatprep.subr.bf16.mxu0 0
        %5919 = vmatpush1.bf16.msra.mxu0 0
        %5920 = vmatprep.mubr.bf16.mxu0 0
        %5921 = vmatmul.mubr.bf16.gmra.mrb[0].mxu0 %v5883
        %v5922 = vpop.f32.mrb[0].mxu0
        %v5923 = vadd.f32 0.0, %v5922
        %v5924 = vpop.f32.mrb[0].mxu0
        %v5925 = vpop.f32.mrb[0].mxu0
        %v5926 = vpop.f32.mrb[0].mxu0
        %5927 = vdwg.mxu0
        %5928 = vmatprep.subr.bf16.mxu0 0
        %5929 = vmatpush1.bf16.msra.mxu0 %v5818
        %5930 = vmatprep.subr.bf16.mxu0 0
        %5931 = vmatpush1.bf16.msra.mxu0 %v5825
        %5932 = vmatprep.subr.bf16.mxu0 0
        %5933 = vmatpush1.bf16.msra.mxu0 0
        %5934 = vmatprep.subr.bf16.mxu0 0
        %5935 = vmatpush1.bf16.msra.mxu0 0
        %5936 = vmatprep.subr.bf16.mxu0 0
        %5937 = vmatpush1.bf16.msra.mxu0 0
        %5938 = vmatprep.subr.bf16.mxu0 0
        %5939 = vmatpush1.bf16.msra.mxu0 0
        %5940 = vmatprep.subr.bf16.mxu0 0
        %5941 = vmatpush1.bf16.msra.mxu0 0
        %5942 = vmatprep.subr.bf16.mxu0 0
        %5943 = vmatpush1.bf16.msra.mxu0 0
        %5944 = vmatprep.subr.bf16.mxu0 0
        %5945 = vmatpush1.bf16.msra.mxu0 0
        %5946 = vmatprep.subr.bf16.mxu0 0
        %5947 = vmatpush1.bf16.msra.mxu0 0
        %5948 = vmatprep.subr.bf16.mxu0 0
        %5949 = vmatpush1.bf16.msra.mxu0 0
        %5950 = vmatprep.subr.bf16.mxu0 0
        %5951 = vmatpush1.bf16.msra.mxu0 0
        %5952 = vmatprep.subr.bf16.mxu0 0
        %5953 = vmatpush1.bf16.msra.mxu0 0
        %5954 = vmatprep.subr.bf16.mxu0 0
        %5955 = vmatpush1.bf16.msra.mxu0 0
        %5956 = vmatprep.subr.bf16.mxu0 0
        %5957 = vmatpush1.bf16.msra.mxu0 0
        %5958 = vmatprep.subr.bf16.mxu0 0
        %5959 = vmatpush1.bf16.msra.mxu0 0
        %5960 = vmatprep.mubr.bf16.mxu0 0
        %5961 = vmatmul.mubr.bf16.gmra.mrb[0].mxu0 %v5883
        %v5962 = vpop.f32.mrb[0].mxu0
        %v5963 = vadd.f32 0.0, %v5962
        %v5964 = vpop.f32.mrb[0].mxu0
        %v5965 = vpop.f32.mrb[0].mxu0
        %v5966 = vpop.f32.mrb[0].mxu0
        %5967 = vdwg.mxu0
        %v5968 = vsub.f32 %v5862, %v5923
        %5969 = vmatprep.subr.bf16.mxu0 0
        %5970 = vmatpush1.bf16.msra.mxu0 %v5879
        %5971 = vmatprep.subr.bf16.mxu0 0
        %5972 = vmatpush1.bf16.msra.mxu0 %v5886
        %5973 = vmatprep.subr.bf16.mxu0 0
        %5974 = vmatpush1.bf16.msra.mxu0 0
        %5975 = vmatprep.subr.bf16.mxu0 0
        %5976 = vmatpush1.bf16.msra.mxu0 0
        %5977 = vmatprep.subr.bf16.mxu0 0
        %5978 = vmatpush1.bf16.msra.mxu0 0
        %5979 = vmatprep.subr.bf16.mxu0 0
        %5980 = vmatpush1.bf16.msra.mxu0 0
        %5981 = vmatprep.subr.bf16.mxu0 0
        %5982 = vmatpush1.bf16.msra.mxu0 0
        %5983 = vmatprep.subr.bf16.mxu0 0
        %5984 = vmatpush1.bf16.msra.mxu0 0
        %5985 = vmatprep.subr.bf16.mxu0 0
        %5986 = vmatpush1.bf16.msra.mxu0 0
        %5987 = vmatprep.subr.bf16.mxu0 0
        %5988 = vmatpush1.bf16.msra.mxu0 0
        %5989 = vmatprep.subr.bf16.mxu0 0
        %5990 = vmatpush1.bf16.msra.mxu0 0
        %5991 = vmatprep.subr.bf16.mxu0 0
        %5992 = vmatpush1.bf16.msra.mxu0 0
        %5993 = vmatprep.subr.bf16.mxu0 0
        %5994 = vmatpush1.bf16.msra.mxu0 0
        %5995 = vmatprep.subr.bf16.mxu0 0
        %5996 = vmatpush1.bf16.msra.mxu0 0
        %5997 = vmatprep.subr.bf16.mxu0 0
        %5998 = vmatpush1.bf16.msra.mxu0 0
        %5999 = vmatprep.subr.bf16.mxu0 0
        %6000 = vmatpush1.bf16.msra.mxu0 0
        %6001 = vmatprep.mubr.bf16.mxu0 0
        %6002 = vmatmul.mubr.bf16.gmra.mrb[0].mxu0 %v5822
        %v6003 = vpop.f32.mrb[0].mxu0
        %v6004 = vadd.f32 %v5963, %v6003
        %v6005 = vpop.f32.mrb[0].mxu0
        %v6006 = vpop.f32.mrb[0].mxu0
        %v6007 = vpop.f32.mrb[0].mxu0
        %6008 = vdwg.mxu0
        %v6009 = vadd.f32 %v5796, %v5968
        %v6010 = vadd.f32 %v5797, %v6004
        %s6011 = scalar_lea.vmem %s57, 24
        %v6012 = vld [vmem:[%s6011] sm:$0xf]
        %v6013 = vld [vmem:[%s6011 + $0x4] sm:$0xf]
        %v6014 = vld [vmem:[%s6011 + $0x8] sm:$0xf]
        %s6015 = scalar_lea.vmem %s59, 24
        %v6016 = vld [vmem:[%s6015] sm:$0xf]
        %v6017 = vld [vmem:[%s6015 + $0x4] sm:$0xf]
        %v6018 = vld [vmem:[%s6015 + $0x8] sm:$0xf]
        %v6020 = vrot.slane %v5588, 1
        %v6024 = vunpack.c.l.b16 %v6012
        %v6025 = vunpack.c.l.b16 %v6013
        %v6026 = vunpack.c.l.b16 %v6014
        %v6027 = vpack.c.b16 %v6025, %v6024
        %v6028 = vpack.c.b16 %v6026, %v6026
        %v6031 = vsel %vm4948, %v6020, 0
        %v6034 = vsel %vm1760, %v6028, 0
        %6036 = vmatprep.subr.bf16.mxu0 0
        %6037 = vmatpush1.bf16.msra.mxu0 %v6027
        %6038 = vmatprep.subr.bf16.mxu0 0
        %6039 = vmatpush1.bf16.msra.mxu0 %v6034
        %6040 = vmatprep.subr.bf16.mxu0 0
        %6041 = vmatpush1.bf16.msra.mxu0 0
        %6042 = vmatprep.subr.bf16.mxu0 0
        %6043 = vmatpush1.bf16.msra.mxu0 0
        %6044 = vmatprep.subr.bf16.mxu0 0
        %6045 = vmatpush1.bf16.msra.mxu0 0
        %6046 = vmatprep.subr.bf16.mxu0 0
        %6047 = vmatpush1.bf16.msra.mxu0 0
        %6048 = vmatprep.subr.bf16.mxu0 0
        %6049 = vmatpush1.bf16.msra.mxu0 0
        %6050 = vmatprep.subr.bf16.mxu0 0
        %6051 = vmatpush1.bf16.msra.mxu0 0
        %6052 = vmatprep.subr.bf16.mxu0 0
        %6053 = vmatpush1.bf16.msra.mxu0 0
        %6054 = vmatprep.subr.bf16.mxu0 0
        %6055 = vmatpush1.bf16.msra.mxu0 0
        %6056 = vmatprep.subr.bf16.mxu0 0
        %6057 = vmatpush1.bf16.msra.mxu0 0
        %6058 = vmatprep.subr.bf16.mxu0 0
        %6059 = vmatpush1.bf16.msra.mxu0 0
        %6060 = vmatprep.subr.bf16.mxu0 0
        %6061 = vmatpush1.bf16.msra.mxu0 0
        %6062 = vmatprep.subr.bf16.mxu0 0
        %6063 = vmatpush1.bf16.msra.mxu0 0
        %6064 = vmatprep.subr.bf16.mxu0 0
        %6065 = vmatpush1.bf16.msra.mxu0 0
        %6066 = vmatprep.subr.bf16.mxu0 0
        %6067 = vmatpush1.bf16.msra.mxu0 0
        %6068 = vmatprep.mubr.bf16.mxu0 0
        %6069 = vmatmul.mubr.bf16.gmra.mrb[0].mxu0 %v6031
        %v6070 = vpop.f32.mrb[0].mxu0
        %v6071 = vadd.f32 0.0, %v6070
        %v6072 = vpop.f32.mrb[0].mxu0
        %v6073 = vpop.f32.mrb[0].mxu0
        %v6074 = vpop.f32.mrb[0].mxu0
        %6075 = vdwg.mxu0
        %v6077 = vrot.slane %v5598, 1
        %v6081 = vunpack.c.l.b16 %v6016
        %v6082 = vunpack.c.l.b16 %v6017
        %v6083 = vunpack.c.l.b16 %v6018
        %v6084 = vpack.c.b16 %v6082, %v6081
        %v6085 = vpack.c.b16 %v6083, %v6083
        %v6088 = vsel %vm4948, %v6077, 0
        %v6091 = vsel %vm1760, %v6085, 0
        %6093 = vmatprep.subr.bf16.mxu0 0
        %6094 = vmatpush1.bf16.msra.mxu0 %v6084
        %6095 = vmatprep.subr.bf16.mxu0 0
        %6096 = vmatpush1.bf16.msra.mxu0 %v6091
        %6097 = vmatprep.subr.bf16.mxu0 0
        %6098 = vmatpush1.bf16.msra.mxu0 0
        %6099 = vmatprep.subr.bf16.mxu0 0
        %6100 = vmatpush1.bf16.msra.mxu0 0
        %6101 = vmatprep.subr.bf16.mxu0 0
        %6102 = vmatpush1.bf16.msra.mxu0 0
        %6103 = vmatprep.subr.bf16.mxu0 0
        %6104 = vmatpush1.bf16.msra.mxu0 0
        %6105 = vmatprep.subr.bf16.mxu0 0
        %6106 = vmatpush1.bf16.msra.mxu0 0
        %6107 = vmatprep.subr.bf16.mxu0 0
        %6108 = vmatpush1.bf16.msra.mxu0 0
        %6109 = vmatprep.subr.bf16.mxu0 0
        %6110 = vmatpush1.bf16.msra.mxu0 0
        %6111 = vmatprep.subr.bf16.mxu0 0
        %6112 = vmatpush1.bf16.msra.mxu0 0
        %6113 = vmatprep.subr.bf16.mxu0 0
        %6114 = vmatpush1.bf16.msra.mxu0 0
        %6115 = vmatprep.subr.bf16.mxu0 0
        %6116 = vmatpush1.bf16.msra.mxu0 0
        %6117 = vmatprep.subr.bf16.mxu0 0
        %6118 = vmatpush1.bf16.msra.mxu0 0
        %6119 = vmatprep.subr.bf16.mxu0 0
        %6120 = vmatpush1.bf16.msra.mxu0 0
        %6121 = vmatprep.subr.bf16.mxu0 0
        %6122 = vmatpush1.bf16.msra.mxu0 0
        %6123 = vmatprep.subr.bf16.mxu0 0
        %6124 = vmatpush1.bf16.msra.mxu0 0
        %6125 = vmatprep.mubr.bf16.mxu0 0
        %6126 = vmatmul.mubr.bf16.gmra.mrb[0].mxu0 %v6088
        %v6127 = vpop.f32.mrb[0].mxu0
        %v6128 = vadd.f32 0.0, %v6127
        %v6129 = vpop.f32.mrb[0].mxu0
        %v6130 = vpop.f32.mrb[0].mxu0
        %v6131 = vpop.f32.mrb[0].mxu0
        %6132 = vdwg.mxu0
        %6133 = vmatprep.subr.bf16.mxu0 0
        %6134 = vmatpush1.bf16.msra.mxu0 %v6027
        %6135 = vmatprep.subr.bf16.mxu0 0
        %6136 = vmatpush1.bf16.msra.mxu0 %v6034
        %6137 = vmatprep.subr.bf16.mxu0 0
        %6138 = vmatpush1.bf16.msra.mxu0 0
        %6139 = vmatprep.subr.bf16.mxu0 0
        %6140 = vmatpush1.bf16.msra.mxu0 0
        %6141 = vmatprep.subr.bf16.mxu0 0
        %6142 = vmatpush1.bf16.msra.mxu0 0
        %6143 = vmatprep.subr.bf16.mxu0 0
        %6144 = vmatpush1.bf16.msra.mxu0 0
        %6145 = vmatprep.subr.bf16.mxu0 0
        %6146 = vmatpush1.bf16.msra.mxu0 0
        %6147 = vmatprep.subr.bf16.mxu0 0
        %6148 = vmatpush1.bf16.msra.mxu0 0
        %6149 = vmatprep.subr.bf16.mxu0 0
        %6150 = vmatpush1.bf16.msra.mxu0 0
        %6151 = vmatprep.subr.bf16.mxu0 0
        %6152 = vmatpush1.bf16.msra.mxu0 0
        %6153 = vmatprep.subr.bf16.mxu0 0
        %6154 = vmatpush1.bf16.msra.mxu0 0
        %6155 = vmatprep.subr.bf16.mxu0 0
        %6156 = vmatpush1.bf16.msra.mxu0 0
        %6157 = vmatprep.subr.bf16.mxu0 0
        %6158 = vmatpush1.bf16.msra.mxu0 0
        %6159 = vmatprep.subr.bf16.mxu0 0
        %6160 = vmatpush1.bf16.msra.mxu0 0
        %6161 = vmatprep.subr.bf16.mxu0 0
        %6162 = vmatpush1.bf16.msra.mxu0 0
        %6163 = vmatprep.subr.bf16.mxu0 0
        %6164 = vmatpush1.bf16.msra.mxu0 0
        %6165 = vmatprep.mubr.bf16.mxu0 0
        %6166 = vmatmul.mubr.bf16.gmra.mrb[0].mxu0 %v6088
        %v6167 = vpop.f32.mrb[0].mxu0
        %v6168 = vadd.f32 0.0, %v6167
        %v6169 = vpop.f32.mrb[0].mxu0
        %v6170 = vpop.f32.mrb[0].mxu0
        %v6171 = vpop.f32.mrb[0].mxu0
        %6172 = vdwg.mxu0
        %v6173 = vsub.f32 %v6071, %v6128
        %6174 = vmatprep.subr.bf16.mxu0 0
        %6175 = vmatpush1.bf16.msra.mxu0 %v6084
        %6176 = vmatprep.subr.bf16.mxu0 0
        %6177 = vmatpush1.bf16.msra.mxu0 %v6091
        %6178 = vmatprep.subr.bf16.mxu0 0
        %6179 = vmatpush1.bf16.msra.mxu0 0
        %6180 = vmatprep.subr.bf16.mxu0 0
        %6181 = vmatpush1.bf16.msra.mxu0 0
        %6182 = vmatprep.subr.bf16.mxu0 0
        %6183 = vmatpush1.bf16.msra.mxu0 0
        %6184 = vmatprep.subr.bf16.mxu0 0
        %6185 = vmatpush1.bf16.msra.mxu0 0
        %6186 = vmatprep.subr.bf16.mxu0 0
        %6187 = vmatpush1.bf16.msra.mxu0 0
        %6188 = vmatprep.subr.bf16.mxu0 0
        %6189 = vmatpush1.bf16.msra.mxu0 0
        %6190 = vmatprep.subr.bf16.mxu0 0
        %6191 = vmatpush1.bf16.msra.mxu0 0
        %6192 = vmatprep.subr.bf16.mxu0 0
        %6193 = vmatpush1.bf16.msra.mxu0 0
        %6194 = vmatprep.subr.bf16.mxu0 0
        %6195 = vmatpush1.bf16.msra.mxu0 0
        %6196 = vmatprep.subr.bf16.mxu0 0
        %6197 = vmatpush1.bf16.msra.mxu0 0
        %6198 = vmatprep.subr.bf16.mxu0 0
        %6199 = vmatpush1.bf16.msra.mxu0 0
        %6200 = vmatprep.subr.bf16.mxu0 0
        %6201 = vmatpush1.bf16.msra.mxu0 0
        %6202 = vmatprep.subr.bf16.mxu0 0
        %6203 = vmatpush1.bf16.msra.mxu0 0
        %6204 = vmatprep.subr.bf16.mxu0 0
        %6205 = vmatpush1.bf16.msra.mxu0 0
        %6206 = vmatprep.mubr.bf16.mxu0 0
        %6207 = vmatmul.mubr.bf16.gmra.mrb[0].mxu0 %v6031
        %v6208 = vpop.f32.mrb[0].mxu0
        %v6209 = vadd.f32 %v6168, %v6208
        %v6210 = vpop.f32.mrb[0].mxu0
        %v6211 = vpop.f32.mrb[0].mxu0
        %v6212 = vpop.f32.mrb[0].mxu0
        %6213 = vdwg.mxu0
        %v6214 = vadd.f32 %v6009, %v6173
        %v6215 = vadd.f32 %v6010, %v6209
        %v6216 = vld [vmem:[%s61] sm:$0x1]
        %v6218 = vlaneseq
        %v6219 = vshrl.u32 %v6218, 7
        %v6220 = vsub.s32 0, %v6219
        %v6221 = vrot.slane %v6216, %v6220
        %v6223 = vadd.f32 %v6214, %v6221
        %v6224 = vld [vmem:[%s63] sm:$0x1]
        %v6226 = vlaneseq
        %v6227 = vshrl.u32 %v6226, 7
        %v6228 = vsub.s32 0, %v6227
        %v6229 = vrot.slane %v6224, %v6228
        %v6231 = vadd.f32 %v6215, %v6229
        %v6232 = vmul.f32 %v6223, %v6223
        %v6233 = vmul.f32 %v6231, %v6231
        %v6234 = vadd.f32 %v6232, %v6233
        %v6235 = vmax.f32 %v6234, 1e-10
        %v6236 = vrsqrt.pop %v6235
        %v6237 = vmul.f32 %v6236, 0.5
        %v6238 = vsub.f32 1.0, %v6237
        %v6239 = vmax.f32 %v6238, 0.0
        %v6240 = vmul.f32 %v6223, %v6239
        %v6241 = vmul.f32 %v6231, %v6239
        %v6242 = vpack.c.bf16 %v6240, %v6240
        %v6243 = vpack.c.bf16 %v6241, %v6241
        %v6244 = vld [vmem:[%s65] sm:$0xf]
        %v6245 = vld [vmem:[%s65 + $0x4] sm:$0xf]
        %v6246 = vld [vmem:[%s67] sm:$0xf]
        %v6247 = vld [vmem:[%s67 + $0x4] sm:$0xf]
        %v6250 = vunpack.c.l.b16 %v6244
        %v6251 = vunpack.c.l.b16 %v6245
        %v6252 = vpack.c.b16 %v6251, %v6250
        %v6255 = vsel %vm3542, %v6242, 0
        %6257 = vmatprep.subr.bf16.mxu0 0
        %6258 = vmatpush1.bf16.msra.mxu0 %v6252
        %6259 = vmatprep.subr.bf16.mxu0 0
        %6260 = vmatpush1.bf16.msra.mxu0 0
        %6261 = vmatprep.subr.bf16.mxu0 0
        %6262 = vmatpush1.bf16.msra.mxu0 0
        %6263 = vmatprep.subr.bf16.mxu0 0
        %6264 = vmatpush1.bf16.msra.mxu0 0
        %6265 = vmatprep.subr.bf16.mxu0 0
        %6266 = vmatpush1.bf16.msra.mxu0 0
        %6267 = vmatprep.subr.bf16.mxu0 0
        %6268 = vmatpush1.bf16.msra.mxu0 0
        %6269 = vmatprep.subr.bf16.mxu0 0
        %6270 = vmatpush1.bf16.msra.mxu0 0
        %6271 = vmatprep.subr.bf16.mxu0 0
        %6272 = vmatpush1.bf16.msra.mxu0 0
        %6273 = vmatprep.subr.bf16.mxu0 0
        %6274 = vmatpush1.bf16.msra.mxu0 0
        %6275 = vmatprep.subr.bf16.mxu0 0
        %6276 = vmatpush1.bf16.msra.mxu0 0
        %6277 = vmatprep.subr.bf16.mxu0 0
        %6278 = vmatpush1.bf16.msra.mxu0 0
        %6279 = vmatprep.subr.bf16.mxu0 0
        %6280 = vmatpush1.bf16.msra.mxu0 0
        %6281 = vmatprep.subr.bf16.mxu0 0
        %6282 = vmatpush1.bf16.msra.mxu0 0
        %6283 = vmatprep.subr.bf16.mxu0 0
        %6284 = vmatpush1.bf16.msra.mxu0 0
        %6285 = vmatprep.subr.bf16.mxu0 0
        %6286 = vmatpush1.bf16.msra.mxu0 0
        %6287 = vmatprep.subr.bf16.mxu0 0
        %6288 = vmatpush1.bf16.msra.mxu0 0
        %6289 = vmatprep.mubr.bf16.mxu0 0
        %6290 = vmatmul.mubr.bf16.gmra.mrb[0].mxu0 %v6255
        %v6291 = vpop.f32.mrb[0].mxu0
        %v6292 = vadd.f32 0.0, %v6291
        %v6293 = vpop.f32.mrb[0].mxu0
        %v6294 = vpop.f32.mrb[0].mxu0
        %v6295 = vpop.f32.mrb[0].mxu0
        %6296 = vdwg.mxu0
        %v6299 = vunpack.c.l.b16 %v6246
        %v6300 = vunpack.c.l.b16 %v6247
        %v6301 = vpack.c.b16 %v6300, %v6299
        %v6304 = vsel %vm3542, %v6243, 0
        %6306 = vmatprep.subr.bf16.mxu0 0
        %6307 = vmatpush1.bf16.msra.mxu0 %v6301
        %6308 = vmatprep.subr.bf16.mxu0 0
        %6309 = vmatpush1.bf16.msra.mxu0 0
        %6310 = vmatprep.subr.bf16.mxu0 0
        %6311 = vmatpush1.bf16.msra.mxu0 0
        %6312 = vmatprep.subr.bf16.mxu0 0
        %6313 = vmatpush1.bf16.msra.mxu0 0
        %6314 = vmatprep.subr.bf16.mxu0 0
        %6315 = vmatpush1.bf16.msra.mxu0 0
        %6316 = vmatprep.subr.bf16.mxu0 0
        %6317 = vmatpush1.bf16.msra.mxu0 0
        %6318 = vmatprep.subr.bf16.mxu0 0
        %6319 = vmatpush1.bf16.msra.mxu0 0
        %6320 = vmatprep.subr.bf16.mxu0 0
        %6321 = vmatpush1.bf16.msra.mxu0 0
        %6322 = vmatprep.subr.bf16.mxu0 0
        %6323 = vmatpush1.bf16.msra.mxu0 0
        %6324 = vmatprep.subr.bf16.mxu0 0
        %6325 = vmatpush1.bf16.msra.mxu0 0
        %6326 = vmatprep.subr.bf16.mxu0 0
        %6327 = vmatpush1.bf16.msra.mxu0 0
        %6328 = vmatprep.subr.bf16.mxu0 0
        %6329 = vmatpush1.bf16.msra.mxu0 0
        %6330 = vmatprep.subr.bf16.mxu0 0
        %6331 = vmatpush1.bf16.msra.mxu0 0
        %6332 = vmatprep.subr.bf16.mxu0 0
        %6333 = vmatpush1.bf16.msra.mxu0 0
        %6334 = vmatprep.subr.bf16.mxu0 0
        %6335 = vmatpush1.bf16.msra.mxu0 0
        %6336 = vmatprep.subr.bf16.mxu0 0
        %6337 = vmatpush1.bf16.msra.mxu0 0
        %6338 = vmatprep.mubr.bf16.mxu0 0
        %6339 = vmatmul.mubr.bf16.gmra.mrb[0].mxu0 %v6304
        %v6340 = vpop.f32.mrb[0].mxu0
        %v6341 = vadd.f32 0.0, %v6340
        %v6342 = vpop.f32.mrb[0].mxu0
        %v6343 = vpop.f32.mrb[0].mxu0
        %v6344 = vpop.f32.mrb[0].mxu0
        %6345 = vdwg.mxu0
        %6346 = vmatprep.subr.bf16.mxu0 0
        %6347 = vmatpush1.bf16.msra.mxu0 %v6252
        %6348 = vmatprep.subr.bf16.mxu0 0
        %6349 = vmatpush1.bf16.msra.mxu0 0
        %6350 = vmatprep.subr.bf16.mxu0 0
        %6351 = vmatpush1.bf16.msra.mxu0 0
        %6352 = vmatprep.subr.bf16.mxu0 0
        %6353 = vmatpush1.bf16.msra.mxu0 0
        %6354 = vmatprep.subr.bf16.mxu0 0
        %6355 = vmatpush1.bf16.msra.mxu0 0
        %6356 = vmatprep.subr.bf16.mxu0 0
        %6357 = vmatpush1.bf16.msra.mxu0 0
        %6358 = vmatprep.subr.bf16.mxu0 0
        %6359 = vmatpush1.bf16.msra.mxu0 0
        %6360 = vmatprep.subr.bf16.mxu0 0
        %6361 = vmatpush1.bf16.msra.mxu0 0
        %6362 = vmatprep.subr.bf16.mxu0 0
        %6363 = vmatpush1.bf16.msra.mxu0 0
        %6364 = vmatprep.subr.bf16.mxu0 0
        %6365 = vmatpush1.bf16.msra.mxu0 0
        %6366 = vmatprep.subr.bf16.mxu0 0
        %6367 = vmatpush1.bf16.msra.mxu0 0
        %6368 = vmatprep.subr.bf16.mxu0 0
        %6369 = vmatpush1.bf16.msra.mxu0 0
        %6370 = vmatprep.subr.bf16.mxu0 0
        %6371 = vmatpush1.bf16.msra.mxu0 0
        %6372 = vmatprep.subr.bf16.mxu0 0
        %6373 = vmatpush1.bf16.msra.mxu0 0
        %6374 = vmatprep.subr.bf16.mxu0 0
        %6375 = vmatpush1.bf16.msra.mxu0 0
        %6376 = vmatprep.subr.bf16.mxu0 0
        %6377 = vmatpush1.bf16.msra.mxu0 0
        %6378 = vmatprep.mubr.bf16.mxu0 0
        %6379 = vmatmul.mubr.bf16.gmra.mrb[0].mxu0 %v6304
        %v6380 = vpop.f32.mrb[0].mxu0
        %v6381 = vadd.f32 0.0, %v6380
        %v6382 = vpop.f32.mrb[0].mxu0
        %v6383 = vpop.f32.mrb[0].mxu0
        %v6384 = vpop.f32.mrb[0].mxu0
        %6385 = vdwg.mxu0
        %v6386 = vsub.f32 %v6292, %v6341
        %6387 = vmatprep.subr.bf16.mxu0 0
        %6388 = vmatpush1.bf16.msra.mxu0 %v6301
        %6389 = vmatprep.subr.bf16.mxu0 0
        %6390 = vmatpush1.bf16.msra.mxu0 0
        %6391 = vmatprep.subr.bf16.mxu0 0
        %6392 = vmatpush1.bf16.msra.mxu0 0
        %6393 = vmatprep.subr.bf16.mxu0 0
        %6394 = vmatpush1.bf16.msra.mxu0 0
        %6395 = vmatprep.subr.bf16.mxu0 0
        %6396 = vmatpush1.bf16.msra.mxu0 0
        %6397 = vmatprep.subr.bf16.mxu0 0
        %6398 = vmatpush1.bf16.msra.mxu0 0
        %6399 = vmatprep.subr.bf16.mxu0 0
        %6400 = vmatpush1.bf16.msra.mxu0 0
        %6401 = vmatprep.subr.bf16.mxu0 0
        %6402 = vmatpush1.bf16.msra.mxu0 0
        %6403 = vmatprep.subr.bf16.mxu0 0
        %6404 = vmatpush1.bf16.msra.mxu0 0
        %6405 = vmatprep.subr.bf16.mxu0 0
        %6406 = vmatpush1.bf16.msra.mxu0 0
        %6407 = vmatprep.subr.bf16.mxu0 0
        %6408 = vmatpush1.bf16.msra.mxu0 0
        %6409 = vmatprep.subr.bf16.mxu0 0
        %6410 = vmatpush1.bf16.msra.mxu0 0
        %6411 = vmatprep.subr.bf16.mxu0 0
        %6412 = vmatpush1.bf16.msra.mxu0 0
        %6413 = vmatprep.subr.bf16.mxu0 0
        %6414 = vmatpush1.bf16.msra.mxu0 0
        %6415 = vmatprep.subr.bf16.mxu0 0
        %6416 = vmatpush1.bf16.msra.mxu0 0
        %6417 = vmatprep.subr.bf16.mxu0 0
        %6418 = vmatpush1.bf16.msra.mxu0 0
        %6419 = vmatprep.mubr.bf16.mxu0 0
        %6420 = vmatmul.mubr.bf16.gmra.mrb[0].mxu0 %v6255
        %v6421 = vpop.f32.mrb[0].mxu0
        %v6422 = vadd.f32 %v6381, %v6421
        %v6423 = vpop.f32.mrb[0].mxu0
        %v6424 = vpop.f32.mrb[0].mxu0
        %v6425 = vpop.f32.mrb[0].mxu0
        %6426 = vdwg.mxu0
        %v6427 = vadd.f32 %v6386, 0.0
        %v6428 = vadd.f32 %v6422, 0.0
        %s6429 = scalar_lea.vmem %s65, 8
        %v6430 = vld [vmem:[%s6429] sm:$0xf]
        %v6431 = vld [vmem:[%s6429 + $0x4] sm:$0xf]
        %s6432 = scalar_lea.vmem %s67, 8
        %v6433 = vld [vmem:[%s6432] sm:$0xf]
        %v6434 = vld [vmem:[%s6432 + $0x4] sm:$0xf]
        %v6435 = vshrl.u32 %v6242, 16
        %v6439 = vunpack.c.l.b16 %v6430
        %v6440 = vunpack.c.l.b16 %v6431
        %v6441 = vpack.c.b16 %v6440, %v6439
        %v6444 = vsel %vm3542, %v6435, 0
        %6446 = vmatprep.subr.bf16.mxu0 0
        %6447 = vmatpush1.bf16.msra.mxu0 %v6441
        %6448 = vmatprep.subr.bf16.mxu0 0
        %6449 = vmatpush1.bf16.msra.mxu0 0
        %6450 = vmatprep.subr.bf16.mxu0 0
        %6451 = vmatpush1.bf16.msra.mxu0 0
        %6452 = vmatprep.subr.bf16.mxu0 0
        %6453 = vmatpush1.bf16.msra.mxu0 0
        %6454 = vmatprep.subr.bf16.mxu0 0
        %6455 = vmatpush1.bf16.msra.mxu0 0
        %6456 = vmatprep.subr.bf16.mxu0 0
        %6457 = vmatpush1.bf16.msra.mxu0 0
        %6458 = vmatprep.subr.bf16.mxu0 0
        %6459 = vmatpush1.bf16.msra.mxu0 0
        %6460 = vmatprep.subr.bf16.mxu0 0
        %6461 = vmatpush1.bf16.msra.mxu0 0
        %6462 = vmatprep.subr.bf16.mxu0 0
        %6463 = vmatpush1.bf16.msra.mxu0 0
        %6464 = vmatprep.subr.bf16.mxu0 0
        %6465 = vmatpush1.bf16.msra.mxu0 0
        %6466 = vmatprep.subr.bf16.mxu0 0
        %6467 = vmatpush1.bf16.msra.mxu0 0
        %6468 = vmatprep.subr.bf16.mxu0 0
        %6469 = vmatpush1.bf16.msra.mxu0 0
        %6470 = vmatprep.subr.bf16.mxu0 0
        %6471 = vmatpush1.bf16.msra.mxu0 0
        %6472 = vmatprep.subr.bf16.mxu0 0
        %6473 = vmatpush1.bf16.msra.mxu0 0
        %6474 = vmatprep.subr.bf16.mxu0 0
        %6475 = vmatpush1.bf16.msra.mxu0 0
        %6476 = vmatprep.subr.bf16.mxu0 0
        %6477 = vmatpush1.bf16.msra.mxu0 0
        %6478 = vmatprep.mubr.bf16.mxu0 0
        %6479 = vmatmul.mubr.bf16.gmra.mrb[0].mxu0 %v6444
        %v6480 = vpop.f32.mrb[0].mxu0
        %v6481 = vadd.f32 0.0, %v6480
        %v6482 = vpop.f32.mrb[0].mxu0
        %v6483 = vpop.f32.mrb[0].mxu0
        %v6484 = vpop.f32.mrb[0].mxu0
        %6485 = vdwg.mxu0
        %v6486 = vshrl.u32 %v6243, 16
        %v6490 = vunpack.c.l.b16 %v6433
        %v6491 = vunpack.c.l.b16 %v6434
        %v6492 = vpack.c.b16 %v6491, %v6490
        %v6495 = vsel %vm3542, %v6486, 0
        %6497 = vmatprep.subr.bf16.mxu0 0
        %6498 = vmatpush1.bf16.msra.mxu0 %v6492
        %6499 = vmatprep.subr.bf16.mxu0 0
        %6500 = vmatpush1.bf16.msra.mxu0 0
        %6501 = vmatprep.subr.bf16.mxu0 0
        %6502 = vmatpush1.bf16.msra.mxu0 0
        %6503 = vmatprep.subr.bf16.mxu0 0
        %6504 = vmatpush1.bf16.msra.mxu0 0
        %6505 = vmatprep.subr.bf16.mxu0 0
        %6506 = vmatpush1.bf16.msra.mxu0 0
        %6507 = vmatprep.subr.bf16.mxu0 0
        %6508 = vmatpush1.bf16.msra.mxu0 0
        %6509 = vmatprep.subr.bf16.mxu0 0
        %6510 = vmatpush1.bf16.msra.mxu0 0
        %6511 = vmatprep.subr.bf16.mxu0 0
        %6512 = vmatpush1.bf16.msra.mxu0 0
        %6513 = vmatprep.subr.bf16.mxu0 0
        %6514 = vmatpush1.bf16.msra.mxu0 0
        %6515 = vmatprep.subr.bf16.mxu0 0
        %6516 = vmatpush1.bf16.msra.mxu0 0
        %6517 = vmatprep.subr.bf16.mxu0 0
        %6518 = vmatpush1.bf16.msra.mxu0 0
        %6519 = vmatprep.subr.bf16.mxu0 0
        %6520 = vmatpush1.bf16.msra.mxu0 0
        %6521 = vmatprep.subr.bf16.mxu0 0
        %6522 = vmatpush1.bf16.msra.mxu0 0
        %6523 = vmatprep.subr.bf16.mxu0 0
        %6524 = vmatpush1.bf16.msra.mxu0 0
        %6525 = vmatprep.subr.bf16.mxu0 0
        %6526 = vmatpush1.bf16.msra.mxu0 0
        %6527 = vmatprep.subr.bf16.mxu0 0
        %6528 = vmatpush1.bf16.msra.mxu0 0
        %6529 = vmatprep.mubr.bf16.mxu0 0
        %6530 = vmatmul.mubr.bf16.gmra.mrb[0].mxu0 %v6495
        %v6531 = vpop.f32.mrb[0].mxu0
        %v6532 = vadd.f32 0.0, %v6531
        %v6533 = vpop.f32.mrb[0].mxu0
        %v6534 = vpop.f32.mrb[0].mxu0
        %v6535 = vpop.f32.mrb[0].mxu0
        %6536 = vdwg.mxu0
        %6537 = vmatprep.subr.bf16.mxu0 0
        %6538 = vmatpush1.bf16.msra.mxu0 %v6441
        %6539 = vmatprep.subr.bf16.mxu0 0
        %6540 = vmatpush1.bf16.msra.mxu0 0
        %6541 = vmatprep.subr.bf16.mxu0 0
        %6542 = vmatpush1.bf16.msra.mxu0 0
        %6543 = vmatprep.subr.bf16.mxu0 0
        %6544 = vmatpush1.bf16.msra.mxu0 0
        %6545 = vmatprep.subr.bf16.mxu0 0
        %6546 = vmatpush1.bf16.msra.mxu0 0
        %6547 = vmatprep.subr.bf16.mxu0 0
        %6548 = vmatpush1.bf16.msra.mxu0 0
        %6549 = vmatprep.subr.bf16.mxu0 0
        %6550 = vmatpush1.bf16.msra.mxu0 0
        %6551 = vmatprep.subr.bf16.mxu0 0
        %6552 = vmatpush1.bf16.msra.mxu0 0
        %6553 = vmatprep.subr.bf16.mxu0 0
        %6554 = vmatpush1.bf16.msra.mxu0 0
        %6555 = vmatprep.subr.bf16.mxu0 0
        %6556 = vmatpush1.bf16.msra.mxu0 0
        %6557 = vmatprep.subr.bf16.mxu0 0
        %6558 = vmatpush1.bf16.msra.mxu0 0
        %6559 = vmatprep.subr.bf16.mxu0 0
        %6560 = vmatpush1.bf16.msra.mxu0 0
        %6561 = vmatprep.subr.bf16.mxu0 0
        %6562 = vmatpush1.bf16.msra.mxu0 0
        %6563 = vmatprep.subr.bf16.mxu0 0
        %6564 = vmatpush1.bf16.msra.mxu0 0
        %6565 = vmatprep.subr.bf16.mxu0 0
        %6566 = vmatpush1.bf16.msra.mxu0 0
        %6567 = vmatprep.subr.bf16.mxu0 0
        %6568 = vmatpush1.bf16.msra.mxu0 0
        %6569 = vmatprep.mubr.bf16.mxu0 0
        %6570 = vmatmul.mubr.bf16.gmra.mrb[0].mxu0 %v6495
        %v6571 = vpop.f32.mrb[0].mxu0
        %v6572 = vadd.f32 0.0, %v6571
        %v6573 = vpop.f32.mrb[0].mxu0
        %v6574 = vpop.f32.mrb[0].mxu0
        %v6575 = vpop.f32.mrb[0].mxu0
        %6576 = vdwg.mxu0
        %v6577 = vsub.f32 %v6481, %v6532
        %6578 = vmatprep.subr.bf16.mxu0 0
        %6579 = vmatpush1.bf16.msra.mxu0 %v6492
        %6580 = vmatprep.subr.bf16.mxu0 0
        %6581 = vmatpush1.bf16.msra.mxu0 0
        %6582 = vmatprep.subr.bf16.mxu0 0
        %6583 = vmatpush1.bf16.msra.mxu0 0
        %6584 = vmatprep.subr.bf16.mxu0 0
        %6585 = vmatpush1.bf16.msra.mxu0 0
        %6586 = vmatprep.subr.bf16.mxu0 0
        %6587 = vmatpush1.bf16.msra.mxu0 0
        %6588 = vmatprep.subr.bf16.mxu0 0
        %6589 = vmatpush1.bf16.msra.mxu0 0
        %6590 = vmatprep.subr.bf16.mxu0 0
        %6591 = vmatpush1.bf16.msra.mxu0 0
        %6592 = vmatprep.subr.bf16.mxu0 0
        %6593 = vmatpush1.bf16.msra.mxu0 0
        %6594 = vmatprep.subr.bf16.mxu0 0
        %6595 = vmatpush1.bf16.msra.mxu0 0
        %6596 = vmatprep.subr.bf16.mxu0 0
        %6597 = vmatpush1.bf16.msra.mxu0 0
        %6598 = vmatprep.subr.bf16.mxu0 0
        %6599 = vmatpush1.bf16.msra.mxu0 0
        %6600 = vmatprep.subr.bf16.mxu0 0
        %6601 = vmatpush1.bf16.msra.mxu0 0
        %6602 = vmatprep.subr.bf16.mxu0 0
        %6603 = vmatpush1.bf16.msra.mxu0 0
        %6604 = vmatprep.subr.bf16.mxu0 0
        %6605 = vmatpush1.bf16.msra.mxu0 0
        %6606 = vmatprep.subr.bf16.mxu0 0
        %6607 = vmatpush1.bf16.msra.mxu0 0
        %6608 = vmatprep.subr.bf16.mxu0 0
        %6609 = vmatpush1.bf16.msra.mxu0 0
        %6610 = vmatprep.mubr.bf16.mxu0 0
        %6611 = vmatmul.mubr.bf16.gmra.mrb[0].mxu0 %v6444
        %v6612 = vpop.f32.mrb[0].mxu0
        %v6613 = vadd.f32 %v6572, %v6612
        %v6614 = vpop.f32.mrb[0].mxu0
        %v6615 = vpop.f32.mrb[0].mxu0
        %v6616 = vpop.f32.mrb[0].mxu0
        %6617 = vdwg.mxu0
        %v6618 = vadd.f32 %v6427, %v6577
        %v6619 = vadd.f32 %v6428, %v6613
        %v6620 = vld [vmem:[%s69] sm:$0x1]
        %v6621 = vadd.f32 %v6618, %v6620
        %v6622 = vld [vmem:[%s71] sm:$0x1]
        %v6623 = vadd.f32 %v6619, %v6622
        %v6624 = vmul.f32 %v6621, %v6621
        %v6625 = vmul.f32 %v6623, %v6623
        %v6626 = vadd.f32 %v6624, %v6625
        %v6627 = vmax.f32 %v6626, 1e-10
        %v6628 = vrsqrt.pop %v6627
        %v6629 = vmul.f32 %v6628, 0.5
        %v6630 = vsub.f32 1.0, %v6629
        %v6631 = vmax.f32 %v6630, 0.0
        %v6632 = vmul.f32 %v6621, %v6631
        %v6633 = vmul.f32 %v6623, %v6631
        %v6634 = vpack.c.bf16 %v6632, %v6632
        %v6635 = vpack.c.bf16 %v6633, %v6633
        %v6636 = vld [vmem:[%s73] sm:$0xf]
        %v6637 = vld [vmem:[%s73 + $0x4] sm:$0xf]
        %v6638 = vld [vmem:[%s73 + $0x8] sm:$0xf]
        %v6639 = vld [vmem:[%s73 + $0xc] sm:$0xf]
        %v6640 = vld [vmem:[%s75] sm:$0xf]
        %v6641 = vld [vmem:[%s75 + $0x4] sm:$0xf]
        %v6642 = vld [vmem:[%s75 + $0x8] sm:$0xf]
        %v6643 = vld [vmem:[%s75 + $0xc] sm:$0xf]
        %v6648 = vunpack.c.l.b16 %v6636
        %v6649 = vunpack.c.l.b16 %v6637
        %v6650 = vunpack.c.l.b16 %v6638
        %v6651 = vunpack.c.l.b16 %v6639
        %v6652 = vpack.c.b16 %v6649, %v6648
        %v6653 = vpack.c.b16 %v6651, %v6650
        %vm6656 = vcmask 261120
        %v6658 = vsel %vm6656, %v6634, 0
        %6660 = vmatprep.subr.bf16.mxu0 0
        %6661 = vmatpush1.bf16.msra.mxu0 %v6652
        %6662 = vmatprep.subr.bf16.mxu0 0
        %6663 = vmatpush1.bf16.msra.mxu0 %v6653
        %6664 = vmatprep.subr.bf16.mxu0 0
        %6665 = vmatpush1.bf16.msra.mxu0 0
        %6666 = vmatprep.subr.bf16.mxu0 0
        %6667 = vmatpush1.bf16.msra.mxu0 0
        %6668 = vmatprep.subr.bf16.mxu0 0
        %6669 = vmatpush1.bf16.msra.mxu0 0
        %6670 = vmatprep.subr.bf16.mxu0 0
        %6671 = vmatpush1.bf16.msra.mxu0 0
        %6672 = vmatprep.subr.bf16.mxu0 0
        %6673 = vmatpush1.bf16.msra.mxu0 0
        %6674 = vmatprep.subr.bf16.mxu0 0
        %6675 = vmatpush1.bf16.msra.mxu0 0
        %6676 = vmatprep.subr.bf16.mxu0 0
        %6677 = vmatpush1.bf16.msra.mxu0 0
        %6678 = vmatprep.subr.bf16.mxu0 0
        %6679 = vmatpush1.bf16.msra.mxu0 0
        %6680 = vmatprep.subr.bf16.mxu0 0
        %6681 = vmatpush1.bf16.msra.mxu0 0
        %6682 = vmatprep.subr.bf16.mxu0 0
        %6683 = vmatpush1.bf16.msra.mxu0 0
        %6684 = vmatprep.subr.bf16.mxu0 0
        %6685 = vmatpush1.bf16.msra.mxu0 0
        %6686 = vmatprep.subr.bf16.mxu0 0
        %6687 = vmatpush1.bf16.msra.mxu0 0
        %6688 = vmatprep.subr.bf16.mxu0 0
        %6689 = vmatpush1.bf16.msra.mxu0 0
        %6690 = vmatprep.subr.bf16.mxu0 0
        %6691 = vmatpush1.bf16.msra.mxu0 0
        %6692 = vmatprep.mubr.bf16.mxu0 0
        %6693 = vmatmul.mubr.bf16.gmra.mrb[0].mxu0 %v6658
        %v6694 = vpop.f32.mrb[0].mxu0
        %v6695 = vadd.f32 0.0, %v6694
        %v6696 = vpop.f32.mrb[0].mxu0
        %v6697 = vpop.f32.mrb[0].mxu0
        %v6698 = vpop.f32.mrb[0].mxu0
        %6699 = vdwg.mxu0
        %v6704 = vunpack.c.l.b16 %v6640
        %v6705 = vunpack.c.l.b16 %v6641
        %v6706 = vunpack.c.l.b16 %v6642
        %v6707 = vunpack.c.l.b16 %v6643
        %v6708 = vpack.c.b16 %v6705, %v6704
        %v6709 = vpack.c.b16 %v6707, %v6706
        %v6713 = vsel %vm6656, %v6635, 0
        %6715 = vmatprep.subr.bf16.mxu0 0
        %6716 = vmatpush1.bf16.msra.mxu0 %v6708
        %6717 = vmatprep.subr.bf16.mxu0 0
        %6718 = vmatpush1.bf16.msra.mxu0 %v6709
        %6719 = vmatprep.subr.bf16.mxu0 0
        %6720 = vmatpush1.bf16.msra.mxu0 0
        %6721 = vmatprep.subr.bf16.mxu0 0
        %6722 = vmatpush1.bf16.msra.mxu0 0
        %6723 = vmatprep.subr.bf16.mxu0 0
        %6724 = vmatpush1.bf16.msra.mxu0 0
        %6725 = vmatprep.subr.bf16.mxu0 0
        %6726 = vmatpush1.bf16.msra.mxu0 0
        %6727 = vmatprep.subr.bf16.mxu0 0
        %6728 = vmatpush1.bf16.msra.mxu0 0
        %6729 = vmatprep.subr.bf16.mxu0 0
        %6730 = vmatpush1.bf16.msra.mxu0 0
        %6731 = vmatprep.subr.bf16.mxu0 0
        %6732 = vmatpush1.bf16.msra.mxu0 0
        %6733 = vmatprep.subr.bf16.mxu0 0
        %6734 = vmatpush1.bf16.msra.mxu0 0
        %6735 = vmatprep.subr.bf16.mxu0 0
        %6736 = vmatpush1.bf16.msra.mxu0 0
        %6737 = vmatprep.subr.bf16.mxu0 0
        %6738 = vmatpush1.bf16.msra.mxu0 0
        %6739 = vmatprep.subr.bf16.mxu0 0
        %6740 = vmatpush1.bf16.msra.mxu0 0
        %6741 = vmatprep.subr.bf16.mxu0 0
        %6742 = vmatpush1.bf16.msra.mxu0 0
        %6743 = vmatprep.subr.bf16.mxu0 0
        %6744 = vmatpush1.bf16.msra.mxu0 0
        %6745 = vmatprep.subr.bf16.mxu0 0
        %6746 = vmatpush1.bf16.msra.mxu0 0
        %6747 = vmatprep.mubr.bf16.mxu0 0
        %6748 = vmatmul.mubr.bf16.gmra.mrb[0].mxu0 %v6713
        %v6749 = vpop.f32.mrb[0].mxu0
        %v6750 = vadd.f32 0.0, %v6749
        %v6751 = vpop.f32.mrb[0].mxu0
        %v6752 = vpop.f32.mrb[0].mxu0
        %v6753 = vpop.f32.mrb[0].mxu0
        %6754 = vdwg.mxu0
        %6755 = vmatprep.subr.bf16.mxu0 0
        %6756 = vmatpush1.bf16.msra.mxu0 %v6652
        %6757 = vmatprep.subr.bf16.mxu0 0
        %6758 = vmatpush1.bf16.msra.mxu0 %v6653
        %6759 = vmatprep.subr.bf16.mxu0 0
        %6760 = vmatpush1.bf16.msra.mxu0 0
        %6761 = vmatprep.subr.bf16.mxu0 0
        %6762 = vmatpush1.bf16.msra.mxu0 0
        %6763 = vmatprep.subr.bf16.mxu0 0
        %6764 = vmatpush1.bf16.msra.mxu0 0
        %6765 = vmatprep.subr.bf16.mxu0 0
        %6766 = vmatpush1.bf16.msra.mxu0 0
        %6767 = vmatprep.subr.bf16.mxu0 0
        %6768 = vmatpush1.bf16.msra.mxu0 0
        %6769 = vmatprep.subr.bf16.mxu0 0
        %6770 = vmatpush1.bf16.msra.mxu0 0
        %6771 = vmatprep.subr.bf16.mxu0 0
        %6772 = vmatpush1.bf16.msra.mxu0 0
        %6773 = vmatprep.subr.bf16.mxu0 0
        %6774 = vmatpush1.bf16.msra.mxu0 0
        %6775 = vmatprep.subr.bf16.mxu0 0
        %6776 = vmatpush1.bf16.msra.mxu0 0
        %6777 = vmatprep.subr.bf16.mxu0 0
        %6778 = vmatpush1.bf16.msra.mxu0 0
        %6779 = vmatprep.subr.bf16.mxu0 0
        %6780 = vmatpush1.bf16.msra.mxu0 0
        %6781 = vmatprep.subr.bf16.mxu0 0
        %6782 = vmatpush1.bf16.msra.mxu0 0
        %6783 = vmatprep.subr.bf16.mxu0 0
        %6784 = vmatpush1.bf16.msra.mxu0 0
        %6785 = vmatprep.subr.bf16.mxu0 0
        %6786 = vmatpush1.bf16.msra.mxu0 0
        %6787 = vmatprep.mubr.bf16.mxu0 0
        %6788 = vmatmul.mubr.bf16.gmra.mrb[0].mxu0 %v6713
        %v6789 = vpop.f32.mrb[0].mxu0
        %v6790 = vadd.f32 0.0, %v6789
        %v6791 = vpop.f32.mrb[0].mxu0
        %v6792 = vpop.f32.mrb[0].mxu0
        %v6793 = vpop.f32.mrb[0].mxu0
        %6794 = vdwg.mxu0
        %v6795 = vsub.f32 %v6695, %v6750
        %6796 = vmatprep.subr.bf16.mxu0 0
        %6797 = vmatpush1.bf16.msra.mxu0 %v6708
        %6798 = vmatprep.subr.bf16.mxu0 0
        %6799 = vmatpush1.bf16.msra.mxu0 %v6709
        %6800 = vmatprep.subr.bf16.mxu0 0
        %6801 = vmatpush1.bf16.msra.mxu0 0
        %6802 = vmatprep.subr.bf16.mxu0 0
        %6803 = vmatpush1.bf16.msra.mxu0 0
        %6804 = vmatprep.subr.bf16.mxu0 0
        %6805 = vmatpush1.bf16.msra.mxu0 0
        %6806 = vmatprep.subr.bf16.mxu0 0
        %6807 = vmatpush1.bf16.msra.mxu0 0
        %6808 = vmatprep.subr.bf16.mxu0 0
        %6809 = vmatpush1.bf16.msra.mxu0 0
        %6810 = vmatprep.subr.bf16.mxu0 0
        %6811 = vmatpush1.bf16.msra.mxu0 0
        %6812 = vmatprep.subr.bf16.mxu0 0
        %6813 = vmatpush1.bf16.msra.mxu0 0
        %6814 = vmatprep.subr.bf16.mxu0 0
        %6815 = vmatpush1.bf16.msra.mxu0 0
        %6816 = vmatprep.subr.bf16.mxu0 0
        %6817 = vmatpush1.bf16.msra.mxu0 0
        %6818 = vmatprep.subr.bf16.mxu0 0
        %6819 = vmatpush1.bf16.msra.mxu0 0
        %6820 = vmatprep.subr.bf16.mxu0 0
        %6821 = vmatpush1.bf16.msra.mxu0 0
        %6822 = vmatprep.subr.bf16.mxu0 0
        %6823 = vmatpush1.bf16.msra.mxu0 0
        %6824 = vmatprep.subr.bf16.mxu0 0
        %6825 = vmatpush1.bf16.msra.mxu0 0
        %6826 = vmatprep.subr.bf16.mxu0 0
        %6827 = vmatpush1.bf16.msra.mxu0 0
        %6828 = vmatprep.mubr.bf16.mxu0 0
        %6829 = vmatmul.mubr.bf16.gmra.mrb[0].mxu0 %v6658
        %v6830 = vpop.f32.mrb[0].mxu0
        %v6831 = vadd.f32 %v6790, %v6830
        %v6832 = vpop.f32.mrb[0].mxu0
        %v6833 = vpop.f32.mrb[0].mxu0
        %v6834 = vpop.f32.mrb[0].mxu0
        %6835 = vdwg.mxu0
        %v6836 = vld [vmem:[%s77] sm:$0x1]
        %v6837 = vadd.f32 %v6795, %v6836
        %v6838 = vld [vmem:[%s79] sm:$0x1]
        %v6839 = vadd.f32 %v6831, %v6838
        %v6840 = vmul.f32 %v6837, %v6837
        %v6841 = vmul.f32 %v6839, %v6839
        %v6842 = vadd.f32 %v6840, %v6841
        %v6843 = vmax.f32 %v6842, 1e-10
        %v6844 = vrsqrt.pop %v6843
        %v6845 = vmul.f32 %v6844, 0.5
        %v6846 = vsub.f32 1.0, %v6845
        %v6847 = vmax.f32 %v6846, 0.0
        %v6848 = vmul.f32 %v6837, %v6847
        %v6849 = vmul.f32 %v6839, %v6847
        %v6850 = vpack.c.bf16 %v6848, %v6848
        %v6851 = vpack.c.bf16 %v6849, %v6849
        %v6852 = vld [vmem:[%s81] sm:$0xf]
        %v6853 = vld [vmem:[%s81 + $0x4] sm:$0xf]
        %v6854 = vld [vmem:[%s81 + $0x8] sm:$0xf]
        %v6855 = vld [vmem:[%s81 + $0xc] sm:$0xf]
        %v6856 = vld [vmem:[%s83] sm:$0xf]
        %v6857 = vld [vmem:[%s83 + $0x4] sm:$0xf]
        %v6858 = vld [vmem:[%s83 + $0x8] sm:$0xf]
        %v6859 = vld [vmem:[%s83 + $0xc] sm:$0xf]
        %v6864 = vunpack.c.l.b16 %v6852
        %v6865 = vunpack.c.l.b16 %v6853
        %v6866 = vunpack.c.l.b16 %v6854
        %v6867 = vunpack.c.l.b16 %v6855
        %v6868 = vpack.c.b16 %v6865, %v6864
        %v6869 = vpack.c.b16 %v6867, %v6866
        %v6873 = vsel %vm6656, %v6850, 0
        %6875 = vmatprep.subr.bf16.mxu0 0
        %6876 = vmatpush1.bf16.msra.mxu0 %v6868
        %6877 = vmatprep.subr.bf16.mxu0 0
        %6878 = vmatpush1.bf16.msra.mxu0 %v6869
        %6879 = vmatprep.subr.bf16.mxu0 0
        %6880 = vmatpush1.bf16.msra.mxu0 0
        %6881 = vmatprep.subr.bf16.mxu0 0
        %6882 = vmatpush1.bf16.msra.mxu0 0
        %6883 = vmatprep.subr.bf16.mxu0 0
        %6884 = vmatpush1.bf16.msra.mxu0 0
        %6885 = vmatprep.subr.bf16.mxu0 0
        %6886 = vmatpush1.bf16.msra.mxu0 0
        %6887 = vmatprep.subr.bf16.mxu0 0
        %6888 = vmatpush1.bf16.msra.mxu0 0
        %6889 = vmatprep.subr.bf16.mxu0 0
        %6890 = vmatpush1.bf16.msra.mxu0 0
        %6891 = vmatprep.subr.bf16.mxu0 0
        %6892 = vmatpush1.bf16.msra.mxu0 0
        %6893 = vmatprep.subr.bf16.mxu0 0
        %6894 = vmatpush1.bf16.msra.mxu0 0
        %6895 = vmatprep.subr.bf16.mxu0 0
        %6896 = vmatpush1.bf16.msra.mxu0 0
        %6897 = vmatprep.subr.bf16.mxu0 0
        %6898 = vmatpush1.bf16.msra.mxu0 0
        %6899 = vmatprep.subr.bf16.mxu0 0
        %6900 = vmatpush1.bf16.msra.mxu0 0
        %6901 = vmatprep.subr.bf16.mxu0 0
        %6902 = vmatpush1.bf16.msra.mxu0 0
        %6903 = vmatprep.subr.bf16.mxu0 0
        %6904 = vmatpush1.bf16.msra.mxu0 0
        %6905 = vmatprep.subr.bf16.mxu0 0
        %6906 = vmatpush1.bf16.msra.mxu0 0
        %6907 = vmatprep.mubr.bf16.mxu0 0
        %6908 = vmatmul.mubr.bf16.gmra.mrb[0].mxu0 %v6873
        %v6909 = vpop.f32.mrb[0].mxu0
        %v6910 = vadd.f32 0.0, %v6909
        %v6911 = vpop.f32.mrb[0].mxu0
        %v6912 = vpop.f32.mrb[0].mxu0
        %v6913 = vpop.f32.mrb[0].mxu0
        %6914 = vdwg.mxu0
        %v6919 = vunpack.c.l.b16 %v6856
        %v6920 = vunpack.c.l.b16 %v6857
        %v6921 = vunpack.c.l.b16 %v6858
        %v6922 = vunpack.c.l.b16 %v6859
        %v6923 = vpack.c.b16 %v6920, %v6919
        %v6924 = vpack.c.b16 %v6922, %v6921
        %v6928 = vsel %vm6656, %v6851, 0
        %6930 = vmatprep.subr.bf16.mxu0 0
        %6931 = vmatpush1.bf16.msra.mxu0 %v6923
        %6932 = vmatprep.subr.bf16.mxu0 0
        %6933 = vmatpush1.bf16.msra.mxu0 %v6924
        %6934 = vmatprep.subr.bf16.mxu0 0
        %6935 = vmatpush1.bf16.msra.mxu0 0
        %6936 = vmatprep.subr.bf16.mxu0 0
        %6937 = vmatpush1.bf16.msra.mxu0 0
        %6938 = vmatprep.subr.bf16.mxu0 0
        %6939 = vmatpush1.bf16.msra.mxu0 0
        %6940 = vmatprep.subr.bf16.mxu0 0
        %6941 = vmatpush1.bf16.msra.mxu0 0
        %6942 = vmatprep.subr.bf16.mxu0 0
        %6943 = vmatpush1.bf16.msra.mxu0 0
        %6944 = vmatprep.subr.bf16.mxu0 0
        %6945 = vmatpush1.bf16.msra.mxu0 0
        %6946 = vmatprep.subr.bf16.mxu0 0
        %6947 = vmatpush1.bf16.msra.mxu0 0
        %6948 = vmatprep.subr.bf16.mxu0 0
        %6949 = vmatpush1.bf16.msra.mxu0 0
        %6950 = vmatprep.subr.bf16.mxu0 0
        %6951 = vmatpush1.bf16.msra.mxu0 0
        %6952 = vmatprep.subr.bf16.mxu0 0
        %6953 = vmatpush1.bf16.msra.mxu0 0
        %6954 = vmatprep.subr.bf16.mxu0 0
        %6955 = vmatpush1.bf16.msra.mxu0 0
        %6956 = vmatprep.subr.bf16.mxu0 0
        %6957 = vmatpush1.bf16.msra.mxu0 0
        %6958 = vmatprep.subr.bf16.mxu0 0
        %6959 = vmatpush1.bf16.msra.mxu0 0
        %6960 = vmatprep.subr.bf16.mxu0 0
        %6961 = vmatpush1.bf16.msra.mxu0 0
        %6962 = vmatprep.mubr.bf16.mxu0 0
        %6963 = vmatmul.mubr.bf16.gmra.mrb[0].mxu0 %v6928
        %v6964 = vpop.f32.mrb[0].mxu0
        %v6965 = vadd.f32 0.0, %v6964
        %v6966 = vpop.f32.mrb[0].mxu0
        %v6967 = vpop.f32.mrb[0].mxu0
        %v6968 = vpop.f32.mrb[0].mxu0
        %6969 = vdwg.mxu0
        %6970 = vmatprep.subr.bf16.mxu0 0
        %6971 = vmatpush1.bf16.msra.mxu0 %v6868
        %6972 = vmatprep.subr.bf16.mxu0 0
        %6973 = vmatpush1.bf16.msra.mxu0 %v6869
        %6974 = vmatprep.subr.bf16.mxu0 0
        %6975 = vmatpush1.bf16.msra.mxu0 0
        %6976 = vmatprep.subr.bf16.mxu0 0
        %6977 = vmatpush1.bf16.msra.mxu0 0
        %6978 = vmatprep.subr.bf16.mxu0 0
        %6979 = vmatpush1.bf16.msra.mxu0 0
        %6980 = vmatprep.subr.bf16.mxu0 0
        %6981 = vmatpush1.bf16.msra.mxu0 0
        %6982 = vmatprep.subr.bf16.mxu0 0
        %6983 = vmatpush1.bf16.msra.mxu0 0
        %6984 = vmatprep.subr.bf16.mxu0 0
        %6985 = vmatpush1.bf16.msra.mxu0 0
        %6986 = vmatprep.subr.bf16.mxu0 0
        %6987 = vmatpush1.bf16.msra.mxu0 0
        %6988 = vmatprep.subr.bf16.mxu0 0
        %6989 = vmatpush1.bf16.msra.mxu0 0
        %6990 = vmatprep.subr.bf16.mxu0 0
        %6991 = vmatpush1.bf16.msra.mxu0 0
        %6992 = vmatprep.subr.bf16.mxu0 0
        %6993 = vmatpush1.bf16.msra.mxu0 0
        %6994 = vmatprep.subr.bf16.mxu0 0
        %6995 = vmatpush1.bf16.msra.mxu0 0
        %6996 = vmatprep.subr.bf16.mxu0 0
        %6997 = vmatpush1.bf16.msra.mxu0 0
        %6998 = vmatprep.subr.bf16.mxu0 0
        %6999 = vmatpush1.bf16.msra.mxu0 0
        %7000 = vmatprep.subr.bf16.mxu0 0
        %7001 = vmatpush1.bf16.msra.mxu0 0
        %7002 = vmatprep.mubr.bf16.mxu0 0
        %7003 = vmatmul.mubr.bf16.gmra.mrb[0].mxu0 %v6928
        %v7004 = vpop.f32.mrb[0].mxu0
        %v7005 = vadd.f32 0.0, %v7004
        %v7006 = vpop.f32.mrb[0].mxu0
        %v7007 = vpop.f32.mrb[0].mxu0
        %v7008 = vpop.f32.mrb[0].mxu0
        %7009 = vdwg.mxu0
        %v7010 = vsub.f32 %v6910, %v6965
        %7011 = vmatprep.subr.bf16.mxu0 0
        %7012 = vmatpush1.bf16.msra.mxu0 %v6923
        %7013 = vmatprep.subr.bf16.mxu0 0
        %7014 = vmatpush1.bf16.msra.mxu0 %v6924
        %7015 = vmatprep.subr.bf16.mxu0 0
        %7016 = vmatpush1.bf16.msra.mxu0 0
        %7017 = vmatprep.subr.bf16.mxu0 0
        %7018 = vmatpush1.bf16.msra.mxu0 0
        %7019 = vmatprep.subr.bf16.mxu0 0
        %7020 = vmatpush1.bf16.msra.mxu0 0
        %7021 = vmatprep.subr.bf16.mxu0 0
        %7022 = vmatpush1.bf16.msra.mxu0 0
        %7023 = vmatprep.subr.bf16.mxu0 0
        %7024 = vmatpush1.bf16.msra.mxu0 0
        %7025 = vmatprep.subr.bf16.mxu0 0
        %7026 = vmatpush1.bf16.msra.mxu0 0
        %7027 = vmatprep.subr.bf16.mxu0 0
        %7028 = vmatpush1.bf16.msra.mxu0 0
        %7029 = vmatprep.subr.bf16.mxu0 0
        %7030 = vmatpush1.bf16.msra.mxu0 0
        %7031 = vmatprep.subr.bf16.mxu0 0
        %7032 = vmatpush1.bf16.msra.mxu0 0
        %7033 = vmatprep.subr.bf16.mxu0 0
        %7034 = vmatpush1.bf16.msra.mxu0 0
        %7035 = vmatprep.subr.bf16.mxu0 0
        %7036 = vmatpush1.bf16.msra.mxu0 0
        %7037 = vmatprep.subr.bf16.mxu0 0
        %7038 = vmatpush1.bf16.msra.mxu0 0
        %7039 = vmatprep.subr.bf16.mxu0 0
        %7040 = vmatpush1.bf16.msra.mxu0 0
        %7041 = vmatprep.subr.bf16.mxu0 0
        %7042 = vmatpush1.bf16.msra.mxu0 0
        %7043 = vmatprep.mubr.bf16.mxu0 0
        %7044 = vmatmul.mubr.bf16.gmra.mrb[0].mxu0 %v6873
        %v7045 = vpop.f32.mrb[0].mxu0
        %v7046 = vadd.f32 %v7005, %v7045
        %v7047 = vpop.f32.mrb[0].mxu0
        %v7048 = vpop.f32.mrb[0].mxu0
        %v7049 = vpop.f32.mrb[0].mxu0
        %7050 = vdwg.mxu0
        %v7051 = vld [vmem:[#allocation2] sm:$0x1]
        %v7052 = vadd.f32 %v7010, %v7051
        %v7053 = vld [vmem:[#allocation5] sm:$0x1]
        %v7054 = vadd.f32 %v7046, %v7053
        %7055 = vst [vmem:[%s1387] sm:$0x1] %v7052
        %7056 = vst [vmem:[%s1393] sm:$0x1] %v7054
        %s7057 = sand.u32 %s1053, 1
        %s7058 = scalar_lea.sflag [#allocation4], %s7057
        %s7059 = sand.u32 %s1053, 1
        %s7060 = scalar_lea.vmem [#allocation7], %s7059
        %s7061 = sand.u32 %s1079, 1
        %s7062 = scalar_lea.sflag [#allocation9], %s7061
        %s7063 = sand.u32 %s1079, 1
        %s7064 = scalar_lea.vmem [#allocation8], %s7063
        // Predicated region
        $region205: #{alexnet_complex_forward.1} parent=195 // pred_check
          %p7065 = pneg %p1063
        $region206: #{alexnet_complex_forward.1} parent=195 // pred_check_branch
          %7067 = sbr.rel (%p7065) target = $region208
        $region207: #{alexnet_complex_forward.1} parent=195 // pred_region
          %s7069 = ssub.s32 16, 16
          %7070 = vsyncadd %s7058, %s7069
          %s7071 = smul.addr %s111, 16
          %s7072 = scalar_lea.hbm %s89, %s7071
          %s7074 = sshll.u32 %s7060, 4
          %s7075 = int_to_ptr.vmem [resolvable:$true] %s7074
          %7077 = dma.vmem_to_hbm [thread:$0]  %s7075, 16, %s7072, %s7058
        $region208: #{alexnet_complex_forward.1} parent=195 // pred_fallthru
          _
        // Predicated region
        $region209: #{alexnet_complex_forward.1} parent=195 // pred_check
          %p7078 = pneg %p1089
        $region210: #{alexnet_complex_forward.1} parent=195 // pred_check_branch
          %7080 = sbr.rel (%p7078) target = $region212
        $region211: #{alexnet_complex_forward.1} parent=195 // pred_region
          %s7082 = ssub.s32 16, 16
          %7083 = vsyncadd %s7062, %s7082
          %s7084 = smul.addr %s111, 16
          %s7085 = scalar_lea.hbm %s91, %s7084
          %s7087 = sshll.u32 %s7064, 4
          %s7088 = int_to_ptr.vmem [resolvable:$true] %s7087
          %7090 = dma.vmem_to_hbm [thread:$0]  %s7088, 16, %s7085, %s7062
        $region212: #{alexnet_complex_forward.1} parent=195 // pred_fallthru
          _
      $region196: #{alexnet_complex_forward.1} parent=5 // pred_fallthru
        _
      %p7091 = scmp.le.s32.totalorder 2, %s106
      // Predicated region
      $region213: #{alexnet_complex_forward.1} parent=5 // pred_check
        %p7092 = pneg %p7091
      $region214: #{alexnet_complex_forward.1} parent=5 // pred_check_branch
        %7094 = sbr.rel (%p7092) target = $region216
      $region215: #{alexnet_complex_forward.1} parent=5 // pred_region
        %s7095 = ssub.s32 %s106, 2
        // Predicated region
        $region217: #{alexnet_complex_forward.1} parent=215 // pred_check
          %p7096 = pneg %p1069
        $region218: #{alexnet_complex_forward.1} parent=215 // pred_check_branch
          %7098 = sbr.rel (%p7096) target = $region220
        $region219: #{alexnet_complex_forward.1} parent=215 // pred_region
          %s7099 = sand.u32 %s1054, 1
          %s7100 = scalar_lea.sflag [#allocation4], %s7099
          %s7101 = sand.u32 %s1054, 1
          %s7102 = scalar_lea.vmem [#allocation7], %s7101
          %7103 = dma.done %s7100, 16
        $region220: #{alexnet_complex_forward.1} parent=215 // pred_fallthru
          _
        // Predicated region
        $region221: #{alexnet_complex_forward.1} parent=215 // pred_check
          %p7104 = pneg %p1095
        $region222: #{alexnet_complex_forward.1} parent=215 // pred_check_branch
          %7106 = sbr.rel (%p7104) target = $region224
        $region223: #{alexnet_complex_forward.1} parent=215 // pred_region
          %s7107 = sand.u32 %s1080, 1
          %s7108 = scalar_lea.sflag [#allocation9], %s7107
          %s7109 = sand.u32 %s1080, 1
          %s7110 = scalar_lea.vmem [#allocation8], %s7109
          %7111 = dma.done %s7108, 16
        $region224: #{alexnet_complex_forward.1} parent=215 // pred_fallthru
          _
      $region216: #{alexnet_complex_forward.1} parent=5 // pred_fallthru
        _
    $region6: #{alexnet_complex_forward.1} parent=1 // loop_footer
      %s110 = sadd.s32 1, %s106
    $region7: #{alexnet_complex_forward.1} parent=1 // loop_footer_branch
      %105 = sbr.rel target = $region3
    $region8: #{alexnet_complex_forward.1} parent=1 // loop_exit
      _
    %7112 = vsyncpa [#allocation3], 1
    %s7113 = scalar_lea.sflag [#allocation3], 1
    %7114 = vsyncpa %s7113, 1
    %7115 = vsyncpa [#allocation6], 1
    %7116 = vsyncpa [#allocation4], 1
    %s7117 = scalar_lea.sflag [#allocation4], 1
    %7118 = vsyncpa %s7117, 1
    %7119 = vsyncpa [#allocation9], 1
    %s7120 = scalar_lea.sflag [#allocation9], 1
    %7121 = vsyncpa %s7120, 1

</llo_original>
